<compile_context>
chip_gen: v6e
topology: v6e:2x2x1
jax: 0.10.0
libtpu: 0.0.40
codegen_flags: <defaults>
</compile_context>

<pallas_src>
import jax
import jax.numpy as jnp
from jax.experimental import pallas as pl
from jax.experimental.pallas import tpu as pltpu

B = 8                # batch (rows); every extra row is ~free (weight-bound kernel)
D_HALF = 1024        # each feature branch
D_IN = 2 * D_HALF    # concat width
D_HID = 1024
N_CLS = 2
N_CLS_PAD = 128      # lane-padded width for the final projection


def mnet_kernel(f1_ref, f2_ref, w1a_ref, w1b_ref, b1_ref, w2_ref, b2_ref,
                w3_ref, b3_ref, out_ref):
    # Inputs arrive as bf16 (cast once in the wrapper); accumulate in f32 on the MXU.
    x1 = f1_ref[...]                                            # (B, 1024) bf16
    x2 = f2_ref[...]                                            # (B, 1024) bf16

    # fc1: concat(x1, x2) @ W1 + b1, W1 pre-split into its two 1024-row halves.
    h1 = (jnp.dot(x1, w1a_ref[...], preferred_element_type=jnp.float32)
          + jnp.dot(x2, w1b_ref[...], preferred_element_type=jnp.float32)
          + b1_ref[...])                                        # (B, 1024) f32
    h1 = jnp.maximum(h1, 0.0).astype(jnp.bfloat16)

    # fc2
    h2 = (jnp.dot(h1, w2_ref[...], preferred_element_type=jnp.float32)
          + b2_ref[...])                                        # (B, 1024) f32
    h2 = jnp.maximum(h2, 0.0).astype(jnp.bfloat16)

    # classification: 1024 -> 2, lane-padded to 128 (padded W3/b3 columns are zero)
    logits = (jnp.dot(h2, w3_ref[...], preferred_element_type=jnp.float32)
              + b3_ref[...])                                    # (B, 128) f32
    col = jax.lax.broadcasted_iota(jnp.int32, logits.shape, 1)
    masked = jnp.where(col < N_CLS, logits, jnp.float32(-1e30))
    m = jnp.max(masked, axis=1, keepdims=True)
    e = jnp.where(col < N_CLS, jnp.exp(masked - m), 0.0)
    s = jnp.sum(e, axis=1, keepdims=True)
    out_ref[...] = e / s      # exact divide (runs once per call; cost negligible)


def init_params(key):
    """Deterministic synthetic parameters. Weights stored (in, out), streamed as bf16."""
    k1, k2, k3, k4, k5, k6 = jax.random.split(key, 6)
    w1 = jax.random.normal(k1, (D_IN, D_HID), jnp.float32) * 0.02
    b1 = jax.random.normal(k2, (1, D_HID), jnp.float32) * 0.01
    w2 = jax.random.normal(k3, (D_HID, D_HID), jnp.float32) * 0.02
    b2 = jax.random.normal(k4, (1, D_HID), jnp.float32) * 0.01
    w3 = jax.random.normal(k5, (D_HID, N_CLS), jnp.float32) * 0.02
    b3 = jax.random.normal(k6, (1, N_CLS), jnp.float32) * 0.01
    # pad final projection to a lane-dense width (padded columns zero, masked in-kernel)
    w3_pad = jnp.zeros((D_HID, N_CLS_PAD), jnp.float32).at[:, :N_CLS].set(w3)
    b3_pad = jnp.zeros((1, N_CLS_PAD), jnp.float32).at[:, :N_CLS].set(b3)
    # TODO(synk): int8 (v5e/v6e) or fp8-e4m3 (v7x) weight quantization would halve the
    # weight stream again; kept bf16 here to stay within tolerance of the f32 module.
    return dict(
        # W1 split into the feat1 / feat2 halves (avoids a wrapper-side concat)
        w1a=w1[:D_HALF].astype(jnp.bfloat16),
        w1b=w1[D_HALF:].astype(jnp.bfloat16),
        b1=b1,
        w2=w2.astype(jnp.bfloat16),
        b2=b2,
        w3=w3_pad.astype(jnp.bfloat16),
        b3=b3_pad,
    )


def mnet_forward(feat1, feat2, params, is_training=True):
    del is_training  # same output either way, matching the PyTorch module
    f1 = feat1["fc1"].astype(jnp.bfloat16)   # cast once, outside the kernel
    f2 = feat2["fc1"].astype(jnp.bfloat16)

    cost = pl.CostEstimate(
        flops=2 * B * (D_IN * D_HID + D_HID * D_HID + D_HID * N_CLS_PAD),
        transcendentals=B * N_CLS_PAD,
        bytes_accessed=(
            (D_IN * D_HID + D_HID * D_HID + D_HID * N_CLS_PAD) * 2   # bf16 weights
            + (2 * D_HID + N_CLS_PAD) * 4                            # f32 biases
            + 2 * B * D_HALF * 2 + B * N_CLS_PAD * 4                 # activations in/out
        ),
    )

    probs_pad = pl.pallas_call(
        mnet_kernel,
        out_shape=jax.ShapeDtypeStruct((B, N_CLS_PAD), jnp.float32),
        grid_spec=pltpu.PrefetchScalarGridSpec(
            num_scalar_prefetch=0,
            grid=(1,),                                               # single straight-line step
            in_specs=[
                pl.BlockSpec((B, D_HALF), lambda j: (0, 0)),         # feat1 (bf16)
                pl.BlockSpec((B, D_HALF), lambda j: (0, 0)),         # feat2 (bf16)
                pl.BlockSpec((D_HALF, D_HID), lambda j: (0, 0)),     # W1a (contiguous 2 MiB slab)
                pl.BlockSpec((D_HALF, D_HID), lambda j: (0, 0)),     # W1b
                pl.BlockSpec((1, D_HID), lambda j: (0, 0)),          # b1
                pl.BlockSpec((D_HID, D_HID), lambda j: (0, 0)),      # W2
                pl.BlockSpec((1, D_HID), lambda j: (0, 0)),          # b2
                pl.BlockSpec((D_HID, N_CLS_PAD), lambda j: (0, 0)),  # W3 (padded)
                pl.BlockSpec((1, N_CLS_PAD), lambda j: (0, 0)),      # b3 (padded)
            ],
            out_specs=pl.BlockSpec((B, N_CLS_PAD), lambda j: (0, 0)),
        ),
        compiler_params=pltpu.CompilerParams(
            dimension_semantics=("arbitrary",),
            vmem_limit_bytes=32 << 20,      # ~13 MiB footprint; explicit so v5e default (16 MiB) isn't a wall
        ),
        cost_estimate=cost,
    )(f1, f2, params["w1a"], params["w1b"], params["b1"],
      params["w2"], params["b2"], params["w3"], params["b3"])

    # lane-dense kernel output; slice to the real 2 classes on the wrapper side
    return {"cls": probs_pad[:, :N_CLS]}


def reference_forward(feat1, feat2, params):
    """Pure-JAX reference using the same bf16 weights."""
    x1 = feat1["fc1"].astype(jnp.bfloat16)
    x2 = feat2["fc1"].astype(jnp.bfloat16)
    h1 = (jnp.dot(x1, params["w1a"], preferred_element_type=jnp.float32)
          + jnp.dot(x2, params["w1b"], preferred_element_type=jnp.float32)
          + params["b1"])
    h1 = jnp.maximum(h1, 0.0).astype(jnp.bfloat16)
    h2 = (jnp.dot(h1, params["w2"], preferred_element_type=jnp.float32)
          + params["b2"])
    h2 = jnp.maximum(h2, 0.0).astype(jnp.bfloat16)
    logits = (jnp.dot(h2, params["w3"][:, :N_CLS], preferred_element_type=jnp.float32)
              + params["b3"][:, :N_CLS])
    return jax.nn.softmax(logits, axis=1)


if __name__ == "__main__":
    key = jax.random.PRNGKey(0)
    kp, kf1, kf2 = jax.random.split(key, 3)

    params = init_params(kp)
    feat1 = {"fc1": jax.random.normal(kf1, (B, D_HALF), jnp.float32)}
    feat2 = {"fc1": jax.random.normal(kf2, (B, D_HALF), jnp.float32)}

    out = mnet_forward(feat1, feat2, params, is_training=True)
    cls = jax.block_until_ready(out["cls"])

    assert cls.shape == (B, N_CLS)
    # softmax rows sum to 1 (exact divide now)
    assert bool(jnp.allclose(jnp.sum(cls, axis=1), 1.0, atol=1e-4))
    # match the pure-JAX reference
    ref = reference_forward(feat1, feat2, params)
    assert bool(jnp.allclose(cls, ref, atol=5e-3)), "mismatch vs reference"

    print("KERNEL_OK")
</pallas_src>

<mosaic_0001>
module attributes {stable_mosaic.version = 11 : i64} {
  func.func @mnet_kernel(%arg0: i32, %arg1: memref<8x1024xbf16, #tpu.memory_space<vmem>>, %arg2: memref<8x1024xbf16, #tpu.memory_space<vmem>>, %arg3: memref<1024x1024xbf16, #tpu.memory_space<vmem>>, %arg4: memref<1024x1024xbf16, #tpu.memory_space<vmem>>, %arg5: memref<1x1024xf32, #tpu.memory_space<vmem>>, %arg6: memref<1024x1024xbf16, #tpu.memory_space<vmem>>, %arg7: memref<1x1024xf32, #tpu.memory_space<vmem>>, %arg8: memref<1024x128xbf16, #tpu.memory_space<vmem>>, %arg9: memref<1x128xf32, #tpu.memory_space<vmem>>, %arg10: memref<8x128xf32, #tpu.memory_space<vmem>>) attributes {dimension_semantics = [#tpu.dimension_semantics<arbitrary>], iteration_bounds = array<i64: 1>, scalar_prefetch = 0 : i64, scratch_operands = 0 : i64, tpu.core_type = #tpu.core_type<tc>, window_params = [{pipeline_mode = #tpu.pipeline_mode<synchronous>, transform_indices = @transform_0, window_bounds = array<i64: 8, 1024>}, {pipeline_mode = #tpu.pipeline_mode<synchronous>, transform_indices = @transform_1, window_bounds = array<i64: 8, 1024>}, {pipeline_mode = #tpu.pipeline_mode<synchronous>, transform_indices = @transform_2, window_bounds = array<i64: 1024, 1024>}, {pipeline_mode = #tpu.pipeline_mode<synchronous>, transform_indices = @transform_3, window_bounds = array<i64: 1024, 1024>}, {pipeline_mode = #tpu.pipeline_mode<synchronous>, transform_indices = @transform_4, window_bounds = array<i64: 1, 1024>}, {pipeline_mode = #tpu.pipeline_mode<synchronous>, transform_indices = @transform_5, window_bounds = array<i64: 1024, 1024>}, {pipeline_mode = #tpu.pipeline_mode<synchronous>, transform_indices = @transform_6, window_bounds = array<i64: 1, 1024>}, {pipeline_mode = #tpu.pipeline_mode<synchronous>, transform_indices = @transform_7, window_bounds = array<i64: 1024, 128>}, {pipeline_mode = #tpu.pipeline_mode<synchronous>, transform_indices = @transform_8, window_bounds = array<i64: 1, 128>}, {pipeline_mode = #tpu.pipeline_mode<synchronous>, transform_indices = @transform_9, window_bounds = array<i64: 8, 128>}]} {
    %c0 = arith.constant 0 : index
    %c0_0 = arith.constant 0 : index
    %0 = vector.load %arg1[%c0, %c0_0] : memref<8x1024xbf16, #tpu.memory_space<vmem>>, vector<8x1024xbf16>
    %c0_1 = arith.constant 0 : index
    %c0_2 = arith.constant 0 : index
    %1 = vector.load %arg2[%c0_1, %c0_2] : memref<8x1024xbf16, #tpu.memory_space<vmem>>, vector<8x1024xbf16>
    %c0_3 = arith.constant 0 : index
    %c0_4 = arith.constant 0 : index
    %2 = vector.load %arg3[%c0_3, %c0_4] : memref<1024x1024xbf16, #tpu.memory_space<vmem>>, vector<1024x1024xbf16>
    %cst = arith.constant dense<0.000000e+00> : vector<8x1024xf32>
    %3 = tpu.matmul %0, %2, %cst {dimension_numbers = #tpu.dot_dimension_numbers<[1], [0], [0], [1], [0, 0, 1, 1], [], []>} : vector<8x1024xbf16>, vector<1024x1024xbf16>, vector<8x1024xf32> -> vector<8x1024xf32>
    %c0_5 = arith.constant 0 : index
    %c0_6 = arith.constant 0 : index
    %4 = vector.load %arg4[%c0_5, %c0_6] : memref<1024x1024xbf16, #tpu.memory_space<vmem>>, vector<1024x1024xbf16>
    %cst_7 = arith.constant dense<0.000000e+00> : vector<8x1024xf32>
    %5 = tpu.matmul %1, %4, %cst_7 {dimension_numbers = #tpu.dot_dimension_numbers<[1], [0], [0], [1], [0, 0, 1, 1], [], []>} : vector<8x1024xbf16>, vector<1024x1024xbf16>, vector<8x1024xf32> -> vector<8x1024xf32>
    %6 = arith.addf %3, %5 : vector<8x1024xf32>
    %c0_8 = arith.constant 0 : index
    %c0_9 = arith.constant 0 : index
    %7 = vector.load %arg5[%c0_8, %c0_9] : memref<1x1024xf32, #tpu.memory_space<vmem>>, vector<1x1024xf32>
    %8 = vector.broadcast %7 : vector<1x1024xf32> to vector<8x1024xf32>
    %9 = arith.addf %6, %8 : vector<8x1024xf32>
    %cst_10 = arith.constant 0.000000e+00 : f32
    %10 = vector.broadcast %cst_10 : f32 to vector<8x1024xf32>
    %11 = arith.maximumf %9, %10 : vector<8x1024xf32>
    %12 = arith.truncf %11 : vector<8x1024xf32> to vector<8x1024xbf16>
    %c0_11 = arith.constant 0 : index
    %c0_12 = arith.constant 0 : index
    %13 = vector.load %arg6[%c0_11, %c0_12] : memref<1024x1024xbf16, #tpu.memory_space<vmem>>, vector<1024x1024xbf16>
    %cst_13 = arith.constant dense<0.000000e+00> : vector<8x1024xf32>
    %14 = tpu.matmul %12, %13, %cst_13 {dimension_numbers = #tpu.dot_dimension_numbers<[1], [0], [0], [1], [0, 0, 1, 1], [], []>} : vector<8x1024xbf16>, vector<1024x1024xbf16>, vector<8x1024xf32> -> vector<8x1024xf32>
    %c0_14 = arith.constant 0 : index
    %c0_15 = arith.constant 0 : index
    %15 = vector.load %arg7[%c0_14, %c0_15] : memref<1x1024xf32, #tpu.memory_space<vmem>>, vector<1x1024xf32>
    %16 = vector.broadcast %15 : vector<1x1024xf32> to vector<8x1024xf32>
    %17 = arith.addf %14, %16 : vector<8x1024xf32>
    %cst_16 = arith.constant 0.000000e+00 : f32
    %18 = vector.broadcast %cst_16 : f32 to vector<8x1024xf32>
    %19 = arith.maximumf %17, %18 : vector<8x1024xf32>
    %20 = arith.truncf %19 : vector<8x1024xf32> to vector<8x1024xbf16>
    %c0_17 = arith.constant 0 : index
    %c0_18 = arith.constant 0 : index
    %21 = vector.load %arg8[%c0_17, %c0_18] : memref<1024x128xbf16, #tpu.memory_space<vmem>>, vector<1024x128xbf16>
    %cst_19 = arith.constant dense<0.000000e+00> : vector<8x128xf32>
    %22 = tpu.matmul %20, %21, %cst_19 {dimension_numbers = #tpu.dot_dimension_numbers<[1], [0], [0], [1], [0, 0, 1, 1], [], []>} : vector<8x1024xbf16>, vector<1024x128xbf16>, vector<8x128xf32> -> vector<8x128xf32>
    %c0_20 = arith.constant 0 : index
    %c0_21 = arith.constant 0 : index
    %23 = vector.load %arg9[%c0_20, %c0_21] : memref<1x128xf32, #tpu.memory_space<vmem>>, vector<1x128xf32>
    %24 = vector.broadcast %23 : vector<1x128xf32> to vector<8x128xf32>
    %25 = arith.addf %22, %24 : vector<8x128xf32>
    %26 = tpu.iota {dimensions = array<i32: 1>} : vector<8x128xi32>
    %c2_i32 = arith.constant 2 : i32
    %27 = vector.broadcast %c2_i32 : i32 to vector<8x128xi32>
    %28 = arith.cmpi slt, %26, %27 : vector<8x128xi32>
    %cst_22 = arith.constant -1.000000e+30 : f32
    %29 = vector.broadcast %cst_22 : f32 to vector<8x128xf32>
    %30 = arith.select %28, %25, %29 : vector<8x128xi1>, vector<8x128xf32>
    %cst_23 = arith.constant dense<0xFF800000> : vector<8xf32>
    %31 = vector.multi_reduction <maximumf>, %30, %cst_23 [1] : vector<8x128xf32> to vector<8xf32>
    %32 = vector.shape_cast %31 : vector<8xf32> to vector<8x1xf32>
    %c2_i32_24 = arith.constant 2 : i32
    %33 = vector.broadcast %c2_i32_24 : i32 to vector<8x128xi32>
    %34 = arith.cmpi slt, %26, %33 : vector<8x128xi32>
    %35 = vector.broadcast %32 : vector<8x1xf32> to vector<8x128xf32>
    %36 = arith.subf %30, %35 : vector<8x128xf32>
    %37 = math.exp %36 : vector<8x128xf32>
    %cst_25 = arith.constant 0.000000e+00 : f32
    %38 = vector.broadcast %cst_25 : f32 to vector<8x128xf32>
    %39 = arith.select %34, %37, %38 : vector<8x128xi1>, vector<8x128xf32>
    %cst_26 = arith.constant dense<0.000000e+00> : vector<8xf32>
    %40 = vector.multi_reduction <add>, %39, %cst_26 [1] : vector<8x128xf32> to vector<8xf32>
    %41 = vector.shape_cast %40 : vector<8xf32> to vector<8x1xf32>
    %42 = vector.broadcast %41 : vector<8x1xf32> to vector<8x128xf32>
    %43 = arith.divf %39, %42 : vector<8x128xf32>
    %c0_27 = arith.constant 0 : index
    %c0_28 = arith.constant 0 : index
    %44 = vector.load %arg10[%c0_27, %c0_28] : memref<8x128xf32, #tpu.memory_space<vmem>>, vector<8x128xf32>
    tpu.vector_store %arg10[%c0_27, %c0_28], %43 {strides = array<i32>} : memref<8x128xf32, #tpu.memory_space<vmem>>, vector<8x128xf32>,
    return
  }
  func.func @transform_0(%arg0: i32) -> (i32, i32) {
    %c0_i32 = arith.constant 0 : i32
    %c0_i32_0 = arith.constant 0 : i32
    %c0_i32_1 = arith.constant 0 : i32
    return %c0_i32, %c0_i32_0 : i32, i32
  }
  func.func @transform_1(%arg0: i32) -> (i32, i32) {
    %c0_i32 = arith.constant 0 : i32
    %c0_i32_0 = arith.constant 0 : i32
    %c0_i32_1 = arith.constant 0 : i32
    return %c0_i32, %c0_i32_0 : i32, i32
  }
  func.func @transform_2(%arg0: i32) -> (i32, i32) {
    %c0_i32 = arith.constant 0 : i32
    %c0_i32_0 = arith.constant 0 : i32
    %c0_i32_1 = arith.constant 0 : i32
    return %c0_i32, %c0_i32_0 : i32, i32
  }
  func.func @transform_3(%arg0: i32) -> (i32, i32) {
    %c0_i32 = arith.constant 0 : i32
    %c0_i32_0 = arith.constant 0 : i32
    %c0_i32_1 = arith.constant 0 : i32
    return %c0_i32, %c0_i32_0 : i32, i32
  }
  func.func @transform_4(%arg0: i32) -> (i32, i32) {
    %c0_i32 = arith.constant 0 : i32
    %c0_i32_0 = arith.constant 0 : i32
    %c0_i32_1 = arith.constant 0 : i32
    return %c0_i32, %c0_i32_0 : i32, i32
  }
  func.func @transform_5(%arg0: i32) -> (i32, i32) {
    %c0_i32 = arith.constant 0 : i32
    %c0_i32_0 = arith.constant 0 : i32
    %c0_i32_1 = arith.constant 0 : i32
    return %c0_i32, %c0_i32_0 : i32, i32
  }
  func.func @transform_6(%arg0: i32) -> (i32, i32) {
    %c0_i32 = arith.constant 0 : i32
    %c0_i32_0 = arith.constant 0 : i32
    %c0_i32_1 = arith.constant 0 : i32
    return %c0_i32, %c0_i32_0 : i32, i32
  }
  func.func @transform_7(%arg0: i32) -> (i32, i32) {
    %c0_i32 = arith.constant 0 : i32
    %c0_i32_0 = arith.constant 0 : i32
    %c0_i32_1 = arith.constant 0 : i32
    return %c0_i32, %c0_i32_0 : i32, i32
  }
  func.func @transform_8(%arg0: i32) -> (i32, i32) {
    %c0_i32 = arith.constant 0 : i32
    %c0_i32_0 = arith.constant 0 : i32
    %c0_i32_1 = arith.constant 0 : i32
    return %c0_i32, %c0_i32_0 : i32, i32
  }
  func.func @transform_9(%arg0: i32) -> (i32, i32) {
    %c0_i32 = arith.constant 0 : i32
    %c0_i32_0 = arith.constant 0 : i32
    %c0_i32_1 = arith.constant 0 : i32
    return %c0_i32, %c0_i32_0 : i32, i32
  }
}

</mosaic_0001>

<llo_original>
// kernel: tpu_custom_call.1
$region0: #{tpu_custom_call.1}
  #allocation0 [shape = 'u32[]', space=smem, size = 0x4, offset = 0x4, fixed_abs, tag = 'smem constant byte address 0x4 - core index']
  #allocation1 [shape = 'u32[144,128]{1,0:T(1,128)}', space=vmem, size = 0x12000, scoped, tag = 'internal scratch']
  %s0 = inlined_call_operand.hbm [shape: bf16[8,1024], index: 0, kind: input, shape index: {}]
  %s1 = inlined_call_operand.hbm [shape: bf16[8,1024], index: 1, kind: input, shape index: {}]
  %s2 = inlined_call_operand.hbm [shape: bf16[1024,1024], index: 2, kind: input, shape index: {}]
  %s3 = inlined_call_operand.hbm [shape: bf16[1024,1024], index: 3, kind: input, shape index: {}]
  %s4 = inlined_call_operand.hbm [shape: f32[1,1024], index: 4, kind: input, shape index: {}]
  %s5 = inlined_call_operand.hbm [shape: bf16[1024,1024], index: 5, kind: input, shape index: {}]
  %s6 = inlined_call_operand.hbm [shape: f32[1,1024], index: 6, kind: input, shape index: {}]
  %s7 = inlined_call_operand.hbm [shape: bf16[1024,128], index: 7, kind: input, shape index: {}]
  %s8 = inlined_call_operand.hbm [shape: f32[1,128], index: 8, kind: input, shape index: {}]
  %s9 = inlined_call_operand.hbm [shape: f32[8,128], index: 9, kind: output, shape index: {}]
  %s10 = sld [smem:[#allocation0]]
  $region82: #{tpu_custom_call.1} parent=0
    _
  %s12 = ssub.s32 1, %s10
  %s13 = scalar_select 0, %s12, %s10
  $region1: #{tpu_custom_call.1} parent=0
    #allocation2 [shape = 'u8[16384]{0}', space=vmem, size = 0x4000, scoped, tag = 'input window, operand 0, single buffered']
    #allocation3 [shape = 's32[1]{0}', space=sflag, size = 0x4, scoped, tag = 'scoped memory for tpu_custom_call.1']
    #allocation4 [shape = 's32[1]{0}', space=sflag, size = 0x4, scoped, tag = 'scoped memory for tpu_custom_call.1']
    #allocation5 [shape = 'u8[16384]{0}', space=vmem, size = 0x4000, scoped, tag = 'input window, operand 1, single buffered']
    #allocation6 [shape = 's32[1]{0}', space=sflag, size = 0x4, scoped, tag = 'scoped memory for tpu_custom_call.1']
    #allocation7 [shape = 'u8[2097152]{0}', space=vmem, size = 0x200000, scoped, tag = 'input window, operand 2, single buffered']
    #allocation8 [shape = 'u8[2097152]{0}', space=vmem, size = 0x200000, scoped, tag = 'input window, operand 3, single buffered']
    #allocation9 [shape = 's32[1]{0}', space=sflag, size = 0x4, scoped, tag = 'scoped memory for tpu_custom_call.1']
    #allocation10 [shape = 'u8[4096]{0}', space=vmem, size = 0x1000, scoped, tag = 'input window, operand 4, single buffered']
    #allocation11 [shape = 'u8[2097152]{0}', space=vmem, size = 0x200000, scoped, tag = 'input window, operand 5, single buffered']
    #allocation12 [shape = 's32[1]{0}', space=sflag, size = 0x4, scoped, tag = 'scoped memory for tpu_custom_call.1']
    #allocation13 [shape = 'u8[4096]{0}', space=vmem, size = 0x1000, scoped, tag = 'input window, operand 6, single buffered']
    #allocation14 [shape = 'u8[262144]{0}', space=vmem, size = 0x40000, scoped, tag = 'input window, operand 7, single buffered']
    #allocation15 [shape = 's32[1]{0}', space=sflag, size = 0x4, scoped, tag = 'scoped memory for tpu_custom_call.1']
    #allocation16 [shape = 'u8[512]{0}', space=vmem, size = 0x400, scoped, tag = 'input window, operand 8, single buffered']
    #allocation17 [shape = 'u8[4096]{0}', space=vmem, size = 0x1000, scoped, tag = 'output window, operand 0, single buffered']
    %14 = vsyncpa [#allocation3], 0
    %15 = vsyncpa [#allocation6], 0
    %16 = vsyncpa [#allocation9], 0
    %17 = vsyncpa [#allocation12], 0
    %18 = vsyncpa [#allocation15], 0
    %19 = vsyncpa [#allocation4], 0
    // Predicated region
    $region2: #{tpu_custom_call.1} parent=1 // pred_check
      _
    $region3: #{tpu_custom_call.1} parent=1 // pred_check_branch
      %21 = sbr.rel (0) target = $region5
    $region4: #{tpu_custom_call.1} parent=1 // pred_region
      %s23 = ssub.s32 512, 512
      %24 = vsyncadd [#allocation3], %s23
      %s26 = sshll.u32 [#allocation2], 4
      %s27 = int_to_ptr.vmem [resolvable:$true] %s26
      %29 = dma.hbm_to_vmem [thread:$0]  %s0, 512, %s27, [#allocation3]
    $region5: #{tpu_custom_call.1} parent=1 // pred_fallthru
      _
    // Predicated region
    $region6: #{tpu_custom_call.1} parent=1 // pred_check
      _
    $region7: #{tpu_custom_call.1} parent=1 // pred_check_branch
      %31 = sbr.rel (0) target = $region9
    $region8: #{tpu_custom_call.1} parent=1 // pred_region
      %s33 = ssub.s32 512, 512
      %34 = vsyncadd [#allocation6], %s33
      %s36 = sshll.u32 [#allocation5], 4
      %s37 = int_to_ptr.vmem [resolvable:$true] %s36
      %39 = dma.hbm_to_vmem [thread:$0]  %s1, 512, %s37, [#allocation6]
    $region9: #{tpu_custom_call.1} parent=1 // pred_fallthru
      _
    // Predicated region
    $region10: #{tpu_custom_call.1} parent=1 // pred_check
      _
    $region11: #{tpu_custom_call.1} parent=1 // pred_check_branch
      %41 = sbr.rel (0) target = $region13
    $region12: #{tpu_custom_call.1} parent=1 // pred_region
      %s43 = ssub.s32 65536, 65536
      %44 = vsyncadd [#allocation6], %s43
      %s45 = sshll.u32 [#allocation7], 4
      %s46 = int_to_ptr.vmem [resolvable:$true] %s45
      %51 = dma.hbm_to_vmem [thread:$0]  %s2, 65536, %s46, [#allocation6], 512, 512, 32
    $region13: #{tpu_custom_call.1} parent=1 // pred_fallthru
      _
    // Predicated region
    $region14: #{tpu_custom_call.1} parent=1 // pred_check
      _
    $region15: #{tpu_custom_call.1} parent=1 // pred_check_branch
      %53 = sbr.rel (0) target = $region17
    $region16: #{tpu_custom_call.1} parent=1 // pred_region
      %s55 = ssub.s32 65536, 65536
      %56 = vsyncadd [#allocation9], %s55
      %s57 = sshll.u32 [#allocation8], 4
      %s58 = int_to_ptr.vmem [resolvable:$true] %s57
      %63 = dma.hbm_to_vmem [thread:$0]  %s3, 65536, %s58, [#allocation9], 512, 512, 32
    $region17: #{tpu_custom_call.1} parent=1 // pred_fallthru
      _
    // Predicated region
    $region18: #{tpu_custom_call.1} parent=1 // pred_check
      _
    $region19: #{tpu_custom_call.1} parent=1 // pred_check_branch
      %65 = sbr.rel (0) target = $region21
    $region20: #{tpu_custom_call.1} parent=1 // pred_region
      %s67 = ssub.s32 128, 128
      %68 = vsyncadd [#allocation9], %s67
      %s70 = sshll.u32 [#allocation10], 4
      %s71 = int_to_ptr.vmem [resolvable:$true] %s70
      %73 = dma.hbm_to_vmem [thread:$0]  %s4, 128, %s71, [#allocation9]
    $region21: #{tpu_custom_call.1} parent=1 // pred_fallthru
      _
    // Predicated region
    $region22: #{tpu_custom_call.1} parent=1 // pred_check
      _
    $region23: #{tpu_custom_call.1} parent=1 // pred_check_branch
      %75 = sbr.rel (0) target = $region25
    $region24: #{tpu_custom_call.1} parent=1 // pred_region
      %s77 = ssub.s32 65536, 65536
      %78 = vsyncadd [#allocation12], %s77
      %s79 = sshll.u32 [#allocation11], 4
      %s80 = int_to_ptr.vmem [resolvable:$true] %s79
      %85 = dma.hbm_to_vmem [thread:$0]  %s5, 65536, %s80, [#allocation12], 512, 512, 32
    $region25: #{tpu_custom_call.1} parent=1 // pred_fallthru
      _
    // Predicated region
    $region26: #{tpu_custom_call.1} parent=1 // pred_check
      _
    $region27: #{tpu_custom_call.1} parent=1 // pred_check_branch
      %87 = sbr.rel (0) target = $region29
    $region28: #{tpu_custom_call.1} parent=1 // pred_region
      %s89 = ssub.s32 128, 128
      %90 = vsyncadd [#allocation12], %s89
      %s92 = sshll.u32 [#allocation13], 4
      %s93 = int_to_ptr.vmem [resolvable:$true] %s92
      %95 = dma.hbm_to_vmem [thread:$0]  %s6, 128, %s93, [#allocation12]
    $region29: #{tpu_custom_call.1} parent=1 // pred_fallthru
      _
    // Predicated region
    $region30: #{tpu_custom_call.1} parent=1 // pred_check
      _
    $region31: #{tpu_custom_call.1} parent=1 // pred_check_branch
      %97 = sbr.rel (0) target = $region33
    $region32: #{tpu_custom_call.1} parent=1 // pred_region
      %s99 = ssub.s32 8192, 8192
      %100 = vsyncadd [#allocation15], %s99
      %s101 = sshll.u32 [#allocation14], 4
      %s102 = int_to_ptr.vmem [resolvable:$true] %s101
      %107 = dma.hbm_to_vmem [thread:$0]  %s7, 8192, %s102, [#allocation15], 64, 64, 4
    $region33: #{tpu_custom_call.1} parent=1 // pred_fallthru
      _
    // Predicated region
    $region34: #{tpu_custom_call.1} parent=1 // pred_check
      _
    $region35: #{tpu_custom_call.1} parent=1 // pred_check_branch
      %109 = sbr.rel (0) target = $region37
    $region36: #{tpu_custom_call.1} parent=1 // pred_region
      %s111 = ssub.s32 16, 16
      %112 = vsyncadd [#allocation15], %s111
      %s114 = sshll.u32 [#allocation16], 4
      %s115 = int_to_ptr.vmem [resolvable:$true] %s114
      %117 = dma.hbm_to_vmem [thread:$0]  %s8, 16, %s115, [#allocation15]
    $region37: #{tpu_custom_call.1} parent=1 // pred_fallthru
      _
    // Predicated region
    $region38: #{tpu_custom_call.1} parent=1 // pred_check
      _
    $region39: #{tpu_custom_call.1} parent=1 // pred_check_branch
      %119 = sbr.rel (0) target = $region41
    $region40: #{tpu_custom_call.1} parent=1 // pred_region
      %120 = dma.done [#allocation3], 512
    $region41: #{tpu_custom_call.1} parent=1 // pred_fallthru
      _
    // Predicated region
    $region42: #{tpu_custom_call.1} parent=1 // pred_check
      _
    $region43: #{tpu_custom_call.1} parent=1 // pred_check_branch
      %122 = sbr.rel (0) target = $region45
    $region44: #{tpu_custom_call.1} parent=1 // pred_region
      %123 = dma.done [#allocation6], 512
    $region45: #{tpu_custom_call.1} parent=1 // pred_fallthru
      _
    // Predicated region
    $region46: #{tpu_custom_call.1} parent=1 // pred_check
      _
    $region47: #{tpu_custom_call.1} parent=1 // pred_check_branch
      %125 = sbr.rel (0) target = $region49
    $region48: #{tpu_custom_call.1} parent=1 // pred_region
      %126 = dma.done [#allocation6], 65536
    $region49: #{tpu_custom_call.1} parent=1 // pred_fallthru
      _
    // Predicated region
    $region50: #{tpu_custom_call.1} parent=1 // pred_check
      _
    $region51: #{tpu_custom_call.1} parent=1 // pred_check_branch
      %128 = sbr.rel (0) target = $region53
    $region52: #{tpu_custom_call.1} parent=1 // pred_region
      %129 = dma.done [#allocation9], 65536
    $region53: #{tpu_custom_call.1} parent=1 // pred_fallthru
      _
    // Predicated region
    $region54: #{tpu_custom_call.1} parent=1 // pred_check
      _
    $region55: #{tpu_custom_call.1} parent=1 // pred_check_branch
      %131 = sbr.rel (0) target = $region57
    $region56: #{tpu_custom_call.1} parent=1 // pred_region
      %132 = dma.done [#allocation9], 128
    $region57: #{tpu_custom_call.1} parent=1 // pred_fallthru
      _
    // Predicated region
    $region58: #{tpu_custom_call.1} parent=1 // pred_check
      _
    $region59: #{tpu_custom_call.1} parent=1 // pred_check_branch
      %134 = sbr.rel (0) target = $region61
    $region60: #{tpu_custom_call.1} parent=1 // pred_region
      %135 = dma.done [#allocation12], 65536
    $region61: #{tpu_custom_call.1} parent=1 // pred_fallthru
      _
    // Predicated region
    $region62: #{tpu_custom_call.1} parent=1 // pred_check
      _
    $region63: #{tpu_custom_call.1} parent=1 // pred_check_branch
      %137 = sbr.rel (0) target = $region65
    $region64: #{tpu_custom_call.1} parent=1 // pred_region
      %138 = dma.done [#allocation12], 128
    $region65: #{tpu_custom_call.1} parent=1 // pred_fallthru
      _
    // Predicated region
    $region66: #{tpu_custom_call.1} parent=1 // pred_check
      _
    $region67: #{tpu_custom_call.1} parent=1 // pred_check_branch
      %140 = sbr.rel (0) target = $region69
    $region68: #{tpu_custom_call.1} parent=1 // pred_region
      %141 = dma.done [#allocation15], 8192
    $region69: #{tpu_custom_call.1} parent=1 // pred_fallthru
      _
    // Predicated region
    $region70: #{tpu_custom_call.1} parent=1 // pred_check
      _
    $region71: #{tpu_custom_call.1} parent=1 // pred_check_branch
      %143 = sbr.rel (0) target = $region73
    $region72: #{tpu_custom_call.1} parent=1 // pred_region
      %144 = dma.done [#allocation15], 16
    $region73: #{tpu_custom_call.1} parent=1 // pred_fallthru
      _
    %v146 = vld [vmem:[#allocation2] sm:$0xff]
    %v147 = vld [vmem:[#allocation2 + $0x8] sm:$0xff]
    %v148 = vld [vmem:[#allocation2 + $0x10] sm:$0xff]
    %v149 = vld [vmem:[#allocation2 + $0x18] sm:$0xff]
    %v150 = vld [vmem:[#allocation5] sm:$0xff]
    %v151 = vld [vmem:[#allocation5 + $0x8] sm:$0xff]
    %v152 = vld [vmem:[#allocation5 + $0x10] sm:$0xff]
    %v153 = vld [vmem:[#allocation5 + $0x18] sm:$0xff]
    %v154 = vld [vmem:[#allocation7] sm:$0xff]
    %v155 = vld [vmem:[#allocation7 + $0x8] sm:$0xff]
    %v156 = vld [vmem:[#allocation7 + $0x10] sm:$0xff]
    %v157 = vld [vmem:[#allocation7 + $0x18] sm:$0xff]
    %v158 = vld [vmem:[#allocation7 + $0x20] sm:$0xff]
    %v159 = vld [vmem:[#allocation7 + $0x28] sm:$0xff]
    %v160 = vld [vmem:[#allocation7 + $0x30] sm:$0xff]
    %v161 = vld [vmem:[#allocation7 + $0x38] sm:$0xff]
    %v162 = vld [vmem:[#allocation7 + $0x40] sm:$0xff]
    %v163 = vld [vmem:[#allocation7 + $0x48] sm:$0xff]
    %v164 = vld [vmem:[#allocation7 + $0x50] sm:$0xff]
    %v165 = vld [vmem:[#allocation7 + $0x58] sm:$0xff]
    %v166 = vld [vmem:[#allocation7 + $0x60] sm:$0xff]
    %v167 = vld [vmem:[#allocation7 + $0x68] sm:$0xff]
    %v168 = vld [vmem:[#allocation7 + $0x70] sm:$0xff]
    %v169 = vld [vmem:[#allocation7 + $0x78] sm:$0xff]
    %v170 = vld [vmem:[#allocation7 + $0x80] sm:$0xff]
    %v171 = vld [vmem:[#allocation7 + $0x88] sm:$0xff]
    %v172 = vld [vmem:[#allocation7 + $0x90] sm:$0xff]
    %v173 = vld [vmem:[#allocation7 + $0x98] sm:$0xff]
    %v174 = vld [vmem:[#allocation7 + $0xa0] sm:$0xff]
    %v175 = vld [vmem:[#allocation7 + $0xa8] sm:$0xff]
    %v176 = vld [vmem:[#allocation7 + $0xb0] sm:$0xff]
    %v177 = vld [vmem:[#allocation7 + $0xb8] sm:$0xff]
    %v178 = vld [vmem:[#allocation7 + $0xc0] sm:$0xff]
    %v179 = vld [vmem:[#allocation7 + $0xc8] sm:$0xff]
    %v180 = vld [vmem:[#allocation7 + $0xd0] sm:$0xff]
    %v181 = vld [vmem:[#allocation7 + $0xd8] sm:$0xff]
    %v182 = vld [vmem:[#allocation7 + $0xe0] sm:$0xff]
    %v183 = vld [vmem:[#allocation7 + $0xe8] sm:$0xff]
    %v184 = vld [vmem:[#allocation7 + $0xf0] sm:$0xff]
    %v185 = vld [vmem:[#allocation7 + $0xf8] sm:$0xff]
    %v186 = vld [vmem:[#allocation7 + $0x100] sm:$0xff]
    %v187 = vld [vmem:[#allocation7 + $0x108] sm:$0xff]
    %v188 = vld [vmem:[#allocation7 + $0x110] sm:$0xff]
    %v189 = vld [vmem:[#allocation7 + $0x118] sm:$0xff]
    %v190 = vld [vmem:[#allocation7 + $0x120] sm:$0xff]
    %v191 = vld [vmem:[#allocation7 + $0x128] sm:$0xff]
    %v192 = vld [vmem:[#allocation7 + $0x130] sm:$0xff]
    %v193 = vld [vmem:[#allocation7 + $0x138] sm:$0xff]
    %v194 = vld [vmem:[#allocation7 + $0x140] sm:$0xff]
    %v195 = vld [vmem:[#allocation7 + $0x148] sm:$0xff]
    %v196 = vld [vmem:[#allocation7 + $0x150] sm:$0xff]
    %v197 = vld [vmem:[#allocation7 + $0x158] sm:$0xff]
    %v198 = vld [vmem:[#allocation7 + $0x160] sm:$0xff]
    %v199 = vld [vmem:[#allocation7 + $0x168] sm:$0xff]
    %v200 = vld [vmem:[#allocation7 + $0x170] sm:$0xff]
    %v201 = vld [vmem:[#allocation7 + $0x178] sm:$0xff]
    %v202 = vld [vmem:[#allocation7 + $0x180] sm:$0xff]
    %v203 = vld [vmem:[#allocation7 + $0x188] sm:$0xff]
    %v204 = vld [vmem:[#allocation7 + $0x190] sm:$0xff]
    %v205 = vld [vmem:[#allocation7 + $0x198] sm:$0xff]
    %v206 = vld [vmem:[#allocation7 + $0x1a0] sm:$0xff]
    %v207 = vld [vmem:[#allocation7 + $0x1a8] sm:$0xff]
    %v208 = vld [vmem:[#allocation7 + $0x1b0] sm:$0xff]
    %v209 = vld [vmem:[#allocation7 + $0x1b8] sm:$0xff]
    %v210 = vld [vmem:[#allocation7 + $0x1c0] sm:$0xff]
    %v211 = vld [vmem:[#allocation7 + $0x1c8] sm:$0xff]
    %v212 = vld [vmem:[#allocation7 + $0x1d0] sm:$0xff]
    %v213 = vld [vmem:[#allocation7 + $0x1d8] sm:$0xff]
    %v214 = vld [vmem:[#allocation7 + $0x1e0] sm:$0xff]
    %v215 = vld [vmem:[#allocation7 + $0x1e8] sm:$0xff]
    %v216 = vld [vmem:[#allocation7 + $0x1f0] sm:$0xff]
    %v217 = vld [vmem:[#allocation7 + $0x1f8] sm:$0xff]
    %v218 = vld [vmem:[#allocation7 + $0x200] sm:$0xff]
    %v219 = vld [vmem:[#allocation7 + $0x208] sm:$0xff]
    %v220 = vld [vmem:[#allocation7 + $0x210] sm:$0xff]
    %v221 = vld [vmem:[#allocation7 + $0x218] sm:$0xff]
    %v222 = vld [vmem:[#allocation7 + $0x220] sm:$0xff]
    %v223 = vld [vmem:[#allocation7 + $0x228] sm:$0xff]
    %v224 = vld [vmem:[#allocation7 + $0x230] sm:$0xff]
    %v225 = vld [vmem:[#allocation7 + $0x238] sm:$0xff]
    %v226 = vld [vmem:[#allocation7 + $0x240] sm:$0xff]
    %v227 = vld [vmem:[#allocation7 + $0x248] sm:$0xff]
    %v228 = vld [vmem:[#allocation7 + $0x250] sm:$0xff]
    %v229 = vld [vmem:[#allocation7 + $0x258] sm:$0xff]
    %v230 = vld [vmem:[#allocation7 + $0x260] sm:$0xff]
    %v231 = vld [vmem:[#allocation7 + $0x268] sm:$0xff]
    %v232 = vld [vmem:[#allocation7 + $0x270] sm:$0xff]
    %v233 = vld [vmem:[#allocation7 + $0x278] sm:$0xff]
    %v234 = vld [vmem:[#allocation7 + $0x280] sm:$0xff]
    %v235 = vld [vmem:[#allocation7 + $0x288] sm:$0xff]
    %v236 = vld [vmem:[#allocation7 + $0x290] sm:$0xff]
    %v237 = vld [vmem:[#allocation7 + $0x298] sm:$0xff]
    %v238 = vld [vmem:[#allocation7 + $0x2a0] sm:$0xff]
    %v239 = vld [vmem:[#allocation7 + $0x2a8] sm:$0xff]
    %v240 = vld [vmem:[#allocation7 + $0x2b0] sm:$0xff]
    %v241 = vld [vmem:[#allocation7 + $0x2b8] sm:$0xff]
    %v242 = vld [vmem:[#allocation7 + $0x2c0] sm:$0xff]
    %v243 = vld [vmem:[#allocation7 + $0x2c8] sm:$0xff]
    %v244 = vld [vmem:[#allocation7 + $0x2d0] sm:$0xff]
    %v245 = vld [vmem:[#allocation7 + $0x2d8] sm:$0xff]
    %v246 = vld [vmem:[#allocation7 + $0x2e0] sm:$0xff]
    %v247 = vld [vmem:[#allocation7 + $0x2e8] sm:$0xff]
    %v248 = vld [vmem:[#allocation7 + $0x2f0] sm:$0xff]
    %v249 = vld [vmem:[#allocation7 + $0x2f8] sm:$0xff]
    %v250 = vld [vmem:[#allocation7 + $0x300] sm:$0xff]
    %v251 = vld [vmem:[#allocation7 + $0x308] sm:$0xff]
    %v252 = vld [vmem:[#allocation7 + $0x310] sm:$0xff]
    %v253 = vld [vmem:[#allocation7 + $0x318] sm:$0xff]
    %v254 = vld [vmem:[#allocation7 + $0x320] sm:$0xff]
    %v255 = vld [vmem:[#allocation7 + $0x328] sm:$0xff]
    %v256 = vld [vmem:[#allocation7 + $0x330] sm:$0xff]
    %v257 = vld [vmem:[#allocation7 + $0x338] sm:$0xff]
    %v258 = vld [vmem:[#allocation7 + $0x340] sm:$0xff]
    %v259 = vld [vmem:[#allocation7 + $0x348] sm:$0xff]
    %v260 = vld [vmem:[#allocation7 + $0x350] sm:$0xff]
    %v261 = vld [vmem:[#allocation7 + $0x358] sm:$0xff]
    %v262 = vld [vmem:[#allocation7 + $0x360] sm:$0xff]
    %v263 = vld [vmem:[#allocation7 + $0x368] sm:$0xff]
    %v264 = vld [vmem:[#allocation7 + $0x370] sm:$0xff]
    %v265 = vld [vmem:[#allocation7 + $0x378] sm:$0xff]
    %v266 = vld [vmem:[#allocation7 + $0x380] sm:$0xff]
    %v267 = vld [vmem:[#allocation7 + $0x388] sm:$0xff]
    %v268 = vld [vmem:[#allocation7 + $0x390] sm:$0xff]
    %v269 = vld [vmem:[#allocation7 + $0x398] sm:$0xff]
    %v270 = vld [vmem:[#allocation7 + $0x3a0] sm:$0xff]
    %v271 = vld [vmem:[#allocation7 + $0x3a8] sm:$0xff]
    %v272 = vld [vmem:[#allocation7 + $0x3b0] sm:$0xff]
    %v273 = vld [vmem:[#allocation7 + $0x3b8] sm:$0xff]
    %v274 = vld [vmem:[#allocation7 + $0x3c0] sm:$0xff]
    %v275 = vld [vmem:[#allocation7 + $0x3c8] sm:$0xff]
    %v276 = vld [vmem:[#allocation7 + $0x3d0] sm:$0xff]
    %v277 = vld [vmem:[#allocation7 + $0x3d8] sm:$0xff]
    %v278 = vld [vmem:[#allocation7 + $0x3e0] sm:$0xff]
    %v279 = vld [vmem:[#allocation7 + $0x3e8] sm:$0xff]
    %v280 = vld [vmem:[#allocation7 + $0x3f0] sm:$0xff]
    %v281 = vld [vmem:[#allocation7 + $0x3f8] sm:$0xff]
    %v282 = vld [vmem:[#allocation7 + $0x400] sm:$0xff]
    %v283 = vld [vmem:[#allocation7 + $0x408] sm:$0xff]
    %v284 = vld [vmem:[#allocation7 + $0x410] sm:$0xff]
    %v285 = vld [vmem:[#allocation7 + $0x418] sm:$0xff]
    %v286 = vld [vmem:[#allocation7 + $0x420] sm:$0xff]
    %v287 = vld [vmem:[#allocation7 + $0x428] sm:$0xff]
    %v288 = vld [vmem:[#allocation7 + $0x430] sm:$0xff]
    %v289 = vld [vmem:[#allocation7 + $0x438] sm:$0xff]
    %v290 = vld [vmem:[#allocation7 + $0x440] sm:$0xff]
    %v291 = vld [vmem:[#allocation7 + $0x448] sm:$0xff]
    %v292 = vld [vmem:[#allocation7 + $0x450] sm:$0xff]
    %v293 = vld [vmem:[#allocation7 + $0x458] sm:$0xff]
    %v294 = vld [vmem:[#allocation7 + $0x460] sm:$0xff]
    %v295 = vld [vmem:[#allocation7 + $0x468] sm:$0xff]
    %v296 = vld [vmem:[#allocation7 + $0x470] sm:$0xff]
    %v297 = vld [vmem:[#allocation7 + $0x478] sm:$0xff]
    %v298 = vld [vmem:[#allocation7 + $0x480] sm:$0xff]
    %v299 = vld [vmem:[#allocation7 + $0x488] sm:$0xff]
    %v300 = vld [vmem:[#allocation7 + $0x490] sm:$0xff]
    %v301 = vld [vmem:[#allocation7 + $0x498] sm:$0xff]
    %v302 = vld [vmem:[#allocation7 + $0x4a0] sm:$0xff]
    %v303 = vld [vmem:[#allocation7 + $0x4a8] sm:$0xff]
    %v304 = vld [vmem:[#allocation7 + $0x4b0] sm:$0xff]
    %v305 = vld [vmem:[#allocation7 + $0x4b8] sm:$0xff]
    %v306 = vld [vmem:[#allocation7 + $0x4c0] sm:$0xff]
    %v307 = vld [vmem:[#allocation7 + $0x4c8] sm:$0xff]
    %v308 = vld [vmem:[#allocation7 + $0x4d0] sm:$0xff]
    %v309 = vld [vmem:[#allocation7 + $0x4d8] sm:$0xff]
    %v310 = vld [vmem:[#allocation7 + $0x4e0] sm:$0xff]
    %v311 = vld [vmem:[#allocation7 + $0x4e8] sm:$0xff]
    %v312 = vld [vmem:[#allocation7 + $0x4f0] sm:$0xff]
    %v313 = vld [vmem:[#allocation7 + $0x4f8] sm:$0xff]
    %v314 = vld [vmem:[#allocation7 + $0x500] sm:$0xff]
    %v315 = vld [vmem:[#allocation7 + $0x508] sm:$0xff]
    %v316 = vld [vmem:[#allocation7 + $0x510] sm:$0xff]
    %v317 = vld [vmem:[#allocation7 + $0x518] sm:$0xff]
    %v318 = vld [vmem:[#allocation7 + $0x520] sm:$0xff]
    %v319 = vld [vmem:[#allocation7 + $0x528] sm:$0xff]
    %v320 = vld [vmem:[#allocation7 + $0x530] sm:$0xff]
    %v321 = vld [vmem:[#allocation7 + $0x538] sm:$0xff]
    %v322 = vld [vmem:[#allocation7 + $0x540] sm:$0xff]
    %v323 = vld [vmem:[#allocation7 + $0x548] sm:$0xff]
    %v324 = vld [vmem:[#allocation7 + $0x550] sm:$0xff]
    %v325 = vld [vmem:[#allocation7 + $0x558] sm:$0xff]
    %v326 = vld [vmem:[#allocation7 + $0x560] sm:$0xff]
    %v327 = vld [vmem:[#allocation7 + $0x568] sm:$0xff]
    %v328 = vld [vmem:[#allocation7 + $0x570] sm:$0xff]
    %v329 = vld [vmem:[#allocation7 + $0x578] sm:$0xff]
    %v330 = vld [vmem:[#allocation7 + $0x580] sm:$0xff]
    %v331 = vld [vmem:[#allocation7 + $0x588] sm:$0xff]
    %v332 = vld [vmem:[#allocation7 + $0x590] sm:$0xff]
    %v333 = vld [vmem:[#allocation7 + $0x598] sm:$0xff]
    %v334 = vld [vmem:[#allocation7 + $0x5a0] sm:$0xff]
    %v335 = vld [vmem:[#allocation7 + $0x5a8] sm:$0xff]
    %v336 = vld [vmem:[#allocation7 + $0x5b0] sm:$0xff]
    %v337 = vld [vmem:[#allocation7 + $0x5b8] sm:$0xff]
    %v338 = vld [vmem:[#allocation7 + $0x5c0] sm:$0xff]
    %v339 = vld [vmem:[#allocation7 + $0x5c8] sm:$0xff]
    %v340 = vld [vmem:[#allocation7 + $0x5d0] sm:$0xff]
    %v341 = vld [vmem:[#allocation7 + $0x5d8] sm:$0xff]
    %v342 = vld [vmem:[#allocation7 + $0x5e0] sm:$0xff]
    %v343 = vld [vmem:[#allocation7 + $0x5e8] sm:$0xff]
    %v344 = vld [vmem:[#allocation7 + $0x5f0] sm:$0xff]
    %v345 = vld [vmem:[#allocation7 + $0x5f8] sm:$0xff]
    %v346 = vld [vmem:[#allocation7 + $0x600] sm:$0xff]
    %v347 = vld [vmem:[#allocation7 + $0x608] sm:$0xff]
    %v348 = vld [vmem:[#allocation7 + $0x610] sm:$0xff]
    %v349 = vld [vmem:[#allocation7 + $0x618] sm:$0xff]
    %v350 = vld [vmem:[#allocation7 + $0x620] sm:$0xff]
    %v351 = vld [vmem:[#allocation7 + $0x628] sm:$0xff]
    %v352 = vld [vmem:[#allocation7 + $0x630] sm:$0xff]
    %v353 = vld [vmem:[#allocation7 + $0x638] sm:$0xff]
    %v354 = vld [vmem:[#allocation7 + $0x640] sm:$0xff]
    %v355 = vld [vmem:[#allocation7 + $0x648] sm:$0xff]
    %v356 = vld [vmem:[#allocation7 + $0x650] sm:$0xff]
    %v357 = vld [vmem:[#allocation7 + $0x658] sm:$0xff]
    %v358 = vld [vmem:[#allocation7 + $0x660] sm:$0xff]
    %v359 = vld [vmem:[#allocation7 + $0x668] sm:$0xff]
    %v360 = vld [vmem:[#allocation7 + $0x670] sm:$0xff]
    %v361 = vld [vmem:[#allocation7 + $0x678] sm:$0xff]
    %v362 = vld [vmem:[#allocation7 + $0x680] sm:$0xff]
    %v363 = vld [vmem:[#allocation7 + $0x688] sm:$0xff]
    %v364 = vld [vmem:[#allocation7 + $0x690] sm:$0xff]
    %v365 = vld [vmem:[#allocation7 + $0x698] sm:$0xff]
    %v366 = vld [vmem:[#allocation7 + $0x6a0] sm:$0xff]
    %v367 = vld [vmem:[#allocation7 + $0x6a8] sm:$0xff]
    %v368 = vld [vmem:[#allocation7 + $0x6b0] sm:$0xff]
    %v369 = vld [vmem:[#allocation7 + $0x6b8] sm:$0xff]
    %v370 = vld [vmem:[#allocation7 + $0x6c0] sm:$0xff]
    %v371 = vld [vmem:[#allocation7 + $0x6c8] sm:$0xff]
    %v372 = vld [vmem:[#allocation7 + $0x6d0] sm:$0xff]
    %v373 = vld [vmem:[#allocation7 + $0x6d8] sm:$0xff]
    %v374 = vld [vmem:[#allocation7 + $0x6e0] sm:$0xff]
    %v375 = vld [vmem:[#allocation7 + $0x6e8] sm:$0xff]
    %v376 = vld [vmem:[#allocation7 + $0x6f0] sm:$0xff]
    %v377 = vld [vmem:[#allocation7 + $0x6f8] sm:$0xff]
    %v378 = vld [vmem:[#allocation7 + $0x700] sm:$0xff]
    %v379 = vld [vmem:[#allocation7 + $0x708] sm:$0xff]
    %v380 = vld [vmem:[#allocation7 + $0x710] sm:$0xff]
    %v381 = vld [vmem:[#allocation7 + $0x718] sm:$0xff]
    %v382 = vld [vmem:[#allocation7 + $0x720] sm:$0xff]
    %v383 = vld [vmem:[#allocation7 + $0x728] sm:$0xff]
    %v384 = vld [vmem:[#allocation7 + $0x730] sm:$0xff]
    %v385 = vld [vmem:[#allocation7 + $0x738] sm:$0xff]
    %v386 = vld [vmem:[#allocation7 + $0x740] sm:$0xff]
    %v387 = vld [vmem:[#allocation7 + $0x748] sm:$0xff]
    %v388 = vld [vmem:[#allocation7 + $0x750] sm:$0xff]
    %v389 = vld [vmem:[#allocation7 + $0x758] sm:$0xff]
    %v390 = vld [vmem:[#allocation7 + $0x760] sm:$0xff]
    %v391 = vld [vmem:[#allocation7 + $0x768] sm:$0xff]
    %v392 = vld [vmem:[#allocation7 + $0x770] sm:$0xff]
    %v393 = vld [vmem:[#allocation7 + $0x778] sm:$0xff]
    %v394 = vld [vmem:[#allocation7 + $0x780] sm:$0xff]
    %v395 = vld [vmem:[#allocation7 + $0x788] sm:$0xff]
    %v396 = vld [vmem:[#allocation7 + $0x790] sm:$0xff]
    %v397 = vld [vmem:[#allocation7 + $0x798] sm:$0xff]
    %v398 = vld [vmem:[#allocation7 + $0x7a0] sm:$0xff]
    %v399 = vld [vmem:[#allocation7 + $0x7a8] sm:$0xff]
    %v400 = vld [vmem:[#allocation7 + $0x7b0] sm:$0xff]
    %v401 = vld [vmem:[#allocation7 + $0x7b8] sm:$0xff]
    %v402 = vld [vmem:[#allocation7 + $0x7c0] sm:$0xff]
    %v403 = vld [vmem:[#allocation7 + $0x7c8] sm:$0xff]
    %v404 = vld [vmem:[#allocation7 + $0x7d0] sm:$0xff]
    %v405 = vld [vmem:[#allocation7 + $0x7d8] sm:$0xff]
    %v406 = vld [vmem:[#allocation7 + $0x7e0] sm:$0xff]
    %v407 = vld [vmem:[#allocation7 + $0x7e8] sm:$0xff]
    %v408 = vld [vmem:[#allocation7 + $0x7f0] sm:$0xff]
    %v409 = vld [vmem:[#allocation7 + $0x7f8] sm:$0xff]
    %v410 = vld [vmem:[#allocation7 + $0x800] sm:$0xff]
    %v411 = vld [vmem:[#allocation7 + $0x808] sm:$0xff]
    %v412 = vld [vmem:[#allocation7 + $0x810] sm:$0xff]
    %v413 = vld [vmem:[#allocation7 + $0x818] sm:$0xff]
    %v414 = vld [vmem:[#allocation7 + $0x820] sm:$0xff]
    %v415 = vld [vmem:[#allocation7 + $0x828] sm:$0xff]
    %v416 = vld [vmem:[#allocation7 + $0x830] sm:$0xff]
    %v417 = vld [vmem:[#allocation7 + $0x838] sm:$0xff]
    %v418 = vld [vmem:[#allocation7 + $0x840] sm:$0xff]
    %v419 = vld [vmem:[#allocation7 + $0x848] sm:$0xff]
    %v420 = vld [vmem:[#allocation7 + $0x850] sm:$0xff]
    %v421 = vld [vmem:[#allocation7 + $0x858] sm:$0xff]
    %v422 = vld [vmem:[#allocation7 + $0x860] sm:$0xff]
    %v423 = vld [vmem:[#allocation7 + $0x868] sm:$0xff]
    %v424 = vld [vmem:[#allocation7 + $0x870] sm:$0xff]
    %v425 = vld [vmem:[#allocation7 + $0x878] sm:$0xff]
    %v426 = vld [vmem:[#allocation7 + $0x880] sm:$0xff]
    %v427 = vld [vmem:[#allocation7 + $0x888] sm:$0xff]
    %v428 = vld [vmem:[#allocation7 + $0x890] sm:$0xff]
    %v429 = vld [vmem:[#allocation7 + $0x898] sm:$0xff]
    %v430 = vld [vmem:[#allocation7 + $0x8a0] sm:$0xff]
    %v431 = vld [vmem:[#allocation7 + $0x8a8] sm:$0xff]
    %v432 = vld [vmem:[#allocation7 + $0x8b0] sm:$0xff]
    %v433 = vld [vmem:[#allocation7 + $0x8b8] sm:$0xff]
    %v434 = vld [vmem:[#allocation7 + $0x8c0] sm:$0xff]
    %v435 = vld [vmem:[#allocation7 + $0x8c8] sm:$0xff]
    %v436 = vld [vmem:[#allocation7 + $0x8d0] sm:$0xff]
    %v437 = vld [vmem:[#allocation7 + $0x8d8] sm:$0xff]
    %v438 = vld [vmem:[#allocation7 + $0x8e0] sm:$0xff]
    %v439 = vld [vmem:[#allocation7 + $0x8e8] sm:$0xff]
    %v440 = vld [vmem:[#allocation7 + $0x8f0] sm:$0xff]
    %v441 = vld [vmem:[#allocation7 + $0x8f8] sm:$0xff]
    %v442 = vld [vmem:[#allocation7 + $0x900] sm:$0xff]
    %v443 = vld [vmem:[#allocation7 + $0x908] sm:$0xff]
    %v444 = vld [vmem:[#allocation7 + $0x910] sm:$0xff]
    %v445 = vld [vmem:[#allocation7 + $0x918] sm:$0xff]
    %v446 = vld [vmem:[#allocation7 + $0x920] sm:$0xff]
    %v447 = vld [vmem:[#allocation7 + $0x928] sm:$0xff]
    %v448 = vld [vmem:[#allocation7 + $0x930] sm:$0xff]
    %v449 = vld [vmem:[#allocation7 + $0x938] sm:$0xff]
    %v450 = vld [vmem:[#allocation7 + $0x940] sm:$0xff]
    %v451 = vld [vmem:[#allocation7 + $0x948] sm:$0xff]
    %v452 = vld [vmem:[#allocation7 + $0x950] sm:$0xff]
    %v453 = vld [vmem:[#allocation7 + $0x958] sm:$0xff]
    %v454 = vld [vmem:[#allocation7 + $0x960] sm:$0xff]
    %v455 = vld [vmem:[#allocation7 + $0x968] sm:$0xff]
    %v456 = vld [vmem:[#allocation7 + $0x970] sm:$0xff]
    %v457 = vld [vmem:[#allocation7 + $0x978] sm:$0xff]
    %v458 = vld [vmem:[#allocation7 + $0x980] sm:$0xff]
    %v459 = vld [vmem:[#allocation7 + $0x988] sm:$0xff]
    %v460 = vld [vmem:[#allocation7 + $0x990] sm:$0xff]
    %v461 = vld [vmem:[#allocation7 + $0x998] sm:$0xff]
    %v462 = vld [vmem:[#allocation7 + $0x9a0] sm:$0xff]
    %v463 = vld [vmem:[#allocation7 + $0x9a8] sm:$0xff]
    %v464 = vld [vmem:[#allocation7 + $0x9b0] sm:$0xff]
    %v465 = vld [vmem:[#allocation7 + $0x9b8] sm:$0xff]
    %v466 = vld [vmem:[#allocation7 + $0x9c0] sm:$0xff]
    %v467 = vld [vmem:[#allocation7 + $0x9c8] sm:$0xff]
    %v468 = vld [vmem:[#allocation7 + $0x9d0] sm:$0xff]
    %v469 = vld [vmem:[#allocation7 + $0x9d8] sm:$0xff]
    %v470 = vld [vmem:[#allocation7 + $0x9e0] sm:$0xff]
    %v471 = vld [vmem:[#allocation7 + $0x9e8] sm:$0xff]
    %v472 = vld [vmem:[#allocation7 + $0x9f0] sm:$0xff]
    %v473 = vld [vmem:[#allocation7 + $0x9f8] sm:$0xff]
    %v474 = vld [vmem:[#allocation7 + $0xa00] sm:$0xff]
    %v475 = vld [vmem:[#allocation7 + $0xa08] sm:$0xff]
    %v476 = vld [vmem:[#allocation7 + $0xa10] sm:$0xff]
    %v477 = vld [vmem:[#allocation7 + $0xa18] sm:$0xff]
    %v478 = vld [vmem:[#allocation7 + $0xa20] sm:$0xff]
    %v479 = vld [vmem:[#allocation7 + $0xa28] sm:$0xff]
    %v480 = vld [vmem:[#allocation7 + $0xa30] sm:$0xff]
    %v481 = vld [vmem:[#allocation7 + $0xa38] sm:$0xff]
    %v482 = vld [vmem:[#allocation7 + $0xa40] sm:$0xff]
    %v483 = vld [vmem:[#allocation7 + $0xa48] sm:$0xff]
    %v484 = vld [vmem:[#allocation7 + $0xa50] sm:$0xff]
    %v485 = vld [vmem:[#allocation7 + $0xa58] sm:$0xff]
    %v486 = vld [vmem:[#allocation7 + $0xa60] sm:$0xff]
    %v487 = vld [vmem:[#allocation7 + $0xa68] sm:$0xff]
    %v488 = vld [vmem:[#allocation7 + $0xa70] sm:$0xff]
    %v489 = vld [vmem:[#allocation7 + $0xa78] sm:$0xff]
    %v490 = vld [vmem:[#allocation7 + $0xa80] sm:$0xff]
    %v491 = vld [vmem:[#allocation7 + $0xa88] sm:$0xff]
    %v492 = vld [vmem:[#allocation7 + $0xa90] sm:$0xff]
    %v493 = vld [vmem:[#allocation7 + $0xa98] sm:$0xff]
    %v494 = vld [vmem:[#allocation7 + $0xaa0] sm:$0xff]
    %v495 = vld [vmem:[#allocation7 + $0xaa8] sm:$0xff]
    %v496 = vld [vmem:[#allocation7 + $0xab0] sm:$0xff]
    %v497 = vld [vmem:[#allocation7 + $0xab8] sm:$0xff]
    %v498 = vld [vmem:[#allocation7 + $0xac0] sm:$0xff]
    %v499 = vld [vmem:[#allocation7 + $0xac8] sm:$0xff]
    %v500 = vld [vmem:[#allocation7 + $0xad0] sm:$0xff]
    %v501 = vld [vmem:[#allocation7 + $0xad8] sm:$0xff]
    %v502 = vld [vmem:[#allocation7 + $0xae0] sm:$0xff]
    %v503 = vld [vmem:[#allocation7 + $0xae8] sm:$0xff]
    %v504 = vld [vmem:[#allocation7 + $0xaf0] sm:$0xff]
    %v505 = vld [vmem:[#allocation7 + $0xaf8] sm:$0xff]
    %v506 = vld [vmem:[#allocation7 + $0xb00] sm:$0xff]
    %v507 = vld [vmem:[#allocation7 + $0xb08] sm:$0xff]
    %v508 = vld [vmem:[#allocation7 + $0xb10] sm:$0xff]
    %v509 = vld [vmem:[#allocation7 + $0xb18] sm:$0xff]
    %v510 = vld [vmem:[#allocation7 + $0xb20] sm:$0xff]
    %v511 = vld [vmem:[#allocation7 + $0xb28] sm:$0xff]
    %v512 = vld [vmem:[#allocation7 + $0xb30] sm:$0xff]
    %v513 = vld [vmem:[#allocation7 + $0xb38] sm:$0xff]
    %v514 = vld [vmem:[#allocation7 + $0xb40] sm:$0xff]
    %v515 = vld [vmem:[#allocation7 + $0xb48] sm:$0xff]
    %v516 = vld [vmem:[#allocation7 + $0xb50] sm:$0xff]
    %v517 = vld [vmem:[#allocation7 + $0xb58] sm:$0xff]
    %v518 = vld [vmem:[#allocation7 + $0xb60] sm:$0xff]
    %v519 = vld [vmem:[#allocation7 + $0xb68] sm:$0xff]
    %v520 = vld [vmem:[#allocation7 + $0xb70] sm:$0xff]
    %v521 = vld [vmem:[#allocation7 + $0xb78] sm:$0xff]
    %v522 = vld [vmem:[#allocation7 + $0xb80] sm:$0xff]
    %v523 = vld [vmem:[#allocation7 + $0xb88] sm:$0xff]
    %v524 = vld [vmem:[#allocation7 + $0xb90] sm:$0xff]
    %v525 = vld [vmem:[#allocation7 + $0xb98] sm:$0xff]
    %v526 = vld [vmem:[#allocation7 + $0xba0] sm:$0xff]
    %v527 = vld [vmem:[#allocation7 + $0xba8] sm:$0xff]
    %v528 = vld [vmem:[#allocation7 + $0xbb0] sm:$0xff]
    %v529 = vld [vmem:[#allocation7 + $0xbb8] sm:$0xff]
    %v530 = vld [vmem:[#allocation7 + $0xbc0] sm:$0xff]
    %v531 = vld [vmem:[#allocation7 + $0xbc8] sm:$0xff]
    %v532 = vld [vmem:[#allocation7 + $0xbd0] sm:$0xff]
    %v533 = vld [vmem:[#allocation7 + $0xbd8] sm:$0xff]
    %v534 = vld [vmem:[#allocation7 + $0xbe0] sm:$0xff]
    %v535 = vld [vmem:[#allocation7 + $0xbe8] sm:$0xff]
    %v536 = vld [vmem:[#allocation7 + $0xbf0] sm:$0xff]
    %v537 = vld [vmem:[#allocation7 + $0xbf8] sm:$0xff]
    %v538 = vld [vmem:[#allocation7 + $0xc00] sm:$0xff]
    %v539 = vld [vmem:[#allocation7 + $0xc08] sm:$0xff]
    %v540 = vld [vmem:[#allocation7 + $0xc10] sm:$0xff]
    %v541 = vld [vmem:[#allocation7 + $0xc18] sm:$0xff]
    %v542 = vld [vmem:[#allocation7 + $0xc20] sm:$0xff]
    %v543 = vld [vmem:[#allocation7 + $0xc28] sm:$0xff]
    %v544 = vld [vmem:[#allocation7 + $0xc30] sm:$0xff]
    %v545 = vld [vmem:[#allocation7 + $0xc38] sm:$0xff]
    %v546 = vld [vmem:[#allocation7 + $0xc40] sm:$0xff]
    %v547 = vld [vmem:[#allocation7 + $0xc48] sm:$0xff]
    %v548 = vld [vmem:[#allocation7 + $0xc50] sm:$0xff]
    %v549 = vld [vmem:[#allocation7 + $0xc58] sm:$0xff]
    %v550 = vld [vmem:[#allocation7 + $0xc60] sm:$0xff]
    %v551 = vld [vmem:[#allocation7 + $0xc68] sm:$0xff]
    %v552 = vld [vmem:[#allocation7 + $0xc70] sm:$0xff]
    %v553 = vld [vmem:[#allocation7 + $0xc78] sm:$0xff]
    %v554 = vld [vmem:[#allocation7 + $0xc80] sm:$0xff]
    %v555 = vld [vmem:[#allocation7 + $0xc88] sm:$0xff]
    %v556 = vld [vmem:[#allocation7 + $0xc90] sm:$0xff]
    %v557 = vld [vmem:[#allocation7 + $0xc98] sm:$0xff]
    %v558 = vld [vmem:[#allocation7 + $0xca0] sm:$0xff]
    %v559 = vld [vmem:[#allocation7 + $0xca8] sm:$0xff]
    %v560 = vld [vmem:[#allocation7 + $0xcb0] sm:$0xff]
    %v561 = vld [vmem:[#allocation7 + $0xcb8] sm:$0xff]
    %v562 = vld [vmem:[#allocation7 + $0xcc0] sm:$0xff]
    %v563 = vld [vmem:[#allocation7 + $0xcc8] sm:$0xff]
    %v564 = vld [vmem:[#allocation7 + $0xcd0] sm:$0xff]
    %v565 = vld [vmem:[#allocation7 + $0xcd8] sm:$0xff]
    %v566 = vld [vmem:[#allocation7 + $0xce0] sm:$0xff]
    %v567 = vld [vmem:[#allocation7 + $0xce8] sm:$0xff]
    %v568 = vld [vmem:[#allocation7 + $0xcf0] sm:$0xff]
    %v569 = vld [vmem:[#allocation7 + $0xcf8] sm:$0xff]
    %v570 = vld [vmem:[#allocation7 + $0xd00] sm:$0xff]
    %v571 = vld [vmem:[#allocation7 + $0xd08] sm:$0xff]
    %v572 = vld [vmem:[#allocation7 + $0xd10] sm:$0xff]
    %v573 = vld [vmem:[#allocation7 + $0xd18] sm:$0xff]
    %v574 = vld [vmem:[#allocation7 + $0xd20] sm:$0xff]
    %v575 = vld [vmem:[#allocation7 + $0xd28] sm:$0xff]
    %v576 = vld [vmem:[#allocation7 + $0xd30] sm:$0xff]
    %v577 = vld [vmem:[#allocation7 + $0xd38] sm:$0xff]
    %v578 = vld [vmem:[#allocation7 + $0xd40] sm:$0xff]
    %v579 = vld [vmem:[#allocation7 + $0xd48] sm:$0xff]
    %v580 = vld [vmem:[#allocation7 + $0xd50] sm:$0xff]
    %v581 = vld [vmem:[#allocation7 + $0xd58] sm:$0xff]
    %v582 = vld [vmem:[#allocation7 + $0xd60] sm:$0xff]
    %v583 = vld [vmem:[#allocation7 + $0xd68] sm:$0xff]
    %v584 = vld [vmem:[#allocation7 + $0xd70] sm:$0xff]
    %v585 = vld [vmem:[#allocation7 + $0xd78] sm:$0xff]
    %v586 = vld [vmem:[#allocation7 + $0xd80] sm:$0xff]
    %v587 = vld [vmem:[#allocation7 + $0xd88] sm:$0xff]
    %v588 = vld [vmem:[#allocation7 + $0xd90] sm:$0xff]
    %v589 = vld [vmem:[#allocation7 + $0xd98] sm:$0xff]
    %v590 = vld [vmem:[#allocation7 + $0xda0] sm:$0xff]
    %v591 = vld [vmem:[#allocation7 + $0xda8] sm:$0xff]
    %v592 = vld [vmem:[#allocation7 + $0xdb0] sm:$0xff]
    %v593 = vld [vmem:[#allocation7 + $0xdb8] sm:$0xff]
    %v594 = vld [vmem:[#allocation7 + $0xdc0] sm:$0xff]
    %v595 = vld [vmem:[#allocation7 + $0xdc8] sm:$0xff]
    %v596 = vld [vmem:[#allocation7 + $0xdd0] sm:$0xff]
    %v597 = vld [vmem:[#allocation7 + $0xdd8] sm:$0xff]
    %v598 = vld [vmem:[#allocation7 + $0xde0] sm:$0xff]
    %v599 = vld [vmem:[#allocation7 + $0xde8] sm:$0xff]
    %v600 = vld [vmem:[#allocation7 + $0xdf0] sm:$0xff]
    %v601 = vld [vmem:[#allocation7 + $0xdf8] sm:$0xff]
    %v602 = vld [vmem:[#allocation7 + $0xe00] sm:$0xff]
    %v603 = vld [vmem:[#allocation7 + $0xe08] sm:$0xff]
    %v604 = vld [vmem:[#allocation7 + $0xe10] sm:$0xff]
    %v605 = vld [vmem:[#allocation7 + $0xe18] sm:$0xff]
    %v606 = vld [vmem:[#allocation7 + $0xe20] sm:$0xff]
    %v607 = vld [vmem:[#allocation7 + $0xe28] sm:$0xff]
    %v608 = vld [vmem:[#allocation7 + $0xe30] sm:$0xff]
    %v609 = vld [vmem:[#allocation7 + $0xe38] sm:$0xff]
    %v610 = vld [vmem:[#allocation7 + $0xe40] sm:$0xff]
    %v611 = vld [vmem:[#allocation7 + $0xe48] sm:$0xff]
    %v612 = vld [vmem:[#allocation7 + $0xe50] sm:$0xff]
    %v613 = vld [vmem:[#allocation7 + $0xe58] sm:$0xff]
    %v614 = vld [vmem:[#allocation7 + $0xe60] sm:$0xff]
    %v615 = vld [vmem:[#allocation7 + $0xe68] sm:$0xff]
    %v616 = vld [vmem:[#allocation7 + $0xe70] sm:$0xff]
    %v617 = vld [vmem:[#allocation7 + $0xe78] sm:$0xff]
    %v618 = vld [vmem:[#allocation7 + $0xe80] sm:$0xff]
    %v619 = vld [vmem:[#allocation7 + $0xe88] sm:$0xff]
    %v620 = vld [vmem:[#allocation7 + $0xe90] sm:$0xff]
    %v621 = vld [vmem:[#allocation7 + $0xe98] sm:$0xff]
    %v622 = vld [vmem:[#allocation7 + $0xea0] sm:$0xff]
    %v623 = vld [vmem:[#allocation7 + $0xea8] sm:$0xff]
    %v624 = vld [vmem:[#allocation7 + $0xeb0] sm:$0xff]
    %v625 = vld [vmem:[#allocation7 + $0xeb8] sm:$0xff]
    %v626 = vld [vmem:[#allocation7 + $0xec0] sm:$0xff]
    %v627 = vld [vmem:[#allocation7 + $0xec8] sm:$0xff]
    %v628 = vld [vmem:[#allocation7 + $0xed0] sm:$0xff]
    %v629 = vld [vmem:[#allocation7 + $0xed8] sm:$0xff]
    %v630 = vld [vmem:[#allocation7 + $0xee0] sm:$0xff]
    %v631 = vld [vmem:[#allocation7 + $0xee8] sm:$0xff]
    %v632 = vld [vmem:[#allocation7 + $0xef0] sm:$0xff]
    %v633 = vld [vmem:[#allocation7 + $0xef8] sm:$0xff]
    %v634 = vld [vmem:[#allocation7 + $0xf00] sm:$0xff]
    %v635 = vld [vmem:[#allocation7 + $0xf08] sm:$0xff]
    %v636 = vld [vmem:[#allocation7 + $0xf10] sm:$0xff]
    %v637 = vld [vmem:[#allocation7 + $0xf18] sm:$0xff]
    %v638 = vld [vmem:[#allocation7 + $0xf20] sm:$0xff]
    %v639 = vld [vmem:[#allocation7 + $0xf28] sm:$0xff]
    %v640 = vld [vmem:[#allocation7 + $0xf30] sm:$0xff]
    %v641 = vld [vmem:[#allocation7 + $0xf38] sm:$0xff]
    %v642 = vld [vmem:[#allocation7 + $0xf40] sm:$0xff]
    %v643 = vld [vmem:[#allocation7 + $0xf48] sm:$0xff]
    %v644 = vld [vmem:[#allocation7 + $0xf50] sm:$0xff]
    %v645 = vld [vmem:[#allocation7 + $0xf58] sm:$0xff]
    %v646 = vld [vmem:[#allocation7 + $0xf60] sm:$0xff]
    %v647 = vld [vmem:[#allocation7 + $0xf68] sm:$0xff]
    %v648 = vld [vmem:[#allocation7 + $0xf70] sm:$0xff]
    %v649 = vld [vmem:[#allocation7 + $0xf78] sm:$0xff]
    %v650 = vld [vmem:[#allocation7 + $0xf80] sm:$0xff]
    %v651 = vld [vmem:[#allocation7 + $0xf88] sm:$0xff]
    %v652 = vld [vmem:[#allocation7 + $0xf90] sm:$0xff]
    %v653 = vld [vmem:[#allocation7 + $0xf98] sm:$0xff]
    %v654 = vld [vmem:[#allocation7 + $0xfa0] sm:$0xff]
    %v655 = vld [vmem:[#allocation7 + $0xfa8] sm:$0xff]
    %v656 = vld [vmem:[#allocation7 + $0xfb0] sm:$0xff]
    %v657 = vld [vmem:[#allocation7 + $0xfb8] sm:$0xff]
    %v658 = vld [vmem:[#allocation7 + $0xfc0] sm:$0xff]
    %v659 = vld [vmem:[#allocation7 + $0xfc8] sm:$0xff]
    %v660 = vld [vmem:[#allocation7 + $0xfd0] sm:$0xff]
    %v661 = vld [vmem:[#allocation7 + $0xfd8] sm:$0xff]
    %v662 = vld [vmem:[#allocation7 + $0xfe0] sm:$0xff]
    %v663 = vld [vmem:[#allocation7 + $0xfe8] sm:$0xff]
    %v664 = vld [vmem:[#allocation7 + $0xff0] sm:$0xff]
    %v665 = vld [vmem:[#allocation7 + $0xff8] sm:$0xff]
    %v666 = vld [vmem:[#allocation8] sm:$0xff]
    %v667 = vld [vmem:[#allocation8 + $0x8] sm:$0xff]
    %v668 = vld [vmem:[#allocation8 + $0x10] sm:$0xff]
    %v669 = vld [vmem:[#allocation8 + $0x18] sm:$0xff]
    %v670 = vld [vmem:[#allocation8 + $0x20] sm:$0xff]
    %v671 = vld [vmem:[#allocation8 + $0x28] sm:$0xff]
    %v672 = vld [vmem:[#allocation8 + $0x30] sm:$0xff]
    %v673 = vld [vmem:[#allocation8 + $0x38] sm:$0xff]
    %v674 = vld [vmem:[#allocation8 + $0x40] sm:$0xff]
    %v675 = vld [vmem:[#allocation8 + $0x48] sm:$0xff]
    %v676 = vld [vmem:[#allocation8 + $0x50] sm:$0xff]
    %v677 = vld [vmem:[#allocation8 + $0x58] sm:$0xff]
    %v678 = vld [vmem:[#allocation8 + $0x60] sm:$0xff]
    %v679 = vld [vmem:[#allocation8 + $0x68] sm:$0xff]
    %v680 = vld [vmem:[#allocation8 + $0x70] sm:$0xff]
    %v681 = vld [vmem:[#allocation8 + $0x78] sm:$0xff]
    %v682 = vld [vmem:[#allocation8 + $0x80] sm:$0xff]
    %v683 = vld [vmem:[#allocation8 + $0x88] sm:$0xff]
    %v684 = vld [vmem:[#allocation8 + $0x90] sm:$0xff]
    %v685 = vld [vmem:[#allocation8 + $0x98] sm:$0xff]
    %v686 = vld [vmem:[#allocation8 + $0xa0] sm:$0xff]
    %v687 = vld [vmem:[#allocation8 + $0xa8] sm:$0xff]
    %v688 = vld [vmem:[#allocation8 + $0xb0] sm:$0xff]
    %v689 = vld [vmem:[#allocation8 + $0xb8] sm:$0xff]
    %v690 = vld [vmem:[#allocation8 + $0xc0] sm:$0xff]
    %v691 = vld [vmem:[#allocation8 + $0xc8] sm:$0xff]
    %v692 = vld [vmem:[#allocation8 + $0xd0] sm:$0xff]
    %v693 = vld [vmem:[#allocation8 + $0xd8] sm:$0xff]
    %v694 = vld [vmem:[#allocation8 + $0xe0] sm:$0xff]
    %v695 = vld [vmem:[#allocation8 + $0xe8] sm:$0xff]
    %v696 = vld [vmem:[#allocation8 + $0xf0] sm:$0xff]
    %v697 = vld [vmem:[#allocation8 + $0xf8] sm:$0xff]
    %v698 = vld [vmem:[#allocation8 + $0x100] sm:$0xff]
    %v699 = vld [vmem:[#allocation8 + $0x108] sm:$0xff]
    %v700 = vld [vmem:[#allocation8 + $0x110] sm:$0xff]
    %v701 = vld [vmem:[#allocation8 + $0x118] sm:$0xff]
    %v702 = vld [vmem:[#allocation8 + $0x120] sm:$0xff]
    %v703 = vld [vmem:[#allocation8 + $0x128] sm:$0xff]
    %v704 = vld [vmem:[#allocation8 + $0x130] sm:$0xff]
    %v705 = vld [vmem:[#allocation8 + $0x138] sm:$0xff]
    %v706 = vld [vmem:[#allocation8 + $0x140] sm:$0xff]
    %v707 = vld [vmem:[#allocation8 + $0x148] sm:$0xff]
    %v708 = vld [vmem:[#allocation8 + $0x150] sm:$0xff]
    %v709 = vld [vmem:[#allocation8 + $0x158] sm:$0xff]
    %v710 = vld [vmem:[#allocation8 + $0x160] sm:$0xff]
    %v711 = vld [vmem:[#allocation8 + $0x168] sm:$0xff]
    %v712 = vld [vmem:[#allocation8 + $0x170] sm:$0xff]
    %v713 = vld [vmem:[#allocation8 + $0x178] sm:$0xff]
    %v714 = vld [vmem:[#allocation8 + $0x180] sm:$0xff]
    %v715 = vld [vmem:[#allocation8 + $0x188] sm:$0xff]
    %v716 = vld [vmem:[#allocation8 + $0x190] sm:$0xff]
    %v717 = vld [vmem:[#allocation8 + $0x198] sm:$0xff]
    %v718 = vld [vmem:[#allocation8 + $0x1a0] sm:$0xff]
    %v719 = vld [vmem:[#allocation8 + $0x1a8] sm:$0xff]
    %v720 = vld [vmem:[#allocation8 + $0x1b0] sm:$0xff]
    %v721 = vld [vmem:[#allocation8 + $0x1b8] sm:$0xff]
    %v722 = vld [vmem:[#allocation8 + $0x1c0] sm:$0xff]
    %v723 = vld [vmem:[#allocation8 + $0x1c8] sm:$0xff]
    %v724 = vld [vmem:[#allocation8 + $0x1d0] sm:$0xff]
    %v725 = vld [vmem:[#allocation8 + $0x1d8] sm:$0xff]
    %v726 = vld [vmem:[#allocation8 + $0x1e0] sm:$0xff]
    %v727 = vld [vmem:[#allocation8 + $0x1e8] sm:$0xff]
    %v728 = vld [vmem:[#allocation8 + $0x1f0] sm:$0xff]
    %v729 = vld [vmem:[#allocation8 + $0x1f8] sm:$0xff]
    %v730 = vld [vmem:[#allocation8 + $0x200] sm:$0xff]
    %v731 = vld [vmem:[#allocation8 + $0x208] sm:$0xff]
    %v732 = vld [vmem:[#allocation8 + $0x210] sm:$0xff]
    %v733 = vld [vmem:[#allocation8 + $0x218] sm:$0xff]
    %v734 = vld [vmem:[#allocation8 + $0x220] sm:$0xff]
    %v735 = vld [vmem:[#allocation8 + $0x228] sm:$0xff]
    %v736 = vld [vmem:[#allocation8 + $0x230] sm:$0xff]
    %v737 = vld [vmem:[#allocation8 + $0x238] sm:$0xff]
    %v738 = vld [vmem:[#allocation8 + $0x240] sm:$0xff]
    %v739 = vld [vmem:[#allocation8 + $0x248] sm:$0xff]
    %v740 = vld [vmem:[#allocation8 + $0x250] sm:$0xff]
    %v741 = vld [vmem:[#allocation8 + $0x258] sm:$0xff]
    %v742 = vld [vmem:[#allocation8 + $0x260] sm:$0xff]
    %v743 = vld [vmem:[#allocation8 + $0x268] sm:$0xff]
    %v744 = vld [vmem:[#allocation8 + $0x270] sm:$0xff]
    %v745 = vld [vmem:[#allocation8 + $0x278] sm:$0xff]
    %v746 = vld [vmem:[#allocation8 + $0x280] sm:$0xff]
    %v747 = vld [vmem:[#allocation8 + $0x288] sm:$0xff]
    %v748 = vld [vmem:[#allocation8 + $0x290] sm:$0xff]
    %v749 = vld [vmem:[#allocation8 + $0x298] sm:$0xff]
    %v750 = vld [vmem:[#allocation8 + $0x2a0] sm:$0xff]
    %v751 = vld [vmem:[#allocation8 + $0x2a8] sm:$0xff]
    %v752 = vld [vmem:[#allocation8 + $0x2b0] sm:$0xff]
    %v753 = vld [vmem:[#allocation8 + $0x2b8] sm:$0xff]
    %v754 = vld [vmem:[#allocation8 + $0x2c0] sm:$0xff]
    %v755 = vld [vmem:[#allocation8 + $0x2c8] sm:$0xff]
    %v756 = vld [vmem:[#allocation8 + $0x2d0] sm:$0xff]
    %v757 = vld [vmem:[#allocation8 + $0x2d8] sm:$0xff]
    %v758 = vld [vmem:[#allocation8 + $0x2e0] sm:$0xff]
    %v759 = vld [vmem:[#allocation8 + $0x2e8] sm:$0xff]
    %v760 = vld [vmem:[#allocation8 + $0x2f0] sm:$0xff]
    %v761 = vld [vmem:[#allocation8 + $0x2f8] sm:$0xff]
    %v762 = vld [vmem:[#allocation8 + $0x300] sm:$0xff]
    %v763 = vld [vmem:[#allocation8 + $0x308] sm:$0xff]
    %v764 = vld [vmem:[#allocation8 + $0x310] sm:$0xff]
    %v765 = vld [vmem:[#allocation8 + $0x318] sm:$0xff]
    %v766 = vld [vmem:[#allocation8 + $0x320] sm:$0xff]
    %v767 = vld [vmem:[#allocation8 + $0x328] sm:$0xff]
    %v768 = vld [vmem:[#allocation8 + $0x330] sm:$0xff]
    %v769 = vld [vmem:[#allocation8 + $0x338] sm:$0xff]
    %v770 = vld [vmem:[#allocation8 + $0x340] sm:$0xff]
    %v771 = vld [vmem:[#allocation8 + $0x348] sm:$0xff]
    %v772 = vld [vmem:[#allocation8 + $0x350] sm:$0xff]
    %v773 = vld [vmem:[#allocation8 + $0x358] sm:$0xff]
    %v774 = vld [vmem:[#allocation8 + $0x360] sm:$0xff]
    %v775 = vld [vmem:[#allocation8 + $0x368] sm:$0xff]
    %v776 = vld [vmem:[#allocation8 + $0x370] sm:$0xff]
    %v777 = vld [vmem:[#allocation8 + $0x378] sm:$0xff]
    %v778 = vld [vmem:[#allocation8 + $0x380] sm:$0xff]
    %v779 = vld [vmem:[#allocation8 + $0x388] sm:$0xff]
    %v780 = vld [vmem:[#allocation8 + $0x390] sm:$0xff]
    %v781 = vld [vmem:[#allocation8 + $0x398] sm:$0xff]
    %v782 = vld [vmem:[#allocation8 + $0x3a0] sm:$0xff]
    %v783 = vld [vmem:[#allocation8 + $0x3a8] sm:$0xff]
    %v784 = vld [vmem:[#allocation8 + $0x3b0] sm:$0xff]
    %v785 = vld [vmem:[#allocation8 + $0x3b8] sm:$0xff]
    %v786 = vld [vmem:[#allocation8 + $0x3c0] sm:$0xff]
    %v787 = vld [vmem:[#allocation8 + $0x3c8] sm:$0xff]
    %v788 = vld [vmem:[#allocation8 + $0x3d0] sm:$0xff]
    %v789 = vld [vmem:[#allocation8 + $0x3d8] sm:$0xff]
    %v790 = vld [vmem:[#allocation8 + $0x3e0] sm:$0xff]
    %v791 = vld [vmem:[#allocation8 + $0x3e8] sm:$0xff]
    %v792 = vld [vmem:[#allocation8 + $0x3f0] sm:$0xff]
    %v793 = vld [vmem:[#allocation8 + $0x3f8] sm:$0xff]
    %v794 = vld [vmem:[#allocation8 + $0x400] sm:$0xff]
    %v795 = vld [vmem:[#allocation8 + $0x408] sm:$0xff]
    %v796 = vld [vmem:[#allocation8 + $0x410] sm:$0xff]
    %v797 = vld [vmem:[#allocation8 + $0x418] sm:$0xff]
    %v798 = vld [vmem:[#allocation8 + $0x420] sm:$0xff]
    %v799 = vld [vmem:[#allocation8 + $0x428] sm:$0xff]
    %v800 = vld [vmem:[#allocation8 + $0x430] sm:$0xff]
    %v801 = vld [vmem:[#allocation8 + $0x438] sm:$0xff]
    %v802 = vld [vmem:[#allocation8 + $0x440] sm:$0xff]
    %v803 = vld [vmem:[#allocation8 + $0x448] sm:$0xff]
    %v804 = vld [vmem:[#allocation8 + $0x450] sm:$0xff]
    %v805 = vld [vmem:[#allocation8 + $0x458] sm:$0xff]
    %v806 = vld [vmem:[#allocation8 + $0x460] sm:$0xff]
    %v807 = vld [vmem:[#allocation8 + $0x468] sm:$0xff]
    %v808 = vld [vmem:[#allocation8 + $0x470] sm:$0xff]
    %v809 = vld [vmem:[#allocation8 + $0x478] sm:$0xff]
    %v810 = vld [vmem:[#allocation8 + $0x480] sm:$0xff]
    %v811 = vld [vmem:[#allocation8 + $0x488] sm:$0xff]
    %v812 = vld [vmem:[#allocation8 + $0x490] sm:$0xff]
    %v813 = vld [vmem:[#allocation8 + $0x498] sm:$0xff]
    %v814 = vld [vmem:[#allocation8 + $0x4a0] sm:$0xff]
    %v815 = vld [vmem:[#allocation8 + $0x4a8] sm:$0xff]
    %v816 = vld [vmem:[#allocation8 + $0x4b0] sm:$0xff]
    %v817 = vld [vmem:[#allocation8 + $0x4b8] sm:$0xff]
    %v818 = vld [vmem:[#allocation8 + $0x4c0] sm:$0xff]
    %v819 = vld [vmem:[#allocation8 + $0x4c8] sm:$0xff]
    %v820 = vld [vmem:[#allocation8 + $0x4d0] sm:$0xff]
    %v821 = vld [vmem:[#allocation8 + $0x4d8] sm:$0xff]
    %v822 = vld [vmem:[#allocation8 + $0x4e0] sm:$0xff]
    %v823 = vld [vmem:[#allocation8 + $0x4e8] sm:$0xff]
    %v824 = vld [vmem:[#allocation8 + $0x4f0] sm:$0xff]
    %v825 = vld [vmem:[#allocation8 + $0x4f8] sm:$0xff]
    %v826 = vld [vmem:[#allocation8 + $0x500] sm:$0xff]
    %v827 = vld [vmem:[#allocation8 + $0x508] sm:$0xff]
    %v828 = vld [vmem:[#allocation8 + $0x510] sm:$0xff]
    %v829 = vld [vmem:[#allocation8 + $0x518] sm:$0xff]
    %v830 = vld [vmem:[#allocation8 + $0x520] sm:$0xff]
    %v831 = vld [vmem:[#allocation8 + $0x528] sm:$0xff]
    %v832 = vld [vmem:[#allocation8 + $0x530] sm:$0xff]
    %v833 = vld [vmem:[#allocation8 + $0x538] sm:$0xff]
    %v834 = vld [vmem:[#allocation8 + $0x540] sm:$0xff]
    %v835 = vld [vmem:[#allocation8 + $0x548] sm:$0xff]
    %v836 = vld [vmem:[#allocation8 + $0x550] sm:$0xff]
    %v837 = vld [vmem:[#allocation8 + $0x558] sm:$0xff]
    %v838 = vld [vmem:[#allocation8 + $0x560] sm:$0xff]
    %v839 = vld [vmem:[#allocation8 + $0x568] sm:$0xff]
    %v840 = vld [vmem:[#allocation8 + $0x570] sm:$0xff]
    %v841 = vld [vmem:[#allocation8 + $0x578] sm:$0xff]
    %v842 = vld [vmem:[#allocation8 + $0x580] sm:$0xff]
    %v843 = vld [vmem:[#allocation8 + $0x588] sm:$0xff]
    %v844 = vld [vmem:[#allocation8 + $0x590] sm:$0xff]
    %v845 = vld [vmem:[#allocation8 + $0x598] sm:$0xff]
    %v846 = vld [vmem:[#allocation8 + $0x5a0] sm:$0xff]
    %v847 = vld [vmem:[#allocation8 + $0x5a8] sm:$0xff]
    %v848 = vld [vmem:[#allocation8 + $0x5b0] sm:$0xff]
    %v849 = vld [vmem:[#allocation8 + $0x5b8] sm:$0xff]
    %v850 = vld [vmem:[#allocation8 + $0x5c0] sm:$0xff]
    %v851 = vld [vmem:[#allocation8 + $0x5c8] sm:$0xff]
    %v852 = vld [vmem:[#allocation8 + $0x5d0] sm:$0xff]
    %v853 = vld [vmem:[#allocation8 + $0x5d8] sm:$0xff]
    %v854 = vld [vmem:[#allocation8 + $0x5e0] sm:$0xff]
    %v855 = vld [vmem:[#allocation8 + $0x5e8] sm:$0xff]
    %v856 = vld [vmem:[#allocation8 + $0x5f0] sm:$0xff]
    %v857 = vld [vmem:[#allocation8 + $0x5f8] sm:$0xff]
    %v858 = vld [vmem:[#allocation8 + $0x600] sm:$0xff]
    %v859 = vld [vmem:[#allocation8 + $0x608] sm:$0xff]
    %v860 = vld [vmem:[#allocation8 + $0x610] sm:$0xff]
    %v861 = vld [vmem:[#allocation8 + $0x618] sm:$0xff]
    %v862 = vld [vmem:[#allocation8 + $0x620] sm:$0xff]
    %v863 = vld [vmem:[#allocation8 + $0x628] sm:$0xff]
    %v864 = vld [vmem:[#allocation8 + $0x630] sm:$0xff]
    %v865 = vld [vmem:[#allocation8 + $0x638] sm:$0xff]
    %v866 = vld [vmem:[#allocation8 + $0x640] sm:$0xff]
    %v867 = vld [vmem:[#allocation8 + $0x648] sm:$0xff]
    %v868 = vld [vmem:[#allocation8 + $0x650] sm:$0xff]
    %v869 = vld [vmem:[#allocation8 + $0x658] sm:$0xff]
    %v870 = vld [vmem:[#allocation8 + $0x660] sm:$0xff]
    %v871 = vld [vmem:[#allocation8 + $0x668] sm:$0xff]
    %v872 = vld [vmem:[#allocation8 + $0x670] sm:$0xff]
    %v873 = vld [vmem:[#allocation8 + $0x678] sm:$0xff]
    %v874 = vld [vmem:[#allocation8 + $0x680] sm:$0xff]
    %v875 = vld [vmem:[#allocation8 + $0x688] sm:$0xff]
    %v876 = vld [vmem:[#allocation8 + $0x690] sm:$0xff]
    %v877 = vld [vmem:[#allocation8 + $0x698] sm:$0xff]
    %v878 = vld [vmem:[#allocation8 + $0x6a0] sm:$0xff]
    %v879 = vld [vmem:[#allocation8 + $0x6a8] sm:$0xff]
    %v880 = vld [vmem:[#allocation8 + $0x6b0] sm:$0xff]
    %v881 = vld [vmem:[#allocation8 + $0x6b8] sm:$0xff]
    %v882 = vld [vmem:[#allocation8 + $0x6c0] sm:$0xff]
    %v883 = vld [vmem:[#allocation8 + $0x6c8] sm:$0xff]
    %v884 = vld [vmem:[#allocation8 + $0x6d0] sm:$0xff]
    %v885 = vld [vmem:[#allocation8 + $0x6d8] sm:$0xff]
    %v886 = vld [vmem:[#allocation8 + $0x6e0] sm:$0xff]
    %v887 = vld [vmem:[#allocation8 + $0x6e8] sm:$0xff]
    %v888 = vld [vmem:[#allocation8 + $0x6f0] sm:$0xff]
    %v889 = vld [vmem:[#allocation8 + $0x6f8] sm:$0xff]
    %v890 = vld [vmem:[#allocation8 + $0x700] sm:$0xff]
    %v891 = vld [vmem:[#allocation8 + $0x708] sm:$0xff]
    %v892 = vld [vmem:[#allocation8 + $0x710] sm:$0xff]
    %v893 = vld [vmem:[#allocation8 + $0x718] sm:$0xff]
    %v894 = vld [vmem:[#allocation8 + $0x720] sm:$0xff]
    %v895 = vld [vmem:[#allocation8 + $0x728] sm:$0xff]
    %v896 = vld [vmem:[#allocation8 + $0x730] sm:$0xff]
    %v897 = vld [vmem:[#allocation8 + $0x738] sm:$0xff]
    %v898 = vld [vmem:[#allocation8 + $0x740] sm:$0xff]
    %v899 = vld [vmem:[#allocation8 + $0x748] sm:$0xff]
    %v900 = vld [vmem:[#allocation8 + $0x750] sm:$0xff]
    %v901 = vld [vmem:[#allocation8 + $0x758] sm:$0xff]
    %v902 = vld [vmem:[#allocation8 + $0x760] sm:$0xff]
    %v903 = vld [vmem:[#allocation8 + $0x768] sm:$0xff]
    %v904 = vld [vmem:[#allocation8 + $0x770] sm:$0xff]
    %v905 = vld [vmem:[#allocation8 + $0x778] sm:$0xff]
    %v906 = vld [vmem:[#allocation8 + $0x780] sm:$0xff]
    %v907 = vld [vmem:[#allocation8 + $0x788] sm:$0xff]
    %v908 = vld [vmem:[#allocation8 + $0x790] sm:$0xff]
    %v909 = vld [vmem:[#allocation8 + $0x798] sm:$0xff]
    %v910 = vld [vmem:[#allocation8 + $0x7a0] sm:$0xff]
    %v911 = vld [vmem:[#allocation8 + $0x7a8] sm:$0xff]
    %v912 = vld [vmem:[#allocation8 + $0x7b0] sm:$0xff]
    %v913 = vld [vmem:[#allocation8 + $0x7b8] sm:$0xff]
    %v914 = vld [vmem:[#allocation8 + $0x7c0] sm:$0xff]
    %v915 = vld [vmem:[#allocation8 + $0x7c8] sm:$0xff]
    %v916 = vld [vmem:[#allocation8 + $0x7d0] sm:$0xff]
    %v917 = vld [vmem:[#allocation8 + $0x7d8] sm:$0xff]
    %v918 = vld [vmem:[#allocation8 + $0x7e0] sm:$0xff]
    %v919 = vld [vmem:[#allocation8 + $0x7e8] sm:$0xff]
    %v920 = vld [vmem:[#allocation8 + $0x7f0] sm:$0xff]
    %v921 = vld [vmem:[#allocation8 + $0x7f8] sm:$0xff]
    %v922 = vld [vmem:[#allocation8 + $0x800] sm:$0xff]
    %v923 = vld [vmem:[#allocation8 + $0x808] sm:$0xff]
    %v924 = vld [vmem:[#allocation8 + $0x810] sm:$0xff]
    %v925 = vld [vmem:[#allocation8 + $0x818] sm:$0xff]
    %v926 = vld [vmem:[#allocation8 + $0x820] sm:$0xff]
    %v927 = vld [vmem:[#allocation8 + $0x828] sm:$0xff]
    %v928 = vld [vmem:[#allocation8 + $0x830] sm:$0xff]
    %v929 = vld [vmem:[#allocation8 + $0x838] sm:$0xff]
    %v930 = vld [vmem:[#allocation8 + $0x840] sm:$0xff]
    %v931 = vld [vmem:[#allocation8 + $0x848] sm:$0xff]
    %v932 = vld [vmem:[#allocation8 + $0x850] sm:$0xff]
    %v933 = vld [vmem:[#allocation8 + $0x858] sm:$0xff]
    %v934 = vld [vmem:[#allocation8 + $0x860] sm:$0xff]
    %v935 = vld [vmem:[#allocation8 + $0x868] sm:$0xff]
    %v936 = vld [vmem:[#allocation8 + $0x870] sm:$0xff]
    %v937 = vld [vmem:[#allocation8 + $0x878] sm:$0xff]
    %v938 = vld [vmem:[#allocation8 + $0x880] sm:$0xff]
    %v939 = vld [vmem:[#allocation8 + $0x888] sm:$0xff]
    %v940 = vld [vmem:[#allocation8 + $0x890] sm:$0xff]
    %v941 = vld [vmem:[#allocation8 + $0x898] sm:$0xff]
    %v942 = vld [vmem:[#allocation8 + $0x8a0] sm:$0xff]
    %v943 = vld [vmem:[#allocation8 + $0x8a8] sm:$0xff]
    %v944 = vld [vmem:[#allocation8 + $0x8b0] sm:$0xff]
    %v945 = vld [vmem:[#allocation8 + $0x8b8] sm:$0xff]
    %v946 = vld [vmem:[#allocation8 + $0x8c0] sm:$0xff]
    %v947 = vld [vmem:[#allocation8 + $0x8c8] sm:$0xff]
    %v948 = vld [vmem:[#allocation8 + $0x8d0] sm:$0xff]
    %v949 = vld [vmem:[#allocation8 + $0x8d8] sm:$0xff]
    %v950 = vld [vmem:[#allocation8 + $0x8e0] sm:$0xff]
    %v951 = vld [vmem:[#allocation8 + $0x8e8] sm:$0xff]
    %v952 = vld [vmem:[#allocation8 + $0x8f0] sm:$0xff]
    %v953 = vld [vmem:[#allocation8 + $0x8f8] sm:$0xff]
    %v954 = vld [vmem:[#allocation8 + $0x900] sm:$0xff]
    %v955 = vld [vmem:[#allocation8 + $0x908] sm:$0xff]
    %v956 = vld [vmem:[#allocation8 + $0x910] sm:$0xff]
    %v957 = vld [vmem:[#allocation8 + $0x918] sm:$0xff]
    %v958 = vld [vmem:[#allocation8 + $0x920] sm:$0xff]
    %v959 = vld [vmem:[#allocation8 + $0x928] sm:$0xff]
    %v960 = vld [vmem:[#allocation8 + $0x930] sm:$0xff]
    %v961 = vld [vmem:[#allocation8 + $0x938] sm:$0xff]
    %v962 = vld [vmem:[#allocation8 + $0x940] sm:$0xff]
    %v963 = vld [vmem:[#allocation8 + $0x948] sm:$0xff]
    %v964 = vld [vmem:[#allocation8 + $0x950] sm:$0xff]
    %v965 = vld [vmem:[#allocation8 + $0x958] sm:$0xff]
    %v966 = vld [vmem:[#allocation8 + $0x960] sm:$0xff]
    %v967 = vld [vmem:[#allocation8 + $0x968] sm:$0xff]
    %v968 = vld [vmem:[#allocation8 + $0x970] sm:$0xff]
    %v969 = vld [vmem:[#allocation8 + $0x978] sm:$0xff]
    %v970 = vld [vmem:[#allocation8 + $0x980] sm:$0xff]
    %v971 = vld [vmem:[#allocation8 + $0x988] sm:$0xff]
    %v972 = vld [vmem:[#allocation8 + $0x990] sm:$0xff]
    %v973 = vld [vmem:[#allocation8 + $0x998] sm:$0xff]
    %v974 = vld [vmem:[#allocation8 + $0x9a0] sm:$0xff]
    %v975 = vld [vmem:[#allocation8 + $0x9a8] sm:$0xff]
    %v976 = vld [vmem:[#allocation8 + $0x9b0] sm:$0xff]
    %v977 = vld [vmem:[#allocation8 + $0x9b8] sm:$0xff]
    %v978 = vld [vmem:[#allocation8 + $0x9c0] sm:$0xff]
    %v979 = vld [vmem:[#allocation8 + $0x9c8] sm:$0xff]
    %v980 = vld [vmem:[#allocation8 + $0x9d0] sm:$0xff]
    %v981 = vld [vmem:[#allocation8 + $0x9d8] sm:$0xff]
    %v982 = vld [vmem:[#allocation8 + $0x9e0] sm:$0xff]
    %v983 = vld [vmem:[#allocation8 + $0x9e8] sm:$0xff]
    %v984 = vld [vmem:[#allocation8 + $0x9f0] sm:$0xff]
    %v985 = vld [vmem:[#allocation8 + $0x9f8] sm:$0xff]
    %v986 = vld [vmem:[#allocation8 + $0xa00] sm:$0xff]
    %v987 = vld [vmem:[#allocation8 + $0xa08] sm:$0xff]
    %v988 = vld [vmem:[#allocation8 + $0xa10] sm:$0xff]
    %v989 = vld [vmem:[#allocation8 + $0xa18] sm:$0xff]
    %v990 = vld [vmem:[#allocation8 + $0xa20] sm:$0xff]
    %v991 = vld [vmem:[#allocation8 + $0xa28] sm:$0xff]
    %v992 = vld [vmem:[#allocation8 + $0xa30] sm:$0xff]
    %v993 = vld [vmem:[#allocation8 + $0xa38] sm:$0xff]
    %v994 = vld [vmem:[#allocation8 + $0xa40] sm:$0xff]
    %v995 = vld [vmem:[#allocation8 + $0xa48] sm:$0xff]
    %v996 = vld [vmem:[#allocation8 + $0xa50] sm:$0xff]
    %v997 = vld [vmem:[#allocation8 + $0xa58] sm:$0xff]
    %v998 = vld [vmem:[#allocation8 + $0xa60] sm:$0xff]
    %v999 = vld [vmem:[#allocation8 + $0xa68] sm:$0xff]
    %v1000 = vld [vmem:[#allocation8 + $0xa70] sm:$0xff]
    %v1001 = vld [vmem:[#allocation8 + $0xa78] sm:$0xff]
    %v1002 = vld [vmem:[#allocation8 + $0xa80] sm:$0xff]
    %v1003 = vld [vmem:[#allocation8 + $0xa88] sm:$0xff]
    %v1004 = vld [vmem:[#allocation8 + $0xa90] sm:$0xff]
    %v1005 = vld [vmem:[#allocation8 + $0xa98] sm:$0xff]
    %v1006 = vld [vmem:[#allocation8 + $0xaa0] sm:$0xff]
    %v1007 = vld [vmem:[#allocation8 + $0xaa8] sm:$0xff]
    %v1008 = vld [vmem:[#allocation8 + $0xab0] sm:$0xff]
    %v1009 = vld [vmem:[#allocation8 + $0xab8] sm:$0xff]
    %v1010 = vld [vmem:[#allocation8 + $0xac0] sm:$0xff]
    %v1011 = vld [vmem:[#allocation8 + $0xac8] sm:$0xff]
    %v1012 = vld [vmem:[#allocation8 + $0xad0] sm:$0xff]
    %v1013 = vld [vmem:[#allocation8 + $0xad8] sm:$0xff]
    %v1014 = vld [vmem:[#allocation8 + $0xae0] sm:$0xff]
    %v1015 = vld [vmem:[#allocation8 + $0xae8] sm:$0xff]
    %v1016 = vld [vmem:[#allocation8 + $0xaf0] sm:$0xff]
    %v1017 = vld [vmem:[#allocation8 + $0xaf8] sm:$0xff]
    %v1018 = vld [vmem:[#allocation8 + $0xb00] sm:$0xff]
    %v1019 = vld [vmem:[#allocation8 + $0xb08] sm:$0xff]
    %v1020 = vld [vmem:[#allocation8 + $0xb10] sm:$0xff]
    %v1021 = vld [vmem:[#allocation8 + $0xb18] sm:$0xff]
    %v1022 = vld [vmem:[#allocation8 + $0xb20] sm:$0xff]
    %v1023 = vld [vmem:[#allocation8 + $0xb28] sm:$0xff]
    %v1024 = vld [vmem:[#allocation8 + $0xb30] sm:$0xff]
    %v1025 = vld [vmem:[#allocation8 + $0xb38] sm:$0xff]
    %v1026 = vld [vmem:[#allocation8 + $0xb40] sm:$0xff]
    %v1027 = vld [vmem:[#allocation8 + $0xb48] sm:$0xff]
    %v1028 = vld [vmem:[#allocation8 + $0xb50] sm:$0xff]
    %v1029 = vld [vmem:[#allocation8 + $0xb58] sm:$0xff]
    %v1030 = vld [vmem:[#allocation8 + $0xb60] sm:$0xff]
    %v1031 = vld [vmem:[#allocation8 + $0xb68] sm:$0xff]
    %v1032 = vld [vmem:[#allocation8 + $0xb70] sm:$0xff]
    %v1033 = vld [vmem:[#allocation8 + $0xb78] sm:$0xff]
    %v1034 = vld [vmem:[#allocation8 + $0xb80] sm:$0xff]
    %v1035 = vld [vmem:[#allocation8 + $0xb88] sm:$0xff]
    %v1036 = vld [vmem:[#allocation8 + $0xb90] sm:$0xff]
    %v1037 = vld [vmem:[#allocation8 + $0xb98] sm:$0xff]
    %v1038 = vld [vmem:[#allocation8 + $0xba0] sm:$0xff]
    %v1039 = vld [vmem:[#allocation8 + $0xba8] sm:$0xff]
    %v1040 = vld [vmem:[#allocation8 + $0xbb0] sm:$0xff]
    %v1041 = vld [vmem:[#allocation8 + $0xbb8] sm:$0xff]
    %v1042 = vld [vmem:[#allocation8 + $0xbc0] sm:$0xff]
    %v1043 = vld [vmem:[#allocation8 + $0xbc8] sm:$0xff]
    %v1044 = vld [vmem:[#allocation8 + $0xbd0] sm:$0xff]
    %v1045 = vld [vmem:[#allocation8 + $0xbd8] sm:$0xff]
    %v1046 = vld [vmem:[#allocation8 + $0xbe0] sm:$0xff]
    %v1047 = vld [vmem:[#allocation8 + $0xbe8] sm:$0xff]
    %v1048 = vld [vmem:[#allocation8 + $0xbf0] sm:$0xff]
    %v1049 = vld [vmem:[#allocation8 + $0xbf8] sm:$0xff]
    %v1050 = vld [vmem:[#allocation8 + $0xc00] sm:$0xff]
    %v1051 = vld [vmem:[#allocation8 + $0xc08] sm:$0xff]
    %v1052 = vld [vmem:[#allocation8 + $0xc10] sm:$0xff]
    %v1053 = vld [vmem:[#allocation8 + $0xc18] sm:$0xff]
    %v1054 = vld [vmem:[#allocation8 + $0xc20] sm:$0xff]
    %v1055 = vld [vmem:[#allocation8 + $0xc28] sm:$0xff]
    %v1056 = vld [vmem:[#allocation8 + $0xc30] sm:$0xff]
    %v1057 = vld [vmem:[#allocation8 + $0xc38] sm:$0xff]
    %v1058 = vld [vmem:[#allocation8 + $0xc40] sm:$0xff]
    %v1059 = vld [vmem:[#allocation8 + $0xc48] sm:$0xff]
    %v1060 = vld [vmem:[#allocation8 + $0xc50] sm:$0xff]
    %v1061 = vld [vmem:[#allocation8 + $0xc58] sm:$0xff]
    %v1062 = vld [vmem:[#allocation8 + $0xc60] sm:$0xff]
    %v1063 = vld [vmem:[#allocation8 + $0xc68] sm:$0xff]
    %v1064 = vld [vmem:[#allocation8 + $0xc70] sm:$0xff]
    %v1065 = vld [vmem:[#allocation8 + $0xc78] sm:$0xff]
    %v1066 = vld [vmem:[#allocation8 + $0xc80] sm:$0xff]
    %v1067 = vld [vmem:[#allocation8 + $0xc88] sm:$0xff]
    %v1068 = vld [vmem:[#allocation8 + $0xc90] sm:$0xff]
    %v1069 = vld [vmem:[#allocation8 + $0xc98] sm:$0xff]
    %v1070 = vld [vmem:[#allocation8 + $0xca0] sm:$0xff]
    %v1071 = vld [vmem:[#allocation8 + $0xca8] sm:$0xff]
    %v1072 = vld [vmem:[#allocation8 + $0xcb0] sm:$0xff]
    %v1073 = vld [vmem:[#allocation8 + $0xcb8] sm:$0xff]
    %v1074 = vld [vmem:[#allocation8 + $0xcc0] sm:$0xff]
    %v1075 = vld [vmem:[#allocation8 + $0xcc8] sm:$0xff]
    %v1076 = vld [vmem:[#allocation8 + $0xcd0] sm:$0xff]
    %v1077 = vld [vmem:[#allocation8 + $0xcd8] sm:$0xff]
    %v1078 = vld [vmem:[#allocation8 + $0xce0] sm:$0xff]
    %v1079 = vld [vmem:[#allocation8 + $0xce8] sm:$0xff]
    %v1080 = vld [vmem:[#allocation8 + $0xcf0] sm:$0xff]
    %v1081 = vld [vmem:[#allocation8 + $0xcf8] sm:$0xff]
    %v1082 = vld [vmem:[#allocation8 + $0xd00] sm:$0xff]
    %v1083 = vld [vmem:[#allocation8 + $0xd08] sm:$0xff]
    %v1084 = vld [vmem:[#allocation8 + $0xd10] sm:$0xff]
    %v1085 = vld [vmem:[#allocation8 + $0xd18] sm:$0xff]
    %v1086 = vld [vmem:[#allocation8 + $0xd20] sm:$0xff]
    %v1087 = vld [vmem:[#allocation8 + $0xd28] sm:$0xff]
    %v1088 = vld [vmem:[#allocation8 + $0xd30] sm:$0xff]
    %v1089 = vld [vmem:[#allocation8 + $0xd38] sm:$0xff]
    %v1090 = vld [vmem:[#allocation8 + $0xd40] sm:$0xff]
    %v1091 = vld [vmem:[#allocation8 + $0xd48] sm:$0xff]
    %v1092 = vld [vmem:[#allocation8 + $0xd50] sm:$0xff]
    %v1093 = vld [vmem:[#allocation8 + $0xd58] sm:$0xff]
    %v1094 = vld [vmem:[#allocation8 + $0xd60] sm:$0xff]
    %v1095 = vld [vmem:[#allocation8 + $0xd68] sm:$0xff]
    %v1096 = vld [vmem:[#allocation8 + $0xd70] sm:$0xff]
    %v1097 = vld [vmem:[#allocation8 + $0xd78] sm:$0xff]
    %v1098 = vld [vmem:[#allocation8 + $0xd80] sm:$0xff]
    %v1099 = vld [vmem:[#allocation8 + $0xd88] sm:$0xff]
    %v1100 = vld [vmem:[#allocation8 + $0xd90] sm:$0xff]
    %v1101 = vld [vmem:[#allocation8 + $0xd98] sm:$0xff]
    %v1102 = vld [vmem:[#allocation8 + $0xda0] sm:$0xff]
    %v1103 = vld [vmem:[#allocation8 + $0xda8] sm:$0xff]
    %v1104 = vld [vmem:[#allocation8 + $0xdb0] sm:$0xff]
    %v1105 = vld [vmem:[#allocation8 + $0xdb8] sm:$0xff]
    %v1106 = vld [vmem:[#allocation8 + $0xdc0] sm:$0xff]
    %v1107 = vld [vmem:[#allocation8 + $0xdc8] sm:$0xff]
    %v1108 = vld [vmem:[#allocation8 + $0xdd0] sm:$0xff]
    %v1109 = vld [vmem:[#allocation8 + $0xdd8] sm:$0xff]
    %v1110 = vld [vmem:[#allocation8 + $0xde0] sm:$0xff]
    %v1111 = vld [vmem:[#allocation8 + $0xde8] sm:$0xff]
    %v1112 = vld [vmem:[#allocation8 + $0xdf0] sm:$0xff]
    %v1113 = vld [vmem:[#allocation8 + $0xdf8] sm:$0xff]
    %v1114 = vld [vmem:[#allocation8 + $0xe00] sm:$0xff]
    %v1115 = vld [vmem:[#allocation8 + $0xe08] sm:$0xff]
    %v1116 = vld [vmem:[#allocation8 + $0xe10] sm:$0xff]
    %v1117 = vld [vmem:[#allocation8 + $0xe18] sm:$0xff]
    %v1118 = vld [vmem:[#allocation8 + $0xe20] sm:$0xff]
    %v1119 = vld [vmem:[#allocation8 + $0xe28] sm:$0xff]
    %v1120 = vld [vmem:[#allocation8 + $0xe30] sm:$0xff]
    %v1121 = vld [vmem:[#allocation8 + $0xe38] sm:$0xff]
    %v1122 = vld [vmem:[#allocation8 + $0xe40] sm:$0xff]
    %v1123 = vld [vmem:[#allocation8 + $0xe48] sm:$0xff]
    %v1124 = vld [vmem:[#allocation8 + $0xe50] sm:$0xff]
    %v1125 = vld [vmem:[#allocation8 + $0xe58] sm:$0xff]
    %v1126 = vld [vmem:[#allocation8 + $0xe60] sm:$0xff]
    %v1127 = vld [vmem:[#allocation8 + $0xe68] sm:$0xff]
    %v1128 = vld [vmem:[#allocation8 + $0xe70] sm:$0xff]
    %v1129 = vld [vmem:[#allocation8 + $0xe78] sm:$0xff]
    %v1130 = vld [vmem:[#allocation8 + $0xe80] sm:$0xff]
    %v1131 = vld [vmem:[#allocation8 + $0xe88] sm:$0xff]
    %v1132 = vld [vmem:[#allocation8 + $0xe90] sm:$0xff]
    %v1133 = vld [vmem:[#allocation8 + $0xe98] sm:$0xff]
    %v1134 = vld [vmem:[#allocation8 + $0xea0] sm:$0xff]
    %v1135 = vld [vmem:[#allocation8 + $0xea8] sm:$0xff]
    %v1136 = vld [vmem:[#allocation8 + $0xeb0] sm:$0xff]
    %v1137 = vld [vmem:[#allocation8 + $0xeb8] sm:$0xff]
    %v1138 = vld [vmem:[#allocation8 + $0xec0] sm:$0xff]
    %v1139 = vld [vmem:[#allocation8 + $0xec8] sm:$0xff]
    %v1140 = vld [vmem:[#allocation8 + $0xed0] sm:$0xff]
    %v1141 = vld [vmem:[#allocation8 + $0xed8] sm:$0xff]
    %v1142 = vld [vmem:[#allocation8 + $0xee0] sm:$0xff]
    %v1143 = vld [vmem:[#allocation8 + $0xee8] sm:$0xff]
    %v1144 = vld [vmem:[#allocation8 + $0xef0] sm:$0xff]
    %v1145 = vld [vmem:[#allocation8 + $0xef8] sm:$0xff]
    %v1146 = vld [vmem:[#allocation8 + $0xf00] sm:$0xff]
    %v1147 = vld [vmem:[#allocation8 + $0xf08] sm:$0xff]
    %v1148 = vld [vmem:[#allocation8 + $0xf10] sm:$0xff]
    %v1149 = vld [vmem:[#allocation8 + $0xf18] sm:$0xff]
    %v1150 = vld [vmem:[#allocation8 + $0xf20] sm:$0xff]
    %v1151 = vld [vmem:[#allocation8 + $0xf28] sm:$0xff]
    %v1152 = vld [vmem:[#allocation8 + $0xf30] sm:$0xff]
    %v1153 = vld [vmem:[#allocation8 + $0xf38] sm:$0xff]
    %v1154 = vld [vmem:[#allocation8 + $0xf40] sm:$0xff]
    %v1155 = vld [vmem:[#allocation8 + $0xf48] sm:$0xff]
    %v1156 = vld [vmem:[#allocation8 + $0xf50] sm:$0xff]
    %v1157 = vld [vmem:[#allocation8 + $0xf58] sm:$0xff]
    %v1158 = vld [vmem:[#allocation8 + $0xf60] sm:$0xff]
    %v1159 = vld [vmem:[#allocation8 + $0xf68] sm:$0xff]
    %v1160 = vld [vmem:[#allocation8 + $0xf70] sm:$0xff]
    %v1161 = vld [vmem:[#allocation8 + $0xf78] sm:$0xff]
    %v1162 = vld [vmem:[#allocation8 + $0xf80] sm:$0xff]
    %v1163 = vld [vmem:[#allocation8 + $0xf88] sm:$0xff]
    %v1164 = vld [vmem:[#allocation8 + $0xf90] sm:$0xff]
    %v1165 = vld [vmem:[#allocation8 + $0xf98] sm:$0xff]
    %v1166 = vld [vmem:[#allocation8 + $0xfa0] sm:$0xff]
    %v1167 = vld [vmem:[#allocation8 + $0xfa8] sm:$0xff]
    %v1168 = vld [vmem:[#allocation8 + $0xfb0] sm:$0xff]
    %v1169 = vld [vmem:[#allocation8 + $0xfb8] sm:$0xff]
    %v1170 = vld [vmem:[#allocation8 + $0xfc0] sm:$0xff]
    %v1171 = vld [vmem:[#allocation8 + $0xfc8] sm:$0xff]
    %v1172 = vld [vmem:[#allocation8 + $0xfd0] sm:$0xff]
    %v1173 = vld [vmem:[#allocation8 + $0xfd8] sm:$0xff]
    %v1174 = vld [vmem:[#allocation8 + $0xfe0] sm:$0xff]
    %v1175 = vld [vmem:[#allocation8 + $0xfe8] sm:$0xff]
    %v1176 = vld [vmem:[#allocation8 + $0xff0] sm:$0xff]
    %v1177 = vld [vmem:[#allocation8 + $0xff8] sm:$0xff]
    %v1182 = vunpack.c.l.b16 %v150
    %v1183 = vunpack.c.h.b16 %v150
    %v1184 = vunpack.c.l.b16 %v151
    %v1185 = vunpack.c.h.b16 %v151
    %v1186 = vunpack.c.l.b16 %v152
    %v1187 = vunpack.c.h.b16 %v152
    %v1188 = vunpack.c.l.b16 %v153
    %v1189 = vunpack.c.h.b16 %v153
    %v1190 = vpack.c.b16 %v1182, %v1182
    %v1191 = vpack.c.b16 %v1183, %v1183
    %v1192 = vpack.c.b16 %v1184, %v1184
    %v1193 = vpack.c.b16 %v1185, %v1185
    %v1194 = vpack.c.b16 %v1186, %v1186
    %v1195 = vpack.c.b16 %v1187, %v1187
    %v1196 = vpack.c.b16 %v1188, %v1188
    %v1197 = vpack.c.b16 %v1189, %v1189
    %v1718 = vunpack.c.l.b16 %v666
    %v1719 = vunpack.c.h.b16 %v666
    %v1720 = vunpack.c.l.b16 %v667
    %v1721 = vunpack.c.h.b16 %v667
    %v1722 = vunpack.c.l.b16 %v668
    %v1723 = vunpack.c.h.b16 %v668
    %v1724 = vunpack.c.l.b16 %v669
    %v1725 = vunpack.c.h.b16 %v669
    %v1726 = vunpack.c.l.b16 %v670
    %v1727 = vunpack.c.h.b16 %v670
    %v1728 = vunpack.c.l.b16 %v671
    %v1729 = vunpack.c.h.b16 %v671
    %v1730 = vunpack.c.l.b16 %v672
    %v1731 = vunpack.c.h.b16 %v672
    %v1732 = vunpack.c.l.b16 %v673
    %v1733 = vunpack.c.h.b16 %v673
    %v1734 = vunpack.c.l.b16 %v674
    %v1735 = vunpack.c.h.b16 %v674
    %v1736 = vunpack.c.l.b16 %v675
    %v1737 = vunpack.c.h.b16 %v675
    %v1738 = vunpack.c.l.b16 %v676
    %v1739 = vunpack.c.h.b16 %v676
    %v1740 = vunpack.c.l.b16 %v677
    %v1741 = vunpack.c.h.b16 %v677
    %v1742 = vunpack.c.l.b16 %v678
    %v1743 = vunpack.c.h.b16 %v678
    %v1744 = vunpack.c.l.b16 %v679
    %v1745 = vunpack.c.h.b16 %v679
    %v1746 = vunpack.c.l.b16 %v680
    %v1747 = vunpack.c.h.b16 %v680
    %v1748 = vunpack.c.l.b16 %v681
    %v1749 = vunpack.c.h.b16 %v681
    %v1750 = vunpack.c.l.b16 %v682
    %v1751 = vunpack.c.h.b16 %v682
    %v1752 = vunpack.c.l.b16 %v683
    %v1753 = vunpack.c.h.b16 %v683
    %v1754 = vunpack.c.l.b16 %v684
    %v1755 = vunpack.c.h.b16 %v684
    %v1756 = vunpack.c.l.b16 %v685
    %v1757 = vunpack.c.h.b16 %v685
    %v1758 = vunpack.c.l.b16 %v686
    %v1759 = vunpack.c.h.b16 %v686
    %v1760 = vunpack.c.l.b16 %v687
    %v1761 = vunpack.c.h.b16 %v687
    %v1762 = vunpack.c.l.b16 %v688
    %v1763 = vunpack.c.h.b16 %v688
    %v1764 = vunpack.c.l.b16 %v689
    %v1765 = vunpack.c.h.b16 %v689
    %v1766 = vunpack.c.l.b16 %v690
    %v1767 = vunpack.c.h.b16 %v690
    %v1768 = vunpack.c.l.b16 %v691
    %v1769 = vunpack.c.h.b16 %v691
    %v1770 = vunpack.c.l.b16 %v692
    %v1771 = vunpack.c.h.b16 %v692
    %v1772 = vunpack.c.l.b16 %v693
    %v1773 = vunpack.c.h.b16 %v693
    %v1774 = vunpack.c.l.b16 %v694
    %v1775 = vunpack.c.h.b16 %v694
    %v1776 = vunpack.c.l.b16 %v695
    %v1777 = vunpack.c.h.b16 %v695
    %v1778 = vunpack.c.l.b16 %v696
    %v1779 = vunpack.c.h.b16 %v696
    %v1780 = vunpack.c.l.b16 %v697
    %v1781 = vunpack.c.h.b16 %v697
    %v1782 = vunpack.c.l.b16 %v698
    %v1783 = vunpack.c.h.b16 %v698
    %v1784 = vunpack.c.l.b16 %v699
    %v1785 = vunpack.c.h.b16 %v699
    %v1786 = vunpack.c.l.b16 %v700
    %v1787 = vunpack.c.h.b16 %v700
    %v1788 = vunpack.c.l.b16 %v701
    %v1789 = vunpack.c.h.b16 %v701
    %v1790 = vunpack.c.l.b16 %v702
    %v1791 = vunpack.c.h.b16 %v702
    %v1792 = vunpack.c.l.b16 %v703
    %v1793 = vunpack.c.h.b16 %v703
    %v1794 = vunpack.c.l.b16 %v704
    %v1795 = vunpack.c.h.b16 %v704
    %v1796 = vunpack.c.l.b16 %v705
    %v1797 = vunpack.c.h.b16 %v705
    %v1798 = vunpack.c.l.b16 %v706
    %v1799 = vunpack.c.h.b16 %v706
    %v1800 = vunpack.c.l.b16 %v707
    %v1801 = vunpack.c.h.b16 %v707
    %v1802 = vunpack.c.l.b16 %v708
    %v1803 = vunpack.c.h.b16 %v708
    %v1804 = vunpack.c.l.b16 %v709
    %v1805 = vunpack.c.h.b16 %v709
    %v1806 = vunpack.c.l.b16 %v710
    %v1807 = vunpack.c.h.b16 %v710
    %v1808 = vunpack.c.l.b16 %v711
    %v1809 = vunpack.c.h.b16 %v711
    %v1810 = vunpack.c.l.b16 %v712
    %v1811 = vunpack.c.h.b16 %v712
    %v1812 = vunpack.c.l.b16 %v713
    %v1813 = vunpack.c.h.b16 %v713
    %v1814 = vunpack.c.l.b16 %v714
    %v1815 = vunpack.c.h.b16 %v714
    %v1816 = vunpack.c.l.b16 %v715
    %v1817 = vunpack.c.h.b16 %v715
    %v1818 = vunpack.c.l.b16 %v716
    %v1819 = vunpack.c.h.b16 %v716
    %v1820 = vunpack.c.l.b16 %v717
    %v1821 = vunpack.c.h.b16 %v717
    %v1822 = vunpack.c.l.b16 %v718
    %v1823 = vunpack.c.h.b16 %v718
    %v1824 = vunpack.c.l.b16 %v719
    %v1825 = vunpack.c.h.b16 %v719
    %v1826 = vunpack.c.l.b16 %v720
    %v1827 = vunpack.c.h.b16 %v720
    %v1828 = vunpack.c.l.b16 %v721
    %v1829 = vunpack.c.h.b16 %v721
    %v1830 = vunpack.c.l.b16 %v722
    %v1831 = vunpack.c.h.b16 %v722
    %v1832 = vunpack.c.l.b16 %v723
    %v1833 = vunpack.c.h.b16 %v723
    %v1834 = vunpack.c.l.b16 %v724
    %v1835 = vunpack.c.h.b16 %v724
    %v1836 = vunpack.c.l.b16 %v725
    %v1837 = vunpack.c.h.b16 %v725
    %v1838 = vunpack.c.l.b16 %v726
    %v1839 = vunpack.c.h.b16 %v726
    %v1840 = vunpack.c.l.b16 %v727
    %v1841 = vunpack.c.h.b16 %v727
    %v1842 = vunpack.c.l.b16 %v728
    %v1843 = vunpack.c.h.b16 %v728
    %v1844 = vunpack.c.l.b16 %v729
    %v1845 = vunpack.c.h.b16 %v729
    %v1846 = vunpack.c.l.b16 %v730
    %v1847 = vunpack.c.h.b16 %v730
    %v1848 = vunpack.c.l.b16 %v731
    %v1849 = vunpack.c.h.b16 %v731
    %v1850 = vunpack.c.l.b16 %v732
    %v1851 = vunpack.c.h.b16 %v732
    %v1852 = vunpack.c.l.b16 %v733
    %v1853 = vunpack.c.h.b16 %v733
    %v1854 = vunpack.c.l.b16 %v734
    %v1855 = vunpack.c.h.b16 %v734
    %v1856 = vunpack.c.l.b16 %v735
    %v1857 = vunpack.c.h.b16 %v735
    %v1858 = vunpack.c.l.b16 %v736
    %v1859 = vunpack.c.h.b16 %v736
    %v1860 = vunpack.c.l.b16 %v737
    %v1861 = vunpack.c.h.b16 %v737
    %v1862 = vunpack.c.l.b16 %v738
    %v1863 = vunpack.c.h.b16 %v738
    %v1864 = vunpack.c.l.b16 %v739
    %v1865 = vunpack.c.h.b16 %v739
    %v1866 = vunpack.c.l.b16 %v740
    %v1867 = vunpack.c.h.b16 %v740
    %v1868 = vunpack.c.l.b16 %v741
    %v1869 = vunpack.c.h.b16 %v741
    %v1870 = vunpack.c.l.b16 %v742
    %v1871 = vunpack.c.h.b16 %v742
    %v1872 = vunpack.c.l.b16 %v743
    %v1873 = vunpack.c.h.b16 %v743
    %v1874 = vunpack.c.l.b16 %v744
    %v1875 = vunpack.c.h.b16 %v744
    %v1876 = vunpack.c.l.b16 %v745
    %v1877 = vunpack.c.h.b16 %v745
    %v1878 = vunpack.c.l.b16 %v746
    %v1879 = vunpack.c.h.b16 %v746
    %v1880 = vunpack.c.l.b16 %v747
    %v1881 = vunpack.c.h.b16 %v747
    %v1882 = vunpack.c.l.b16 %v748
    %v1883 = vunpack.c.h.b16 %v748
    %v1884 = vunpack.c.l.b16 %v749
    %v1885 = vunpack.c.h.b16 %v749
    %v1886 = vunpack.c.l.b16 %v750
    %v1887 = vunpack.c.h.b16 %v750
    %v1888 = vunpack.c.l.b16 %v751
    %v1889 = vunpack.c.h.b16 %v751
    %v1890 = vunpack.c.l.b16 %v752
    %v1891 = vunpack.c.h.b16 %v752
    %v1892 = vunpack.c.l.b16 %v753
    %v1893 = vunpack.c.h.b16 %v753
    %v1894 = vunpack.c.l.b16 %v754
    %v1895 = vunpack.c.h.b16 %v754
    %v1896 = vunpack.c.l.b16 %v755
    %v1897 = vunpack.c.h.b16 %v755
    %v1898 = vunpack.c.l.b16 %v756
    %v1899 = vunpack.c.h.b16 %v756
    %v1900 = vunpack.c.l.b16 %v757
    %v1901 = vunpack.c.h.b16 %v757
    %v1902 = vunpack.c.l.b16 %v758
    %v1903 = vunpack.c.h.b16 %v758
    %v1904 = vunpack.c.l.b16 %v759
    %v1905 = vunpack.c.h.b16 %v759
    %v1906 = vunpack.c.l.b16 %v760
    %v1907 = vunpack.c.h.b16 %v760
    %v1908 = vunpack.c.l.b16 %v761
    %v1909 = vunpack.c.h.b16 %v761
    %v1910 = vunpack.c.l.b16 %v762
    %v1911 = vunpack.c.h.b16 %v762
    %v1912 = vunpack.c.l.b16 %v763
    %v1913 = vunpack.c.h.b16 %v763
    %v1914 = vunpack.c.l.b16 %v764
    %v1915 = vunpack.c.h.b16 %v764
    %v1916 = vunpack.c.l.b16 %v765
    %v1917 = vunpack.c.h.b16 %v765
    %v1918 = vunpack.c.l.b16 %v766
    %v1919 = vunpack.c.h.b16 %v766
    %v1920 = vunpack.c.l.b16 %v767
    %v1921 = vunpack.c.h.b16 %v767
    %v1922 = vunpack.c.l.b16 %v768
    %v1923 = vunpack.c.h.b16 %v768
    %v1924 = vunpack.c.l.b16 %v769
    %v1925 = vunpack.c.h.b16 %v769
    %v1926 = vunpack.c.l.b16 %v770
    %v1927 = vunpack.c.h.b16 %v770
    %v1928 = vunpack.c.l.b16 %v771
    %v1929 = vunpack.c.h.b16 %v771
    %v1930 = vunpack.c.l.b16 %v772
    %v1931 = vunpack.c.h.b16 %v772
    %v1932 = vunpack.c.l.b16 %v773
    %v1933 = vunpack.c.h.b16 %v773
    %v1934 = vunpack.c.l.b16 %v774
    %v1935 = vunpack.c.h.b16 %v774
    %v1936 = vunpack.c.l.b16 %v775
    %v1937 = vunpack.c.h.b16 %v775
    %v1938 = vunpack.c.l.b16 %v776
    %v1939 = vunpack.c.h.b16 %v776
    %v1940 = vunpack.c.l.b16 %v777
    %v1941 = vunpack.c.h.b16 %v777
    %v1942 = vunpack.c.l.b16 %v778
    %v1943 = vunpack.c.h.b16 %v778
    %v1944 = vunpack.c.l.b16 %v779
    %v1945 = vunpack.c.h.b16 %v779
    %v1946 = vunpack.c.l.b16 %v780
    %v1947 = vunpack.c.h.b16 %v780
    %v1948 = vunpack.c.l.b16 %v781
    %v1949 = vunpack.c.h.b16 %v781
    %v1950 = vunpack.c.l.b16 %v782
    %v1951 = vunpack.c.h.b16 %v782
    %v1952 = vunpack.c.l.b16 %v783
    %v1953 = vunpack.c.h.b16 %v783
    %v1954 = vunpack.c.l.b16 %v784
    %v1955 = vunpack.c.h.b16 %v784
    %v1956 = vunpack.c.l.b16 %v785
    %v1957 = vunpack.c.h.b16 %v785
    %v1958 = vunpack.c.l.b16 %v786
    %v1959 = vunpack.c.h.b16 %v786
    %v1960 = vunpack.c.l.b16 %v787
    %v1961 = vunpack.c.h.b16 %v787
    %v1962 = vunpack.c.l.b16 %v788
    %v1963 = vunpack.c.h.b16 %v788
    %v1964 = vunpack.c.l.b16 %v789
    %v1965 = vunpack.c.h.b16 %v789
    %v1966 = vunpack.c.l.b16 %v790
    %v1967 = vunpack.c.h.b16 %v790
    %v1968 = vunpack.c.l.b16 %v791
    %v1969 = vunpack.c.h.b16 %v791
    %v1970 = vunpack.c.l.b16 %v792
    %v1971 = vunpack.c.h.b16 %v792
    %v1972 = vunpack.c.l.b16 %v793
    %v1973 = vunpack.c.h.b16 %v793
    %v1974 = vunpack.c.l.b16 %v794
    %v1975 = vunpack.c.h.b16 %v794
    %v1976 = vunpack.c.l.b16 %v795
    %v1977 = vunpack.c.h.b16 %v795
    %v1978 = vunpack.c.l.b16 %v796
    %v1979 = vunpack.c.h.b16 %v796
    %v1980 = vunpack.c.l.b16 %v797
    %v1981 = vunpack.c.h.b16 %v797
    %v1982 = vunpack.c.l.b16 %v798
    %v1983 = vunpack.c.h.b16 %v798
    %v1984 = vunpack.c.l.b16 %v799
    %v1985 = vunpack.c.h.b16 %v799
    %v1986 = vunpack.c.l.b16 %v800
    %v1987 = vunpack.c.h.b16 %v800
    %v1988 = vunpack.c.l.b16 %v801
    %v1989 = vunpack.c.h.b16 %v801
    %v1990 = vunpack.c.l.b16 %v802
    %v1991 = vunpack.c.h.b16 %v802
    %v1992 = vunpack.c.l.b16 %v803
    %v1993 = vunpack.c.h.b16 %v803
    %v1994 = vunpack.c.l.b16 %v804
    %v1995 = vunpack.c.h.b16 %v804
    %v1996 = vunpack.c.l.b16 %v805
    %v1997 = vunpack.c.h.b16 %v805
    %v1998 = vunpack.c.l.b16 %v806
    %v1999 = vunpack.c.h.b16 %v806
    %v2000 = vunpack.c.l.b16 %v807
    %v2001 = vunpack.c.h.b16 %v807
    %v2002 = vunpack.c.l.b16 %v808
    %v2003 = vunpack.c.h.b16 %v808
    %v2004 = vunpack.c.l.b16 %v809
    %v2005 = vunpack.c.h.b16 %v809
    %v2006 = vunpack.c.l.b16 %v810
    %v2007 = vunpack.c.h.b16 %v810
    %v2008 = vunpack.c.l.b16 %v811
    %v2009 = vunpack.c.h.b16 %v811
    %v2010 = vunpack.c.l.b16 %v812
    %v2011 = vunpack.c.h.b16 %v812
    %v2012 = vunpack.c.l.b16 %v813
    %v2013 = vunpack.c.h.b16 %v813
    %v2014 = vunpack.c.l.b16 %v814
    %v2015 = vunpack.c.h.b16 %v814
    %v2016 = vunpack.c.l.b16 %v815
    %v2017 = vunpack.c.h.b16 %v815
    %v2018 = vunpack.c.l.b16 %v816
    %v2019 = vunpack.c.h.b16 %v816
    %v2020 = vunpack.c.l.b16 %v817
    %v2021 = vunpack.c.h.b16 %v817
    %v2022 = vunpack.c.l.b16 %v818
    %v2023 = vunpack.c.h.b16 %v818
    %v2024 = vunpack.c.l.b16 %v819
    %v2025 = vunpack.c.h.b16 %v819
    %v2026 = vunpack.c.l.b16 %v820
    %v2027 = vunpack.c.h.b16 %v820
    %v2028 = vunpack.c.l.b16 %v821
    %v2029 = vunpack.c.h.b16 %v821
    %v2030 = vunpack.c.l.b16 %v822
    %v2031 = vunpack.c.h.b16 %v822
    %v2032 = vunpack.c.l.b16 %v823
    %v2033 = vunpack.c.h.b16 %v823
    %v2034 = vunpack.c.l.b16 %v824
    %v2035 = vunpack.c.h.b16 %v824
    %v2036 = vunpack.c.l.b16 %v825
    %v2037 = vunpack.c.h.b16 %v825
    %v2038 = vunpack.c.l.b16 %v826
    %v2039 = vunpack.c.h.b16 %v826
    %v2040 = vunpack.c.l.b16 %v827
    %v2041 = vunpack.c.h.b16 %v827
    %v2042 = vunpack.c.l.b16 %v828
    %v2043 = vunpack.c.h.b16 %v828
    %v2044 = vunpack.c.l.b16 %v829
    %v2045 = vunpack.c.h.b16 %v829
    %v2046 = vunpack.c.l.b16 %v830
    %v2047 = vunpack.c.h.b16 %v830
    %v2048 = vunpack.c.l.b16 %v831
    %v2049 = vunpack.c.h.b16 %v831
    %v2050 = vunpack.c.l.b16 %v832
    %v2051 = vunpack.c.h.b16 %v832
    %v2052 = vunpack.c.l.b16 %v833
    %v2053 = vunpack.c.h.b16 %v833
    %v2054 = vunpack.c.l.b16 %v834
    %v2055 = vunpack.c.h.b16 %v834
    %v2056 = vunpack.c.l.b16 %v835
    %v2057 = vunpack.c.h.b16 %v835
    %v2058 = vunpack.c.l.b16 %v836
    %v2059 = vunpack.c.h.b16 %v836
    %v2060 = vunpack.c.l.b16 %v837
    %v2061 = vunpack.c.h.b16 %v837
    %v2062 = vunpack.c.l.b16 %v838
    %v2063 = vunpack.c.h.b16 %v838
    %v2064 = vunpack.c.l.b16 %v839
    %v2065 = vunpack.c.h.b16 %v839
    %v2066 = vunpack.c.l.b16 %v840
    %v2067 = vunpack.c.h.b16 %v840
    %v2068 = vunpack.c.l.b16 %v841
    %v2069 = vunpack.c.h.b16 %v841
    %v2070 = vunpack.c.l.b16 %v842
    %v2071 = vunpack.c.h.b16 %v842
    %v2072 = vunpack.c.l.b16 %v843
    %v2073 = vunpack.c.h.b16 %v843
    %v2074 = vunpack.c.l.b16 %v844
    %v2075 = vunpack.c.h.b16 %v844
    %v2076 = vunpack.c.l.b16 %v845
    %v2077 = vunpack.c.h.b16 %v845
    %v2078 = vunpack.c.l.b16 %v846
    %v2079 = vunpack.c.h.b16 %v846
    %v2080 = vunpack.c.l.b16 %v847
    %v2081 = vunpack.c.h.b16 %v847
    %v2082 = vunpack.c.l.b16 %v848
    %v2083 = vunpack.c.h.b16 %v848
    %v2084 = vunpack.c.l.b16 %v849
    %v2085 = vunpack.c.h.b16 %v849
    %v2086 = vunpack.c.l.b16 %v850
    %v2087 = vunpack.c.h.b16 %v850
    %v2088 = vunpack.c.l.b16 %v851
    %v2089 = vunpack.c.h.b16 %v851
    %v2090 = vunpack.c.l.b16 %v852
    %v2091 = vunpack.c.h.b16 %v852
    %v2092 = vunpack.c.l.b16 %v853
    %v2093 = vunpack.c.h.b16 %v853
    %v2094 = vunpack.c.l.b16 %v854
    %v2095 = vunpack.c.h.b16 %v854
    %v2096 = vunpack.c.l.b16 %v855
    %v2097 = vunpack.c.h.b16 %v855
    %v2098 = vunpack.c.l.b16 %v856
    %v2099 = vunpack.c.h.b16 %v856
    %v2100 = vunpack.c.l.b16 %v857
    %v2101 = vunpack.c.h.b16 %v857
    %v2102 = vunpack.c.l.b16 %v858
    %v2103 = vunpack.c.h.b16 %v858
    %v2104 = vunpack.c.l.b16 %v859
    %v2105 = vunpack.c.h.b16 %v859
    %v2106 = vunpack.c.l.b16 %v860
    %v2107 = vunpack.c.h.b16 %v860
    %v2108 = vunpack.c.l.b16 %v861
    %v2109 = vunpack.c.h.b16 %v861
    %v2110 = vunpack.c.l.b16 %v862
    %v2111 = vunpack.c.h.b16 %v862
    %v2112 = vunpack.c.l.b16 %v863
    %v2113 = vunpack.c.h.b16 %v863
    %v2114 = vunpack.c.l.b16 %v864
    %v2115 = vunpack.c.h.b16 %v864
    %v2116 = vunpack.c.l.b16 %v865
    %v2117 = vunpack.c.h.b16 %v865
    %v2118 = vunpack.c.l.b16 %v866
    %v2119 = vunpack.c.h.b16 %v866
    %v2120 = vunpack.c.l.b16 %v867
    %v2121 = vunpack.c.h.b16 %v867
    %v2122 = vunpack.c.l.b16 %v868
    %v2123 = vunpack.c.h.b16 %v868
    %v2124 = vunpack.c.l.b16 %v869
    %v2125 = vunpack.c.h.b16 %v869
    %v2126 = vunpack.c.l.b16 %v870
    %v2127 = vunpack.c.h.b16 %v870
    %v2128 = vunpack.c.l.b16 %v871
    %v2129 = vunpack.c.h.b16 %v871
    %v2130 = vunpack.c.l.b16 %v872
    %v2131 = vunpack.c.h.b16 %v872
    %v2132 = vunpack.c.l.b16 %v873
    %v2133 = vunpack.c.h.b16 %v873
    %v2134 = vunpack.c.l.b16 %v874
    %v2135 = vunpack.c.h.b16 %v874
    %v2136 = vunpack.c.l.b16 %v875
    %v2137 = vunpack.c.h.b16 %v875
    %v2138 = vunpack.c.l.b16 %v876
    %v2139 = vunpack.c.h.b16 %v876
    %v2140 = vunpack.c.l.b16 %v877
    %v2141 = vunpack.c.h.b16 %v877
    %v2142 = vunpack.c.l.b16 %v878
    %v2143 = vunpack.c.h.b16 %v878
    %v2144 = vunpack.c.l.b16 %v879
    %v2145 = vunpack.c.h.b16 %v879
    %v2146 = vunpack.c.l.b16 %v880
    %v2147 = vunpack.c.h.b16 %v880
    %v2148 = vunpack.c.l.b16 %v881
    %v2149 = vunpack.c.h.b16 %v881
    %v2150 = vunpack.c.l.b16 %v882
    %v2151 = vunpack.c.h.b16 %v882
    %v2152 = vunpack.c.l.b16 %v883
    %v2153 = vunpack.c.h.b16 %v883
    %v2154 = vunpack.c.l.b16 %v884
    %v2155 = vunpack.c.h.b16 %v884
    %v2156 = vunpack.c.l.b16 %v885
    %v2157 = vunpack.c.h.b16 %v885
    %v2158 = vunpack.c.l.b16 %v886
    %v2159 = vunpack.c.h.b16 %v886
    %v2160 = vunpack.c.l.b16 %v887
    %v2161 = vunpack.c.h.b16 %v887
    %v2162 = vunpack.c.l.b16 %v888
    %v2163 = vunpack.c.h.b16 %v888
    %v2164 = vunpack.c.l.b16 %v889
    %v2165 = vunpack.c.h.b16 %v889
    %v2166 = vunpack.c.l.b16 %v890
    %v2167 = vunpack.c.h.b16 %v890
    %v2168 = vunpack.c.l.b16 %v891
    %v2169 = vunpack.c.h.b16 %v891
    %v2170 = vunpack.c.l.b16 %v892
    %v2171 = vunpack.c.h.b16 %v892
    %v2172 = vunpack.c.l.b16 %v893
    %v2173 = vunpack.c.h.b16 %v893
    %v2174 = vunpack.c.l.b16 %v894
    %v2175 = vunpack.c.h.b16 %v894
    %v2176 = vunpack.c.l.b16 %v895
    %v2177 = vunpack.c.h.b16 %v895
    %v2178 = vunpack.c.l.b16 %v896
    %v2179 = vunpack.c.h.b16 %v896
    %v2180 = vunpack.c.l.b16 %v897
    %v2181 = vunpack.c.h.b16 %v897
    %v2182 = vunpack.c.l.b16 %v898
    %v2183 = vunpack.c.h.b16 %v898
    %v2184 = vunpack.c.l.b16 %v899
    %v2185 = vunpack.c.h.b16 %v899
    %v2186 = vunpack.c.l.b16 %v900
    %v2187 = vunpack.c.h.b16 %v900
    %v2188 = vunpack.c.l.b16 %v901
    %v2189 = vunpack.c.h.b16 %v901
    %v2190 = vunpack.c.l.b16 %v902
    %v2191 = vunpack.c.h.b16 %v902
    %v2192 = vunpack.c.l.b16 %v903
    %v2193 = vunpack.c.h.b16 %v903
    %v2194 = vunpack.c.l.b16 %v904
    %v2195 = vunpack.c.h.b16 %v904
    %v2196 = vunpack.c.l.b16 %v905
    %v2197 = vunpack.c.h.b16 %v905
    %v2198 = vunpack.c.l.b16 %v906
    %v2199 = vunpack.c.h.b16 %v906
    %v2200 = vunpack.c.l.b16 %v907
    %v2201 = vunpack.c.h.b16 %v907
    %v2202 = vunpack.c.l.b16 %v908
    %v2203 = vunpack.c.h.b16 %v908
    %v2204 = vunpack.c.l.b16 %v909
    %v2205 = vunpack.c.h.b16 %v909
    %v2206 = vunpack.c.l.b16 %v910
    %v2207 = vunpack.c.h.b16 %v910
    %v2208 = vunpack.c.l.b16 %v911
    %v2209 = vunpack.c.h.b16 %v911
    %v2210 = vunpack.c.l.b16 %v912
    %v2211 = vunpack.c.h.b16 %v912
    %v2212 = vunpack.c.l.b16 %v913
    %v2213 = vunpack.c.h.b16 %v913
    %v2214 = vunpack.c.l.b16 %v914
    %v2215 = vunpack.c.h.b16 %v914
    %v2216 = vunpack.c.l.b16 %v915
    %v2217 = vunpack.c.h.b16 %v915
    %v2218 = vunpack.c.l.b16 %v916
    %v2219 = vunpack.c.h.b16 %v916
    %v2220 = vunpack.c.l.b16 %v917
    %v2221 = vunpack.c.h.b16 %v917
    %v2222 = vunpack.c.l.b16 %v918
    %v2223 = vunpack.c.h.b16 %v918
    %v2224 = vunpack.c.l.b16 %v919
    %v2225 = vunpack.c.h.b16 %v919
    %v2226 = vunpack.c.l.b16 %v920
    %v2227 = vunpack.c.h.b16 %v920
    %v2228 = vunpack.c.l.b16 %v921
    %v2229 = vunpack.c.h.b16 %v921
    %v2230 = vunpack.c.l.b16 %v922
    %v2231 = vunpack.c.h.b16 %v922
    %v2232 = vunpack.c.l.b16 %v923
    %v2233 = vunpack.c.h.b16 %v923
    %v2234 = vunpack.c.l.b16 %v924
    %v2235 = vunpack.c.h.b16 %v924
    %v2236 = vunpack.c.l.b16 %v925
    %v2237 = vunpack.c.h.b16 %v925
    %v2238 = vunpack.c.l.b16 %v926
    %v2239 = vunpack.c.h.b16 %v926
    %v2240 = vunpack.c.l.b16 %v927
    %v2241 = vunpack.c.h.b16 %v927
    %v2242 = vunpack.c.l.b16 %v928
    %v2243 = vunpack.c.h.b16 %v928
    %v2244 = vunpack.c.l.b16 %v929
    %v2245 = vunpack.c.h.b16 %v929
    %v2246 = vunpack.c.l.b16 %v930
    %v2247 = vunpack.c.h.b16 %v930
    %v2248 = vunpack.c.l.b16 %v931
    %v2249 = vunpack.c.h.b16 %v931
    %v2250 = vunpack.c.l.b16 %v932
    %v2251 = vunpack.c.h.b16 %v932
    %v2252 = vunpack.c.l.b16 %v933
    %v2253 = vunpack.c.h.b16 %v933
    %v2254 = vunpack.c.l.b16 %v934
    %v2255 = vunpack.c.h.b16 %v934
    %v2256 = vunpack.c.l.b16 %v935
    %v2257 = vunpack.c.h.b16 %v935
    %v2258 = vunpack.c.l.b16 %v936
    %v2259 = vunpack.c.h.b16 %v936
    %v2260 = vunpack.c.l.b16 %v937
    %v2261 = vunpack.c.h.b16 %v937
    %v2262 = vunpack.c.l.b16 %v938
    %v2263 = vunpack.c.h.b16 %v938
    %v2264 = vunpack.c.l.b16 %v939
    %v2265 = vunpack.c.h.b16 %v939
    %v2266 = vunpack.c.l.b16 %v940
    %v2267 = vunpack.c.h.b16 %v940
    %v2268 = vunpack.c.l.b16 %v941
    %v2269 = vunpack.c.h.b16 %v941
    %v2270 = vunpack.c.l.b16 %v942
    %v2271 = vunpack.c.h.b16 %v942
    %v2272 = vunpack.c.l.b16 %v943
    %v2273 = vunpack.c.h.b16 %v943
    %v2274 = vunpack.c.l.b16 %v944
    %v2275 = vunpack.c.h.b16 %v944
    %v2276 = vunpack.c.l.b16 %v945
    %v2277 = vunpack.c.h.b16 %v945
    %v2278 = vunpack.c.l.b16 %v946
    %v2279 = vunpack.c.h.b16 %v946
    %v2280 = vunpack.c.l.b16 %v947
    %v2281 = vunpack.c.h.b16 %v947
    %v2282 = vunpack.c.l.b16 %v948
    %v2283 = vunpack.c.h.b16 %v948
    %v2284 = vunpack.c.l.b16 %v949
    %v2285 = vunpack.c.h.b16 %v949
    %v2286 = vunpack.c.l.b16 %v950
    %v2287 = vunpack.c.h.b16 %v950
    %v2288 = vunpack.c.l.b16 %v951
    %v2289 = vunpack.c.h.b16 %v951
    %v2290 = vunpack.c.l.b16 %v952
    %v2291 = vunpack.c.h.b16 %v952
    %v2292 = vunpack.c.l.b16 %v953
    %v2293 = vunpack.c.h.b16 %v953
    %v2294 = vunpack.c.l.b16 %v954
    %v2295 = vunpack.c.h.b16 %v954
    %v2296 = vunpack.c.l.b16 %v955
    %v2297 = vunpack.c.h.b16 %v955
    %v2298 = vunpack.c.l.b16 %v956
    %v2299 = vunpack.c.h.b16 %v956
    %v2300 = vunpack.c.l.b16 %v957
    %v2301 = vunpack.c.h.b16 %v957
    %v2302 = vunpack.c.l.b16 %v958
    %v2303 = vunpack.c.h.b16 %v958
    %v2304 = vunpack.c.l.b16 %v959
    %v2305 = vunpack.c.h.b16 %v959
    %v2306 = vunpack.c.l.b16 %v960
    %v2307 = vunpack.c.h.b16 %v960
    %v2308 = vunpack.c.l.b16 %v961
    %v2309 = vunpack.c.h.b16 %v961
    %v2310 = vunpack.c.l.b16 %v962
    %v2311 = vunpack.c.h.b16 %v962
    %v2312 = vunpack.c.l.b16 %v963
    %v2313 = vunpack.c.h.b16 %v963
    %v2314 = vunpack.c.l.b16 %v964
    %v2315 = vunpack.c.h.b16 %v964
    %v2316 = vunpack.c.l.b16 %v965
    %v2317 = vunpack.c.h.b16 %v965
    %v2318 = vunpack.c.l.b16 %v966
    %v2319 = vunpack.c.h.b16 %v966
    %v2320 = vunpack.c.l.b16 %v967
    %v2321 = vunpack.c.h.b16 %v967
    %v2322 = vunpack.c.l.b16 %v968
    %v2323 = vunpack.c.h.b16 %v968
    %v2324 = vunpack.c.l.b16 %v969
    %v2325 = vunpack.c.h.b16 %v969
    %v2326 = vunpack.c.l.b16 %v970
    %v2327 = vunpack.c.h.b16 %v970
    %v2328 = vunpack.c.l.b16 %v971
    %v2329 = vunpack.c.h.b16 %v971
    %v2330 = vunpack.c.l.b16 %v972
    %v2331 = vunpack.c.h.b16 %v972
    %v2332 = vunpack.c.l.b16 %v973
    %v2333 = vunpack.c.h.b16 %v973
    %v2334 = vunpack.c.l.b16 %v974
    %v2335 = vunpack.c.h.b16 %v974
    %v2336 = vunpack.c.l.b16 %v975
    %v2337 = vunpack.c.h.b16 %v975
    %v2338 = vunpack.c.l.b16 %v976
    %v2339 = vunpack.c.h.b16 %v976
    %v2340 = vunpack.c.l.b16 %v977
    %v2341 = vunpack.c.h.b16 %v977
    %v2342 = vunpack.c.l.b16 %v978
    %v2343 = vunpack.c.h.b16 %v978
    %v2344 = vunpack.c.l.b16 %v979
    %v2345 = vunpack.c.h.b16 %v979
    %v2346 = vunpack.c.l.b16 %v980
    %v2347 = vunpack.c.h.b16 %v980
    %v2348 = vunpack.c.l.b16 %v981
    %v2349 = vunpack.c.h.b16 %v981
    %v2350 = vunpack.c.l.b16 %v982
    %v2351 = vunpack.c.h.b16 %v982
    %v2352 = vunpack.c.l.b16 %v983
    %v2353 = vunpack.c.h.b16 %v983
    %v2354 = vunpack.c.l.b16 %v984
    %v2355 = vunpack.c.h.b16 %v984
    %v2356 = vunpack.c.l.b16 %v985
    %v2357 = vunpack.c.h.b16 %v985
    %v2358 = vunpack.c.l.b16 %v986
    %v2359 = vunpack.c.h.b16 %v986
    %v2360 = vunpack.c.l.b16 %v987
    %v2361 = vunpack.c.h.b16 %v987
    %v2362 = vunpack.c.l.b16 %v988
    %v2363 = vunpack.c.h.b16 %v988
    %v2364 = vunpack.c.l.b16 %v989
    %v2365 = vunpack.c.h.b16 %v989
    %v2366 = vunpack.c.l.b16 %v990
    %v2367 = vunpack.c.h.b16 %v990
    %v2368 = vunpack.c.l.b16 %v991
    %v2369 = vunpack.c.h.b16 %v991
    %v2370 = vunpack.c.l.b16 %v992
    %v2371 = vunpack.c.h.b16 %v992
    %v2372 = vunpack.c.l.b16 %v993
    %v2373 = vunpack.c.h.b16 %v993
    %v2374 = vunpack.c.l.b16 %v994
    %v2375 = vunpack.c.h.b16 %v994
    %v2376 = vunpack.c.l.b16 %v995
    %v2377 = vunpack.c.h.b16 %v995
    %v2378 = vunpack.c.l.b16 %v996
    %v2379 = vunpack.c.h.b16 %v996
    %v2380 = vunpack.c.l.b16 %v997
    %v2381 = vunpack.c.h.b16 %v997
    %v2382 = vunpack.c.l.b16 %v998
    %v2383 = vunpack.c.h.b16 %v998
    %v2384 = vunpack.c.l.b16 %v999
    %v2385 = vunpack.c.h.b16 %v999
    %v2386 = vunpack.c.l.b16 %v1000
    %v2387 = vunpack.c.h.b16 %v1000
    %v2388 = vunpack.c.l.b16 %v1001
    %v2389 = vunpack.c.h.b16 %v1001
    %v2390 = vunpack.c.l.b16 %v1002
    %v2391 = vunpack.c.h.b16 %v1002
    %v2392 = vunpack.c.l.b16 %v1003
    %v2393 = vunpack.c.h.b16 %v1003
    %v2394 = vunpack.c.l.b16 %v1004
    %v2395 = vunpack.c.h.b16 %v1004
    %v2396 = vunpack.c.l.b16 %v1005
    %v2397 = vunpack.c.h.b16 %v1005
    %v2398 = vunpack.c.l.b16 %v1006
    %v2399 = vunpack.c.h.b16 %v1006
    %v2400 = vunpack.c.l.b16 %v1007
    %v2401 = vunpack.c.h.b16 %v1007
    %v2402 = vunpack.c.l.b16 %v1008
    %v2403 = vunpack.c.h.b16 %v1008
    %v2404 = vunpack.c.l.b16 %v1009
    %v2405 = vunpack.c.h.b16 %v1009
    %v2406 = vunpack.c.l.b16 %v1010
    %v2407 = vunpack.c.h.b16 %v1010
    %v2408 = vunpack.c.l.b16 %v1011
    %v2409 = vunpack.c.h.b16 %v1011
    %v2410 = vunpack.c.l.b16 %v1012
    %v2411 = vunpack.c.h.b16 %v1012
    %v2412 = vunpack.c.l.b16 %v1013
    %v2413 = vunpack.c.h.b16 %v1013
    %v2414 = vunpack.c.l.b16 %v1014
    %v2415 = vunpack.c.h.b16 %v1014
    %v2416 = vunpack.c.l.b16 %v1015
    %v2417 = vunpack.c.h.b16 %v1015
    %v2418 = vunpack.c.l.b16 %v1016
    %v2419 = vunpack.c.h.b16 %v1016
    %v2420 = vunpack.c.l.b16 %v1017
    %v2421 = vunpack.c.h.b16 %v1017
    %v2422 = vunpack.c.l.b16 %v1018
    %v2423 = vunpack.c.h.b16 %v1018
    %v2424 = vunpack.c.l.b16 %v1019
    %v2425 = vunpack.c.h.b16 %v1019
    %v2426 = vunpack.c.l.b16 %v1020
    %v2427 = vunpack.c.h.b16 %v1020
    %v2428 = vunpack.c.l.b16 %v1021
    %v2429 = vunpack.c.h.b16 %v1021
    %v2430 = vunpack.c.l.b16 %v1022
    %v2431 = vunpack.c.h.b16 %v1022
    %v2432 = vunpack.c.l.b16 %v1023
    %v2433 = vunpack.c.h.b16 %v1023
    %v2434 = vunpack.c.l.b16 %v1024
    %v2435 = vunpack.c.h.b16 %v1024
    %v2436 = vunpack.c.l.b16 %v1025
    %v2437 = vunpack.c.h.b16 %v1025
    %v2438 = vunpack.c.l.b16 %v1026
    %v2439 = vunpack.c.h.b16 %v1026
    %v2440 = vunpack.c.l.b16 %v1027
    %v2441 = vunpack.c.h.b16 %v1027
    %v2442 = vunpack.c.l.b16 %v1028
    %v2443 = vunpack.c.h.b16 %v1028
    %v2444 = vunpack.c.l.b16 %v1029
    %v2445 = vunpack.c.h.b16 %v1029
    %v2446 = vunpack.c.l.b16 %v1030
    %v2447 = vunpack.c.h.b16 %v1030
    %v2448 = vunpack.c.l.b16 %v1031
    %v2449 = vunpack.c.h.b16 %v1031
    %v2450 = vunpack.c.l.b16 %v1032
    %v2451 = vunpack.c.h.b16 %v1032
    %v2452 = vunpack.c.l.b16 %v1033
    %v2453 = vunpack.c.h.b16 %v1033
    %v2454 = vunpack.c.l.b16 %v1034
    %v2455 = vunpack.c.h.b16 %v1034
    %v2456 = vunpack.c.l.b16 %v1035
    %v2457 = vunpack.c.h.b16 %v1035
    %v2458 = vunpack.c.l.b16 %v1036
    %v2459 = vunpack.c.h.b16 %v1036
    %v2460 = vunpack.c.l.b16 %v1037
    %v2461 = vunpack.c.h.b16 %v1037
    %v2462 = vunpack.c.l.b16 %v1038
    %v2463 = vunpack.c.h.b16 %v1038
    %v2464 = vunpack.c.l.b16 %v1039
    %v2465 = vunpack.c.h.b16 %v1039
    %v2466 = vunpack.c.l.b16 %v1040
    %v2467 = vunpack.c.h.b16 %v1040
    %v2468 = vunpack.c.l.b16 %v1041
    %v2469 = vunpack.c.h.b16 %v1041
    %v2470 = vunpack.c.l.b16 %v1042
    %v2471 = vunpack.c.h.b16 %v1042
    %v2472 = vunpack.c.l.b16 %v1043
    %v2473 = vunpack.c.h.b16 %v1043
    %v2474 = vunpack.c.l.b16 %v1044
    %v2475 = vunpack.c.h.b16 %v1044
    %v2476 = vunpack.c.l.b16 %v1045
    %v2477 = vunpack.c.h.b16 %v1045
    %v2478 = vunpack.c.l.b16 %v1046
    %v2479 = vunpack.c.h.b16 %v1046
    %v2480 = vunpack.c.l.b16 %v1047
    %v2481 = vunpack.c.h.b16 %v1047
    %v2482 = vunpack.c.l.b16 %v1048
    %v2483 = vunpack.c.h.b16 %v1048
    %v2484 = vunpack.c.l.b16 %v1049
    %v2485 = vunpack.c.h.b16 %v1049
    %v2486 = vunpack.c.l.b16 %v1050
    %v2487 = vunpack.c.h.b16 %v1050
    %v2488 = vunpack.c.l.b16 %v1051
    %v2489 = vunpack.c.h.b16 %v1051
    %v2490 = vunpack.c.l.b16 %v1052
    %v2491 = vunpack.c.h.b16 %v1052
    %v2492 = vunpack.c.l.b16 %v1053
    %v2493 = vunpack.c.h.b16 %v1053
    %v2494 = vunpack.c.l.b16 %v1054
    %v2495 = vunpack.c.h.b16 %v1054
    %v2496 = vunpack.c.l.b16 %v1055
    %v2497 = vunpack.c.h.b16 %v1055
    %v2498 = vunpack.c.l.b16 %v1056
    %v2499 = vunpack.c.h.b16 %v1056
    %v2500 = vunpack.c.l.b16 %v1057
    %v2501 = vunpack.c.h.b16 %v1057
    %v2502 = vunpack.c.l.b16 %v1058
    %v2503 = vunpack.c.h.b16 %v1058
    %v2504 = vunpack.c.l.b16 %v1059
    %v2505 = vunpack.c.h.b16 %v1059
    %v2506 = vunpack.c.l.b16 %v1060
    %v2507 = vunpack.c.h.b16 %v1060
    %v2508 = vunpack.c.l.b16 %v1061
    %v2509 = vunpack.c.h.b16 %v1061
    %v2510 = vunpack.c.l.b16 %v1062
    %v2511 = vunpack.c.h.b16 %v1062
    %v2512 = vunpack.c.l.b16 %v1063
    %v2513 = vunpack.c.h.b16 %v1063
    %v2514 = vunpack.c.l.b16 %v1064
    %v2515 = vunpack.c.h.b16 %v1064
    %v2516 = vunpack.c.l.b16 %v1065
    %v2517 = vunpack.c.h.b16 %v1065
    %v2518 = vunpack.c.l.b16 %v1066
    %v2519 = vunpack.c.h.b16 %v1066
    %v2520 = vunpack.c.l.b16 %v1067
    %v2521 = vunpack.c.h.b16 %v1067
    %v2522 = vunpack.c.l.b16 %v1068
    %v2523 = vunpack.c.h.b16 %v1068
    %v2524 = vunpack.c.l.b16 %v1069
    %v2525 = vunpack.c.h.b16 %v1069
    %v2526 = vunpack.c.l.b16 %v1070
    %v2527 = vunpack.c.h.b16 %v1070
    %v2528 = vunpack.c.l.b16 %v1071
    %v2529 = vunpack.c.h.b16 %v1071
    %v2530 = vunpack.c.l.b16 %v1072
    %v2531 = vunpack.c.h.b16 %v1072
    %v2532 = vunpack.c.l.b16 %v1073
    %v2533 = vunpack.c.h.b16 %v1073
    %v2534 = vunpack.c.l.b16 %v1074
    %v2535 = vunpack.c.h.b16 %v1074
    %v2536 = vunpack.c.l.b16 %v1075
    %v2537 = vunpack.c.h.b16 %v1075
    %v2538 = vunpack.c.l.b16 %v1076
    %v2539 = vunpack.c.h.b16 %v1076
    %v2540 = vunpack.c.l.b16 %v1077
    %v2541 = vunpack.c.h.b16 %v1077
    %v2542 = vunpack.c.l.b16 %v1078
    %v2543 = vunpack.c.h.b16 %v1078
    %v2544 = vunpack.c.l.b16 %v1079
    %v2545 = vunpack.c.h.b16 %v1079
    %v2546 = vunpack.c.l.b16 %v1080
    %v2547 = vunpack.c.h.b16 %v1080
    %v2548 = vunpack.c.l.b16 %v1081
    %v2549 = vunpack.c.h.b16 %v1081
    %v2550 = vunpack.c.l.b16 %v1082
    %v2551 = vunpack.c.h.b16 %v1082
    %v2552 = vunpack.c.l.b16 %v1083
    %v2553 = vunpack.c.h.b16 %v1083
    %v2554 = vunpack.c.l.b16 %v1084
    %v2555 = vunpack.c.h.b16 %v1084
    %v2556 = vunpack.c.l.b16 %v1085
    %v2557 = vunpack.c.h.b16 %v1085
    %v2558 = vunpack.c.l.b16 %v1086
    %v2559 = vunpack.c.h.b16 %v1086
    %v2560 = vunpack.c.l.b16 %v1087
    %v2561 = vunpack.c.h.b16 %v1087
    %v2562 = vunpack.c.l.b16 %v1088
    %v2563 = vunpack.c.h.b16 %v1088
    %v2564 = vunpack.c.l.b16 %v1089
    %v2565 = vunpack.c.h.b16 %v1089
    %v2566 = vunpack.c.l.b16 %v1090
    %v2567 = vunpack.c.h.b16 %v1090
    %v2568 = vunpack.c.l.b16 %v1091
    %v2569 = vunpack.c.h.b16 %v1091
    %v2570 = vunpack.c.l.b16 %v1092
    %v2571 = vunpack.c.h.b16 %v1092
    %v2572 = vunpack.c.l.b16 %v1093
    %v2573 = vunpack.c.h.b16 %v1093
    %v2574 = vunpack.c.l.b16 %v1094
    %v2575 = vunpack.c.h.b16 %v1094
    %v2576 = vunpack.c.l.b16 %v1095
    %v2577 = vunpack.c.h.b16 %v1095
    %v2578 = vunpack.c.l.b16 %v1096
    %v2579 = vunpack.c.h.b16 %v1096
    %v2580 = vunpack.c.l.b16 %v1097
    %v2581 = vunpack.c.h.b16 %v1097
    %v2582 = vunpack.c.l.b16 %v1098
    %v2583 = vunpack.c.h.b16 %v1098
    %v2584 = vunpack.c.l.b16 %v1099
    %v2585 = vunpack.c.h.b16 %v1099
    %v2586 = vunpack.c.l.b16 %v1100
    %v2587 = vunpack.c.h.b16 %v1100
    %v2588 = vunpack.c.l.b16 %v1101
    %v2589 = vunpack.c.h.b16 %v1101
    %v2590 = vunpack.c.l.b16 %v1102
    %v2591 = vunpack.c.h.b16 %v1102
    %v2592 = vunpack.c.l.b16 %v1103
    %v2593 = vunpack.c.h.b16 %v1103
    %v2594 = vunpack.c.l.b16 %v1104
    %v2595 = vunpack.c.h.b16 %v1104
    %v2596 = vunpack.c.l.b16 %v1105
    %v2597 = vunpack.c.h.b16 %v1105
    %v2598 = vunpack.c.l.b16 %v1106
    %v2599 = vunpack.c.h.b16 %v1106
    %v2600 = vunpack.c.l.b16 %v1107
    %v2601 = vunpack.c.h.b16 %v1107
    %v2602 = vunpack.c.l.b16 %v1108
    %v2603 = vunpack.c.h.b16 %v1108
    %v2604 = vunpack.c.l.b16 %v1109
    %v2605 = vunpack.c.h.b16 %v1109
    %v2606 = vunpack.c.l.b16 %v1110
    %v2607 = vunpack.c.h.b16 %v1110
    %v2608 = vunpack.c.l.b16 %v1111
    %v2609 = vunpack.c.h.b16 %v1111
    %v2610 = vunpack.c.l.b16 %v1112
    %v2611 = vunpack.c.h.b16 %v1112
    %v2612 = vunpack.c.l.b16 %v1113
    %v2613 = vunpack.c.h.b16 %v1113
    %v2614 = vunpack.c.l.b16 %v1114
    %v2615 = vunpack.c.h.b16 %v1114
    %v2616 = vunpack.c.l.b16 %v1115
    %v2617 = vunpack.c.h.b16 %v1115
    %v2618 = vunpack.c.l.b16 %v1116
    %v2619 = vunpack.c.h.b16 %v1116
    %v2620 = vunpack.c.l.b16 %v1117
    %v2621 = vunpack.c.h.b16 %v1117
    %v2622 = vunpack.c.l.b16 %v1118
    %v2623 = vunpack.c.h.b16 %v1118
    %v2624 = vunpack.c.l.b16 %v1119
    %v2625 = vunpack.c.h.b16 %v1119
    %v2626 = vunpack.c.l.b16 %v1120
    %v2627 = vunpack.c.h.b16 %v1120
    %v2628 = vunpack.c.l.b16 %v1121
    %v2629 = vunpack.c.h.b16 %v1121
    %v2630 = vunpack.c.l.b16 %v1122
    %v2631 = vunpack.c.h.b16 %v1122
    %v2632 = vunpack.c.l.b16 %v1123
    %v2633 = vunpack.c.h.b16 %v1123
    %v2634 = vunpack.c.l.b16 %v1124
    %v2635 = vunpack.c.h.b16 %v1124
    %v2636 = vunpack.c.l.b16 %v1125
    %v2637 = vunpack.c.h.b16 %v1125
    %v2638 = vunpack.c.l.b16 %v1126
    %v2639 = vunpack.c.h.b16 %v1126
    %v2640 = vunpack.c.l.b16 %v1127
    %v2641 = vunpack.c.h.b16 %v1127
    %v2642 = vunpack.c.l.b16 %v1128
    %v2643 = vunpack.c.h.b16 %v1128
    %v2644 = vunpack.c.l.b16 %v1129
    %v2645 = vunpack.c.h.b16 %v1129
    %v2646 = vunpack.c.l.b16 %v1130
    %v2647 = vunpack.c.h.b16 %v1130
    %v2648 = vunpack.c.l.b16 %v1131
    %v2649 = vunpack.c.h.b16 %v1131
    %v2650 = vunpack.c.l.b16 %v1132
    %v2651 = vunpack.c.h.b16 %v1132
    %v2652 = vunpack.c.l.b16 %v1133
    %v2653 = vunpack.c.h.b16 %v1133
    %v2654 = vunpack.c.l.b16 %v1134
    %v2655 = vunpack.c.h.b16 %v1134
    %v2656 = vunpack.c.l.b16 %v1135
    %v2657 = vunpack.c.h.b16 %v1135
    %v2658 = vunpack.c.l.b16 %v1136
    %v2659 = vunpack.c.h.b16 %v1136
    %v2660 = vunpack.c.l.b16 %v1137
    %v2661 = vunpack.c.h.b16 %v1137
    %v2662 = vunpack.c.l.b16 %v1138
    %v2663 = vunpack.c.h.b16 %v1138
    %v2664 = vunpack.c.l.b16 %v1139
    %v2665 = vunpack.c.h.b16 %v1139
    %v2666 = vunpack.c.l.b16 %v1140
    %v2667 = vunpack.c.h.b16 %v1140
    %v2668 = vunpack.c.l.b16 %v1141
    %v2669 = vunpack.c.h.b16 %v1141
    %v2670 = vunpack.c.l.b16 %v1142
    %v2671 = vunpack.c.h.b16 %v1142
    %v2672 = vunpack.c.l.b16 %v1143
    %v2673 = vunpack.c.h.b16 %v1143
    %v2674 = vunpack.c.l.b16 %v1144
    %v2675 = vunpack.c.h.b16 %v1144
    %v2676 = vunpack.c.l.b16 %v1145
    %v2677 = vunpack.c.h.b16 %v1145
    %v2678 = vunpack.c.l.b16 %v1146
    %v2679 = vunpack.c.h.b16 %v1146
    %v2680 = vunpack.c.l.b16 %v1147
    %v2681 = vunpack.c.h.b16 %v1147
    %v2682 = vunpack.c.l.b16 %v1148
    %v2683 = vunpack.c.h.b16 %v1148
    %v2684 = vunpack.c.l.b16 %v1149
    %v2685 = vunpack.c.h.b16 %v1149
    %v2686 = vunpack.c.l.b16 %v1150
    %v2687 = vunpack.c.h.b16 %v1150
    %v2688 = vunpack.c.l.b16 %v1151
    %v2689 = vunpack.c.h.b16 %v1151
    %v2690 = vunpack.c.l.b16 %v1152
    %v2691 = vunpack.c.h.b16 %v1152
    %v2692 = vunpack.c.l.b16 %v1153
    %v2693 = vunpack.c.h.b16 %v1153
    %v2694 = vunpack.c.l.b16 %v1154
    %v2695 = vunpack.c.h.b16 %v1154
    %v2696 = vunpack.c.l.b16 %v1155
    %v2697 = vunpack.c.h.b16 %v1155
    %v2698 = vunpack.c.l.b16 %v1156
    %v2699 = vunpack.c.h.b16 %v1156
    %v2700 = vunpack.c.l.b16 %v1157
    %v2701 = vunpack.c.h.b16 %v1157
    %v2702 = vunpack.c.l.b16 %v1158
    %v2703 = vunpack.c.h.b16 %v1158
    %v2704 = vunpack.c.l.b16 %v1159
    %v2705 = vunpack.c.h.b16 %v1159
    %v2706 = vunpack.c.l.b16 %v1160
    %v2707 = vunpack.c.h.b16 %v1160
    %v2708 = vunpack.c.l.b16 %v1161
    %v2709 = vunpack.c.h.b16 %v1161
    %v2710 = vunpack.c.l.b16 %v1162
    %v2711 = vunpack.c.h.b16 %v1162
    %v2712 = vunpack.c.l.b16 %v1163
    %v2713 = vunpack.c.h.b16 %v1163
    %v2714 = vunpack.c.l.b16 %v1164
    %v2715 = vunpack.c.h.b16 %v1164
    %v2716 = vunpack.c.l.b16 %v1165
    %v2717 = vunpack.c.h.b16 %v1165
    %v2718 = vunpack.c.l.b16 %v1166
    %v2719 = vunpack.c.h.b16 %v1166
    %v2720 = vunpack.c.l.b16 %v1167
    %v2721 = vunpack.c.h.b16 %v1167
    %v2722 = vunpack.c.l.b16 %v1168
    %v2723 = vunpack.c.h.b16 %v1168
    %v2724 = vunpack.c.l.b16 %v1169
    %v2725 = vunpack.c.h.b16 %v1169
    %v2726 = vunpack.c.l.b16 %v1170
    %v2727 = vunpack.c.h.b16 %v1170
    %v2728 = vunpack.c.l.b16 %v1171
    %v2729 = vunpack.c.h.b16 %v1171
    %v2730 = vunpack.c.l.b16 %v1172
    %v2731 = vunpack.c.h.b16 %v1172
    %v2732 = vunpack.c.l.b16 %v1173
    %v2733 = vunpack.c.h.b16 %v1173
    %v2734 = vunpack.c.l.b16 %v1174
    %v2735 = vunpack.c.h.b16 %v1174
    %v2736 = vunpack.c.l.b16 %v1175
    %v2737 = vunpack.c.h.b16 %v1175
    %v2738 = vunpack.c.l.b16 %v1176
    %v2739 = vunpack.c.h.b16 %v1176
    %v2740 = vunpack.c.l.b16 %v1177
    %v2741 = vunpack.c.h.b16 %v1177
    %v2742 = vpack.c.b16 %v1726, %v1718
    %v2743 = vpack.c.b16 %v1727, %v1719
    %v2744 = vpack.c.b16 %v1728, %v1720
    %v2745 = vpack.c.b16 %v1729, %v1721
    %v2746 = vpack.c.b16 %v1730, %v1722
    %v2747 = vpack.c.b16 %v1731, %v1723
    %v2748 = vpack.c.b16 %v1732, %v1724
    %v2749 = vpack.c.b16 %v1733, %v1725
    %v2750 = vpack.c.b16 %v1742, %v1734
    %v2751 = vpack.c.b16 %v1743, %v1735
    %v2752 = vpack.c.b16 %v1744, %v1736
    %v2753 = vpack.c.b16 %v1745, %v1737
    %v2754 = vpack.c.b16 %v1746, %v1738
    %v2755 = vpack.c.b16 %v1747, %v1739
    %v2756 = vpack.c.b16 %v1748, %v1740
    %v2757 = vpack.c.b16 %v1749, %v1741
    %v2758 = vpack.c.b16 %v1758, %v1750
    %v2759 = vpack.c.b16 %v1759, %v1751
    %v2760 = vpack.c.b16 %v1760, %v1752
    %v2761 = vpack.c.b16 %v1761, %v1753
    %v2762 = vpack.c.b16 %v1762, %v1754
    %v2763 = vpack.c.b16 %v1763, %v1755
    %v2764 = vpack.c.b16 %v1764, %v1756
    %v2765 = vpack.c.b16 %v1765, %v1757
    %v2766 = vpack.c.b16 %v1774, %v1766
    %v2767 = vpack.c.b16 %v1775, %v1767
    %v2768 = vpack.c.b16 %v1776, %v1768
    %v2769 = vpack.c.b16 %v1777, %v1769
    %v2770 = vpack.c.b16 %v1778, %v1770
    %v2771 = vpack.c.b16 %v1779, %v1771
    %v2772 = vpack.c.b16 %v1780, %v1772
    %v2773 = vpack.c.b16 %v1781, %v1773
    %v2774 = vpack.c.b16 %v1790, %v1782
    %v2775 = vpack.c.b16 %v1791, %v1783
    %v2776 = vpack.c.b16 %v1792, %v1784
    %v2777 = vpack.c.b16 %v1793, %v1785
    %v2778 = vpack.c.b16 %v1794, %v1786
    %v2779 = vpack.c.b16 %v1795, %v1787
    %v2780 = vpack.c.b16 %v1796, %v1788
    %v2781 = vpack.c.b16 %v1797, %v1789
    %v2782 = vpack.c.b16 %v1806, %v1798
    %v2783 = vpack.c.b16 %v1807, %v1799
    %v2784 = vpack.c.b16 %v1808, %v1800
    %v2785 = vpack.c.b16 %v1809, %v1801
    %v2786 = vpack.c.b16 %v1810, %v1802
    %v2787 = vpack.c.b16 %v1811, %v1803
    %v2788 = vpack.c.b16 %v1812, %v1804
    %v2789 = vpack.c.b16 %v1813, %v1805
    %v2790 = vpack.c.b16 %v1822, %v1814
    %v2791 = vpack.c.b16 %v1823, %v1815
    %v2792 = vpack.c.b16 %v1824, %v1816
    %v2793 = vpack.c.b16 %v1825, %v1817
    %v2794 = vpack.c.b16 %v1826, %v1818
    %v2795 = vpack.c.b16 %v1827, %v1819
    %v2796 = vpack.c.b16 %v1828, %v1820
    %v2797 = vpack.c.b16 %v1829, %v1821
    %v2798 = vpack.c.b16 %v1838, %v1830
    %v2799 = vpack.c.b16 %v1839, %v1831
    %v2800 = vpack.c.b16 %v1840, %v1832
    %v2801 = vpack.c.b16 %v1841, %v1833
    %v2802 = vpack.c.b16 %v1842, %v1834
    %v2803 = vpack.c.b16 %v1843, %v1835
    %v2804 = vpack.c.b16 %v1844, %v1836
    %v2805 = vpack.c.b16 %v1845, %v1837
    %v2806 = vpack.c.b16 %v1854, %v1846
    %v2807 = vpack.c.b16 %v1855, %v1847
    %v2808 = vpack.c.b16 %v1856, %v1848
    %v2809 = vpack.c.b16 %v1857, %v1849
    %v2810 = vpack.c.b16 %v1858, %v1850
    %v2811 = vpack.c.b16 %v1859, %v1851
    %v2812 = vpack.c.b16 %v1860, %v1852
    %v2813 = vpack.c.b16 %v1861, %v1853
    %v2814 = vpack.c.b16 %v1870, %v1862
    %v2815 = vpack.c.b16 %v1871, %v1863
    %v2816 = vpack.c.b16 %v1872, %v1864
    %v2817 = vpack.c.b16 %v1873, %v1865
    %v2818 = vpack.c.b16 %v1874, %v1866
    %v2819 = vpack.c.b16 %v1875, %v1867
    %v2820 = vpack.c.b16 %v1876, %v1868
    %v2821 = vpack.c.b16 %v1877, %v1869
    %v2822 = vpack.c.b16 %v1886, %v1878
    %v2823 = vpack.c.b16 %v1887, %v1879
    %v2824 = vpack.c.b16 %v1888, %v1880
    %v2825 = vpack.c.b16 %v1889, %v1881
    %v2826 = vpack.c.b16 %v1890, %v1882
    %v2827 = vpack.c.b16 %v1891, %v1883
    %v2828 = vpack.c.b16 %v1892, %v1884
    %v2829 = vpack.c.b16 %v1893, %v1885
    %v2830 = vpack.c.b16 %v1902, %v1894
    %v2831 = vpack.c.b16 %v1903, %v1895
    %v2832 = vpack.c.b16 %v1904, %v1896
    %v2833 = vpack.c.b16 %v1905, %v1897
    %v2834 = vpack.c.b16 %v1906, %v1898
    %v2835 = vpack.c.b16 %v1907, %v1899
    %v2836 = vpack.c.b16 %v1908, %v1900
    %v2837 = vpack.c.b16 %v1909, %v1901
    %v2838 = vpack.c.b16 %v1918, %v1910
    %v2839 = vpack.c.b16 %v1919, %v1911
    %v2840 = vpack.c.b16 %v1920, %v1912
    %v2841 = vpack.c.b16 %v1921, %v1913
    %v2842 = vpack.c.b16 %v1922, %v1914
    %v2843 = vpack.c.b16 %v1923, %v1915
    %v2844 = vpack.c.b16 %v1924, %v1916
    %v2845 = vpack.c.b16 %v1925, %v1917
    %v2846 = vpack.c.b16 %v1934, %v1926
    %v2847 = vpack.c.b16 %v1935, %v1927
    %v2848 = vpack.c.b16 %v1936, %v1928
    %v2849 = vpack.c.b16 %v1937, %v1929
    %v2850 = vpack.c.b16 %v1938, %v1930
    %v2851 = vpack.c.b16 %v1939, %v1931
    %v2852 = vpack.c.b16 %v1940, %v1932
    %v2853 = vpack.c.b16 %v1941, %v1933
    %v2854 = vpack.c.b16 %v1950, %v1942
    %v2855 = vpack.c.b16 %v1951, %v1943
    %v2856 = vpack.c.b16 %v1952, %v1944
    %v2857 = vpack.c.b16 %v1953, %v1945
    %v2858 = vpack.c.b16 %v1954, %v1946
    %v2859 = vpack.c.b16 %v1955, %v1947
    %v2860 = vpack.c.b16 %v1956, %v1948
    %v2861 = vpack.c.b16 %v1957, %v1949
    %v2862 = vpack.c.b16 %v1966, %v1958
    %v2863 = vpack.c.b16 %v1967, %v1959
    %v2864 = vpack.c.b16 %v1968, %v1960
    %v2865 = vpack.c.b16 %v1969, %v1961
    %v2866 = vpack.c.b16 %v1970, %v1962
    %v2867 = vpack.c.b16 %v1971, %v1963
    %v2868 = vpack.c.b16 %v1972, %v1964
    %v2869 = vpack.c.b16 %v1973, %v1965
    %v2870 = vpack.c.b16 %v1982, %v1974
    %v2871 = vpack.c.b16 %v1983, %v1975
    %v2872 = vpack.c.b16 %v1984, %v1976
    %v2873 = vpack.c.b16 %v1985, %v1977
    %v2874 = vpack.c.b16 %v1986, %v1978
    %v2875 = vpack.c.b16 %v1987, %v1979
    %v2876 = vpack.c.b16 %v1988, %v1980
    %v2877 = vpack.c.b16 %v1989, %v1981
    %v2878 = vpack.c.b16 %v1998, %v1990
    %v2879 = vpack.c.b16 %v1999, %v1991
    %v2880 = vpack.c.b16 %v2000, %v1992
    %v2881 = vpack.c.b16 %v2001, %v1993
    %v2882 = vpack.c.b16 %v2002, %v1994
    %v2883 = vpack.c.b16 %v2003, %v1995
    %v2884 = vpack.c.b16 %v2004, %v1996
    %v2885 = vpack.c.b16 %v2005, %v1997
    %v2886 = vpack.c.b16 %v2014, %v2006
    %v2887 = vpack.c.b16 %v2015, %v2007
    %v2888 = vpack.c.b16 %v2016, %v2008
    %v2889 = vpack.c.b16 %v2017, %v2009
    %v2890 = vpack.c.b16 %v2018, %v2010
    %v2891 = vpack.c.b16 %v2019, %v2011
    %v2892 = vpack.c.b16 %v2020, %v2012
    %v2893 = vpack.c.b16 %v2021, %v2013
    %v2894 = vpack.c.b16 %v2030, %v2022
    %v2895 = vpack.c.b16 %v2031, %v2023
    %v2896 = vpack.c.b16 %v2032, %v2024
    %v2897 = vpack.c.b16 %v2033, %v2025
    %v2898 = vpack.c.b16 %v2034, %v2026
    %v2899 = vpack.c.b16 %v2035, %v2027
    %v2900 = vpack.c.b16 %v2036, %v2028
    %v2901 = vpack.c.b16 %v2037, %v2029
    %v2902 = vpack.c.b16 %v2046, %v2038
    %v2903 = vpack.c.b16 %v2047, %v2039
    %v2904 = vpack.c.b16 %v2048, %v2040
    %v2905 = vpack.c.b16 %v2049, %v2041
    %v2906 = vpack.c.b16 %v2050, %v2042
    %v2907 = vpack.c.b16 %v2051, %v2043
    %v2908 = vpack.c.b16 %v2052, %v2044
    %v2909 = vpack.c.b16 %v2053, %v2045
    %v2910 = vpack.c.b16 %v2062, %v2054
    %v2911 = vpack.c.b16 %v2063, %v2055
    %v2912 = vpack.c.b16 %v2064, %v2056
    %v2913 = vpack.c.b16 %v2065, %v2057
    %v2914 = vpack.c.b16 %v2066, %v2058
    %v2915 = vpack.c.b16 %v2067, %v2059
    %v2916 = vpack.c.b16 %v2068, %v2060
    %v2917 = vpack.c.b16 %v2069, %v2061
    %v2918 = vpack.c.b16 %v2078, %v2070
    %v2919 = vpack.c.b16 %v2079, %v2071
    %v2920 = vpack.c.b16 %v2080, %v2072
    %v2921 = vpack.c.b16 %v2081, %v2073
    %v2922 = vpack.c.b16 %v2082, %v2074
    %v2923 = vpack.c.b16 %v2083, %v2075
    %v2924 = vpack.c.b16 %v2084, %v2076
    %v2925 = vpack.c.b16 %v2085, %v2077
    %v2926 = vpack.c.b16 %v2094, %v2086
    %v2927 = vpack.c.b16 %v2095, %v2087
    %v2928 = vpack.c.b16 %v2096, %v2088
    %v2929 = vpack.c.b16 %v2097, %v2089
    %v2930 = vpack.c.b16 %v2098, %v2090
    %v2931 = vpack.c.b16 %v2099, %v2091
    %v2932 = vpack.c.b16 %v2100, %v2092
    %v2933 = vpack.c.b16 %v2101, %v2093
    %v2934 = vpack.c.b16 %v2110, %v2102
    %v2935 = vpack.c.b16 %v2111, %v2103
    %v2936 = vpack.c.b16 %v2112, %v2104
    %v2937 = vpack.c.b16 %v2113, %v2105
    %v2938 = vpack.c.b16 %v2114, %v2106
    %v2939 = vpack.c.b16 %v2115, %v2107
    %v2940 = vpack.c.b16 %v2116, %v2108
    %v2941 = vpack.c.b16 %v2117, %v2109
    %v2942 = vpack.c.b16 %v2126, %v2118
    %v2943 = vpack.c.b16 %v2127, %v2119
    %v2944 = vpack.c.b16 %v2128, %v2120
    %v2945 = vpack.c.b16 %v2129, %v2121
    %v2946 = vpack.c.b16 %v2130, %v2122
    %v2947 = vpack.c.b16 %v2131, %v2123
    %v2948 = vpack.c.b16 %v2132, %v2124
    %v2949 = vpack.c.b16 %v2133, %v2125
    %v2950 = vpack.c.b16 %v2142, %v2134
    %v2951 = vpack.c.b16 %v2143, %v2135
    %v2952 = vpack.c.b16 %v2144, %v2136
    %v2953 = vpack.c.b16 %v2145, %v2137
    %v2954 = vpack.c.b16 %v2146, %v2138
    %v2955 = vpack.c.b16 %v2147, %v2139
    %v2956 = vpack.c.b16 %v2148, %v2140
    %v2957 = vpack.c.b16 %v2149, %v2141
    %v2958 = vpack.c.b16 %v2158, %v2150
    %v2959 = vpack.c.b16 %v2159, %v2151
    %v2960 = vpack.c.b16 %v2160, %v2152
    %v2961 = vpack.c.b16 %v2161, %v2153
    %v2962 = vpack.c.b16 %v2162, %v2154
    %v2963 = vpack.c.b16 %v2163, %v2155
    %v2964 = vpack.c.b16 %v2164, %v2156
    %v2965 = vpack.c.b16 %v2165, %v2157
    %v2966 = vpack.c.b16 %v2174, %v2166
    %v2967 = vpack.c.b16 %v2175, %v2167
    %v2968 = vpack.c.b16 %v2176, %v2168
    %v2969 = vpack.c.b16 %v2177, %v2169
    %v2970 = vpack.c.b16 %v2178, %v2170
    %v2971 = vpack.c.b16 %v2179, %v2171
    %v2972 = vpack.c.b16 %v2180, %v2172
    %v2973 = vpack.c.b16 %v2181, %v2173
    %v2974 = vpack.c.b16 %v2190, %v2182
    %v2975 = vpack.c.b16 %v2191, %v2183
    %v2976 = vpack.c.b16 %v2192, %v2184
    %v2977 = vpack.c.b16 %v2193, %v2185
    %v2978 = vpack.c.b16 %v2194, %v2186
    %v2979 = vpack.c.b16 %v2195, %v2187
    %v2980 = vpack.c.b16 %v2196, %v2188
    %v2981 = vpack.c.b16 %v2197, %v2189
    %v2982 = vpack.c.b16 %v2206, %v2198
    %v2983 = vpack.c.b16 %v2207, %v2199
    %v2984 = vpack.c.b16 %v2208, %v2200
    %v2985 = vpack.c.b16 %v2209, %v2201
    %v2986 = vpack.c.b16 %v2210, %v2202
    %v2987 = vpack.c.b16 %v2211, %v2203
    %v2988 = vpack.c.b16 %v2212, %v2204
    %v2989 = vpack.c.b16 %v2213, %v2205
    %v2990 = vpack.c.b16 %v2222, %v2214
    %v2991 = vpack.c.b16 %v2223, %v2215
    %v2992 = vpack.c.b16 %v2224, %v2216
    %v2993 = vpack.c.b16 %v2225, %v2217
    %v2994 = vpack.c.b16 %v2226, %v2218
    %v2995 = vpack.c.b16 %v2227, %v2219
    %v2996 = vpack.c.b16 %v2228, %v2220
    %v2997 = vpack.c.b16 %v2229, %v2221
    %v2998 = vpack.c.b16 %v2238, %v2230
    %v2999 = vpack.c.b16 %v2239, %v2231
    %v3000 = vpack.c.b16 %v2240, %v2232
    %v3001 = vpack.c.b16 %v2241, %v2233
    %v3002 = vpack.c.b16 %v2242, %v2234
    %v3003 = vpack.c.b16 %v2243, %v2235
    %v3004 = vpack.c.b16 %v2244, %v2236
    %v3005 = vpack.c.b16 %v2245, %v2237
    %v3006 = vpack.c.b16 %v2254, %v2246
    %v3007 = vpack.c.b16 %v2255, %v2247
    %v3008 = vpack.c.b16 %v2256, %v2248
    %v3009 = vpack.c.b16 %v2257, %v2249
    %v3010 = vpack.c.b16 %v2258, %v2250
    %v3011 = vpack.c.b16 %v2259, %v2251
    %v3012 = vpack.c.b16 %v2260, %v2252
    %v3013 = vpack.c.b16 %v2261, %v2253
    %v3014 = vpack.c.b16 %v2270, %v2262
    %v3015 = vpack.c.b16 %v2271, %v2263
    %v3016 = vpack.c.b16 %v2272, %v2264
    %v3017 = vpack.c.b16 %v2273, %v2265
    %v3018 = vpack.c.b16 %v2274, %v2266
    %v3019 = vpack.c.b16 %v2275, %v2267
    %v3020 = vpack.c.b16 %v2276, %v2268
    %v3021 = vpack.c.b16 %v2277, %v2269
    %v3022 = vpack.c.b16 %v2286, %v2278
    %v3023 = vpack.c.b16 %v2287, %v2279
    %v3024 = vpack.c.b16 %v2288, %v2280
    %v3025 = vpack.c.b16 %v2289, %v2281
    %v3026 = vpack.c.b16 %v2290, %v2282
    %v3027 = vpack.c.b16 %v2291, %v2283
    %v3028 = vpack.c.b16 %v2292, %v2284
    %v3029 = vpack.c.b16 %v2293, %v2285
    %v3030 = vpack.c.b16 %v2302, %v2294
    %v3031 = vpack.c.b16 %v2303, %v2295
    %v3032 = vpack.c.b16 %v2304, %v2296
    %v3033 = vpack.c.b16 %v2305, %v2297
    %v3034 = vpack.c.b16 %v2306, %v2298
    %v3035 = vpack.c.b16 %v2307, %v2299
    %v3036 = vpack.c.b16 %v2308, %v2300
    %v3037 = vpack.c.b16 %v2309, %v2301
    %v3038 = vpack.c.b16 %v2318, %v2310
    %v3039 = vpack.c.b16 %v2319, %v2311
    %v3040 = vpack.c.b16 %v2320, %v2312
    %v3041 = vpack.c.b16 %v2321, %v2313
    %v3042 = vpack.c.b16 %v2322, %v2314
    %v3043 = vpack.c.b16 %v2323, %v2315
    %v3044 = vpack.c.b16 %v2324, %v2316
    %v3045 = vpack.c.b16 %v2325, %v2317
    %v3046 = vpack.c.b16 %v2334, %v2326
    %v3047 = vpack.c.b16 %v2335, %v2327
    %v3048 = vpack.c.b16 %v2336, %v2328
    %v3049 = vpack.c.b16 %v2337, %v2329
    %v3050 = vpack.c.b16 %v2338, %v2330
    %v3051 = vpack.c.b16 %v2339, %v2331
    %v3052 = vpack.c.b16 %v2340, %v2332
    %v3053 = vpack.c.b16 %v2341, %v2333
    %v3054 = vpack.c.b16 %v2350, %v2342
    %v3055 = vpack.c.b16 %v2351, %v2343
    %v3056 = vpack.c.b16 %v2352, %v2344
    %v3057 = vpack.c.b16 %v2353, %v2345
    %v3058 = vpack.c.b16 %v2354, %v2346
    %v3059 = vpack.c.b16 %v2355, %v2347
    %v3060 = vpack.c.b16 %v2356, %v2348
    %v3061 = vpack.c.b16 %v2357, %v2349
    %v3062 = vpack.c.b16 %v2366, %v2358
    %v3063 = vpack.c.b16 %v2367, %v2359
    %v3064 = vpack.c.b16 %v2368, %v2360
    %v3065 = vpack.c.b16 %v2369, %v2361
    %v3066 = vpack.c.b16 %v2370, %v2362
    %v3067 = vpack.c.b16 %v2371, %v2363
    %v3068 = vpack.c.b16 %v2372, %v2364
    %v3069 = vpack.c.b16 %v2373, %v2365
    %v3070 = vpack.c.b16 %v2382, %v2374
    %v3071 = vpack.c.b16 %v2383, %v2375
    %v3072 = vpack.c.b16 %v2384, %v2376
    %v3073 = vpack.c.b16 %v2385, %v2377
    %v3074 = vpack.c.b16 %v2386, %v2378
    %v3075 = vpack.c.b16 %v2387, %v2379
    %v3076 = vpack.c.b16 %v2388, %v2380
    %v3077 = vpack.c.b16 %v2389, %v2381
    %v3078 = vpack.c.b16 %v2398, %v2390
    %v3079 = vpack.c.b16 %v2399, %v2391
    %v3080 = vpack.c.b16 %v2400, %v2392
    %v3081 = vpack.c.b16 %v2401, %v2393
    %v3082 = vpack.c.b16 %v2402, %v2394
    %v3083 = vpack.c.b16 %v2403, %v2395
    %v3084 = vpack.c.b16 %v2404, %v2396
    %v3085 = vpack.c.b16 %v2405, %v2397
    %v3086 = vpack.c.b16 %v2414, %v2406
    %v3087 = vpack.c.b16 %v2415, %v2407
    %v3088 = vpack.c.b16 %v2416, %v2408
    %v3089 = vpack.c.b16 %v2417, %v2409
    %v3090 = vpack.c.b16 %v2418, %v2410
    %v3091 = vpack.c.b16 %v2419, %v2411
    %v3092 = vpack.c.b16 %v2420, %v2412
    %v3093 = vpack.c.b16 %v2421, %v2413
    %v3094 = vpack.c.b16 %v2430, %v2422
    %v3095 = vpack.c.b16 %v2431, %v2423
    %v3096 = vpack.c.b16 %v2432, %v2424
    %v3097 = vpack.c.b16 %v2433, %v2425
    %v3098 = vpack.c.b16 %v2434, %v2426
    %v3099 = vpack.c.b16 %v2435, %v2427
    %v3100 = vpack.c.b16 %v2436, %v2428
    %v3101 = vpack.c.b16 %v2437, %v2429
    %v3102 = vpack.c.b16 %v2446, %v2438
    %v3103 = vpack.c.b16 %v2447, %v2439
    %v3104 = vpack.c.b16 %v2448, %v2440
    %v3105 = vpack.c.b16 %v2449, %v2441
    %v3106 = vpack.c.b16 %v2450, %v2442
    %v3107 = vpack.c.b16 %v2451, %v2443
    %v3108 = vpack.c.b16 %v2452, %v2444
    %v3109 = vpack.c.b16 %v2453, %v2445
    %v3110 = vpack.c.b16 %v2462, %v2454
    %v3111 = vpack.c.b16 %v2463, %v2455
    %v3112 = vpack.c.b16 %v2464, %v2456
    %v3113 = vpack.c.b16 %v2465, %v2457
    %v3114 = vpack.c.b16 %v2466, %v2458
    %v3115 = vpack.c.b16 %v2467, %v2459
    %v3116 = vpack.c.b16 %v2468, %v2460
    %v3117 = vpack.c.b16 %v2469, %v2461
    %v3118 = vpack.c.b16 %v2478, %v2470
    %v3119 = vpack.c.b16 %v2479, %v2471
    %v3120 = vpack.c.b16 %v2480, %v2472
    %v3121 = vpack.c.b16 %v2481, %v2473
    %v3122 = vpack.c.b16 %v2482, %v2474
    %v3123 = vpack.c.b16 %v2483, %v2475
    %v3124 = vpack.c.b16 %v2484, %v2476
    %v3125 = vpack.c.b16 %v2485, %v2477
    %v3126 = vpack.c.b16 %v2494, %v2486
    %v3127 = vpack.c.b16 %v2495, %v2487
    %v3128 = vpack.c.b16 %v2496, %v2488
    %v3129 = vpack.c.b16 %v2497, %v2489
    %v3130 = vpack.c.b16 %v2498, %v2490
    %v3131 = vpack.c.b16 %v2499, %v2491
    %v3132 = vpack.c.b16 %v2500, %v2492
    %v3133 = vpack.c.b16 %v2501, %v2493
    %v3134 = vpack.c.b16 %v2510, %v2502
    %v3135 = vpack.c.b16 %v2511, %v2503
    %v3136 = vpack.c.b16 %v2512, %v2504
    %v3137 = vpack.c.b16 %v2513, %v2505
    %v3138 = vpack.c.b16 %v2514, %v2506
    %v3139 = vpack.c.b16 %v2515, %v2507
    %v3140 = vpack.c.b16 %v2516, %v2508
    %v3141 = vpack.c.b16 %v2517, %v2509
    %v3142 = vpack.c.b16 %v2526, %v2518
    %v3143 = vpack.c.b16 %v2527, %v2519
    %v3144 = vpack.c.b16 %v2528, %v2520
    %v3145 = vpack.c.b16 %v2529, %v2521
    %v3146 = vpack.c.b16 %v2530, %v2522
    %v3147 = vpack.c.b16 %v2531, %v2523
    %v3148 = vpack.c.b16 %v2532, %v2524
    %v3149 = vpack.c.b16 %v2533, %v2525
    %v3150 = vpack.c.b16 %v2542, %v2534
    %v3151 = vpack.c.b16 %v2543, %v2535
    %v3152 = vpack.c.b16 %v2544, %v2536
    %v3153 = vpack.c.b16 %v2545, %v2537
    %v3154 = vpack.c.b16 %v2546, %v2538
    %v3155 = vpack.c.b16 %v2547, %v2539
    %v3156 = vpack.c.b16 %v2548, %v2540
    %v3157 = vpack.c.b16 %v2549, %v2541
    %v3158 = vpack.c.b16 %v2558, %v2550
    %v3159 = vpack.c.b16 %v2559, %v2551
    %v3160 = vpack.c.b16 %v2560, %v2552
    %v3161 = vpack.c.b16 %v2561, %v2553
    %v3162 = vpack.c.b16 %v2562, %v2554
    %v3163 = vpack.c.b16 %v2563, %v2555
    %v3164 = vpack.c.b16 %v2564, %v2556
    %v3165 = vpack.c.b16 %v2565, %v2557
    %v3166 = vpack.c.b16 %v2574, %v2566
    %v3167 = vpack.c.b16 %v2575, %v2567
    %v3168 = vpack.c.b16 %v2576, %v2568
    %v3169 = vpack.c.b16 %v2577, %v2569
    %v3170 = vpack.c.b16 %v2578, %v2570
    %v3171 = vpack.c.b16 %v2579, %v2571
    %v3172 = vpack.c.b16 %v2580, %v2572
    %v3173 = vpack.c.b16 %v2581, %v2573
    %v3174 = vpack.c.b16 %v2590, %v2582
    %v3175 = vpack.c.b16 %v2591, %v2583
    %v3176 = vpack.c.b16 %v2592, %v2584
    %v3177 = vpack.c.b16 %v2593, %v2585
    %v3178 = vpack.c.b16 %v2594, %v2586
    %v3179 = vpack.c.b16 %v2595, %v2587
    %v3180 = vpack.c.b16 %v2596, %v2588
    %v3181 = vpack.c.b16 %v2597, %v2589
    %v3182 = vpack.c.b16 %v2606, %v2598
    %v3183 = vpack.c.b16 %v2607, %v2599
    %v3184 = vpack.c.b16 %v2608, %v2600
    %v3185 = vpack.c.b16 %v2609, %v2601
    %v3186 = vpack.c.b16 %v2610, %v2602
    %v3187 = vpack.c.b16 %v2611, %v2603
    %v3188 = vpack.c.b16 %v2612, %v2604
    %v3189 = vpack.c.b16 %v2613, %v2605
    %v3190 = vpack.c.b16 %v2622, %v2614
    %v3191 = vpack.c.b16 %v2623, %v2615
    %v3192 = vpack.c.b16 %v2624, %v2616
    %v3193 = vpack.c.b16 %v2625, %v2617
    %v3194 = vpack.c.b16 %v2626, %v2618
    %v3195 = vpack.c.b16 %v2627, %v2619
    %v3196 = vpack.c.b16 %v2628, %v2620
    %v3197 = vpack.c.b16 %v2629, %v2621
    %v3198 = vpack.c.b16 %v2638, %v2630
    %v3199 = vpack.c.b16 %v2639, %v2631
    %v3200 = vpack.c.b16 %v2640, %v2632
    %v3201 = vpack.c.b16 %v2641, %v2633
    %v3202 = vpack.c.b16 %v2642, %v2634
    %v3203 = vpack.c.b16 %v2643, %v2635
    %v3204 = vpack.c.b16 %v2644, %v2636
    %v3205 = vpack.c.b16 %v2645, %v2637
    %v3206 = vpack.c.b16 %v2654, %v2646
    %v3207 = vpack.c.b16 %v2655, %v2647
    %v3208 = vpack.c.b16 %v2656, %v2648
    %v3209 = vpack.c.b16 %v2657, %v2649
    %v3210 = vpack.c.b16 %v2658, %v2650
    %v3211 = vpack.c.b16 %v2659, %v2651
    %v3212 = vpack.c.b16 %v2660, %v2652
    %v3213 = vpack.c.b16 %v2661, %v2653
    %v3214 = vpack.c.b16 %v2670, %v2662
    %v3215 = vpack.c.b16 %v2671, %v2663
    %v3216 = vpack.c.b16 %v2672, %v2664
    %v3217 = vpack.c.b16 %v2673, %v2665
    %v3218 = vpack.c.b16 %v2674, %v2666
    %v3219 = vpack.c.b16 %v2675, %v2667
    %v3220 = vpack.c.b16 %v2676, %v2668
    %v3221 = vpack.c.b16 %v2677, %v2669
    %v3222 = vpack.c.b16 %v2686, %v2678
    %v3223 = vpack.c.b16 %v2687, %v2679
    %v3224 = vpack.c.b16 %v2688, %v2680
    %v3225 = vpack.c.b16 %v2689, %v2681
    %v3226 = vpack.c.b16 %v2690, %v2682
    %v3227 = vpack.c.b16 %v2691, %v2683
    %v3228 = vpack.c.b16 %v2692, %v2684
    %v3229 = vpack.c.b16 %v2693, %v2685
    %v3230 = vpack.c.b16 %v2702, %v2694
    %v3231 = vpack.c.b16 %v2703, %v2695
    %v3232 = vpack.c.b16 %v2704, %v2696
    %v3233 = vpack.c.b16 %v2705, %v2697
    %v3234 = vpack.c.b16 %v2706, %v2698
    %v3235 = vpack.c.b16 %v2707, %v2699
    %v3236 = vpack.c.b16 %v2708, %v2700
    %v3237 = vpack.c.b16 %v2709, %v2701
    %v3238 = vpack.c.b16 %v2718, %v2710
    %v3239 = vpack.c.b16 %v2719, %v2711
    %v3240 = vpack.c.b16 %v2720, %v2712
    %v3241 = vpack.c.b16 %v2721, %v2713
    %v3242 = vpack.c.b16 %v2722, %v2714
    %v3243 = vpack.c.b16 %v2723, %v2715
    %v3244 = vpack.c.b16 %v2724, %v2716
    %v3245 = vpack.c.b16 %v2725, %v2717
    %v3246 = vpack.c.b16 %v2734, %v2726
    %v3247 = vpack.c.b16 %v2735, %v2727
    %v3248 = vpack.c.b16 %v2736, %v2728
    %v3249 = vpack.c.b16 %v2737, %v2729
    %v3250 = vpack.c.b16 %v2738, %v2730
    %v3251 = vpack.c.b16 %v2739, %v2731
    %v3252 = vpack.c.b16 %v2740, %v2732
    %v3253 = vpack.c.b16 %v2741, %v2733
    %3766 = vmatprep.subr.bf16.mxu0 %v2799
    %3767 = vmatpush1.bf16.msra.mxu0 %v2798
    %3768 = vmatprep.subr.bf16.mxu0 %v2791
    %3769 = vmatpush1.bf16.msra.mxu0 %v2790
    %3770 = vmatprep.subr.bf16.mxu0 %v2783
    %3771 = vmatpush1.bf16.msra.mxu0 %v2782
    %3772 = vmatprep.subr.bf16.mxu0 %v2775
    %3773 = vmatpush1.bf16.msra.mxu0 %v2774
    %3774 = vmatprep.subr.bf16.mxu0 %v2767
    %3775 = vmatpush1.bf16.msra.mxu0 %v2766
    %3776 = vmatprep.subr.bf16.mxu0 %v2759
    %3777 = vmatpush1.bf16.msra.mxu0 %v2758
    %3778 = vmatprep.subr.bf16.mxu0 %v2751
    %3779 = vmatpush1.bf16.msra.mxu0 %v2750
    %3780 = vmatprep.subr.bf16.mxu0 %v2743
    %3781 = vmatpush1.bf16.msra.mxu0 %v2742
    %3782 = vmatprep.subr.bf16.mxu0 %v2863
    %3783 = vmatpush2.bf16.msra.mxu0 %v2862
    %3784 = vmatprep.subr.bf16.mxu0 %v2855
    %3785 = vmatpush2.bf16.msra.mxu0 %v2854
    %3786 = vmatprep.subr.bf16.mxu0 %v2847
    %3787 = vmatpush2.bf16.msra.mxu0 %v2846
    %3788 = vmatprep.subr.bf16.mxu0 %v2839
    %3789 = vmatpush2.bf16.msra.mxu0 %v2838
    %3790 = vmatprep.subr.bf16.mxu0 %v2831
    %3791 = vmatpush2.bf16.msra.mxu0 %v2830
    %3792 = vmatprep.subr.bf16.mxu0 %v2823
    %3793 = vmatpush2.bf16.msra.mxu0 %v2822
    %3794 = vmatprep.subr.bf16.mxu0 %v2815
    %3795 = vmatpush2.bf16.msra.mxu0 %v2814
    %3796 = vmatprep.subr.bf16.mxu0 %v2807
    %3797 = vmatpush2.bf16.msra.mxu0 %v2806
    %3798 = vmatprep.mubr.bf16.mxu0 %v1191
    %3799 = vmatmul.mubr.bf16.gmra.mxu0 %v1190
    %v3800 = vpop.f32.mrf.mxu0
    %v3801 = vadd.f32 0.0, %v3800
    %v3802 = vpop.f32.mrf.mxu0
    %v3803 = vadd.f32 0.0, %v3802
    %v3804 = vpop.f32.mrf.mxu0
    %v3805 = vpop.f32.mrf.mxu0
    %3806 = vdwg.mxu0
    %3807 = vmatprep.subr.bf16.mxu0 %v2927
    %3808 = vmatpush1.bf16.msra.mxu0 %v2926
    %3809 = vmatprep.subr.bf16.mxu0 %v2919
    %3810 = vmatpush1.bf16.msra.mxu0 %v2918
    %3811 = vmatprep.subr.bf16.mxu0 %v2911
    %3812 = vmatpush1.bf16.msra.mxu0 %v2910
    %3813 = vmatprep.subr.bf16.mxu0 %v2903
    %3814 = vmatpush1.bf16.msra.mxu0 %v2902
    %3815 = vmatprep.subr.bf16.mxu0 %v2895
    %3816 = vmatpush1.bf16.msra.mxu0 %v2894
    %3817 = vmatprep.subr.bf16.mxu0 %v2887
    %3818 = vmatpush1.bf16.msra.mxu0 %v2886
    %3819 = vmatprep.subr.bf16.mxu0 %v2879
    %3820 = vmatpush1.bf16.msra.mxu0 %v2878
    %3821 = vmatprep.subr.bf16.mxu0 %v2871
    %3822 = vmatpush1.bf16.msra.mxu0 %v2870
    %3823 = vmatprep.subr.bf16.mxu0 %v2991
    %3824 = vmatpush2.bf16.msra.mxu0 %v2990
    %3825 = vmatprep.subr.bf16.mxu0 %v2983
    %3826 = vmatpush2.bf16.msra.mxu0 %v2982
    %3827 = vmatprep.subr.bf16.mxu0 %v2975
    %3828 = vmatpush2.bf16.msra.mxu0 %v2974
    %3829 = vmatprep.subr.bf16.mxu0 %v2967
    %3830 = vmatpush2.bf16.msra.mxu0 %v2966
    %3831 = vmatprep.subr.bf16.mxu0 %v2959
    %3832 = vmatpush2.bf16.msra.mxu0 %v2958
    %3833 = vmatprep.subr.bf16.mxu0 %v2951
    %3834 = vmatpush2.bf16.msra.mxu0 %v2950
    %3835 = vmatprep.subr.bf16.mxu0 %v2943
    %3836 = vmatpush2.bf16.msra.mxu0 %v2942
    %3837 = vmatprep.subr.bf16.mxu0 %v2935
    %3838 = vmatpush2.bf16.msra.mxu0 %v2934
    %3839 = vmatprep.mubr.bf16.mxu0 %v1193
    %3840 = vmatmul.mubr.bf16.gmra.mxu0 %v1192
    %v3841 = vpop.f32.mrf.mxu0
    %v3842 = vadd.f32 %v3801, %v3841
    %v3843 = vpop.f32.mrf.mxu0
    %v3844 = vadd.f32 %v3803, %v3843
    %v3845 = vpop.f32.mrf.mxu0
    %v3846 = vpop.f32.mrf.mxu0
    %3847 = vdwg.mxu0
    %3848 = vmatprep.subr.bf16.mxu0 %v3055
    %3849 = vmatpush1.bf16.msra.mxu0 %v3054
    %3850 = vmatprep.subr.bf16.mxu0 %v3047
    %3851 = vmatpush1.bf16.msra.mxu0 %v3046
    %3852 = vmatprep.subr.bf16.mxu0 %v3039
    %3853 = vmatpush1.bf16.msra.mxu0 %v3038
    %3854 = vmatprep.subr.bf16.mxu0 %v3031
    %3855 = vmatpush1.bf16.msra.mxu0 %v3030
    %3856 = vmatprep.subr.bf16.mxu0 %v3023
    %3857 = vmatpush1.bf16.msra.mxu0 %v3022
    %3858 = vmatprep.subr.bf16.mxu0 %v3015
    %3859 = vmatpush1.bf16.msra.mxu0 %v3014
    %3860 = vmatprep.subr.bf16.mxu0 %v3007
    %3861 = vmatpush1.bf16.msra.mxu0 %v3006
    %3862 = vmatprep.subr.bf16.mxu0 %v2999
    %3863 = vmatpush1.bf16.msra.mxu0 %v2998
    %3864 = vmatprep.subr.bf16.mxu0 %v3119
    %3865 = vmatpush2.bf16.msra.mxu0 %v3118
    %3866 = vmatprep.subr.bf16.mxu0 %v3111
    %3867 = vmatpush2.bf16.msra.mxu0 %v3110
    %3868 = vmatprep.subr.bf16.mxu0 %v3103
    %3869 = vmatpush2.bf16.msra.mxu0 %v3102
    %3870 = vmatprep.subr.bf16.mxu0 %v3095
    %3871 = vmatpush2.bf16.msra.mxu0 %v3094
    %3872 = vmatprep.subr.bf16.mxu0 %v3087
    %3873 = vmatpush2.bf16.msra.mxu0 %v3086
    %3874 = vmatprep.subr.bf16.mxu0 %v3079
    %3875 = vmatpush2.bf16.msra.mxu0 %v3078
    %3876 = vmatprep.subr.bf16.mxu0 %v3071
    %3877 = vmatpush2.bf16.msra.mxu0 %v3070
    %3878 = vmatprep.subr.bf16.mxu0 %v3063
    %3879 = vmatpush2.bf16.msra.mxu0 %v3062
    %3880 = vmatprep.mubr.bf16.mxu0 %v1195
    %3881 = vmatmul.mubr.bf16.gmra.mxu0 %v1194
    %v3882 = vpop.f32.mrf.mxu0
    %v3883 = vadd.f32 %v3842, %v3882
    %v3884 = vpop.f32.mrf.mxu0
    %v3885 = vadd.f32 %v3844, %v3884
    %v3886 = vpop.f32.mrf.mxu0
    %v3887 = vpop.f32.mrf.mxu0
    %3888 = vdwg.mxu0
    %3889 = vmatprep.subr.bf16.mxu0 %v3183
    %3890 = vmatpush1.bf16.msra.mxu0 %v3182
    %3891 = vmatprep.subr.bf16.mxu0 %v3175
    %3892 = vmatpush1.bf16.msra.mxu0 %v3174
    %3893 = vmatprep.subr.bf16.mxu0 %v3167
    %3894 = vmatpush1.bf16.msra.mxu0 %v3166
    %3895 = vmatprep.subr.bf16.mxu0 %v3159
    %3896 = vmatpush1.bf16.msra.mxu0 %v3158
    %3897 = vmatprep.subr.bf16.mxu0 %v3151
    %3898 = vmatpush1.bf16.msra.mxu0 %v3150
    %3899 = vmatprep.subr.bf16.mxu0 %v3143
    %3900 = vmatpush1.bf16.msra.mxu0 %v3142
    %3901 = vmatprep.subr.bf16.mxu0 %v3135
    %3902 = vmatpush1.bf16.msra.mxu0 %v3134
    %3903 = vmatprep.subr.bf16.mxu0 %v3127
    %3904 = vmatpush1.bf16.msra.mxu0 %v3126
    %3905 = vmatprep.subr.bf16.mxu0 %v3247
    %3906 = vmatpush2.bf16.msra.mxu0 %v3246
    %3907 = vmatprep.subr.bf16.mxu0 %v3239
    %3908 = vmatpush2.bf16.msra.mxu0 %v3238
    %3909 = vmatprep.subr.bf16.mxu0 %v3231
    %3910 = vmatpush2.bf16.msra.mxu0 %v3230
    %3911 = vmatprep.subr.bf16.mxu0 %v3223
    %3912 = vmatpush2.bf16.msra.mxu0 %v3222
    %3913 = vmatprep.subr.bf16.mxu0 %v3215
    %3914 = vmatpush2.bf16.msra.mxu0 %v3214
    %3915 = vmatprep.subr.bf16.mxu0 %v3207
    %3916 = vmatpush2.bf16.msra.mxu0 %v3206
    %3917 = vmatprep.subr.bf16.mxu0 %v3199
    %3918 = vmatpush2.bf16.msra.mxu0 %v3198
    %3919 = vmatprep.subr.bf16.mxu0 %v3191
    %3920 = vmatpush2.bf16.msra.mxu0 %v3190
    %3921 = vmatprep.mubr.bf16.mxu0 %v1197
    %3922 = vmatmul.mubr.bf16.gmra.mxu0 %v1196
    %v3923 = vpop.f32.mrf.mxu0
    %v3924 = vadd.f32 %v3883, %v3923
    %v3925 = vpop.f32.mrf.mxu0
    %v3926 = vadd.f32 %v3885, %v3925
    %v3927 = vpop.f32.mrf.mxu0
    %v3928 = vpop.f32.mrf.mxu0
    %3929 = vdwg.mxu0
    %3930 = vmatprep.subr.bf16.mxu0 %v2801
    %3931 = vmatpush1.bf16.msra.mxu0 %v2800
    %3932 = vmatprep.subr.bf16.mxu0 %v2793
    %3933 = vmatpush1.bf16.msra.mxu0 %v2792
    %3934 = vmatprep.subr.bf16.mxu0 %v2785
    %3935 = vmatpush1.bf16.msra.mxu0 %v2784
    %3936 = vmatprep.subr.bf16.mxu0 %v2777
    %3937 = vmatpush1.bf16.msra.mxu0 %v2776
    %3938 = vmatprep.subr.bf16.mxu0 %v2769
    %3939 = vmatpush1.bf16.msra.mxu0 %v2768
    %3940 = vmatprep.subr.bf16.mxu0 %v2761
    %3941 = vmatpush1.bf16.msra.mxu0 %v2760
    %3942 = vmatprep.subr.bf16.mxu0 %v2753
    %3943 = vmatpush1.bf16.msra.mxu0 %v2752
    %3944 = vmatprep.subr.bf16.mxu0 %v2745
    %3945 = vmatpush1.bf16.msra.mxu0 %v2744
    %3946 = vmatprep.subr.bf16.mxu0 %v2865
    %3947 = vmatpush2.bf16.msra.mxu0 %v2864
    %3948 = vmatprep.subr.bf16.mxu0 %v2857
    %3949 = vmatpush2.bf16.msra.mxu0 %v2856
    %3950 = vmatprep.subr.bf16.mxu0 %v2849
    %3951 = vmatpush2.bf16.msra.mxu0 %v2848
    %3952 = vmatprep.subr.bf16.mxu0 %v2841
    %3953 = vmatpush2.bf16.msra.mxu0 %v2840
    %3954 = vmatprep.subr.bf16.mxu0 %v2833
    %3955 = vmatpush2.bf16.msra.mxu0 %v2832
    %3956 = vmatprep.subr.bf16.mxu0 %v2825
    %3957 = vmatpush2.bf16.msra.mxu0 %v2824
    %3958 = vmatprep.subr.bf16.mxu0 %v2817
    %3959 = vmatpush2.bf16.msra.mxu0 %v2816
    %3960 = vmatprep.subr.bf16.mxu0 %v2809
    %3961 = vmatpush2.bf16.msra.mxu0 %v2808
    %3962 = vmatprep.mubr.bf16.mxu0 %v1191
    %3963 = vmatmul.mubr.bf16.gmra.mxu0 %v1190
    %v3964 = vpop.f32.mrf.mxu0
    %v3965 = vadd.f32 0.0, %v3964
    %v3966 = vpop.f32.mrf.mxu0
    %v3967 = vadd.f32 0.0, %v3966
    %v3968 = vpop.f32.mrf.mxu0
    %v3969 = vpop.f32.mrf.mxu0
    %3970 = vdwg.mxu0
    %3971 = vmatprep.subr.bf16.mxu0 %v2929
    %3972 = vmatpush1.bf16.msra.mxu0 %v2928
    %3973 = vmatprep.subr.bf16.mxu0 %v2921
    %3974 = vmatpush1.bf16.msra.mxu0 %v2920
    %3975 = vmatprep.subr.bf16.mxu0 %v2913
    %3976 = vmatpush1.bf16.msra.mxu0 %v2912
    %3977 = vmatprep.subr.bf16.mxu0 %v2905
    %3978 = vmatpush1.bf16.msra.mxu0 %v2904
    %3979 = vmatprep.subr.bf16.mxu0 %v2897
    %3980 = vmatpush1.bf16.msra.mxu0 %v2896
    %3981 = vmatprep.subr.bf16.mxu0 %v2889
    %3982 = vmatpush1.bf16.msra.mxu0 %v2888
    %3983 = vmatprep.subr.bf16.mxu0 %v2881
    %3984 = vmatpush1.bf16.msra.mxu0 %v2880
    %3985 = vmatprep.subr.bf16.mxu0 %v2873
    %3986 = vmatpush1.bf16.msra.mxu0 %v2872
    %3987 = vmatprep.subr.bf16.mxu0 %v2993
    %3988 = vmatpush2.bf16.msra.mxu0 %v2992
    %3989 = vmatprep.subr.bf16.mxu0 %v2985
    %3990 = vmatpush2.bf16.msra.mxu0 %v2984
    %3991 = vmatprep.subr.bf16.mxu0 %v2977
    %3992 = vmatpush2.bf16.msra.mxu0 %v2976
    %3993 = vmatprep.subr.bf16.mxu0 %v2969
    %3994 = vmatpush2.bf16.msra.mxu0 %v2968
    %3995 = vmatprep.subr.bf16.mxu0 %v2961
    %3996 = vmatpush2.bf16.msra.mxu0 %v2960
    %3997 = vmatprep.subr.bf16.mxu0 %v2953
    %3998 = vmatpush2.bf16.msra.mxu0 %v2952
    %3999 = vmatprep.subr.bf16.mxu0 %v2945
    %4000 = vmatpush2.bf16.msra.mxu0 %v2944
    %4001 = vmatprep.subr.bf16.mxu0 %v2937
    %4002 = vmatpush2.bf16.msra.mxu0 %v2936
    %4003 = vmatprep.mubr.bf16.mxu0 %v1193
    %4004 = vmatmul.mubr.bf16.gmra.mxu0 %v1192
    %v4005 = vpop.f32.mrf.mxu0
    %v4006 = vadd.f32 %v3965, %v4005
    %v4007 = vpop.f32.mrf.mxu0
    %v4008 = vadd.f32 %v3967, %v4007
    %v4009 = vpop.f32.mrf.mxu0
    %v4010 = vpop.f32.mrf.mxu0
    %4011 = vdwg.mxu0
    %4012 = vmatprep.subr.bf16.mxu0 %v3057
    %4013 = vmatpush1.bf16.msra.mxu0 %v3056
    %4014 = vmatprep.subr.bf16.mxu0 %v3049
    %4015 = vmatpush1.bf16.msra.mxu0 %v3048
    %4016 = vmatprep.subr.bf16.mxu0 %v3041
    %4017 = vmatpush1.bf16.msra.mxu0 %v3040
    %4018 = vmatprep.subr.bf16.mxu0 %v3033
    %4019 = vmatpush1.bf16.msra.mxu0 %v3032
    %4020 = vmatprep.subr.bf16.mxu0 %v3025
    %4021 = vmatpush1.bf16.msra.mxu0 %v3024
    %4022 = vmatprep.subr.bf16.mxu0 %v3017
    %4023 = vmatpush1.bf16.msra.mxu0 %v3016
    %4024 = vmatprep.subr.bf16.mxu0 %v3009
    %4025 = vmatpush1.bf16.msra.mxu0 %v3008
    %4026 = vmatprep.subr.bf16.mxu0 %v3001
    %4027 = vmatpush1.bf16.msra.mxu0 %v3000
    %4028 = vmatprep.subr.bf16.mxu0 %v3121
    %4029 = vmatpush2.bf16.msra.mxu0 %v3120
    %4030 = vmatprep.subr.bf16.mxu0 %v3113
    %4031 = vmatpush2.bf16.msra.mxu0 %v3112
    %4032 = vmatprep.subr.bf16.mxu0 %v3105
    %4033 = vmatpush2.bf16.msra.mxu0 %v3104
    %4034 = vmatprep.subr.bf16.mxu0 %v3097
    %4035 = vmatpush2.bf16.msra.mxu0 %v3096
    %4036 = vmatprep.subr.bf16.mxu0 %v3089
    %4037 = vmatpush2.bf16.msra.mxu0 %v3088
    %4038 = vmatprep.subr.bf16.mxu0 %v3081
    %4039 = vmatpush2.bf16.msra.mxu0 %v3080
    %4040 = vmatprep.subr.bf16.mxu0 %v3073
    %4041 = vmatpush2.bf16.msra.mxu0 %v3072
    %4042 = vmatprep.subr.bf16.mxu0 %v3065
    %4043 = vmatpush2.bf16.msra.mxu0 %v3064
    %4044 = vmatprep.mubr.bf16.mxu0 %v1195
    %4045 = vmatmul.mubr.bf16.gmra.mxu0 %v1194
    %v4046 = vpop.f32.mrf.mxu0
    %v4047 = vadd.f32 %v4006, %v4046
    %v4048 = vpop.f32.mrf.mxu0
    %v4049 = vadd.f32 %v4008, %v4048
    %v4050 = vpop.f32.mrf.mxu0
    %v4051 = vpop.f32.mrf.mxu0
    %4052 = vdwg.mxu0
    %4053 = vmatprep.subr.bf16.mxu0 %v3185
    %4054 = vmatpush1.bf16.msra.mxu0 %v3184
    %4055 = vmatprep.subr.bf16.mxu0 %v3177
    %4056 = vmatpush1.bf16.msra.mxu0 %v3176
    %4057 = vmatprep.subr.bf16.mxu0 %v3169
    %4058 = vmatpush1.bf16.msra.mxu0 %v3168
    %4059 = vmatprep.subr.bf16.mxu0 %v3161
    %4060 = vmatpush1.bf16.msra.mxu0 %v3160
    %4061 = vmatprep.subr.bf16.mxu0 %v3153
    %4062 = vmatpush1.bf16.msra.mxu0 %v3152
    %4063 = vmatprep.subr.bf16.mxu0 %v3145
    %4064 = vmatpush1.bf16.msra.mxu0 %v3144
    %4065 = vmatprep.subr.bf16.mxu0 %v3137
    %4066 = vmatpush1.bf16.msra.mxu0 %v3136
    %4067 = vmatprep.subr.bf16.mxu0 %v3129
    %4068 = vmatpush1.bf16.msra.mxu0 %v3128
    %4069 = vmatprep.subr.bf16.mxu0 %v3249
    %4070 = vmatpush2.bf16.msra.mxu0 %v3248
    %4071 = vmatprep.subr.bf16.mxu0 %v3241
    %4072 = vmatpush2.bf16.msra.mxu0 %v3240
    %4073 = vmatprep.subr.bf16.mxu0 %v3233
    %4074 = vmatpush2.bf16.msra.mxu0 %v3232
    %4075 = vmatprep.subr.bf16.mxu0 %v3225
    %4076 = vmatpush2.bf16.msra.mxu0 %v3224
    %4077 = vmatprep.subr.bf16.mxu0 %v3217
    %4078 = vmatpush2.bf16.msra.mxu0 %v3216
    %4079 = vmatprep.subr.bf16.mxu0 %v3209
    %4080 = vmatpush2.bf16.msra.mxu0 %v3208
    %4081 = vmatprep.subr.bf16.mxu0 %v3201
    %4082 = vmatpush2.bf16.msra.mxu0 %v3200
    %4083 = vmatprep.subr.bf16.mxu0 %v3193
    %4084 = vmatpush2.bf16.msra.mxu0 %v3192
    %4085 = vmatprep.mubr.bf16.mxu0 %v1197
    %4086 = vmatmul.mubr.bf16.gmra.mxu0 %v1196
    %v4087 = vpop.f32.mrf.mxu0
    %v4088 = vadd.f32 %v4047, %v4087
    %v4089 = vpop.f32.mrf.mxu0
    %v4090 = vadd.f32 %v4049, %v4089
    %v4091 = vpop.f32.mrf.mxu0
    %v4092 = vpop.f32.mrf.mxu0
    %4093 = vdwg.mxu0
    %4094 = vmatprep.subr.bf16.mxu0 %v2803
    %4095 = vmatpush1.bf16.msra.mxu0 %v2802
    %4096 = vmatprep.subr.bf16.mxu0 %v2795
    %4097 = vmatpush1.bf16.msra.mxu0 %v2794
    %4098 = vmatprep.subr.bf16.mxu0 %v2787
    %4099 = vmatpush1.bf16.msra.mxu0 %v2786
    %4100 = vmatprep.subr.bf16.mxu0 %v2779
    %4101 = vmatpush1.bf16.msra.mxu0 %v2778
    %4102 = vmatprep.subr.bf16.mxu0 %v2771
    %4103 = vmatpush1.bf16.msra.mxu0 %v2770
    %4104 = vmatprep.subr.bf16.mxu0 %v2763
    %4105 = vmatpush1.bf16.msra.mxu0 %v2762
    %4106 = vmatprep.subr.bf16.mxu0 %v2755
    %4107 = vmatpush1.bf16.msra.mxu0 %v2754
    %4108 = vmatprep.subr.bf16.mxu0 %v2747
    %4109 = vmatpush1.bf16.msra.mxu0 %v2746
    %4110 = vmatprep.subr.bf16.mxu0 %v2867
    %4111 = vmatpush2.bf16.msra.mxu0 %v2866
    %4112 = vmatprep.subr.bf16.mxu0 %v2859
    %4113 = vmatpush2.bf16.msra.mxu0 %v2858
    %4114 = vmatprep.subr.bf16.mxu0 %v2851
    %4115 = vmatpush2.bf16.msra.mxu0 %v2850
    %4116 = vmatprep.subr.bf16.mxu0 %v2843
    %4117 = vmatpush2.bf16.msra.mxu0 %v2842
    %4118 = vmatprep.subr.bf16.mxu0 %v2835
    %4119 = vmatpush2.bf16.msra.mxu0 %v2834
    %4120 = vmatprep.subr.bf16.mxu0 %v2827
    %4121 = vmatpush2.bf16.msra.mxu0 %v2826
    %4122 = vmatprep.subr.bf16.mxu0 %v2819
    %4123 = vmatpush2.bf16.msra.mxu0 %v2818
    %4124 = vmatprep.subr.bf16.mxu0 %v2811
    %4125 = vmatpush2.bf16.msra.mxu0 %v2810
    %4126 = vmatprep.mubr.bf16.mxu0 %v1191
    %4127 = vmatmul.mubr.bf16.gmra.mxu0 %v1190
    %v4128 = vpop.f32.mrf.mxu0
    %v4129 = vadd.f32 0.0, %v4128
    %v4130 = vpop.f32.mrf.mxu0
    %v4131 = vadd.f32 0.0, %v4130
    %v4132 = vpop.f32.mrf.mxu0
    %v4133 = vpop.f32.mrf.mxu0
    %4134 = vdwg.mxu0
    %4135 = vmatprep.subr.bf16.mxu0 %v2931
    %4136 = vmatpush1.bf16.msra.mxu0 %v2930
    %4137 = vmatprep.subr.bf16.mxu0 %v2923
    %4138 = vmatpush1.bf16.msra.mxu0 %v2922
    %4139 = vmatprep.subr.bf16.mxu0 %v2915
    %4140 = vmatpush1.bf16.msra.mxu0 %v2914
    %4141 = vmatprep.subr.bf16.mxu0 %v2907
    %4142 = vmatpush1.bf16.msra.mxu0 %v2906
    %4143 = vmatprep.subr.bf16.mxu0 %v2899
    %4144 = vmatpush1.bf16.msra.mxu0 %v2898
    %4145 = vmatprep.subr.bf16.mxu0 %v2891
    %4146 = vmatpush1.bf16.msra.mxu0 %v2890
    %4147 = vmatprep.subr.bf16.mxu0 %v2883
    %4148 = vmatpush1.bf16.msra.mxu0 %v2882
    %4149 = vmatprep.subr.bf16.mxu0 %v2875
    %4150 = vmatpush1.bf16.msra.mxu0 %v2874
    %4151 = vmatprep.subr.bf16.mxu0 %v2995
    %4152 = vmatpush2.bf16.msra.mxu0 %v2994
    %4153 = vmatprep.subr.bf16.mxu0 %v2987
    %4154 = vmatpush2.bf16.msra.mxu0 %v2986
    %4155 = vmatprep.subr.bf16.mxu0 %v2979
    %4156 = vmatpush2.bf16.msra.mxu0 %v2978
    %4157 = vmatprep.subr.bf16.mxu0 %v2971
    %4158 = vmatpush2.bf16.msra.mxu0 %v2970
    %4159 = vmatprep.subr.bf16.mxu0 %v2963
    %4160 = vmatpush2.bf16.msra.mxu0 %v2962
    %4161 = vmatprep.subr.bf16.mxu0 %v2955
    %4162 = vmatpush2.bf16.msra.mxu0 %v2954
    %4163 = vmatprep.subr.bf16.mxu0 %v2947
    %4164 = vmatpush2.bf16.msra.mxu0 %v2946
    %4165 = vmatprep.subr.bf16.mxu0 %v2939
    %4166 = vmatpush2.bf16.msra.mxu0 %v2938
    %4167 = vmatprep.mubr.bf16.mxu0 %v1193
    %4168 = vmatmul.mubr.bf16.gmra.mxu0 %v1192
    %v4169 = vpop.f32.mrf.mxu0
    %v4170 = vadd.f32 %v4129, %v4169
    %v4171 = vpop.f32.mrf.mxu0
    %v4172 = vadd.f32 %v4131, %v4171
    %v4173 = vpop.f32.mrf.mxu0
    %v4174 = vpop.f32.mrf.mxu0
    %4175 = vdwg.mxu0
    %4176 = vmatprep.subr.bf16.mxu0 %v3059
    %4177 = vmatpush1.bf16.msra.mxu0 %v3058
    %4178 = vmatprep.subr.bf16.mxu0 %v3051
    %4179 = vmatpush1.bf16.msra.mxu0 %v3050
    %4180 = vmatprep.subr.bf16.mxu0 %v3043
    %4181 = vmatpush1.bf16.msra.mxu0 %v3042
    %4182 = vmatprep.subr.bf16.mxu0 %v3035
    %4183 = vmatpush1.bf16.msra.mxu0 %v3034
    %4184 = vmatprep.subr.bf16.mxu0 %v3027
    %4185 = vmatpush1.bf16.msra.mxu0 %v3026
    %4186 = vmatprep.subr.bf16.mxu0 %v3019
    %4187 = vmatpush1.bf16.msra.mxu0 %v3018
    %4188 = vmatprep.subr.bf16.mxu0 %v3011
    %4189 = vmatpush1.bf16.msra.mxu0 %v3010
    %4190 = vmatprep.subr.bf16.mxu0 %v3003
    %4191 = vmatpush1.bf16.msra.mxu0 %v3002
    %4192 = vmatprep.subr.bf16.mxu0 %v3123
    %4193 = vmatpush2.bf16.msra.mxu0 %v3122
    %4194 = vmatprep.subr.bf16.mxu0 %v3115
    %4195 = vmatpush2.bf16.msra.mxu0 %v3114
    %4196 = vmatprep.subr.bf16.mxu0 %v3107
    %4197 = vmatpush2.bf16.msra.mxu0 %v3106
    %4198 = vmatprep.subr.bf16.mxu0 %v3099
    %4199 = vmatpush2.bf16.msra.mxu0 %v3098
    %4200 = vmatprep.subr.bf16.mxu0 %v3091
    %4201 = vmatpush2.bf16.msra.mxu0 %v3090
    %4202 = vmatprep.subr.bf16.mxu0 %v3083
    %4203 = vmatpush2.bf16.msra.mxu0 %v3082
    %4204 = vmatprep.subr.bf16.mxu0 %v3075
    %4205 = vmatpush2.bf16.msra.mxu0 %v3074
    %4206 = vmatprep.subr.bf16.mxu0 %v3067
    %4207 = vmatpush2.bf16.msra.mxu0 %v3066
    %4208 = vmatprep.mubr.bf16.mxu0 %v1195
    %4209 = vmatmul.mubr.bf16.gmra.mxu0 %v1194
    %v4210 = vpop.f32.mrf.mxu0
    %v4211 = vadd.f32 %v4170, %v4210
    %v4212 = vpop.f32.mrf.mxu0
    %v4213 = vadd.f32 %v4172, %v4212
    %v4214 = vpop.f32.mrf.mxu0
    %v4215 = vpop.f32.mrf.mxu0
    %4216 = vdwg.mxu0
    %4217 = vmatprep.subr.bf16.mxu0 %v3187
    %4218 = vmatpush1.bf16.msra.mxu0 %v3186
    %4219 = vmatprep.subr.bf16.mxu0 %v3179
    %4220 = vmatpush1.bf16.msra.mxu0 %v3178
    %4221 = vmatprep.subr.bf16.mxu0 %v3171
    %4222 = vmatpush1.bf16.msra.mxu0 %v3170
    %4223 = vmatprep.subr.bf16.mxu0 %v3163
    %4224 = vmatpush1.bf16.msra.mxu0 %v3162
    %4225 = vmatprep.subr.bf16.mxu0 %v3155
    %4226 = vmatpush1.bf16.msra.mxu0 %v3154
    %4227 = vmatprep.subr.bf16.mxu0 %v3147
    %4228 = vmatpush1.bf16.msra.mxu0 %v3146
    %4229 = vmatprep.subr.bf16.mxu0 %v3139
    %4230 = vmatpush1.bf16.msra.mxu0 %v3138
    %4231 = vmatprep.subr.bf16.mxu0 %v3131
    %4232 = vmatpush1.bf16.msra.mxu0 %v3130
    %4233 = vmatprep.subr.bf16.mxu0 %v3251
    %4234 = vmatpush2.bf16.msra.mxu0 %v3250
    %4235 = vmatprep.subr.bf16.mxu0 %v3243
    %4236 = vmatpush2.bf16.msra.mxu0 %v3242
    %4237 = vmatprep.subr.bf16.mxu0 %v3235
    %4238 = vmatpush2.bf16.msra.mxu0 %v3234
    %4239 = vmatprep.subr.bf16.mxu0 %v3227
    %4240 = vmatpush2.bf16.msra.mxu0 %v3226
    %4241 = vmatprep.subr.bf16.mxu0 %v3219
    %4242 = vmatpush2.bf16.msra.mxu0 %v3218
    %4243 = vmatprep.subr.bf16.mxu0 %v3211
    %4244 = vmatpush2.bf16.msra.mxu0 %v3210
    %4245 = vmatprep.subr.bf16.mxu0 %v3203
    %4246 = vmatpush2.bf16.msra.mxu0 %v3202
    %4247 = vmatprep.subr.bf16.mxu0 %v3195
    %4248 = vmatpush2.bf16.msra.mxu0 %v3194
    %4249 = vmatprep.mubr.bf16.mxu0 %v1197
    %4250 = vmatmul.mubr.bf16.gmra.mxu0 %v1196
    %v4251 = vpop.f32.mrf.mxu0
    %v4252 = vadd.f32 %v4211, %v4251
    %v4253 = vpop.f32.mrf.mxu0
    %v4254 = vadd.f32 %v4213, %v4253
    %v4255 = vpop.f32.mrf.mxu0
    %v4256 = vpop.f32.mrf.mxu0
    %4257 = vdwg.mxu0
    %4258 = vmatprep.subr.bf16.mxu0 %v2805
    %4259 = vmatpush1.bf16.msra.mxu0 %v2804
    %4260 = vmatprep.subr.bf16.mxu0 %v2797
    %4261 = vmatpush1.bf16.msra.mxu0 %v2796
    %4262 = vmatprep.subr.bf16.mxu0 %v2789
    %4263 = vmatpush1.bf16.msra.mxu0 %v2788
    %4264 = vmatprep.subr.bf16.mxu0 %v2781
    %4265 = vmatpush1.bf16.msra.mxu0 %v2780
    %4266 = vmatprep.subr.bf16.mxu0 %v2773
    %4267 = vmatpush1.bf16.msra.mxu0 %v2772
    %4268 = vmatprep.subr.bf16.mxu0 %v2765
    %4269 = vmatpush1.bf16.msra.mxu0 %v2764
    %4270 = vmatprep.subr.bf16.mxu0 %v2757
    %4271 = vmatpush1.bf16.msra.mxu0 %v2756
    %4272 = vmatprep.subr.bf16.mxu0 %v2749
    %4273 = vmatpush1.bf16.msra.mxu0 %v2748
    %4274 = vmatprep.subr.bf16.mxu0 %v2869
    %4275 = vmatpush2.bf16.msra.mxu0 %v2868
    %4276 = vmatprep.subr.bf16.mxu0 %v2861
    %4277 = vmatpush2.bf16.msra.mxu0 %v2860
    %4278 = vmatprep.subr.bf16.mxu0 %v2853
    %4279 = vmatpush2.bf16.msra.mxu0 %v2852
    %4280 = vmatprep.subr.bf16.mxu0 %v2845
    %4281 = vmatpush2.bf16.msra.mxu0 %v2844
    %4282 = vmatprep.subr.bf16.mxu0 %v2837
    %4283 = vmatpush2.bf16.msra.mxu0 %v2836
    %4284 = vmatprep.subr.bf16.mxu0 %v2829
    %4285 = vmatpush2.bf16.msra.mxu0 %v2828
    %4286 = vmatprep.subr.bf16.mxu0 %v2821
    %4287 = vmatpush2.bf16.msra.mxu0 %v2820
    %4288 = vmatprep.subr.bf16.mxu0 %v2813
    %4289 = vmatpush2.bf16.msra.mxu0 %v2812
    %4290 = vmatprep.mubr.bf16.mxu0 %v1191
    %4291 = vmatmul.mubr.bf16.gmra.mxu0 %v1190
    %v4292 = vpop.f32.mrf.mxu0
    %v4293 = vadd.f32 0.0, %v4292
    %v4294 = vpop.f32.mrf.mxu0
    %v4295 = vadd.f32 0.0, %v4294
    %v4296 = vpop.f32.mrf.mxu0
    %v4297 = vpop.f32.mrf.mxu0
    %4298 = vdwg.mxu0
    %4299 = vmatprep.subr.bf16.mxu0 %v2933
    %4300 = vmatpush1.bf16.msra.mxu0 %v2932
    %4301 = vmatprep.subr.bf16.mxu0 %v2925
    %4302 = vmatpush1.bf16.msra.mxu0 %v2924
    %4303 = vmatprep.subr.bf16.mxu0 %v2917
    %4304 = vmatpush1.bf16.msra.mxu0 %v2916
    %4305 = vmatprep.subr.bf16.mxu0 %v2909
    %4306 = vmatpush1.bf16.msra.mxu0 %v2908
    %4307 = vmatprep.subr.bf16.mxu0 %v2901
    %4308 = vmatpush1.bf16.msra.mxu0 %v2900
    %4309 = vmatprep.subr.bf16.mxu0 %v2893
    %4310 = vmatpush1.bf16.msra.mxu0 %v2892
    %4311 = vmatprep.subr.bf16.mxu0 %v2885
    %4312 = vmatpush1.bf16.msra.mxu0 %v2884
    %4313 = vmatprep.subr.bf16.mxu0 %v2877
    %4314 = vmatpush1.bf16.msra.mxu0 %v2876
    %4315 = vmatprep.subr.bf16.mxu0 %v2997
    %4316 = vmatpush2.bf16.msra.mxu0 %v2996
    %4317 = vmatprep.subr.bf16.mxu0 %v2989
    %4318 = vmatpush2.bf16.msra.mxu0 %v2988
    %4319 = vmatprep.subr.bf16.mxu0 %v2981
    %4320 = vmatpush2.bf16.msra.mxu0 %v2980
    %4321 = vmatprep.subr.bf16.mxu0 %v2973
    %4322 = vmatpush2.bf16.msra.mxu0 %v2972
    %4323 = vmatprep.subr.bf16.mxu0 %v2965
    %4324 = vmatpush2.bf16.msra.mxu0 %v2964
    %4325 = vmatprep.subr.bf16.mxu0 %v2957
    %4326 = vmatpush2.bf16.msra.mxu0 %v2956
    %4327 = vmatprep.subr.bf16.mxu0 %v2949
    %4328 = vmatpush2.bf16.msra.mxu0 %v2948
    %4329 = vmatprep.subr.bf16.mxu0 %v2941
    %4330 = vmatpush2.bf16.msra.mxu0 %v2940
    %4331 = vmatprep.mubr.bf16.mxu0 %v1193
    %4332 = vmatmul.mubr.bf16.gmra.mxu0 %v1192
    %v4333 = vpop.f32.mrf.mxu0
    %v4334 = vadd.f32 %v4293, %v4333
    %v4335 = vpop.f32.mrf.mxu0
    %v4336 = vadd.f32 %v4295, %v4335
    %v4337 = vpop.f32.mrf.mxu0
    %v4338 = vpop.f32.mrf.mxu0
    %4339 = vdwg.mxu0
    %4340 = vmatprep.subr.bf16.mxu0 %v3061
    %4341 = vmatpush1.bf16.msra.mxu0 %v3060
    %4342 = vmatprep.subr.bf16.mxu0 %v3053
    %4343 = vmatpush1.bf16.msra.mxu0 %v3052
    %4344 = vmatprep.subr.bf16.mxu0 %v3045
    %4345 = vmatpush1.bf16.msra.mxu0 %v3044
    %4346 = vmatprep.subr.bf16.mxu0 %v3037
    %4347 = vmatpush1.bf16.msra.mxu0 %v3036
    %4348 = vmatprep.subr.bf16.mxu0 %v3029
    %4349 = vmatpush1.bf16.msra.mxu0 %v3028
    %4350 = vmatprep.subr.bf16.mxu0 %v3021
    %4351 = vmatpush1.bf16.msra.mxu0 %v3020
    %4352 = vmatprep.subr.bf16.mxu0 %v3013
    %4353 = vmatpush1.bf16.msra.mxu0 %v3012
    %4354 = vmatprep.subr.bf16.mxu0 %v3005
    %4355 = vmatpush1.bf16.msra.mxu0 %v3004
    %4356 = vmatprep.subr.bf16.mxu0 %v3125
    %4357 = vmatpush2.bf16.msra.mxu0 %v3124
    %4358 = vmatprep.subr.bf16.mxu0 %v3117
    %4359 = vmatpush2.bf16.msra.mxu0 %v3116
    %4360 = vmatprep.subr.bf16.mxu0 %v3109
    %4361 = vmatpush2.bf16.msra.mxu0 %v3108
    %4362 = vmatprep.subr.bf16.mxu0 %v3101
    %4363 = vmatpush2.bf16.msra.mxu0 %v3100
    %4364 = vmatprep.subr.bf16.mxu0 %v3093
    %4365 = vmatpush2.bf16.msra.mxu0 %v3092
    %4366 = vmatprep.subr.bf16.mxu0 %v3085
    %4367 = vmatpush2.bf16.msra.mxu0 %v3084
    %4368 = vmatprep.subr.bf16.mxu0 %v3077
    %4369 = vmatpush2.bf16.msra.mxu0 %v3076
    %4370 = vmatprep.subr.bf16.mxu0 %v3069
    %4371 = vmatpush2.bf16.msra.mxu0 %v3068
    %4372 = vmatprep.mubr.bf16.mxu0 %v1195
    %4373 = vmatmul.mubr.bf16.gmra.mxu0 %v1194
    %v4374 = vpop.f32.mrf.mxu0
    %v4375 = vadd.f32 %v4334, %v4374
    %v4376 = vpop.f32.mrf.mxu0
    %v4377 = vadd.f32 %v4336, %v4376
    %v4378 = vpop.f32.mrf.mxu0
    %v4379 = vpop.f32.mrf.mxu0
    %4380 = vdwg.mxu0
    %4381 = vmatprep.subr.bf16.mxu0 %v3189
    %4382 = vmatpush1.bf16.msra.mxu0 %v3188
    %4383 = vmatprep.subr.bf16.mxu0 %v3181
    %4384 = vmatpush1.bf16.msra.mxu0 %v3180
    %4385 = vmatprep.subr.bf16.mxu0 %v3173
    %4386 = vmatpush1.bf16.msra.mxu0 %v3172
    %4387 = vmatprep.subr.bf16.mxu0 %v3165
    %4388 = vmatpush1.bf16.msra.mxu0 %v3164
    %4389 = vmatprep.subr.bf16.mxu0 %v3157
    %4390 = vmatpush1.bf16.msra.mxu0 %v3156
    %4391 = vmatprep.subr.bf16.mxu0 %v3149
    %4392 = vmatpush1.bf16.msra.mxu0 %v3148
    %4393 = vmatprep.subr.bf16.mxu0 %v3141
    %4394 = vmatpush1.bf16.msra.mxu0 %v3140
    %4395 = vmatprep.subr.bf16.mxu0 %v3133
    %4396 = vmatpush1.bf16.msra.mxu0 %v3132
    %4397 = vmatprep.subr.bf16.mxu0 %v3253
    %4398 = vmatpush2.bf16.msra.mxu0 %v3252
    %4399 = vmatprep.subr.bf16.mxu0 %v3245
    %4400 = vmatpush2.bf16.msra.mxu0 %v3244
    %4401 = vmatprep.subr.bf16.mxu0 %v3237
    %4402 = vmatpush2.bf16.msra.mxu0 %v3236
    %4403 = vmatprep.subr.bf16.mxu0 %v3229
    %4404 = vmatpush2.bf16.msra.mxu0 %v3228
    %4405 = vmatprep.subr.bf16.mxu0 %v3221
    %4406 = vmatpush2.bf16.msra.mxu0 %v3220
    %4407 = vmatprep.subr.bf16.mxu0 %v3213
    %4408 = vmatpush2.bf16.msra.mxu0 %v3212
    %4409 = vmatprep.subr.bf16.mxu0 %v3205
    %4410 = vmatpush2.bf16.msra.mxu0 %v3204
    %4411 = vmatprep.subr.bf16.mxu0 %v3197
    %4412 = vmatpush2.bf16.msra.mxu0 %v3196
    %4413 = vmatprep.mubr.bf16.mxu0 %v1197
    %4414 = vmatmul.mubr.bf16.gmra.mxu0 %v1196
    %v4415 = vpop.f32.mrf.mxu0
    %v4416 = vadd.f32 %v4375, %v4415
    %v4417 = vpop.f32.mrf.mxu0
    %v4418 = vadd.f32 %v4377, %v4417
    %v4419 = vpop.f32.mrf.mxu0
    %v4420 = vpop.f32.mrf.mxu0
    %4421 = vdwg.mxu0
    %v4426 = vunpack.c.l.b16 %v146
    %v4427 = vunpack.c.h.b16 %v146
    %v4428 = vunpack.c.l.b16 %v147
    %v4429 = vunpack.c.h.b16 %v147
    %v4430 = vunpack.c.l.b16 %v148
    %v4431 = vunpack.c.h.b16 %v148
    %v4432 = vunpack.c.l.b16 %v149
    %v4433 = vunpack.c.h.b16 %v149
    %v4434 = vpack.c.b16 %v4426, %v4426
    %v4435 = vpack.c.b16 %v4427, %v4427
    %v4436 = vpack.c.b16 %v4428, %v4428
    %v4437 = vpack.c.b16 %v4429, %v4429
    %v4438 = vpack.c.b16 %v4430, %v4430
    %v4439 = vpack.c.b16 %v4431, %v4431
    %v4440 = vpack.c.b16 %v4432, %v4432
    %v4441 = vpack.c.b16 %v4433, %v4433
    %v4962 = vunpack.c.l.b16 %v154
    %v4963 = vunpack.c.h.b16 %v154
    %v4964 = vunpack.c.l.b16 %v155
    %v4965 = vunpack.c.h.b16 %v155
    %v4966 = vunpack.c.l.b16 %v156
    %v4967 = vunpack.c.h.b16 %v156
    %v4968 = vunpack.c.l.b16 %v157
    %v4969 = vunpack.c.h.b16 %v157
    %v4970 = vunpack.c.l.b16 %v158
    %v4971 = vunpack.c.h.b16 %v158
    %v4972 = vunpack.c.l.b16 %v159
    %v4973 = vunpack.c.h.b16 %v159
    %v4974 = vunpack.c.l.b16 %v160
    %v4975 = vunpack.c.h.b16 %v160
    %v4976 = vunpack.c.l.b16 %v161
    %v4977 = vunpack.c.h.b16 %v161
    %v4978 = vunpack.c.l.b16 %v162
    %v4979 = vunpack.c.h.b16 %v162
    %v4980 = vunpack.c.l.b16 %v163
    %v4981 = vunpack.c.h.b16 %v163
    %v4982 = vunpack.c.l.b16 %v164
    %v4983 = vunpack.c.h.b16 %v164
    %v4984 = vunpack.c.l.b16 %v165
    %v4985 = vunpack.c.h.b16 %v165
    %v4986 = vunpack.c.l.b16 %v166
    %v4987 = vunpack.c.h.b16 %v166
    %v4988 = vunpack.c.l.b16 %v167
    %v4989 = vunpack.c.h.b16 %v167
    %v4990 = vunpack.c.l.b16 %v168
    %v4991 = vunpack.c.h.b16 %v168
    %v4992 = vunpack.c.l.b16 %v169
    %v4993 = vunpack.c.h.b16 %v169
    %v4994 = vunpack.c.l.b16 %v170
    %v4995 = vunpack.c.h.b16 %v170
    %v4996 = vunpack.c.l.b16 %v171
    %v4997 = vunpack.c.h.b16 %v171
    %v4998 = vunpack.c.l.b16 %v172
    %v4999 = vunpack.c.h.b16 %v172
    %v5000 = vunpack.c.l.b16 %v173
    %v5001 = vunpack.c.h.b16 %v173
    %v5002 = vunpack.c.l.b16 %v174
    %v5003 = vunpack.c.h.b16 %v174
    %v5004 = vunpack.c.l.b16 %v175
    %v5005 = vunpack.c.h.b16 %v175
    %v5006 = vunpack.c.l.b16 %v176
    %v5007 = vunpack.c.h.b16 %v176
    %v5008 = vunpack.c.l.b16 %v177
    %v5009 = vunpack.c.h.b16 %v177
    %v5010 = vunpack.c.l.b16 %v178
    %v5011 = vunpack.c.h.b16 %v178
    %v5012 = vunpack.c.l.b16 %v179
    %v5013 = vunpack.c.h.b16 %v179
    %v5014 = vunpack.c.l.b16 %v180
    %v5015 = vunpack.c.h.b16 %v180
    %v5016 = vunpack.c.l.b16 %v181
    %v5017 = vunpack.c.h.b16 %v181
    %v5018 = vunpack.c.l.b16 %v182
    %v5019 = vunpack.c.h.b16 %v182
    %v5020 = vunpack.c.l.b16 %v183
    %v5021 = vunpack.c.h.b16 %v183
    %v5022 = vunpack.c.l.b16 %v184
    %v5023 = vunpack.c.h.b16 %v184
    %v5024 = vunpack.c.l.b16 %v185
    %v5025 = vunpack.c.h.b16 %v185
    %v5026 = vunpack.c.l.b16 %v186
    %v5027 = vunpack.c.h.b16 %v186
    %v5028 = vunpack.c.l.b16 %v187
    %v5029 = vunpack.c.h.b16 %v187
    %v5030 = vunpack.c.l.b16 %v188
    %v5031 = vunpack.c.h.b16 %v188
    %v5032 = vunpack.c.l.b16 %v189
    %v5033 = vunpack.c.h.b16 %v189
    %v5034 = vunpack.c.l.b16 %v190
    %v5035 = vunpack.c.h.b16 %v190
    %v5036 = vunpack.c.l.b16 %v191
    %v5037 = vunpack.c.h.b16 %v191
    %v5038 = vunpack.c.l.b16 %v192
    %v5039 = vunpack.c.h.b16 %v192
    %v5040 = vunpack.c.l.b16 %v193
    %v5041 = vunpack.c.h.b16 %v193
    %v5042 = vunpack.c.l.b16 %v194
    %v5043 = vunpack.c.h.b16 %v194
    %v5044 = vunpack.c.l.b16 %v195
    %v5045 = vunpack.c.h.b16 %v195
    %v5046 = vunpack.c.l.b16 %v196
    %v5047 = vunpack.c.h.b16 %v196
    %v5048 = vunpack.c.l.b16 %v197
    %v5049 = vunpack.c.h.b16 %v197
    %v5050 = vunpack.c.l.b16 %v198
    %v5051 = vunpack.c.h.b16 %v198
    %v5052 = vunpack.c.l.b16 %v199
    %v5053 = vunpack.c.h.b16 %v199
    %v5054 = vunpack.c.l.b16 %v200
    %v5055 = vunpack.c.h.b16 %v200
    %v5056 = vunpack.c.l.b16 %v201
    %v5057 = vunpack.c.h.b16 %v201
    %v5058 = vunpack.c.l.b16 %v202
    %v5059 = vunpack.c.h.b16 %v202
    %v5060 = vunpack.c.l.b16 %v203
    %v5061 = vunpack.c.h.b16 %v203
    %v5062 = vunpack.c.l.b16 %v204
    %v5063 = vunpack.c.h.b16 %v204
    %v5064 = vunpack.c.l.b16 %v205
    %v5065 = vunpack.c.h.b16 %v205
    %v5066 = vunpack.c.l.b16 %v206
    %v5067 = vunpack.c.h.b16 %v206
    %v5068 = vunpack.c.l.b16 %v207
    %v5069 = vunpack.c.h.b16 %v207
    %v5070 = vunpack.c.l.b16 %v208
    %v5071 = vunpack.c.h.b16 %v208
    %v5072 = vunpack.c.l.b16 %v209
    %v5073 = vunpack.c.h.b16 %v209
    %v5074 = vunpack.c.l.b16 %v210
    %v5075 = vunpack.c.h.b16 %v210
    %v5076 = vunpack.c.l.b16 %v211
    %v5077 = vunpack.c.h.b16 %v211
    %v5078 = vunpack.c.l.b16 %v212
    %v5079 = vunpack.c.h.b16 %v212
    %v5080 = vunpack.c.l.b16 %v213
    %v5081 = vunpack.c.h.b16 %v213
    %v5082 = vunpack.c.l.b16 %v214
    %v5083 = vunpack.c.h.b16 %v214
    %v5084 = vunpack.c.l.b16 %v215
    %v5085 = vunpack.c.h.b16 %v215
    %v5086 = vunpack.c.l.b16 %v216
    %v5087 = vunpack.c.h.b16 %v216
    %v5088 = vunpack.c.l.b16 %v217
    %v5089 = vunpack.c.h.b16 %v217
    %v5090 = vunpack.c.l.b16 %v218
    %v5091 = vunpack.c.h.b16 %v218
    %v5092 = vunpack.c.l.b16 %v219
    %v5093 = vunpack.c.h.b16 %v219
    %v5094 = vunpack.c.l.b16 %v220
    %v5095 = vunpack.c.h.b16 %v220
    %v5096 = vunpack.c.l.b16 %v221
    %v5097 = vunpack.c.h.b16 %v221
    %v5098 = vunpack.c.l.b16 %v222
    %v5099 = vunpack.c.h.b16 %v222
    %v5100 = vunpack.c.l.b16 %v223
    %v5101 = vunpack.c.h.b16 %v223
    %v5102 = vunpack.c.l.b16 %v224
    %v5103 = vunpack.c.h.b16 %v224
    %v5104 = vunpack.c.l.b16 %v225
    %v5105 = vunpack.c.h.b16 %v225
    %v5106 = vunpack.c.l.b16 %v226
    %v5107 = vunpack.c.h.b16 %v226
    %v5108 = vunpack.c.l.b16 %v227
    %v5109 = vunpack.c.h.b16 %v227
    %v5110 = vunpack.c.l.b16 %v228
    %v5111 = vunpack.c.h.b16 %v228
    %v5112 = vunpack.c.l.b16 %v229
    %v5113 = vunpack.c.h.b16 %v229
    %v5114 = vunpack.c.l.b16 %v230
    %v5115 = vunpack.c.h.b16 %v230
    %v5116 = vunpack.c.l.b16 %v231
    %v5117 = vunpack.c.h.b16 %v231
    %v5118 = vunpack.c.l.b16 %v232
    %v5119 = vunpack.c.h.b16 %v232
    %v5120 = vunpack.c.l.b16 %v233
    %v5121 = vunpack.c.h.b16 %v233
    %v5122 = vunpack.c.l.b16 %v234
    %v5123 = vunpack.c.h.b16 %v234
    %v5124 = vunpack.c.l.b16 %v235
    %v5125 = vunpack.c.h.b16 %v235
    %v5126 = vunpack.c.l.b16 %v236
    %v5127 = vunpack.c.h.b16 %v236
    %v5128 = vunpack.c.l.b16 %v237
    %v5129 = vunpack.c.h.b16 %v237
    %v5130 = vunpack.c.l.b16 %v238
    %v5131 = vunpack.c.h.b16 %v238
    %v5132 = vunpack.c.l.b16 %v239
    %v5133 = vunpack.c.h.b16 %v239
    %v5134 = vunpack.c.l.b16 %v240
    %v5135 = vunpack.c.h.b16 %v240
    %v5136 = vunpack.c.l.b16 %v241
    %v5137 = vunpack.c.h.b16 %v241
    %v5138 = vunpack.c.l.b16 %v242
    %v5139 = vunpack.c.h.b16 %v242
    %v5140 = vunpack.c.l.b16 %v243
    %v5141 = vunpack.c.h.b16 %v243
    %v5142 = vunpack.c.l.b16 %v244
    %v5143 = vunpack.c.h.b16 %v244
    %v5144 = vunpack.c.l.b16 %v245
    %v5145 = vunpack.c.h.b16 %v245
    %v5146 = vunpack.c.l.b16 %v246
    %v5147 = vunpack.c.h.b16 %v246
    %v5148 = vunpack.c.l.b16 %v247
    %v5149 = vunpack.c.h.b16 %v247
    %v5150 = vunpack.c.l.b16 %v248
    %v5151 = vunpack.c.h.b16 %v248
    %v5152 = vunpack.c.l.b16 %v249
    %v5153 = vunpack.c.h.b16 %v249
    %v5154 = vunpack.c.l.b16 %v250
    %v5155 = vunpack.c.h.b16 %v250
    %v5156 = vunpack.c.l.b16 %v251
    %v5157 = vunpack.c.h.b16 %v251
    %v5158 = vunpack.c.l.b16 %v252
    %v5159 = vunpack.c.h.b16 %v252
    %v5160 = vunpack.c.l.b16 %v253
    %v5161 = vunpack.c.h.b16 %v253
    %v5162 = vunpack.c.l.b16 %v254
    %v5163 = vunpack.c.h.b16 %v254
    %v5164 = vunpack.c.l.b16 %v255
    %v5165 = vunpack.c.h.b16 %v255
    %v5166 = vunpack.c.l.b16 %v256
    %v5167 = vunpack.c.h.b16 %v256
    %v5168 = vunpack.c.l.b16 %v257
    %v5169 = vunpack.c.h.b16 %v257
    %v5170 = vunpack.c.l.b16 %v258
    %v5171 = vunpack.c.h.b16 %v258
    %v5172 = vunpack.c.l.b16 %v259
    %v5173 = vunpack.c.h.b16 %v259
    %v5174 = vunpack.c.l.b16 %v260
    %v5175 = vunpack.c.h.b16 %v260
    %v5176 = vunpack.c.l.b16 %v261
    %v5177 = vunpack.c.h.b16 %v261
    %v5178 = vunpack.c.l.b16 %v262
    %v5179 = vunpack.c.h.b16 %v262
    %v5180 = vunpack.c.l.b16 %v263
    %v5181 = vunpack.c.h.b16 %v263
    %v5182 = vunpack.c.l.b16 %v264
    %v5183 = vunpack.c.h.b16 %v264
    %v5184 = vunpack.c.l.b16 %v265
    %v5185 = vunpack.c.h.b16 %v265
    %v5186 = vunpack.c.l.b16 %v266
    %v5187 = vunpack.c.h.b16 %v266
    %v5188 = vunpack.c.l.b16 %v267
    %v5189 = vunpack.c.h.b16 %v267
    %v5190 = vunpack.c.l.b16 %v268
    %v5191 = vunpack.c.h.b16 %v268
    %v5192 = vunpack.c.l.b16 %v269
    %v5193 = vunpack.c.h.b16 %v269
    %v5194 = vunpack.c.l.b16 %v270
    %v5195 = vunpack.c.h.b16 %v270
    %v5196 = vunpack.c.l.b16 %v271
    %v5197 = vunpack.c.h.b16 %v271
    %v5198 = vunpack.c.l.b16 %v272
    %v5199 = vunpack.c.h.b16 %v272
    %v5200 = vunpack.c.l.b16 %v273
    %v5201 = vunpack.c.h.b16 %v273
    %v5202 = vunpack.c.l.b16 %v274
    %v5203 = vunpack.c.h.b16 %v274
    %v5204 = vunpack.c.l.b16 %v275
    %v5205 = vunpack.c.h.b16 %v275
    %v5206 = vunpack.c.l.b16 %v276
    %v5207 = vunpack.c.h.b16 %v276
    %v5208 = vunpack.c.l.b16 %v277
    %v5209 = vunpack.c.h.b16 %v277
    %v5210 = vunpack.c.l.b16 %v278
    %v5211 = vunpack.c.h.b16 %v278
    %v5212 = vunpack.c.l.b16 %v279
    %v5213 = vunpack.c.h.b16 %v279
    %v5214 = vunpack.c.l.b16 %v280
    %v5215 = vunpack.c.h.b16 %v280
    %v5216 = vunpack.c.l.b16 %v281
    %v5217 = vunpack.c.h.b16 %v281
    %v5218 = vunpack.c.l.b16 %v282
    %v5219 = vunpack.c.h.b16 %v282
    %v5220 = vunpack.c.l.b16 %v283
    %v5221 = vunpack.c.h.b16 %v283
    %v5222 = vunpack.c.l.b16 %v284
    %v5223 = vunpack.c.h.b16 %v284
    %v5224 = vunpack.c.l.b16 %v285
    %v5225 = vunpack.c.h.b16 %v285
    %v5226 = vunpack.c.l.b16 %v286
    %v5227 = vunpack.c.h.b16 %v286
    %v5228 = vunpack.c.l.b16 %v287
    %v5229 = vunpack.c.h.b16 %v287
    %v5230 = vunpack.c.l.b16 %v288
    %v5231 = vunpack.c.h.b16 %v288
    %v5232 = vunpack.c.l.b16 %v289
    %v5233 = vunpack.c.h.b16 %v289
    %v5234 = vunpack.c.l.b16 %v290
    %v5235 = vunpack.c.h.b16 %v290
    %v5236 = vunpack.c.l.b16 %v291
    %v5237 = vunpack.c.h.b16 %v291
    %v5238 = vunpack.c.l.b16 %v292
    %v5239 = vunpack.c.h.b16 %v292
    %v5240 = vunpack.c.l.b16 %v293
    %v5241 = vunpack.c.h.b16 %v293
    %v5242 = vunpack.c.l.b16 %v294
    %v5243 = vunpack.c.h.b16 %v294
    %v5244 = vunpack.c.l.b16 %v295
    %v5245 = vunpack.c.h.b16 %v295
    %v5246 = vunpack.c.l.b16 %v296
    %v5247 = vunpack.c.h.b16 %v296
    %v5248 = vunpack.c.l.b16 %v297
    %v5249 = vunpack.c.h.b16 %v297
    %v5250 = vunpack.c.l.b16 %v298
    %v5251 = vunpack.c.h.b16 %v298
    %v5252 = vunpack.c.l.b16 %v299
    %v5253 = vunpack.c.h.b16 %v299
    %v5254 = vunpack.c.l.b16 %v300
    %v5255 = vunpack.c.h.b16 %v300
    %v5256 = vunpack.c.l.b16 %v301
    %v5257 = vunpack.c.h.b16 %v301
    %v5258 = vunpack.c.l.b16 %v302
    %v5259 = vunpack.c.h.b16 %v302
    %v5260 = vunpack.c.l.b16 %v303
    %v5261 = vunpack.c.h.b16 %v303
    %v5262 = vunpack.c.l.b16 %v304
    %v5263 = vunpack.c.h.b16 %v304
    %v5264 = vunpack.c.l.b16 %v305
    %v5265 = vunpack.c.h.b16 %v305
    %v5266 = vunpack.c.l.b16 %v306
    %v5267 = vunpack.c.h.b16 %v306
    %v5268 = vunpack.c.l.b16 %v307
    %v5269 = vunpack.c.h.b16 %v307
    %v5270 = vunpack.c.l.b16 %v308
    %v5271 = vunpack.c.h.b16 %v308
    %v5272 = vunpack.c.l.b16 %v309
    %v5273 = vunpack.c.h.b16 %v309
    %v5274 = vunpack.c.l.b16 %v310
    %v5275 = vunpack.c.h.b16 %v310
    %v5276 = vunpack.c.l.b16 %v311
    %v5277 = vunpack.c.h.b16 %v311
    %v5278 = vunpack.c.l.b16 %v312
    %v5279 = vunpack.c.h.b16 %v312
    %v5280 = vunpack.c.l.b16 %v313
    %v5281 = vunpack.c.h.b16 %v313
    %v5282 = vunpack.c.l.b16 %v314
    %v5283 = vunpack.c.h.b16 %v314
    %v5284 = vunpack.c.l.b16 %v315
    %v5285 = vunpack.c.h.b16 %v315
    %v5286 = vunpack.c.l.b16 %v316
    %v5287 = vunpack.c.h.b16 %v316
    %v5288 = vunpack.c.l.b16 %v317
    %v5289 = vunpack.c.h.b16 %v317
    %v5290 = vunpack.c.l.b16 %v318
    %v5291 = vunpack.c.h.b16 %v318
    %v5292 = vunpack.c.l.b16 %v319
    %v5293 = vunpack.c.h.b16 %v319
    %v5294 = vunpack.c.l.b16 %v320
    %v5295 = vunpack.c.h.b16 %v320
    %v5296 = vunpack.c.l.b16 %v321
    %v5297 = vunpack.c.h.b16 %v321
    %v5298 = vunpack.c.l.b16 %v322
    %v5299 = vunpack.c.h.b16 %v322
    %v5300 = vunpack.c.l.b16 %v323
    %v5301 = vunpack.c.h.b16 %v323
    %v5302 = vunpack.c.l.b16 %v324
    %v5303 = vunpack.c.h.b16 %v324
    %v5304 = vunpack.c.l.b16 %v325
    %v5305 = vunpack.c.h.b16 %v325
    %v5306 = vunpack.c.l.b16 %v326
    %v5307 = vunpack.c.h.b16 %v326
    %v5308 = vunpack.c.l.b16 %v327
    %v5309 = vunpack.c.h.b16 %v327
    %v5310 = vunpack.c.l.b16 %v328
    %v5311 = vunpack.c.h.b16 %v328
    %v5312 = vunpack.c.l.b16 %v329
    %v5313 = vunpack.c.h.b16 %v329
    %v5314 = vunpack.c.l.b16 %v330
    %v5315 = vunpack.c.h.b16 %v330
    %v5316 = vunpack.c.l.b16 %v331
    %v5317 = vunpack.c.h.b16 %v331
    %v5318 = vunpack.c.l.b16 %v332
    %v5319 = vunpack.c.h.b16 %v332
    %v5320 = vunpack.c.l.b16 %v333
    %v5321 = vunpack.c.h.b16 %v333
    %v5322 = vunpack.c.l.b16 %v334
    %v5323 = vunpack.c.h.b16 %v334
    %v5324 = vunpack.c.l.b16 %v335
    %v5325 = vunpack.c.h.b16 %v335
    %v5326 = vunpack.c.l.b16 %v336
    %v5327 = vunpack.c.h.b16 %v336
    %v5328 = vunpack.c.l.b16 %v337
    %v5329 = vunpack.c.h.b16 %v337
    %v5330 = vunpack.c.l.b16 %v338
    %v5331 = vunpack.c.h.b16 %v338
    %v5332 = vunpack.c.l.b16 %v339
    %v5333 = vunpack.c.h.b16 %v339
    %v5334 = vunpack.c.l.b16 %v340
    %v5335 = vunpack.c.h.b16 %v340
    %v5336 = vunpack.c.l.b16 %v341
    %v5337 = vunpack.c.h.b16 %v341
    %v5338 = vunpack.c.l.b16 %v342
    %v5339 = vunpack.c.h.b16 %v342
    %v5340 = vunpack.c.l.b16 %v343
    %v5341 = vunpack.c.h.b16 %v343
    %v5342 = vunpack.c.l.b16 %v344
    %v5343 = vunpack.c.h.b16 %v344
    %v5344 = vunpack.c.l.b16 %v345
    %v5345 = vunpack.c.h.b16 %v345
    %v5346 = vunpack.c.l.b16 %v346
    %v5347 = vunpack.c.h.b16 %v346
    %v5348 = vunpack.c.l.b16 %v347
    %v5349 = vunpack.c.h.b16 %v347
    %v5350 = vunpack.c.l.b16 %v348
    %v5351 = vunpack.c.h.b16 %v348
    %v5352 = vunpack.c.l.b16 %v349
    %v5353 = vunpack.c.h.b16 %v349
    %v5354 = vunpack.c.l.b16 %v350
    %v5355 = vunpack.c.h.b16 %v350
    %v5356 = vunpack.c.l.b16 %v351
    %v5357 = vunpack.c.h.b16 %v351
    %v5358 = vunpack.c.l.b16 %v352
    %v5359 = vunpack.c.h.b16 %v352
    %v5360 = vunpack.c.l.b16 %v353
    %v5361 = vunpack.c.h.b16 %v353
    %v5362 = vunpack.c.l.b16 %v354
    %v5363 = vunpack.c.h.b16 %v354
    %v5364 = vunpack.c.l.b16 %v355
    %v5365 = vunpack.c.h.b16 %v355
    %v5366 = vunpack.c.l.b16 %v356
    %v5367 = vunpack.c.h.b16 %v356
    %v5368 = vunpack.c.l.b16 %v357
    %v5369 = vunpack.c.h.b16 %v357
    %v5370 = vunpack.c.l.b16 %v358
    %v5371 = vunpack.c.h.b16 %v358
    %v5372 = vunpack.c.l.b16 %v359
    %v5373 = vunpack.c.h.b16 %v359
    %v5374 = vunpack.c.l.b16 %v360
    %v5375 = vunpack.c.h.b16 %v360
    %v5376 = vunpack.c.l.b16 %v361
    %v5377 = vunpack.c.h.b16 %v361
    %v5378 = vunpack.c.l.b16 %v362
    %v5379 = vunpack.c.h.b16 %v362
    %v5380 = vunpack.c.l.b16 %v363
    %v5381 = vunpack.c.h.b16 %v363
    %v5382 = vunpack.c.l.b16 %v364
    %v5383 = vunpack.c.h.b16 %v364
    %v5384 = vunpack.c.l.b16 %v365
    %v5385 = vunpack.c.h.b16 %v365
    %v5386 = vunpack.c.l.b16 %v366
    %v5387 = vunpack.c.h.b16 %v366
    %v5388 = vunpack.c.l.b16 %v367
    %v5389 = vunpack.c.h.b16 %v367
    %v5390 = vunpack.c.l.b16 %v368
    %v5391 = vunpack.c.h.b16 %v368
    %v5392 = vunpack.c.l.b16 %v369
    %v5393 = vunpack.c.h.b16 %v369
    %v5394 = vunpack.c.l.b16 %v370
    %v5395 = vunpack.c.h.b16 %v370
    %v5396 = vunpack.c.l.b16 %v371
    %v5397 = vunpack.c.h.b16 %v371
    %v5398 = vunpack.c.l.b16 %v372
    %v5399 = vunpack.c.h.b16 %v372
    %v5400 = vunpack.c.l.b16 %v373
    %v5401 = vunpack.c.h.b16 %v373
    %v5402 = vunpack.c.l.b16 %v374
    %v5403 = vunpack.c.h.b16 %v374
    %v5404 = vunpack.c.l.b16 %v375
    %v5405 = vunpack.c.h.b16 %v375
    %v5406 = vunpack.c.l.b16 %v376
    %v5407 = vunpack.c.h.b16 %v376
    %v5408 = vunpack.c.l.b16 %v377
    %v5409 = vunpack.c.h.b16 %v377
    %v5410 = vunpack.c.l.b16 %v378
    %v5411 = vunpack.c.h.b16 %v378
    %v5412 = vunpack.c.l.b16 %v379
    %v5413 = vunpack.c.h.b16 %v379
    %v5414 = vunpack.c.l.b16 %v380
    %v5415 = vunpack.c.h.b16 %v380
    %v5416 = vunpack.c.l.b16 %v381
    %v5417 = vunpack.c.h.b16 %v381
    %v5418 = vunpack.c.l.b16 %v382
    %v5419 = vunpack.c.h.b16 %v382
    %v5420 = vunpack.c.l.b16 %v383
    %v5421 = vunpack.c.h.b16 %v383
    %v5422 = vunpack.c.l.b16 %v384
    %v5423 = vunpack.c.h.b16 %v384
    %v5424 = vunpack.c.l.b16 %v385
    %v5425 = vunpack.c.h.b16 %v385
    %v5426 = vunpack.c.l.b16 %v386
    %v5427 = vunpack.c.h.b16 %v386
    %v5428 = vunpack.c.l.b16 %v387
    %v5429 = vunpack.c.h.b16 %v387
    %v5430 = vunpack.c.l.b16 %v388
    %v5431 = vunpack.c.h.b16 %v388
    %v5432 = vunpack.c.l.b16 %v389
    %v5433 = vunpack.c.h.b16 %v389
    %v5434 = vunpack.c.l.b16 %v390
    %v5435 = vunpack.c.h.b16 %v390
    %v5436 = vunpack.c.l.b16 %v391
    %v5437 = vunpack.c.h.b16 %v391
    %v5438 = vunpack.c.l.b16 %v392
    %v5439 = vunpack.c.h.b16 %v392
    %v5440 = vunpack.c.l.b16 %v393
    %v5441 = vunpack.c.h.b16 %v393
    %v5442 = vunpack.c.l.b16 %v394
    %v5443 = vunpack.c.h.b16 %v394
    %v5444 = vunpack.c.l.b16 %v395
    %v5445 = vunpack.c.h.b16 %v395
    %v5446 = vunpack.c.l.b16 %v396
    %v5447 = vunpack.c.h.b16 %v396
    %v5448 = vunpack.c.l.b16 %v397
    %v5449 = vunpack.c.h.b16 %v397
    %v5450 = vunpack.c.l.b16 %v398
    %v5451 = vunpack.c.h.b16 %v398
    %v5452 = vunpack.c.l.b16 %v399
    %v5453 = vunpack.c.h.b16 %v399
    %v5454 = vunpack.c.l.b16 %v400
    %v5455 = vunpack.c.h.b16 %v400
    %v5456 = vunpack.c.l.b16 %v401
    %v5457 = vunpack.c.h.b16 %v401
    %v5458 = vunpack.c.l.b16 %v402
    %v5459 = vunpack.c.h.b16 %v402
    %v5460 = vunpack.c.l.b16 %v403
    %v5461 = vunpack.c.h.b16 %v403
    %v5462 = vunpack.c.l.b16 %v404
    %v5463 = vunpack.c.h.b16 %v404
    %v5464 = vunpack.c.l.b16 %v405
    %v5465 = vunpack.c.h.b16 %v405
    %v5466 = vunpack.c.l.b16 %v406
    %v5467 = vunpack.c.h.b16 %v406
    %v5468 = vunpack.c.l.b16 %v407
    %v5469 = vunpack.c.h.b16 %v407
    %v5470 = vunpack.c.l.b16 %v408
    %v5471 = vunpack.c.h.b16 %v408
    %v5472 = vunpack.c.l.b16 %v409
    %v5473 = vunpack.c.h.b16 %v409
    %v5474 = vunpack.c.l.b16 %v410
    %v5475 = vunpack.c.h.b16 %v410
    %v5476 = vunpack.c.l.b16 %v411
    %v5477 = vunpack.c.h.b16 %v411
    %v5478 = vunpack.c.l.b16 %v412
    %v5479 = vunpack.c.h.b16 %v412
    %v5480 = vunpack.c.l.b16 %v413
    %v5481 = vunpack.c.h.b16 %v413
    %v5482 = vunpack.c.l.b16 %v414
    %v5483 = vunpack.c.h.b16 %v414
    %v5484 = vunpack.c.l.b16 %v415
    %v5485 = vunpack.c.h.b16 %v415
    %v5486 = vunpack.c.l.b16 %v416
    %v5487 = vunpack.c.h.b16 %v416
    %v5488 = vunpack.c.l.b16 %v417
    %v5489 = vunpack.c.h.b16 %v417
    %v5490 = vunpack.c.l.b16 %v418
    %v5491 = vunpack.c.h.b16 %v418
    %v5492 = vunpack.c.l.b16 %v419
    %v5493 = vunpack.c.h.b16 %v419
    %v5494 = vunpack.c.l.b16 %v420
    %v5495 = vunpack.c.h.b16 %v420
    %v5496 = vunpack.c.l.b16 %v421
    %v5497 = vunpack.c.h.b16 %v421
    %v5498 = vunpack.c.l.b16 %v422
    %v5499 = vunpack.c.h.b16 %v422
    %v5500 = vunpack.c.l.b16 %v423
    %v5501 = vunpack.c.h.b16 %v423
    %v5502 = vunpack.c.l.b16 %v424
    %v5503 = vunpack.c.h.b16 %v424
    %v5504 = vunpack.c.l.b16 %v425
    %v5505 = vunpack.c.h.b16 %v425
    %v5506 = vunpack.c.l.b16 %v426
    %v5507 = vunpack.c.h.b16 %v426
    %v5508 = vunpack.c.l.b16 %v427
    %v5509 = vunpack.c.h.b16 %v427
    %v5510 = vunpack.c.l.b16 %v428
    %v5511 = vunpack.c.h.b16 %v428
    %v5512 = vunpack.c.l.b16 %v429
    %v5513 = vunpack.c.h.b16 %v429
    %v5514 = vunpack.c.l.b16 %v430
    %v5515 = vunpack.c.h.b16 %v430
    %v5516 = vunpack.c.l.b16 %v431
    %v5517 = vunpack.c.h.b16 %v431
    %v5518 = vunpack.c.l.b16 %v432
    %v5519 = vunpack.c.h.b16 %v432
    %v5520 = vunpack.c.l.b16 %v433
    %v5521 = vunpack.c.h.b16 %v433
    %v5522 = vunpack.c.l.b16 %v434
    %v5523 = vunpack.c.h.b16 %v434
    %v5524 = vunpack.c.l.b16 %v435
    %v5525 = vunpack.c.h.b16 %v435
    %v5526 = vunpack.c.l.b16 %v436
    %v5527 = vunpack.c.h.b16 %v436
    %v5528 = vunpack.c.l.b16 %v437
    %v5529 = vunpack.c.h.b16 %v437
    %v5530 = vunpack.c.l.b16 %v438
    %v5531 = vunpack.c.h.b16 %v438
    %v5532 = vunpack.c.l.b16 %v439
    %v5533 = vunpack.c.h.b16 %v439
    %v5534 = vunpack.c.l.b16 %v440
    %v5535 = vunpack.c.h.b16 %v440
    %v5536 = vunpack.c.l.b16 %v441
    %v5537 = vunpack.c.h.b16 %v441
    %v5538 = vunpack.c.l.b16 %v442
    %v5539 = vunpack.c.h.b16 %v442
    %v5540 = vunpack.c.l.b16 %v443
    %v5541 = vunpack.c.h.b16 %v443
    %v5542 = vunpack.c.l.b16 %v444
    %v5543 = vunpack.c.h.b16 %v444
    %v5544 = vunpack.c.l.b16 %v445
    %v5545 = vunpack.c.h.b16 %v445
    %v5546 = vunpack.c.l.b16 %v446
    %v5547 = vunpack.c.h.b16 %v446
    %v5548 = vunpack.c.l.b16 %v447
    %v5549 = vunpack.c.h.b16 %v447
    %v5550 = vunpack.c.l.b16 %v448
    %v5551 = vunpack.c.h.b16 %v448
    %v5552 = vunpack.c.l.b16 %v449
    %v5553 = vunpack.c.h.b16 %v449
    %v5554 = vunpack.c.l.b16 %v450
    %v5555 = vunpack.c.h.b16 %v450
    %v5556 = vunpack.c.l.b16 %v451
    %v5557 = vunpack.c.h.b16 %v451
    %v5558 = vunpack.c.l.b16 %v452
    %v5559 = vunpack.c.h.b16 %v452
    %v5560 = vunpack.c.l.b16 %v453
    %v5561 = vunpack.c.h.b16 %v453
    %v5562 = vunpack.c.l.b16 %v454
    %v5563 = vunpack.c.h.b16 %v454
    %v5564 = vunpack.c.l.b16 %v455
    %v5565 = vunpack.c.h.b16 %v455
    %v5566 = vunpack.c.l.b16 %v456
    %v5567 = vunpack.c.h.b16 %v456
    %v5568 = vunpack.c.l.b16 %v457
    %v5569 = vunpack.c.h.b16 %v457
    %v5570 = vunpack.c.l.b16 %v458
    %v5571 = vunpack.c.h.b16 %v458
    %v5572 = vunpack.c.l.b16 %v459
    %v5573 = vunpack.c.h.b16 %v459
    %v5574 = vunpack.c.l.b16 %v460
    %v5575 = vunpack.c.h.b16 %v460
    %v5576 = vunpack.c.l.b16 %v461
    %v5577 = vunpack.c.h.b16 %v461
    %v5578 = vunpack.c.l.b16 %v462
    %v5579 = vunpack.c.h.b16 %v462
    %v5580 = vunpack.c.l.b16 %v463
    %v5581 = vunpack.c.h.b16 %v463
    %v5582 = vunpack.c.l.b16 %v464
    %v5583 = vunpack.c.h.b16 %v464
    %v5584 = vunpack.c.l.b16 %v465
    %v5585 = vunpack.c.h.b16 %v465
    %v5586 = vunpack.c.l.b16 %v466
    %v5587 = vunpack.c.h.b16 %v466
    %v5588 = vunpack.c.l.b16 %v467
    %v5589 = vunpack.c.h.b16 %v467
    %v5590 = vunpack.c.l.b16 %v468
    %v5591 = vunpack.c.h.b16 %v468
    %v5592 = vunpack.c.l.b16 %v469
    %v5593 = vunpack.c.h.b16 %v469
    %v5594 = vunpack.c.l.b16 %v470
    %v5595 = vunpack.c.h.b16 %v470
    %v5596 = vunpack.c.l.b16 %v471
    %v5597 = vunpack.c.h.b16 %v471
    %v5598 = vunpack.c.l.b16 %v472
    %v5599 = vunpack.c.h.b16 %v472
    %v5600 = vunpack.c.l.b16 %v473
    %v5601 = vunpack.c.h.b16 %v473
    %v5602 = vunpack.c.l.b16 %v474
    %v5603 = vunpack.c.h.b16 %v474
    %v5604 = vunpack.c.l.b16 %v475
    %v5605 = vunpack.c.h.b16 %v475
    %v5606 = vunpack.c.l.b16 %v476
    %v5607 = vunpack.c.h.b16 %v476
    %v5608 = vunpack.c.l.b16 %v477
    %v5609 = vunpack.c.h.b16 %v477
    %v5610 = vunpack.c.l.b16 %v478
    %v5611 = vunpack.c.h.b16 %v478
    %v5612 = vunpack.c.l.b16 %v479
    %v5613 = vunpack.c.h.b16 %v479
    %v5614 = vunpack.c.l.b16 %v480
    %v5615 = vunpack.c.h.b16 %v480
    %v5616 = vunpack.c.l.b16 %v481
    %v5617 = vunpack.c.h.b16 %v481
    %v5618 = vunpack.c.l.b16 %v482
    %v5619 = vunpack.c.h.b16 %v482
    %v5620 = vunpack.c.l.b16 %v483
    %v5621 = vunpack.c.h.b16 %v483
    %v5622 = vunpack.c.l.b16 %v484
    %v5623 = vunpack.c.h.b16 %v484
    %v5624 = vunpack.c.l.b16 %v485
    %v5625 = vunpack.c.h.b16 %v485
    %v5626 = vunpack.c.l.b16 %v486
    %v5627 = vunpack.c.h.b16 %v486
    %v5628 = vunpack.c.l.b16 %v487
    %v5629 = vunpack.c.h.b16 %v487
    %v5630 = vunpack.c.l.b16 %v488
    %v5631 = vunpack.c.h.b16 %v488
    %v5632 = vunpack.c.l.b16 %v489
    %v5633 = vunpack.c.h.b16 %v489
    %v5634 = vunpack.c.l.b16 %v490
    %v5635 = vunpack.c.h.b16 %v490
    %v5636 = vunpack.c.l.b16 %v491
    %v5637 = vunpack.c.h.b16 %v491
    %v5638 = vunpack.c.l.b16 %v492
    %v5639 = vunpack.c.h.b16 %v492
    %v5640 = vunpack.c.l.b16 %v493
    %v5641 = vunpack.c.h.b16 %v493
    %v5642 = vunpack.c.l.b16 %v494
    %v5643 = vunpack.c.h.b16 %v494
    %v5644 = vunpack.c.l.b16 %v495
    %v5645 = vunpack.c.h.b16 %v495
    %v5646 = vunpack.c.l.b16 %v496
    %v5647 = vunpack.c.h.b16 %v496
    %v5648 = vunpack.c.l.b16 %v497
    %v5649 = vunpack.c.h.b16 %v497
    %v5650 = vunpack.c.l.b16 %v498
    %v5651 = vunpack.c.h.b16 %v498
    %v5652 = vunpack.c.l.b16 %v499
    %v5653 = vunpack.c.h.b16 %v499
    %v5654 = vunpack.c.l.b16 %v500
    %v5655 = vunpack.c.h.b16 %v500
    %v5656 = vunpack.c.l.b16 %v501
    %v5657 = vunpack.c.h.b16 %v501
    %v5658 = vunpack.c.l.b16 %v502
    %v5659 = vunpack.c.h.b16 %v502
    %v5660 = vunpack.c.l.b16 %v503
    %v5661 = vunpack.c.h.b16 %v503
    %v5662 = vunpack.c.l.b16 %v504
    %v5663 = vunpack.c.h.b16 %v504
    %v5664 = vunpack.c.l.b16 %v505
    %v5665 = vunpack.c.h.b16 %v505
    %v5666 = vunpack.c.l.b16 %v506
    %v5667 = vunpack.c.h.b16 %v506
    %v5668 = vunpack.c.l.b16 %v507
    %v5669 = vunpack.c.h.b16 %v507
    %v5670 = vunpack.c.l.b16 %v508
    %v5671 = vunpack.c.h.b16 %v508
    %v5672 = vunpack.c.l.b16 %v509
    %v5673 = vunpack.c.h.b16 %v509
    %v5674 = vunpack.c.l.b16 %v510
    %v5675 = vunpack.c.h.b16 %v510
    %v5676 = vunpack.c.l.b16 %v511
    %v5677 = vunpack.c.h.b16 %v511
    %v5678 = vunpack.c.l.b16 %v512
    %v5679 = vunpack.c.h.b16 %v512
    %v5680 = vunpack.c.l.b16 %v513
    %v5681 = vunpack.c.h.b16 %v513
    %v5682 = vunpack.c.l.b16 %v514
    %v5683 = vunpack.c.h.b16 %v514
    %v5684 = vunpack.c.l.b16 %v515
    %v5685 = vunpack.c.h.b16 %v515
    %v5686 = vunpack.c.l.b16 %v516
    %v5687 = vunpack.c.h.b16 %v516
    %v5688 = vunpack.c.l.b16 %v517
    %v5689 = vunpack.c.h.b16 %v517
    %v5690 = vunpack.c.l.b16 %v518
    %v5691 = vunpack.c.h.b16 %v518
    %v5692 = vunpack.c.l.b16 %v519
    %v5693 = vunpack.c.h.b16 %v519
    %v5694 = vunpack.c.l.b16 %v520
    %v5695 = vunpack.c.h.b16 %v520
    %v5696 = vunpack.c.l.b16 %v521
    %v5697 = vunpack.c.h.b16 %v521
    %v5698 = vunpack.c.l.b16 %v522
    %v5699 = vunpack.c.h.b16 %v522
    %v5700 = vunpack.c.l.b16 %v523
    %v5701 = vunpack.c.h.b16 %v523
    %v5702 = vunpack.c.l.b16 %v524
    %v5703 = vunpack.c.h.b16 %v524
    %v5704 = vunpack.c.l.b16 %v525
    %v5705 = vunpack.c.h.b16 %v525
    %v5706 = vunpack.c.l.b16 %v526
    %v5707 = vunpack.c.h.b16 %v526
    %v5708 = vunpack.c.l.b16 %v527
    %v5709 = vunpack.c.h.b16 %v527
    %v5710 = vunpack.c.l.b16 %v528
    %v5711 = vunpack.c.h.b16 %v528
    %v5712 = vunpack.c.l.b16 %v529
    %v5713 = vunpack.c.h.b16 %v529
    %v5714 = vunpack.c.l.b16 %v530
    %v5715 = vunpack.c.h.b16 %v530
    %v5716 = vunpack.c.l.b16 %v531
    %v5717 = vunpack.c.h.b16 %v531
    %v5718 = vunpack.c.l.b16 %v532
    %v5719 = vunpack.c.h.b16 %v532
    %v5720 = vunpack.c.l.b16 %v533
    %v5721 = vunpack.c.h.b16 %v533
    %v5722 = vunpack.c.l.b16 %v534
    %v5723 = vunpack.c.h.b16 %v534
    %v5724 = vunpack.c.l.b16 %v535
    %v5725 = vunpack.c.h.b16 %v535
    %v5726 = vunpack.c.l.b16 %v536
    %v5727 = vunpack.c.h.b16 %v536
    %v5728 = vunpack.c.l.b16 %v537
    %v5729 = vunpack.c.h.b16 %v537
    %v5730 = vunpack.c.l.b16 %v538
    %v5731 = vunpack.c.h.b16 %v538
    %v5732 = vunpack.c.l.b16 %v539
    %v5733 = vunpack.c.h.b16 %v539
    %v5734 = vunpack.c.l.b16 %v540
    %v5735 = vunpack.c.h.b16 %v540
    %v5736 = vunpack.c.l.b16 %v541
    %v5737 = vunpack.c.h.b16 %v541
    %v5738 = vunpack.c.l.b16 %v542
    %v5739 = vunpack.c.h.b16 %v542
    %v5740 = vunpack.c.l.b16 %v543
    %v5741 = vunpack.c.h.b16 %v543
    %v5742 = vunpack.c.l.b16 %v544
    %v5743 = vunpack.c.h.b16 %v544
    %v5744 = vunpack.c.l.b16 %v545
    %v5745 = vunpack.c.h.b16 %v545
    %v5746 = vunpack.c.l.b16 %v546
    %v5747 = vunpack.c.h.b16 %v546
    %v5748 = vunpack.c.l.b16 %v547
    %v5749 = vunpack.c.h.b16 %v547
    %v5750 = vunpack.c.l.b16 %v548
    %v5751 = vunpack.c.h.b16 %v548
    %v5752 = vunpack.c.l.b16 %v549
    %v5753 = vunpack.c.h.b16 %v549
    %v5754 = vunpack.c.l.b16 %v550
    %v5755 = vunpack.c.h.b16 %v550
    %v5756 = vunpack.c.l.b16 %v551
    %v5757 = vunpack.c.h.b16 %v551
    %v5758 = vunpack.c.l.b16 %v552
    %v5759 = vunpack.c.h.b16 %v552
    %v5760 = vunpack.c.l.b16 %v553
    %v5761 = vunpack.c.h.b16 %v553
    %v5762 = vunpack.c.l.b16 %v554
    %v5763 = vunpack.c.h.b16 %v554
    %v5764 = vunpack.c.l.b16 %v555
    %v5765 = vunpack.c.h.b16 %v555
    %v5766 = vunpack.c.l.b16 %v556
    %v5767 = vunpack.c.h.b16 %v556
    %v5768 = vunpack.c.l.b16 %v557
    %v5769 = vunpack.c.h.b16 %v557
    %v5770 = vunpack.c.l.b16 %v558
    %v5771 = vunpack.c.h.b16 %v558
    %v5772 = vunpack.c.l.b16 %v559
    %v5773 = vunpack.c.h.b16 %v559
    %v5774 = vunpack.c.l.b16 %v560
    %v5775 = vunpack.c.h.b16 %v560
    %v5776 = vunpack.c.l.b16 %v561
    %v5777 = vunpack.c.h.b16 %v561
    %v5778 = vunpack.c.l.b16 %v562
    %v5779 = vunpack.c.h.b16 %v562
    %v5780 = vunpack.c.l.b16 %v563
    %v5781 = vunpack.c.h.b16 %v563
    %v5782 = vunpack.c.l.b16 %v564
    %v5783 = vunpack.c.h.b16 %v564
    %v5784 = vunpack.c.l.b16 %v565
    %v5785 = vunpack.c.h.b16 %v565
    %v5786 = vunpack.c.l.b16 %v566
    %v5787 = vunpack.c.h.b16 %v566
    %v5788 = vunpack.c.l.b16 %v567
    %v5789 = vunpack.c.h.b16 %v567
    %v5790 = vunpack.c.l.b16 %v568
    %v5791 = vunpack.c.h.b16 %v568
    %v5792 = vunpack.c.l.b16 %v569
    %v5793 = vunpack.c.h.b16 %v569
    %v5794 = vunpack.c.l.b16 %v570
    %v5795 = vunpack.c.h.b16 %v570
    %v5796 = vunpack.c.l.b16 %v571
    %v5797 = vunpack.c.h.b16 %v571
    %v5798 = vunpack.c.l.b16 %v572
    %v5799 = vunpack.c.h.b16 %v572
    %v5800 = vunpack.c.l.b16 %v573
    %v5801 = vunpack.c.h.b16 %v573
    %v5802 = vunpack.c.l.b16 %v574
    %v5803 = vunpack.c.h.b16 %v574
    %v5804 = vunpack.c.l.b16 %v575
    %v5805 = vunpack.c.h.b16 %v575
    %v5806 = vunpack.c.l.b16 %v576
    %v5807 = vunpack.c.h.b16 %v576
    %v5808 = vunpack.c.l.b16 %v577
    %v5809 = vunpack.c.h.b16 %v577
    %v5810 = vunpack.c.l.b16 %v578
    %v5811 = vunpack.c.h.b16 %v578
    %v5812 = vunpack.c.l.b16 %v579
    %v5813 = vunpack.c.h.b16 %v579
    %v5814 = vunpack.c.l.b16 %v580
    %v5815 = vunpack.c.h.b16 %v580
    %v5816 = vunpack.c.l.b16 %v581
    %v5817 = vunpack.c.h.b16 %v581
    %v5818 = vunpack.c.l.b16 %v582
    %v5819 = vunpack.c.h.b16 %v582
    %v5820 = vunpack.c.l.b16 %v583
    %v5821 = vunpack.c.h.b16 %v583
    %v5822 = vunpack.c.l.b16 %v584
    %v5823 = vunpack.c.h.b16 %v584
    %v5824 = vunpack.c.l.b16 %v585
    %v5825 = vunpack.c.h.b16 %v585
    %v5826 = vunpack.c.l.b16 %v586
    %v5827 = vunpack.c.h.b16 %v586
    %v5828 = vunpack.c.l.b16 %v587
    %v5829 = vunpack.c.h.b16 %v587
    %v5830 = vunpack.c.l.b16 %v588
    %v5831 = vunpack.c.h.b16 %v588
    %v5832 = vunpack.c.l.b16 %v589
    %v5833 = vunpack.c.h.b16 %v589
    %v5834 = vunpack.c.l.b16 %v590
    %v5835 = vunpack.c.h.b16 %v590
    %v5836 = vunpack.c.l.b16 %v591
    %v5837 = vunpack.c.h.b16 %v591
    %v5838 = vunpack.c.l.b16 %v592
    %v5839 = vunpack.c.h.b16 %v592
    %v5840 = vunpack.c.l.b16 %v593
    %v5841 = vunpack.c.h.b16 %v593
    %v5842 = vunpack.c.l.b16 %v594
    %v5843 = vunpack.c.h.b16 %v594
    %v5844 = vunpack.c.l.b16 %v595
    %v5845 = vunpack.c.h.b16 %v595
    %v5846 = vunpack.c.l.b16 %v596
    %v5847 = vunpack.c.h.b16 %v596
    %v5848 = vunpack.c.l.b16 %v597
    %v5849 = vunpack.c.h.b16 %v597
    %v5850 = vunpack.c.l.b16 %v598
    %v5851 = vunpack.c.h.b16 %v598
    %v5852 = vunpack.c.l.b16 %v599
    %v5853 = vunpack.c.h.b16 %v599
    %v5854 = vunpack.c.l.b16 %v600
    %v5855 = vunpack.c.h.b16 %v600
    %v5856 = vunpack.c.l.b16 %v601
    %v5857 = vunpack.c.h.b16 %v601
    %v5858 = vunpack.c.l.b16 %v602
    %v5859 = vunpack.c.h.b16 %v602
    %v5860 = vunpack.c.l.b16 %v603
    %v5861 = vunpack.c.h.b16 %v603
    %v5862 = vunpack.c.l.b16 %v604
    %v5863 = vunpack.c.h.b16 %v604
    %v5864 = vunpack.c.l.b16 %v605
    %v5865 = vunpack.c.h.b16 %v605
    %v5866 = vunpack.c.l.b16 %v606
    %v5867 = vunpack.c.h.b16 %v606
    %v5868 = vunpack.c.l.b16 %v607
    %v5869 = vunpack.c.h.b16 %v607
    %v5870 = vunpack.c.l.b16 %v608
    %v5871 = vunpack.c.h.b16 %v608
    %v5872 = vunpack.c.l.b16 %v609
    %v5873 = vunpack.c.h.b16 %v609
    %v5874 = vunpack.c.l.b16 %v610
    %v5875 = vunpack.c.h.b16 %v610
    %v5876 = vunpack.c.l.b16 %v611
    %v5877 = vunpack.c.h.b16 %v611
    %v5878 = vunpack.c.l.b16 %v612
    %v5879 = vunpack.c.h.b16 %v612
    %v5880 = vunpack.c.l.b16 %v613
    %v5881 = vunpack.c.h.b16 %v613
    %v5882 = vunpack.c.l.b16 %v614
    %v5883 = vunpack.c.h.b16 %v614
    %v5884 = vunpack.c.l.b16 %v615
    %v5885 = vunpack.c.h.b16 %v615
    %v5886 = vunpack.c.l.b16 %v616
    %v5887 = vunpack.c.h.b16 %v616
    %v5888 = vunpack.c.l.b16 %v617
    %v5889 = vunpack.c.h.b16 %v617
    %v5890 = vunpack.c.l.b16 %v618
    %v5891 = vunpack.c.h.b16 %v618
    %v5892 = vunpack.c.l.b16 %v619
    %v5893 = vunpack.c.h.b16 %v619
    %v5894 = vunpack.c.l.b16 %v620
    %v5895 = vunpack.c.h.b16 %v620
    %v5896 = vunpack.c.l.b16 %v621
    %v5897 = vunpack.c.h.b16 %v621
    %v5898 = vunpack.c.l.b16 %v622
    %v5899 = vunpack.c.h.b16 %v622
    %v5900 = vunpack.c.l.b16 %v623
    %v5901 = vunpack.c.h.b16 %v623
    %v5902 = vunpack.c.l.b16 %v624
    %v5903 = vunpack.c.h.b16 %v624
    %v5904 = vunpack.c.l.b16 %v625
    %v5905 = vunpack.c.h.b16 %v625
    %v5906 = vunpack.c.l.b16 %v626
    %v5907 = vunpack.c.h.b16 %v626
    %v5908 = vunpack.c.l.b16 %v627
    %v5909 = vunpack.c.h.b16 %v627
    %v5910 = vunpack.c.l.b16 %v628
    %v5911 = vunpack.c.h.b16 %v628
    %v5912 = vunpack.c.l.b16 %v629
    %v5913 = vunpack.c.h.b16 %v629
    %v5914 = vunpack.c.l.b16 %v630
    %v5915 = vunpack.c.h.b16 %v630
    %v5916 = vunpack.c.l.b16 %v631
    %v5917 = vunpack.c.h.b16 %v631
    %v5918 = vunpack.c.l.b16 %v632
    %v5919 = vunpack.c.h.b16 %v632
    %v5920 = vunpack.c.l.b16 %v633
    %v5921 = vunpack.c.h.b16 %v633
    %v5922 = vunpack.c.l.b16 %v634
    %v5923 = vunpack.c.h.b16 %v634
    %v5924 = vunpack.c.l.b16 %v635
    %v5925 = vunpack.c.h.b16 %v635
    %v5926 = vunpack.c.l.b16 %v636
    %v5927 = vunpack.c.h.b16 %v636
    %v5928 = vunpack.c.l.b16 %v637
    %v5929 = vunpack.c.h.b16 %v637
    %v5930 = vunpack.c.l.b16 %v638
    %v5931 = vunpack.c.h.b16 %v638
    %v5932 = vunpack.c.l.b16 %v639
    %v5933 = vunpack.c.h.b16 %v639
    %v5934 = vunpack.c.l.b16 %v640
    %v5935 = vunpack.c.h.b16 %v640
    %v5936 = vunpack.c.l.b16 %v641
    %v5937 = vunpack.c.h.b16 %v641
    %v5938 = vunpack.c.l.b16 %v642
    %v5939 = vunpack.c.h.b16 %v642
    %v5940 = vunpack.c.l.b16 %v643
    %v5941 = vunpack.c.h.b16 %v643
    %v5942 = vunpack.c.l.b16 %v644
    %v5943 = vunpack.c.h.b16 %v644
    %v5944 = vunpack.c.l.b16 %v645
    %v5945 = vunpack.c.h.b16 %v645
    %v5946 = vunpack.c.l.b16 %v646
    %v5947 = vunpack.c.h.b16 %v646
    %v5948 = vunpack.c.l.b16 %v647
    %v5949 = vunpack.c.h.b16 %v647
    %v5950 = vunpack.c.l.b16 %v648
    %v5951 = vunpack.c.h.b16 %v648
    %v5952 = vunpack.c.l.b16 %v649
    %v5953 = vunpack.c.h.b16 %v649
    %v5954 = vunpack.c.l.b16 %v650
    %v5955 = vunpack.c.h.b16 %v650
    %v5956 = vunpack.c.l.b16 %v651
    %v5957 = vunpack.c.h.b16 %v651
    %v5958 = vunpack.c.l.b16 %v652
    %v5959 = vunpack.c.h.b16 %v652
    %v5960 = vunpack.c.l.b16 %v653
    %v5961 = vunpack.c.h.b16 %v653
    %v5962 = vunpack.c.l.b16 %v654
    %v5963 = vunpack.c.h.b16 %v654
    %v5964 = vunpack.c.l.b16 %v655
    %v5965 = vunpack.c.h.b16 %v655
    %v5966 = vunpack.c.l.b16 %v656
    %v5967 = vunpack.c.h.b16 %v656
    %v5968 = vunpack.c.l.b16 %v657
    %v5969 = vunpack.c.h.b16 %v657
    %v5970 = vunpack.c.l.b16 %v658
    %v5971 = vunpack.c.h.b16 %v658
    %v5972 = vunpack.c.l.b16 %v659
    %v5973 = vunpack.c.h.b16 %v659
    %v5974 = vunpack.c.l.b16 %v660
    %v5975 = vunpack.c.h.b16 %v660
    %v5976 = vunpack.c.l.b16 %v661
    %v5977 = vunpack.c.h.b16 %v661
    %v5978 = vunpack.c.l.b16 %v662
    %v5979 = vunpack.c.h.b16 %v662
    %v5980 = vunpack.c.l.b16 %v663
    %v5981 = vunpack.c.h.b16 %v663
    %v5982 = vunpack.c.l.b16 %v664
    %v5983 = vunpack.c.h.b16 %v664
    %v5984 = vunpack.c.l.b16 %v665
    %v5985 = vunpack.c.h.b16 %v665
    %v5986 = vpack.c.b16 %v4970, %v4962
    %v5987 = vpack.c.b16 %v4971, %v4963
    %v5988 = vpack.c.b16 %v4972, %v4964
    %v5989 = vpack.c.b16 %v4973, %v4965
    %v5990 = vpack.c.b16 %v4974, %v4966
    %v5991 = vpack.c.b16 %v4975, %v4967
    %v5992 = vpack.c.b16 %v4976, %v4968
    %v5993 = vpack.c.b16 %v4977, %v4969
    %v5994 = vpack.c.b16 %v4986, %v4978
    %v5995 = vpack.c.b16 %v4987, %v4979
    %v5996 = vpack.c.b16 %v4988, %v4980
    %v5997 = vpack.c.b16 %v4989, %v4981
    %v5998 = vpack.c.b16 %v4990, %v4982
    %v5999 = vpack.c.b16 %v4991, %v4983
    %v6000 = vpack.c.b16 %v4992, %v4984
    %v6001 = vpack.c.b16 %v4993, %v4985
    %v6002 = vpack.c.b16 %v5002, %v4994
    %v6003 = vpack.c.b16 %v5003, %v4995
    %v6004 = vpack.c.b16 %v5004, %v4996
    %v6005 = vpack.c.b16 %v5005, %v4997
    %v6006 = vpack.c.b16 %v5006, %v4998
    %v6007 = vpack.c.b16 %v5007, %v4999
    %v6008 = vpack.c.b16 %v5008, %v5000
    %v6009 = vpack.c.b16 %v5009, %v5001
    %v6010 = vpack.c.b16 %v5018, %v5010
    %v6011 = vpack.c.b16 %v5019, %v5011
    %v6012 = vpack.c.b16 %v5020, %v5012
    %v6013 = vpack.c.b16 %v5021, %v5013
    %v6014 = vpack.c.b16 %v5022, %v5014
    %v6015 = vpack.c.b16 %v5023, %v5015
    %v6016 = vpack.c.b16 %v5024, %v5016
    %v6017 = vpack.c.b16 %v5025, %v5017
    %v6018 = vpack.c.b16 %v5034, %v5026
    %v6019 = vpack.c.b16 %v5035, %v5027
    %v6020 = vpack.c.b16 %v5036, %v5028
    %v6021 = vpack.c.b16 %v5037, %v5029
    %v6022 = vpack.c.b16 %v5038, %v5030
    %v6023 = vpack.c.b16 %v5039, %v5031
    %v6024 = vpack.c.b16 %v5040, %v5032
    %v6025 = vpack.c.b16 %v5041, %v5033
    %v6026 = vpack.c.b16 %v5050, %v5042
    %v6027 = vpack.c.b16 %v5051, %v5043
    %v6028 = vpack.c.b16 %v5052, %v5044
    %v6029 = vpack.c.b16 %v5053, %v5045
    %v6030 = vpack.c.b16 %v5054, %v5046
    %v6031 = vpack.c.b16 %v5055, %v5047
    %v6032 = vpack.c.b16 %v5056, %v5048
    %v6033 = vpack.c.b16 %v5057, %v5049
    %v6034 = vpack.c.b16 %v5066, %v5058
    %v6035 = vpack.c.b16 %v5067, %v5059
    %v6036 = vpack.c.b16 %v5068, %v5060
    %v6037 = vpack.c.b16 %v5069, %v5061
    %v6038 = vpack.c.b16 %v5070, %v5062
    %v6039 = vpack.c.b16 %v5071, %v5063
    %v6040 = vpack.c.b16 %v5072, %v5064
    %v6041 = vpack.c.b16 %v5073, %v5065
    %v6042 = vpack.c.b16 %v5082, %v5074
    %v6043 = vpack.c.b16 %v5083, %v5075
    %v6044 = vpack.c.b16 %v5084, %v5076
    %v6045 = vpack.c.b16 %v5085, %v5077
    %v6046 = vpack.c.b16 %v5086, %v5078
    %v6047 = vpack.c.b16 %v5087, %v5079
    %v6048 = vpack.c.b16 %v5088, %v5080
    %v6049 = vpack.c.b16 %v5089, %v5081
    %v6050 = vpack.c.b16 %v5098, %v5090
    %v6051 = vpack.c.b16 %v5099, %v5091
    %v6052 = vpack.c.b16 %v5100, %v5092
    %v6053 = vpack.c.b16 %v5101, %v5093
    %v6054 = vpack.c.b16 %v5102, %v5094
    %v6055 = vpack.c.b16 %v5103, %v5095
    %v6056 = vpack.c.b16 %v5104, %v5096
    %v6057 = vpack.c.b16 %v5105, %v5097
    %v6058 = vpack.c.b16 %v5114, %v5106
    %v6059 = vpack.c.b16 %v5115, %v5107
    %v6060 = vpack.c.b16 %v5116, %v5108
    %v6061 = vpack.c.b16 %v5117, %v5109
    %v6062 = vpack.c.b16 %v5118, %v5110
    %v6063 = vpack.c.b16 %v5119, %v5111
    %v6064 = vpack.c.b16 %v5120, %v5112
    %v6065 = vpack.c.b16 %v5121, %v5113
    %v6066 = vpack.c.b16 %v5130, %v5122
    %v6067 = vpack.c.b16 %v5131, %v5123
    %v6068 = vpack.c.b16 %v5132, %v5124
    %v6069 = vpack.c.b16 %v5133, %v5125
    %v6070 = vpack.c.b16 %v5134, %v5126
    %v6071 = vpack.c.b16 %v5135, %v5127
    %v6072 = vpack.c.b16 %v5136, %v5128
    %v6073 = vpack.c.b16 %v5137, %v5129
    %v6074 = vpack.c.b16 %v5146, %v5138
    %v6075 = vpack.c.b16 %v5147, %v5139
    %v6076 = vpack.c.b16 %v5148, %v5140
    %v6077 = vpack.c.b16 %v5149, %v5141
    %v6078 = vpack.c.b16 %v5150, %v5142
    %v6079 = vpack.c.b16 %v5151, %v5143
    %v6080 = vpack.c.b16 %v5152, %v5144
    %v6081 = vpack.c.b16 %v5153, %v5145
    %v6082 = vpack.c.b16 %v5162, %v5154
    %v6083 = vpack.c.b16 %v5163, %v5155
    %v6084 = vpack.c.b16 %v5164, %v5156
    %v6085 = vpack.c.b16 %v5165, %v5157
    %v6086 = vpack.c.b16 %v5166, %v5158
    %v6087 = vpack.c.b16 %v5167, %v5159
    %v6088 = vpack.c.b16 %v5168, %v5160
    %v6089 = vpack.c.b16 %v5169, %v5161
    %v6090 = vpack.c.b16 %v5178, %v5170
    %v6091 = vpack.c.b16 %v5179, %v5171
    %v6092 = vpack.c.b16 %v5180, %v5172
    %v6093 = vpack.c.b16 %v5181, %v5173
    %v6094 = vpack.c.b16 %v5182, %v5174
    %v6095 = vpack.c.b16 %v5183, %v5175
    %v6096 = vpack.c.b16 %v5184, %v5176
    %v6097 = vpack.c.b16 %v5185, %v5177
    %v6098 = vpack.c.b16 %v5194, %v5186
    %v6099 = vpack.c.b16 %v5195, %v5187
    %v6100 = vpack.c.b16 %v5196, %v5188
    %v6101 = vpack.c.b16 %v5197, %v5189
    %v6102 = vpack.c.b16 %v5198, %v5190
    %v6103 = vpack.c.b16 %v5199, %v5191
    %v6104 = vpack.c.b16 %v5200, %v5192
    %v6105 = vpack.c.b16 %v5201, %v5193
    %v6106 = vpack.c.b16 %v5210, %v5202
    %v6107 = vpack.c.b16 %v5211, %v5203
    %v6108 = vpack.c.b16 %v5212, %v5204
    %v6109 = vpack.c.b16 %v5213, %v5205
    %v6110 = vpack.c.b16 %v5214, %v5206
    %v6111 = vpack.c.b16 %v5215, %v5207
    %v6112 = vpack.c.b16 %v5216, %v5208
    %v6113 = vpack.c.b16 %v5217, %v5209
    %v6114 = vpack.c.b16 %v5226, %v5218
    %v6115 = vpack.c.b16 %v5227, %v5219
    %v6116 = vpack.c.b16 %v5228, %v5220
    %v6117 = vpack.c.b16 %v5229, %v5221
    %v6118 = vpack.c.b16 %v5230, %v5222
    %v6119 = vpack.c.b16 %v5231, %v5223
    %v6120 = vpack.c.b16 %v5232, %v5224
    %v6121 = vpack.c.b16 %v5233, %v5225
    %v6122 = vpack.c.b16 %v5242, %v5234
    %v6123 = vpack.c.b16 %v5243, %v5235
    %v6124 = vpack.c.b16 %v5244, %v5236
    %v6125 = vpack.c.b16 %v5245, %v5237
    %v6126 = vpack.c.b16 %v5246, %v5238
    %v6127 = vpack.c.b16 %v5247, %v5239
    %v6128 = vpack.c.b16 %v5248, %v5240
    %v6129 = vpack.c.b16 %v5249, %v5241
    %v6130 = vpack.c.b16 %v5258, %v5250
    %v6131 = vpack.c.b16 %v5259, %v5251
    %v6132 = vpack.c.b16 %v5260, %v5252
    %v6133 = vpack.c.b16 %v5261, %v5253
    %v6134 = vpack.c.b16 %v5262, %v5254
    %v6135 = vpack.c.b16 %v5263, %v5255
    %v6136 = vpack.c.b16 %v5264, %v5256
    %v6137 = vpack.c.b16 %v5265, %v5257
    %v6138 = vpack.c.b16 %v5274, %v5266
    %v6139 = vpack.c.b16 %v5275, %v5267
    %v6140 = vpack.c.b16 %v5276, %v5268
    %v6141 = vpack.c.b16 %v5277, %v5269
    %v6142 = vpack.c.b16 %v5278, %v5270
    %v6143 = vpack.c.b16 %v5279, %v5271
    %v6144 = vpack.c.b16 %v5280, %v5272
    %v6145 = vpack.c.b16 %v5281, %v5273
    %v6146 = vpack.c.b16 %v5290, %v5282
    %v6147 = vpack.c.b16 %v5291, %v5283
    %v6148 = vpack.c.b16 %v5292, %v5284
    %v6149 = vpack.c.b16 %v5293, %v5285
    %v6150 = vpack.c.b16 %v5294, %v5286
    %v6151 = vpack.c.b16 %v5295, %v5287
    %v6152 = vpack.c.b16 %v5296, %v5288
    %v6153 = vpack.c.b16 %v5297, %v5289
    %v6154 = vpack.c.b16 %v5306, %v5298
    %v6155 = vpack.c.b16 %v5307, %v5299
    %v6156 = vpack.c.b16 %v5308, %v5300
    %v6157 = vpack.c.b16 %v5309, %v5301
    %v6158 = vpack.c.b16 %v5310, %v5302
    %v6159 = vpack.c.b16 %v5311, %v5303
    %v6160 = vpack.c.b16 %v5312, %v5304
    %v6161 = vpack.c.b16 %v5313, %v5305
    %v6162 = vpack.c.b16 %v5322, %v5314
    %v6163 = vpack.c.b16 %v5323, %v5315
    %v6164 = vpack.c.b16 %v5324, %v5316
    %v6165 = vpack.c.b16 %v5325, %v5317
    %v6166 = vpack.c.b16 %v5326, %v5318
    %v6167 = vpack.c.b16 %v5327, %v5319
    %v6168 = vpack.c.b16 %v5328, %v5320
    %v6169 = vpack.c.b16 %v5329, %v5321
    %v6170 = vpack.c.b16 %v5338, %v5330
    %v6171 = vpack.c.b16 %v5339, %v5331
    %v6172 = vpack.c.b16 %v5340, %v5332
    %v6173 = vpack.c.b16 %v5341, %v5333
    %v6174 = vpack.c.b16 %v5342, %v5334
    %v6175 = vpack.c.b16 %v5343, %v5335
    %v6176 = vpack.c.b16 %v5344, %v5336
    %v6177 = vpack.c.b16 %v5345, %v5337
    %v6178 = vpack.c.b16 %v5354, %v5346
    %v6179 = vpack.c.b16 %v5355, %v5347
    %v6180 = vpack.c.b16 %v5356, %v5348
    %v6181 = vpack.c.b16 %v5357, %v5349
    %v6182 = vpack.c.b16 %v5358, %v5350
    %v6183 = vpack.c.b16 %v5359, %v5351
    %v6184 = vpack.c.b16 %v5360, %v5352
    %v6185 = vpack.c.b16 %v5361, %v5353
    %v6186 = vpack.c.b16 %v5370, %v5362
    %v6187 = vpack.c.b16 %v5371, %v5363
    %v6188 = vpack.c.b16 %v5372, %v5364
    %v6189 = vpack.c.b16 %v5373, %v5365
    %v6190 = vpack.c.b16 %v5374, %v5366
    %v6191 = vpack.c.b16 %v5375, %v5367
    %v6192 = vpack.c.b16 %v5376, %v5368
    %v6193 = vpack.c.b16 %v5377, %v5369
    %v6194 = vpack.c.b16 %v5386, %v5378
    %v6195 = vpack.c.b16 %v5387, %v5379
    %v6196 = vpack.c.b16 %v5388, %v5380
    %v6197 = vpack.c.b16 %v5389, %v5381
    %v6198 = vpack.c.b16 %v5390, %v5382
    %v6199 = vpack.c.b16 %v5391, %v5383
    %v6200 = vpack.c.b16 %v5392, %v5384
    %v6201 = vpack.c.b16 %v5393, %v5385
    %v6202 = vpack.c.b16 %v5402, %v5394
    %v6203 = vpack.c.b16 %v5403, %v5395
    %v6204 = vpack.c.b16 %v5404, %v5396
    %v6205 = vpack.c.b16 %v5405, %v5397
    %v6206 = vpack.c.b16 %v5406, %v5398
    %v6207 = vpack.c.b16 %v5407, %v5399
    %v6208 = vpack.c.b16 %v5408, %v5400
    %v6209 = vpack.c.b16 %v5409, %v5401
    %v6210 = vpack.c.b16 %v5418, %v5410
    %v6211 = vpack.c.b16 %v5419, %v5411
    %v6212 = vpack.c.b16 %v5420, %v5412
    %v6213 = vpack.c.b16 %v5421, %v5413
    %v6214 = vpack.c.b16 %v5422, %v5414
    %v6215 = vpack.c.b16 %v5423, %v5415
    %v6216 = vpack.c.b16 %v5424, %v5416
    %v6217 = vpack.c.b16 %v5425, %v5417
    %v6218 = vpack.c.b16 %v5434, %v5426
    %v6219 = vpack.c.b16 %v5435, %v5427
    %v6220 = vpack.c.b16 %v5436, %v5428
    %v6221 = vpack.c.b16 %v5437, %v5429
    %v6222 = vpack.c.b16 %v5438, %v5430
    %v6223 = vpack.c.b16 %v5439, %v5431
    %v6224 = vpack.c.b16 %v5440, %v5432
    %v6225 = vpack.c.b16 %v5441, %v5433
    %v6226 = vpack.c.b16 %v5450, %v5442
    %v6227 = vpack.c.b16 %v5451, %v5443
    %v6228 = vpack.c.b16 %v5452, %v5444
    %v6229 = vpack.c.b16 %v5453, %v5445
    %v6230 = vpack.c.b16 %v5454, %v5446
    %v6231 = vpack.c.b16 %v5455, %v5447
    %v6232 = vpack.c.b16 %v5456, %v5448
    %v6233 = vpack.c.b16 %v5457, %v5449
    %v6234 = vpack.c.b16 %v5466, %v5458
    %v6235 = vpack.c.b16 %v5467, %v5459
    %v6236 = vpack.c.b16 %v5468, %v5460
    %v6237 = vpack.c.b16 %v5469, %v5461
    %v6238 = vpack.c.b16 %v5470, %v5462
    %v6239 = vpack.c.b16 %v5471, %v5463
    %v6240 = vpack.c.b16 %v5472, %v5464
    %v6241 = vpack.c.b16 %v5473, %v5465
    %v6242 = vpack.c.b16 %v5482, %v5474
    %v6243 = vpack.c.b16 %v5483, %v5475
    %v6244 = vpack.c.b16 %v5484, %v5476
    %v6245 = vpack.c.b16 %v5485, %v5477
    %v6246 = vpack.c.b16 %v5486, %v5478
    %v6247 = vpack.c.b16 %v5487, %v5479
    %v6248 = vpack.c.b16 %v5488, %v5480
    %v6249 = vpack.c.b16 %v5489, %v5481
    %v6250 = vpack.c.b16 %v5498, %v5490
    %v6251 = vpack.c.b16 %v5499, %v5491
    %v6252 = vpack.c.b16 %v5500, %v5492
    %v6253 = vpack.c.b16 %v5501, %v5493
    %v6254 = vpack.c.b16 %v5502, %v5494
    %v6255 = vpack.c.b16 %v5503, %v5495
    %v6256 = vpack.c.b16 %v5504, %v5496
    %v6257 = vpack.c.b16 %v5505, %v5497
    %v6258 = vpack.c.b16 %v5514, %v5506
    %v6259 = vpack.c.b16 %v5515, %v5507
    %v6260 = vpack.c.b16 %v5516, %v5508
    %v6261 = vpack.c.b16 %v5517, %v5509
    %v6262 = vpack.c.b16 %v5518, %v5510
    %v6263 = vpack.c.b16 %v5519, %v5511
    %v6264 = vpack.c.b16 %v5520, %v5512
    %v6265 = vpack.c.b16 %v5521, %v5513
    %v6266 = vpack.c.b16 %v5530, %v5522
    %v6267 = vpack.c.b16 %v5531, %v5523
    %v6268 = vpack.c.b16 %v5532, %v5524
    %v6269 = vpack.c.b16 %v5533, %v5525
    %v6270 = vpack.c.b16 %v5534, %v5526
    %v6271 = vpack.c.b16 %v5535, %v5527
    %v6272 = vpack.c.b16 %v5536, %v5528
    %v6273 = vpack.c.b16 %v5537, %v5529
    %v6274 = vpack.c.b16 %v5546, %v5538
    %v6275 = vpack.c.b16 %v5547, %v5539
    %v6276 = vpack.c.b16 %v5548, %v5540
    %v6277 = vpack.c.b16 %v5549, %v5541
    %v6278 = vpack.c.b16 %v5550, %v5542
    %v6279 = vpack.c.b16 %v5551, %v5543
    %v6280 = vpack.c.b16 %v5552, %v5544
    %v6281 = vpack.c.b16 %v5553, %v5545
    %v6282 = vpack.c.b16 %v5562, %v5554
    %v6283 = vpack.c.b16 %v5563, %v5555
    %v6284 = vpack.c.b16 %v5564, %v5556
    %v6285 = vpack.c.b16 %v5565, %v5557
    %v6286 = vpack.c.b16 %v5566, %v5558
    %v6287 = vpack.c.b16 %v5567, %v5559
    %v6288 = vpack.c.b16 %v5568, %v5560
    %v6289 = vpack.c.b16 %v5569, %v5561
    %v6290 = vpack.c.b16 %v5578, %v5570
    %v6291 = vpack.c.b16 %v5579, %v5571
    %v6292 = vpack.c.b16 %v5580, %v5572
    %v6293 = vpack.c.b16 %v5581, %v5573
    %v6294 = vpack.c.b16 %v5582, %v5574
    %v6295 = vpack.c.b16 %v5583, %v5575
    %v6296 = vpack.c.b16 %v5584, %v5576
    %v6297 = vpack.c.b16 %v5585, %v5577
    %v6298 = vpack.c.b16 %v5594, %v5586
    %v6299 = vpack.c.b16 %v5595, %v5587
    %v6300 = vpack.c.b16 %v5596, %v5588
    %v6301 = vpack.c.b16 %v5597, %v5589
    %v6302 = vpack.c.b16 %v5598, %v5590
    %v6303 = vpack.c.b16 %v5599, %v5591
    %v6304 = vpack.c.b16 %v5600, %v5592
    %v6305 = vpack.c.b16 %v5601, %v5593
    %v6306 = vpack.c.b16 %v5610, %v5602
    %v6307 = vpack.c.b16 %v5611, %v5603
    %v6308 = vpack.c.b16 %v5612, %v5604
    %v6309 = vpack.c.b16 %v5613, %v5605
    %v6310 = vpack.c.b16 %v5614, %v5606
    %v6311 = vpack.c.b16 %v5615, %v5607
    %v6312 = vpack.c.b16 %v5616, %v5608
    %v6313 = vpack.c.b16 %v5617, %v5609
    %v6314 = vpack.c.b16 %v5626, %v5618
    %v6315 = vpack.c.b16 %v5627, %v5619
    %v6316 = vpack.c.b16 %v5628, %v5620
    %v6317 = vpack.c.b16 %v5629, %v5621
    %v6318 = vpack.c.b16 %v5630, %v5622
    %v6319 = vpack.c.b16 %v5631, %v5623
    %v6320 = vpack.c.b16 %v5632, %v5624
    %v6321 = vpack.c.b16 %v5633, %v5625
    %v6322 = vpack.c.b16 %v5642, %v5634
    %v6323 = vpack.c.b16 %v5643, %v5635
    %v6324 = vpack.c.b16 %v5644, %v5636
    %v6325 = vpack.c.b16 %v5645, %v5637
    %v6326 = vpack.c.b16 %v5646, %v5638
    %v6327 = vpack.c.b16 %v5647, %v5639
    %v6328 = vpack.c.b16 %v5648, %v5640
    %v6329 = vpack.c.b16 %v5649, %v5641
    %v6330 = vpack.c.b16 %v5658, %v5650
    %v6331 = vpack.c.b16 %v5659, %v5651
    %v6332 = vpack.c.b16 %v5660, %v5652
    %v6333 = vpack.c.b16 %v5661, %v5653
    %v6334 = vpack.c.b16 %v5662, %v5654
    %v6335 = vpack.c.b16 %v5663, %v5655
    %v6336 = vpack.c.b16 %v5664, %v5656
    %v6337 = vpack.c.b16 %v5665, %v5657
    %v6338 = vpack.c.b16 %v5674, %v5666
    %v6339 = vpack.c.b16 %v5675, %v5667
    %v6340 = vpack.c.b16 %v5676, %v5668
    %v6341 = vpack.c.b16 %v5677, %v5669
    %v6342 = vpack.c.b16 %v5678, %v5670
    %v6343 = vpack.c.b16 %v5679, %v5671
    %v6344 = vpack.c.b16 %v5680, %v5672
    %v6345 = vpack.c.b16 %v5681, %v5673
    %v6346 = vpack.c.b16 %v5690, %v5682
    %v6347 = vpack.c.b16 %v5691, %v5683
    %v6348 = vpack.c.b16 %v5692, %v5684
    %v6349 = vpack.c.b16 %v5693, %v5685
    %v6350 = vpack.c.b16 %v5694, %v5686
    %v6351 = vpack.c.b16 %v5695, %v5687
    %v6352 = vpack.c.b16 %v5696, %v5688
    %v6353 = vpack.c.b16 %v5697, %v5689
    %v6354 = vpack.c.b16 %v5706, %v5698
    %v6355 = vpack.c.b16 %v5707, %v5699
    %v6356 = vpack.c.b16 %v5708, %v5700
    %v6357 = vpack.c.b16 %v5709, %v5701
    %v6358 = vpack.c.b16 %v5710, %v5702
    %v6359 = vpack.c.b16 %v5711, %v5703
    %v6360 = vpack.c.b16 %v5712, %v5704
    %v6361 = vpack.c.b16 %v5713, %v5705
    %v6362 = vpack.c.b16 %v5722, %v5714
    %v6363 = vpack.c.b16 %v5723, %v5715
    %v6364 = vpack.c.b16 %v5724, %v5716
    %v6365 = vpack.c.b16 %v5725, %v5717
    %v6366 = vpack.c.b16 %v5726, %v5718
    %v6367 = vpack.c.b16 %v5727, %v5719
    %v6368 = vpack.c.b16 %v5728, %v5720
    %v6369 = vpack.c.b16 %v5729, %v5721
    %v6370 = vpack.c.b16 %v5738, %v5730
    %v6371 = vpack.c.b16 %v5739, %v5731
    %v6372 = vpack.c.b16 %v5740, %v5732
    %v6373 = vpack.c.b16 %v5741, %v5733
    %v6374 = vpack.c.b16 %v5742, %v5734
    %v6375 = vpack.c.b16 %v5743, %v5735
    %v6376 = vpack.c.b16 %v5744, %v5736
    %v6377 = vpack.c.b16 %v5745, %v5737
    %v6378 = vpack.c.b16 %v5754, %v5746
    %v6379 = vpack.c.b16 %v5755, %v5747
    %v6380 = vpack.c.b16 %v5756, %v5748
    %v6381 = vpack.c.b16 %v5757, %v5749
    %v6382 = vpack.c.b16 %v5758, %v5750
    %v6383 = vpack.c.b16 %v5759, %v5751
    %v6384 = vpack.c.b16 %v5760, %v5752
    %v6385 = vpack.c.b16 %v5761, %v5753
    %v6386 = vpack.c.b16 %v5770, %v5762
    %v6387 = vpack.c.b16 %v5771, %v5763
    %v6388 = vpack.c.b16 %v5772, %v5764
    %v6389 = vpack.c.b16 %v5773, %v5765
    %v6390 = vpack.c.b16 %v5774, %v5766
    %v6391 = vpack.c.b16 %v5775, %v5767
    %v6392 = vpack.c.b16 %v5776, %v5768
    %v6393 = vpack.c.b16 %v5777, %v5769
    %v6394 = vpack.c.b16 %v5786, %v5778
    %v6395 = vpack.c.b16 %v5787, %v5779
    %v6396 = vpack.c.b16 %v5788, %v5780
    %v6397 = vpack.c.b16 %v5789, %v5781
    %v6398 = vpack.c.b16 %v5790, %v5782
    %v6399 = vpack.c.b16 %v5791, %v5783
    %v6400 = vpack.c.b16 %v5792, %v5784
    %v6401 = vpack.c.b16 %v5793, %v5785
    %v6402 = vpack.c.b16 %v5802, %v5794
    %v6403 = vpack.c.b16 %v5803, %v5795
    %v6404 = vpack.c.b16 %v5804, %v5796
    %v6405 = vpack.c.b16 %v5805, %v5797
    %v6406 = vpack.c.b16 %v5806, %v5798
    %v6407 = vpack.c.b16 %v5807, %v5799
    %v6408 = vpack.c.b16 %v5808, %v5800
    %v6409 = vpack.c.b16 %v5809, %v5801
    %v6410 = vpack.c.b16 %v5818, %v5810
    %v6411 = vpack.c.b16 %v5819, %v5811
    %v6412 = vpack.c.b16 %v5820, %v5812
    %v6413 = vpack.c.b16 %v5821, %v5813
    %v6414 = vpack.c.b16 %v5822, %v5814
    %v6415 = vpack.c.b16 %v5823, %v5815
    %v6416 = vpack.c.b16 %v5824, %v5816
    %v6417 = vpack.c.b16 %v5825, %v5817
    %v6418 = vpack.c.b16 %v5834, %v5826
    %v6419 = vpack.c.b16 %v5835, %v5827
    %v6420 = vpack.c.b16 %v5836, %v5828
    %v6421 = vpack.c.b16 %v5837, %v5829
    %v6422 = vpack.c.b16 %v5838, %v5830
    %v6423 = vpack.c.b16 %v5839, %v5831
    %v6424 = vpack.c.b16 %v5840, %v5832
    %v6425 = vpack.c.b16 %v5841, %v5833
    %v6426 = vpack.c.b16 %v5850, %v5842
    %v6427 = vpack.c.b16 %v5851, %v5843
    %v6428 = vpack.c.b16 %v5852, %v5844
    %v6429 = vpack.c.b16 %v5853, %v5845
    %v6430 = vpack.c.b16 %v5854, %v5846
    %v6431 = vpack.c.b16 %v5855, %v5847
    %v6432 = vpack.c.b16 %v5856, %v5848
    %v6433 = vpack.c.b16 %v5857, %v5849
    %v6434 = vpack.c.b16 %v5866, %v5858
    %v6435 = vpack.c.b16 %v5867, %v5859
    %v6436 = vpack.c.b16 %v5868, %v5860
    %v6437 = vpack.c.b16 %v5869, %v5861
    %v6438 = vpack.c.b16 %v5870, %v5862
    %v6439 = vpack.c.b16 %v5871, %v5863
    %v6440 = vpack.c.b16 %v5872, %v5864
    %v6441 = vpack.c.b16 %v5873, %v5865
    %v6442 = vpack.c.b16 %v5882, %v5874
    %v6443 = vpack.c.b16 %v5883, %v5875
    %v6444 = vpack.c.b16 %v5884, %v5876
    %v6445 = vpack.c.b16 %v5885, %v5877
    %v6446 = vpack.c.b16 %v5886, %v5878
    %v6447 = vpack.c.b16 %v5887, %v5879
    %v6448 = vpack.c.b16 %v5888, %v5880
    %v6449 = vpack.c.b16 %v5889, %v5881
    %v6450 = vpack.c.b16 %v5898, %v5890
    %v6451 = vpack.c.b16 %v5899, %v5891
    %v6452 = vpack.c.b16 %v5900, %v5892
    %v6453 = vpack.c.b16 %v5901, %v5893
    %v6454 = vpack.c.b16 %v5902, %v5894
    %v6455 = vpack.c.b16 %v5903, %v5895
    %v6456 = vpack.c.b16 %v5904, %v5896
    %v6457 = vpack.c.b16 %v5905, %v5897
    %v6458 = vpack.c.b16 %v5914, %v5906
    %v6459 = vpack.c.b16 %v5915, %v5907
    %v6460 = vpack.c.b16 %v5916, %v5908
    %v6461 = vpack.c.b16 %v5917, %v5909
    %v6462 = vpack.c.b16 %v5918, %v5910
    %v6463 = vpack.c.b16 %v5919, %v5911
    %v6464 = vpack.c.b16 %v5920, %v5912
    %v6465 = vpack.c.b16 %v5921, %v5913
    %v6466 = vpack.c.b16 %v5930, %v5922
    %v6467 = vpack.c.b16 %v5931, %v5923
    %v6468 = vpack.c.b16 %v5932, %v5924
    %v6469 = vpack.c.b16 %v5933, %v5925
    %v6470 = vpack.c.b16 %v5934, %v5926
    %v6471 = vpack.c.b16 %v5935, %v5927
    %v6472 = vpack.c.b16 %v5936, %v5928
    %v6473 = vpack.c.b16 %v5937, %v5929
    %v6474 = vpack.c.b16 %v5946, %v5938
    %v6475 = vpack.c.b16 %v5947, %v5939
    %v6476 = vpack.c.b16 %v5948, %v5940
    %v6477 = vpack.c.b16 %v5949, %v5941
    %v6478 = vpack.c.b16 %v5950, %v5942
    %v6479 = vpack.c.b16 %v5951, %v5943
    %v6480 = vpack.c.b16 %v5952, %v5944
    %v6481 = vpack.c.b16 %v5953, %v5945
    %v6482 = vpack.c.b16 %v5962, %v5954
    %v6483 = vpack.c.b16 %v5963, %v5955
    %v6484 = vpack.c.b16 %v5964, %v5956
    %v6485 = vpack.c.b16 %v5965, %v5957
    %v6486 = vpack.c.b16 %v5966, %v5958
    %v6487 = vpack.c.b16 %v5967, %v5959
    %v6488 = vpack.c.b16 %v5968, %v5960
    %v6489 = vpack.c.b16 %v5969, %v5961
    %v6490 = vpack.c.b16 %v5978, %v5970
    %v6491 = vpack.c.b16 %v5979, %v5971
    %v6492 = vpack.c.b16 %v5980, %v5972
    %v6493 = vpack.c.b16 %v5981, %v5973
    %v6494 = vpack.c.b16 %v5982, %v5974
    %v6495 = vpack.c.b16 %v5983, %v5975
    %v6496 = vpack.c.b16 %v5984, %v5976
    %v6497 = vpack.c.b16 %v5985, %v5977
    %7010 = vmatprep.subr.bf16.mxu0 %v6043
    %7011 = vmatpush1.bf16.msra.mxu0 %v6042
    %7012 = vmatprep.subr.bf16.mxu0 %v6035
    %7013 = vmatpush1.bf16.msra.mxu0 %v6034
    %7014 = vmatprep.subr.bf16.mxu0 %v6027
    %7015 = vmatpush1.bf16.msra.mxu0 %v6026
    %7016 = vmatprep.subr.bf16.mxu0 %v6019
    %7017 = vmatpush1.bf16.msra.mxu0 %v6018
    %7018 = vmatprep.subr.bf16.mxu0 %v6011
    %7019 = vmatpush1.bf16.msra.mxu0 %v6010
    %7020 = vmatprep.subr.bf16.mxu0 %v6003
    %7021 = vmatpush1.bf16.msra.mxu0 %v6002
    %7022 = vmatprep.subr.bf16.mxu0 %v5995
    %7023 = vmatpush1.bf16.msra.mxu0 %v5994
    %7024 = vmatprep.subr.bf16.mxu0 %v5987
    %7025 = vmatpush1.bf16.msra.mxu0 %v5986
    %7026 = vmatprep.subr.bf16.mxu0 %v6107
    %7027 = vmatpush2.bf16.msra.mxu0 %v6106
    %7028 = vmatprep.subr.bf16.mxu0 %v6099
    %7029 = vmatpush2.bf16.msra.mxu0 %v6098
    %7030 = vmatprep.subr.bf16.mxu0 %v6091
    %7031 = vmatpush2.bf16.msra.mxu0 %v6090
    %7032 = vmatprep.subr.bf16.mxu0 %v6083
    %7033 = vmatpush2.bf16.msra.mxu0 %v6082
    %7034 = vmatprep.subr.bf16.mxu0 %v6075
    %7035 = vmatpush2.bf16.msra.mxu0 %v6074
    %7036 = vmatprep.subr.bf16.mxu0 %v6067
    %7037 = vmatpush2.bf16.msra.mxu0 %v6066
    %7038 = vmatprep.subr.bf16.mxu0 %v6059
    %7039 = vmatpush2.bf16.msra.mxu0 %v6058
    %7040 = vmatprep.subr.bf16.mxu0 %v6051
    %7041 = vmatpush2.bf16.msra.mxu0 %v6050
    %7042 = vmatprep.mubr.bf16.mxu0 %v4435
    %7043 = vmatmul.mubr.bf16.gmra.mxu0 %v4434
    %v7044 = vpop.f32.mrf.mxu0
    %v7045 = vadd.f32 %v3924, %v7044
    %v7046 = vpop.f32.mrf.mxu0
    %v7047 = vadd.f32 %v3926, %v7046
    %v7048 = vpop.f32.mrf.mxu0
    %v7049 = vpop.f32.mrf.mxu0
    %7050 = vdwg.mxu0
    %7051 = vmatprep.subr.bf16.mxu0 %v6171
    %7052 = vmatpush1.bf16.msra.mxu0 %v6170
    %7053 = vmatprep.subr.bf16.mxu0 %v6163
    %7054 = vmatpush1.bf16.msra.mxu0 %v6162
    %7055 = vmatprep.subr.bf16.mxu0 %v6155
    %7056 = vmatpush1.bf16.msra.mxu0 %v6154
    %7057 = vmatprep.subr.bf16.mxu0 %v6147
    %7058 = vmatpush1.bf16.msra.mxu0 %v6146
    %7059 = vmatprep.subr.bf16.mxu0 %v6139
    %7060 = vmatpush1.bf16.msra.mxu0 %v6138
    %7061 = vmatprep.subr.bf16.mxu0 %v6131
    %7062 = vmatpush1.bf16.msra.mxu0 %v6130
    %7063 = vmatprep.subr.bf16.mxu0 %v6123
    %7064 = vmatpush1.bf16.msra.mxu0 %v6122
    %7065 = vmatprep.subr.bf16.mxu0 %v6115
    %7066 = vmatpush1.bf16.msra.mxu0 %v6114
    %7067 = vmatprep.subr.bf16.mxu0 %v6235
    %7068 = vmatpush2.bf16.msra.mxu0 %v6234
    %7069 = vmatprep.subr.bf16.mxu0 %v6227
    %7070 = vmatpush2.bf16.msra.mxu0 %v6226
    %7071 = vmatprep.subr.bf16.mxu0 %v6219
    %7072 = vmatpush2.bf16.msra.mxu0 %v6218
    %7073 = vmatprep.subr.bf16.mxu0 %v6211
    %7074 = vmatpush2.bf16.msra.mxu0 %v6210
    %7075 = vmatprep.subr.bf16.mxu0 %v6203
    %7076 = vmatpush2.bf16.msra.mxu0 %v6202
    %7077 = vmatprep.subr.bf16.mxu0 %v6195
    %7078 = vmatpush2.bf16.msra.mxu0 %v6194
    %7079 = vmatprep.subr.bf16.mxu0 %v6187
    %7080 = vmatpush2.bf16.msra.mxu0 %v6186
    %7081 = vmatprep.subr.bf16.mxu0 %v6179
    %7082 = vmatpush2.bf16.msra.mxu0 %v6178
    %7083 = vmatprep.mubr.bf16.mxu0 %v4437
    %7084 = vmatmul.mubr.bf16.gmra.mxu0 %v4436
    %v7085 = vpop.f32.mrf.mxu0
    %v7086 = vadd.f32 %v7045, %v7085
    %v7087 = vpop.f32.mrf.mxu0
    %v7088 = vadd.f32 %v7047, %v7087
    %v7089 = vpop.f32.mrf.mxu0
    %v7090 = vpop.f32.mrf.mxu0
    %7091 = vdwg.mxu0
    %7092 = vmatprep.subr.bf16.mxu0 %v6299
    %7093 = vmatpush1.bf16.msra.mxu0 %v6298
    %7094 = vmatprep.subr.bf16.mxu0 %v6291
    %7095 = vmatpush1.bf16.msra.mxu0 %v6290
    %7096 = vmatprep.subr.bf16.mxu0 %v6283
    %7097 = vmatpush1.bf16.msra.mxu0 %v6282
    %7098 = vmatprep.subr.bf16.mxu0 %v6275
    %7099 = vmatpush1.bf16.msra.mxu0 %v6274
    %7100 = vmatprep.subr.bf16.mxu0 %v6267
    %7101 = vmatpush1.bf16.msra.mxu0 %v6266
    %7102 = vmatprep.subr.bf16.mxu0 %v6259
    %7103 = vmatpush1.bf16.msra.mxu0 %v6258
    %7104 = vmatprep.subr.bf16.mxu0 %v6251
    %7105 = vmatpush1.bf16.msra.mxu0 %v6250
    %7106 = vmatprep.subr.bf16.mxu0 %v6243
    %7107 = vmatpush1.bf16.msra.mxu0 %v6242
    %7108 = vmatprep.subr.bf16.mxu0 %v6363
    %7109 = vmatpush2.bf16.msra.mxu0 %v6362
    %7110 = vmatprep.subr.bf16.mxu0 %v6355
    %7111 = vmatpush2.bf16.msra.mxu0 %v6354
    %7112 = vmatprep.subr.bf16.mxu0 %v6347
    %7113 = vmatpush2.bf16.msra.mxu0 %v6346
    %7114 = vmatprep.subr.bf16.mxu0 %v6339
    %7115 = vmatpush2.bf16.msra.mxu0 %v6338
    %7116 = vmatprep.subr.bf16.mxu0 %v6331
    %7117 = vmatpush2.bf16.msra.mxu0 %v6330
    %7118 = vmatprep.subr.bf16.mxu0 %v6323
    %7119 = vmatpush2.bf16.msra.mxu0 %v6322
    %7120 = vmatprep.subr.bf16.mxu0 %v6315
    %7121 = vmatpush2.bf16.msra.mxu0 %v6314
    %7122 = vmatprep.subr.bf16.mxu0 %v6307
    %7123 = vmatpush2.bf16.msra.mxu0 %v6306
    %7124 = vmatprep.mubr.bf16.mxu0 %v4439
    %7125 = vmatmul.mubr.bf16.gmra.mxu0 %v4438
    %v7126 = vpop.f32.mrf.mxu0
    %v7127 = vadd.f32 %v7086, %v7126
    %v7128 = vpop.f32.mrf.mxu0
    %v7129 = vadd.f32 %v7088, %v7128
    %v7130 = vpop.f32.mrf.mxu0
    %v7131 = vpop.f32.mrf.mxu0
    %7132 = vdwg.mxu0
    %7133 = vmatprep.subr.bf16.mxu0 %v6427
    %7134 = vmatpush1.bf16.msra.mxu0 %v6426
    %7135 = vmatprep.subr.bf16.mxu0 %v6419
    %7136 = vmatpush1.bf16.msra.mxu0 %v6418
    %7137 = vmatprep.subr.bf16.mxu0 %v6411
    %7138 = vmatpush1.bf16.msra.mxu0 %v6410
    %7139 = vmatprep.subr.bf16.mxu0 %v6403
    %7140 = vmatpush1.bf16.msra.mxu0 %v6402
    %7141 = vmatprep.subr.bf16.mxu0 %v6395
    %7142 = vmatpush1.bf16.msra.mxu0 %v6394
    %7143 = vmatprep.subr.bf16.mxu0 %v6387
    %7144 = vmatpush1.bf16.msra.mxu0 %v6386
    %7145 = vmatprep.subr.bf16.mxu0 %v6379
    %7146 = vmatpush1.bf16.msra.mxu0 %v6378
    %7147 = vmatprep.subr.bf16.mxu0 %v6371
    %7148 = vmatpush1.bf16.msra.mxu0 %v6370
    %7149 = vmatprep.subr.bf16.mxu0 %v6491
    %7150 = vmatpush2.bf16.msra.mxu0 %v6490
    %7151 = vmatprep.subr.bf16.mxu0 %v6483
    %7152 = vmatpush2.bf16.msra.mxu0 %v6482
    %7153 = vmatprep.subr.bf16.mxu0 %v6475
    %7154 = vmatpush2.bf16.msra.mxu0 %v6474
    %7155 = vmatprep.subr.bf16.mxu0 %v6467
    %7156 = vmatpush2.bf16.msra.mxu0 %v6466
    %7157 = vmatprep.subr.bf16.mxu0 %v6459
    %7158 = vmatpush2.bf16.msra.mxu0 %v6458
    %7159 = vmatprep.subr.bf16.mxu0 %v6451
    %7160 = vmatpush2.bf16.msra.mxu0 %v6450
    %7161 = vmatprep.subr.bf16.mxu0 %v6443
    %7162 = vmatpush2.bf16.msra.mxu0 %v6442
    %7163 = vmatprep.subr.bf16.mxu0 %v6435
    %7164 = vmatpush2.bf16.msra.mxu0 %v6434
    %7165 = vmatprep.mubr.bf16.mxu0 %v4441
    %7166 = vmatmul.mubr.bf16.gmra.mxu0 %v4440
    %v7167 = vpop.f32.mrf.mxu0
    %v7168 = vadd.f32 %v7127, %v7167
    %v7169 = vpop.f32.mrf.mxu0
    %v7170 = vadd.f32 %v7129, %v7169
    %v7171 = vpop.f32.mrf.mxu0
    %v7172 = vpop.f32.mrf.mxu0
    %7173 = vdwg.mxu0
    %7174 = vmatprep.subr.bf16.mxu0 %v6045
    %7175 = vmatpush1.bf16.msra.mxu0 %v6044
    %7176 = vmatprep.subr.bf16.mxu0 %v6037
    %7177 = vmatpush1.bf16.msra.mxu0 %v6036
    %7178 = vmatprep.subr.bf16.mxu0 %v6029
    %7179 = vmatpush1.bf16.msra.mxu0 %v6028
    %7180 = vmatprep.subr.bf16.mxu0 %v6021
    %7181 = vmatpush1.bf16.msra.mxu0 %v6020
    %7182 = vmatprep.subr.bf16.mxu0 %v6013
    %7183 = vmatpush1.bf16.msra.mxu0 %v6012
    %7184 = vmatprep.subr.bf16.mxu0 %v6005
    %7185 = vmatpush1.bf16.msra.mxu0 %v6004
    %7186 = vmatprep.subr.bf16.mxu0 %v5997
    %7187 = vmatpush1.bf16.msra.mxu0 %v5996
    %7188 = vmatprep.subr.bf16.mxu0 %v5989
    %7189 = vmatpush1.bf16.msra.mxu0 %v5988
    %7190 = vmatprep.subr.bf16.mxu0 %v6109
    %7191 = vmatpush2.bf16.msra.mxu0 %v6108
    %7192 = vmatprep.subr.bf16.mxu0 %v6101
    %7193 = vmatpush2.bf16.msra.mxu0 %v6100
    %7194 = vmatprep.subr.bf16.mxu0 %v6093
    %7195 = vmatpush2.bf16.msra.mxu0 %v6092
    %7196 = vmatprep.subr.bf16.mxu0 %v6085
    %7197 = vmatpush2.bf16.msra.mxu0 %v6084
    %7198 = vmatprep.subr.bf16.mxu0 %v6077
    %7199 = vmatpush2.bf16.msra.mxu0 %v6076
    %7200 = vmatprep.subr.bf16.mxu0 %v6069
    %7201 = vmatpush2.bf16.msra.mxu0 %v6068
    %7202 = vmatprep.subr.bf16.mxu0 %v6061
    %7203 = vmatpush2.bf16.msra.mxu0 %v6060
    %7204 = vmatprep.subr.bf16.mxu0 %v6053
    %7205 = vmatpush2.bf16.msra.mxu0 %v6052
    %7206 = vmatprep.mubr.bf16.mxu0 %v4435
    %7207 = vmatmul.mubr.bf16.gmra.mxu0 %v4434
    %v7208 = vpop.f32.mrf.mxu0
    %v7209 = vadd.f32 %v4088, %v7208
    %v7210 = vpop.f32.mrf.mxu0
    %v7211 = vadd.f32 %v4090, %v7210
    %v7212 = vpop.f32.mrf.mxu0
    %v7213 = vpop.f32.mrf.mxu0
    %7214 = vdwg.mxu0
    %7215 = vmatprep.subr.bf16.mxu0 %v6173
    %7216 = vmatpush1.bf16.msra.mxu0 %v6172
    %7217 = vmatprep.subr.bf16.mxu0 %v6165
    %7218 = vmatpush1.bf16.msra.mxu0 %v6164
    %7219 = vmatprep.subr.bf16.mxu0 %v6157
    %7220 = vmatpush1.bf16.msra.mxu0 %v6156
    %7221 = vmatprep.subr.bf16.mxu0 %v6149
    %7222 = vmatpush1.bf16.msra.mxu0 %v6148
    %7223 = vmatprep.subr.bf16.mxu0 %v6141
    %7224 = vmatpush1.bf16.msra.mxu0 %v6140
    %7225 = vmatprep.subr.bf16.mxu0 %v6133
    %7226 = vmatpush1.bf16.msra.mxu0 %v6132
    %7227 = vmatprep.subr.bf16.mxu0 %v6125
    %7228 = vmatpush1.bf16.msra.mxu0 %v6124
    %7229 = vmatprep.subr.bf16.mxu0 %v6117
    %7230 = vmatpush1.bf16.msra.mxu0 %v6116
    %7231 = vmatprep.subr.bf16.mxu0 %v6237
    %7232 = vmatpush2.bf16.msra.mxu0 %v6236
    %7233 = vmatprep.subr.bf16.mxu0 %v6229
    %7234 = vmatpush2.bf16.msra.mxu0 %v6228
    %7235 = vmatprep.subr.bf16.mxu0 %v6221
    %7236 = vmatpush2.bf16.msra.mxu0 %v6220
    %7237 = vmatprep.subr.bf16.mxu0 %v6213
    %7238 = vmatpush2.bf16.msra.mxu0 %v6212
    %7239 = vmatprep.subr.bf16.mxu0 %v6205
    %7240 = vmatpush2.bf16.msra.mxu0 %v6204
    %7241 = vmatprep.subr.bf16.mxu0 %v6197
    %7242 = vmatpush2.bf16.msra.mxu0 %v6196
    %7243 = vmatprep.subr.bf16.mxu0 %v6189
    %7244 = vmatpush2.bf16.msra.mxu0 %v6188
    %7245 = vmatprep.subr.bf16.mxu0 %v6181
    %7246 = vmatpush2.bf16.msra.mxu0 %v6180
    %7247 = vmatprep.mubr.bf16.mxu0 %v4437
    %7248 = vmatmul.mubr.bf16.gmra.mxu0 %v4436
    %v7249 = vpop.f32.mrf.mxu0
    %v7250 = vadd.f32 %v7209, %v7249
    %v7251 = vpop.f32.mrf.mxu0
    %v7252 = vadd.f32 %v7211, %v7251
    %v7253 = vpop.f32.mrf.mxu0
    %v7254 = vpop.f32.mrf.mxu0
    %7255 = vdwg.mxu0
    %7256 = vmatprep.subr.bf16.mxu0 %v6301
    %7257 = vmatpush1.bf16.msra.mxu0 %v6300
    %7258 = vmatprep.subr.bf16.mxu0 %v6293
    %7259 = vmatpush1.bf16.msra.mxu0 %v6292
    %7260 = vmatprep.subr.bf16.mxu0 %v6285
    %7261 = vmatpush1.bf16.msra.mxu0 %v6284
    %7262 = vmatprep.subr.bf16.mxu0 %v6277
    %7263 = vmatpush1.bf16.msra.mxu0 %v6276
    %7264 = vmatprep.subr.bf16.mxu0 %v6269
    %7265 = vmatpush1.bf16.msra.mxu0 %v6268
    %7266 = vmatprep.subr.bf16.mxu0 %v6261
    %7267 = vmatpush1.bf16.msra.mxu0 %v6260
    %7268 = vmatprep.subr.bf16.mxu0 %v6253
    %7269 = vmatpush1.bf16.msra.mxu0 %v6252
    %7270 = vmatprep.subr.bf16.mxu0 %v6245
    %7271 = vmatpush1.bf16.msra.mxu0 %v6244
    %7272 = vmatprep.subr.bf16.mxu0 %v6365
    %7273 = vmatpush2.bf16.msra.mxu0 %v6364
    %7274 = vmatprep.subr.bf16.mxu0 %v6357
    %7275 = vmatpush2.bf16.msra.mxu0 %v6356
    %7276 = vmatprep.subr.bf16.mxu0 %v6349
    %7277 = vmatpush2.bf16.msra.mxu0 %v6348
    %7278 = vmatprep.subr.bf16.mxu0 %v6341
    %7279 = vmatpush2.bf16.msra.mxu0 %v6340
    %7280 = vmatprep.subr.bf16.mxu0 %v6333
    %7281 = vmatpush2.bf16.msra.mxu0 %v6332
    %7282 = vmatprep.subr.bf16.mxu0 %v6325
    %7283 = vmatpush2.bf16.msra.mxu0 %v6324
    %7284 = vmatprep.subr.bf16.mxu0 %v6317
    %7285 = vmatpush2.bf16.msra.mxu0 %v6316
    %7286 = vmatprep.subr.bf16.mxu0 %v6309
    %7287 = vmatpush2.bf16.msra.mxu0 %v6308
    %7288 = vmatprep.mubr.bf16.mxu0 %v4439
    %7289 = vmatmul.mubr.bf16.gmra.mxu0 %v4438
    %v7290 = vpop.f32.mrf.mxu0
    %v7291 = vadd.f32 %v7250, %v7290
    %v7292 = vpop.f32.mrf.mxu0
    %v7293 = vadd.f32 %v7252, %v7292
    %v7294 = vpop.f32.mrf.mxu0
    %v7295 = vpop.f32.mrf.mxu0
    %7296 = vdwg.mxu0
    %7297 = vmatprep.subr.bf16.mxu0 %v6429
    %7298 = vmatpush1.bf16.msra.mxu0 %v6428
    %7299 = vmatprep.subr.bf16.mxu0 %v6421
    %7300 = vmatpush1.bf16.msra.mxu0 %v6420
    %7301 = vmatprep.subr.bf16.mxu0 %v6413
    %7302 = vmatpush1.bf16.msra.mxu0 %v6412
    %7303 = vmatprep.subr.bf16.mxu0 %v6405
    %7304 = vmatpush1.bf16.msra.mxu0 %v6404
    %7305 = vmatprep.subr.bf16.mxu0 %v6397
    %7306 = vmatpush1.bf16.msra.mxu0 %v6396
    %7307 = vmatprep.subr.bf16.mxu0 %v6389
    %7308 = vmatpush1.bf16.msra.mxu0 %v6388
    %7309 = vmatprep.subr.bf16.mxu0 %v6381
    %7310 = vmatpush1.bf16.msra.mxu0 %v6380
    %7311 = vmatprep.subr.bf16.mxu0 %v6373
    %7312 = vmatpush1.bf16.msra.mxu0 %v6372
    %7313 = vmatprep.subr.bf16.mxu0 %v6493
    %7314 = vmatpush2.bf16.msra.mxu0 %v6492
    %7315 = vmatprep.subr.bf16.mxu0 %v6485
    %7316 = vmatpush2.bf16.msra.mxu0 %v6484
    %7317 = vmatprep.subr.bf16.mxu0 %v6477
    %7318 = vmatpush2.bf16.msra.mxu0 %v6476
    %7319 = vmatprep.subr.bf16.mxu0 %v6469
    %7320 = vmatpush2.bf16.msra.mxu0 %v6468
    %7321 = vmatprep.subr.bf16.mxu0 %v6461
    %7322 = vmatpush2.bf16.msra.mxu0 %v6460
    %7323 = vmatprep.subr.bf16.mxu0 %v6453
    %7324 = vmatpush2.bf16.msra.mxu0 %v6452
    %7325 = vmatprep.subr.bf16.mxu0 %v6445
    %7326 = vmatpush2.bf16.msra.mxu0 %v6444
    %7327 = vmatprep.subr.bf16.mxu0 %v6437
    %7328 = vmatpush2.bf16.msra.mxu0 %v6436
    %7329 = vmatprep.mubr.bf16.mxu0 %v4441
    %7330 = vmatmul.mubr.bf16.gmra.mxu0 %v4440
    %v7331 = vpop.f32.mrf.mxu0
    %v7332 = vadd.f32 %v7291, %v7331
    %v7333 = vpop.f32.mrf.mxu0
    %v7334 = vadd.f32 %v7293, %v7333
    %v7335 = vpop.f32.mrf.mxu0
    %v7336 = vpop.f32.mrf.mxu0
    %7337 = vdwg.mxu0
    %7338 = vmatprep.subr.bf16.mxu0 %v6047
    %7339 = vmatpush1.bf16.msra.mxu0 %v6046
    %7340 = vmatprep.subr.bf16.mxu0 %v6039
    %7341 = vmatpush1.bf16.msra.mxu0 %v6038
    %7342 = vmatprep.subr.bf16.mxu0 %v6031
    %7343 = vmatpush1.bf16.msra.mxu0 %v6030
    %7344 = vmatprep.subr.bf16.mxu0 %v6023
    %7345 = vmatpush1.bf16.msra.mxu0 %v6022
    %7346 = vmatprep.subr.bf16.mxu0 %v6015
    %7347 = vmatpush1.bf16.msra.mxu0 %v6014
    %7348 = vmatprep.subr.bf16.mxu0 %v6007
    %7349 = vmatpush1.bf16.msra.mxu0 %v6006
    %7350 = vmatprep.subr.bf16.mxu0 %v5999
    %7351 = vmatpush1.bf16.msra.mxu0 %v5998
    %7352 = vmatprep.subr.bf16.mxu0 %v5991
    %7353 = vmatpush1.bf16.msra.mxu0 %v5990
    %7354 = vmatprep.subr.bf16.mxu0 %v6111
    %7355 = vmatpush2.bf16.msra.mxu0 %v6110
    %7356 = vmatprep.subr.bf16.mxu0 %v6103
    %7357 = vmatpush2.bf16.msra.mxu0 %v6102
    %7358 = vmatprep.subr.bf16.mxu0 %v6095
    %7359 = vmatpush2.bf16.msra.mxu0 %v6094
    %7360 = vmatprep.subr.bf16.mxu0 %v6087
    %7361 = vmatpush2.bf16.msra.mxu0 %v6086
    %7362 = vmatprep.subr.bf16.mxu0 %v6079
    %7363 = vmatpush2.bf16.msra.mxu0 %v6078
    %7364 = vmatprep.subr.bf16.mxu0 %v6071
    %7365 = vmatpush2.bf16.msra.mxu0 %v6070
    %7366 = vmatprep.subr.bf16.mxu0 %v6063
    %7367 = vmatpush2.bf16.msra.mxu0 %v6062
    %7368 = vmatprep.subr.bf16.mxu0 %v6055
    %7369 = vmatpush2.bf16.msra.mxu0 %v6054
    %7370 = vmatprep.mubr.bf16.mxu0 %v4435
    %7371 = vmatmul.mubr.bf16.gmra.mxu0 %v4434
    %v7372 = vpop.f32.mrf.mxu0
    %v7373 = vadd.f32 %v4252, %v7372
    %v7374 = vpop.f32.mrf.mxu0
    %v7375 = vadd.f32 %v4254, %v7374
    %v7376 = vpop.f32.mrf.mxu0
    %v7377 = vpop.f32.mrf.mxu0
    %7378 = vdwg.mxu0
    %7379 = vmatprep.subr.bf16.mxu0 %v6175
    %7380 = vmatpush1.bf16.msra.mxu0 %v6174
    %7381 = vmatprep.subr.bf16.mxu0 %v6167
    %7382 = vmatpush1.bf16.msra.mxu0 %v6166
    %7383 = vmatprep.subr.bf16.mxu0 %v6159
    %7384 = vmatpush1.bf16.msra.mxu0 %v6158
    %7385 = vmatprep.subr.bf16.mxu0 %v6151
    %7386 = vmatpush1.bf16.msra.mxu0 %v6150
    %7387 = vmatprep.subr.bf16.mxu0 %v6143
    %7388 = vmatpush1.bf16.msra.mxu0 %v6142
    %7389 = vmatprep.subr.bf16.mxu0 %v6135
    %7390 = vmatpush1.bf16.msra.mxu0 %v6134
    %7391 = vmatprep.subr.bf16.mxu0 %v6127
    %7392 = vmatpush1.bf16.msra.mxu0 %v6126
    %7393 = vmatprep.subr.bf16.mxu0 %v6119
    %7394 = vmatpush1.bf16.msra.mxu0 %v6118
    %7395 = vmatprep.subr.bf16.mxu0 %v6239
    %7396 = vmatpush2.bf16.msra.mxu0 %v6238
    %7397 = vmatprep.subr.bf16.mxu0 %v6231
    %7398 = vmatpush2.bf16.msra.mxu0 %v6230
    %7399 = vmatprep.subr.bf16.mxu0 %v6223
    %7400 = vmatpush2.bf16.msra.mxu0 %v6222
    %7401 = vmatprep.subr.bf16.mxu0 %v6215
    %7402 = vmatpush2.bf16.msra.mxu0 %v6214
    %7403 = vmatprep.subr.bf16.mxu0 %v6207
    %7404 = vmatpush2.bf16.msra.mxu0 %v6206
    %7405 = vmatprep.subr.bf16.mxu0 %v6199
    %7406 = vmatpush2.bf16.msra.mxu0 %v6198
    %7407 = vmatprep.subr.bf16.mxu0 %v6191
    %7408 = vmatpush2.bf16.msra.mxu0 %v6190
    %7409 = vmatprep.subr.bf16.mxu0 %v6183
    %7410 = vmatpush2.bf16.msra.mxu0 %v6182
    %7411 = vmatprep.mubr.bf16.mxu0 %v4437
    %7412 = vmatmul.mubr.bf16.gmra.mxu0 %v4436
    %v7413 = vpop.f32.mrf.mxu0
    %v7414 = vadd.f32 %v7373, %v7413
    %v7415 = vpop.f32.mrf.mxu0
    %v7416 = vadd.f32 %v7375, %v7415
    %v7417 = vpop.f32.mrf.mxu0
    %v7418 = vpop.f32.mrf.mxu0
    %7419 = vdwg.mxu0
    %7420 = vmatprep.subr.bf16.mxu0 %v6303
    %7421 = vmatpush1.bf16.msra.mxu0 %v6302
    %7422 = vmatprep.subr.bf16.mxu0 %v6295
    %7423 = vmatpush1.bf16.msra.mxu0 %v6294
    %7424 = vmatprep.subr.bf16.mxu0 %v6287
    %7425 = vmatpush1.bf16.msra.mxu0 %v6286
    %7426 = vmatprep.subr.bf16.mxu0 %v6279
    %7427 = vmatpush1.bf16.msra.mxu0 %v6278
    %7428 = vmatprep.subr.bf16.mxu0 %v6271
    %7429 = vmatpush1.bf16.msra.mxu0 %v6270
    %7430 = vmatprep.subr.bf16.mxu0 %v6263
    %7431 = vmatpush1.bf16.msra.mxu0 %v6262
    %7432 = vmatprep.subr.bf16.mxu0 %v6255
    %7433 = vmatpush1.bf16.msra.mxu0 %v6254
    %7434 = vmatprep.subr.bf16.mxu0 %v6247
    %7435 = vmatpush1.bf16.msra.mxu0 %v6246
    %7436 = vmatprep.subr.bf16.mxu0 %v6367
    %7437 = vmatpush2.bf16.msra.mxu0 %v6366
    %7438 = vmatprep.subr.bf16.mxu0 %v6359
    %7439 = vmatpush2.bf16.msra.mxu0 %v6358
    %7440 = vmatprep.subr.bf16.mxu0 %v6351
    %7441 = vmatpush2.bf16.msra.mxu0 %v6350
    %7442 = vmatprep.subr.bf16.mxu0 %v6343
    %7443 = vmatpush2.bf16.msra.mxu0 %v6342
    %7444 = vmatprep.subr.bf16.mxu0 %v6335
    %7445 = vmatpush2.bf16.msra.mxu0 %v6334
    %7446 = vmatprep.subr.bf16.mxu0 %v6327
    %7447 = vmatpush2.bf16.msra.mxu0 %v6326
    %7448 = vmatprep.subr.bf16.mxu0 %v6319
    %7449 = vmatpush2.bf16.msra.mxu0 %v6318
    %7450 = vmatprep.subr.bf16.mxu0 %v6311
    %7451 = vmatpush2.bf16.msra.mxu0 %v6310
    %7452 = vmatprep.mubr.bf16.mxu0 %v4439
    %7453 = vmatmul.mubr.bf16.gmra.mxu0 %v4438
    %v7454 = vpop.f32.mrf.mxu0
    %v7455 = vadd.f32 %v7414, %v7454
    %v7456 = vpop.f32.mrf.mxu0
    %v7457 = vadd.f32 %v7416, %v7456
    %v7458 = vpop.f32.mrf.mxu0
    %v7459 = vpop.f32.mrf.mxu0
    %7460 = vdwg.mxu0
    %7461 = vmatprep.subr.bf16.mxu0 %v6431
    %7462 = vmatpush1.bf16.msra.mxu0 %v6430
    %7463 = vmatprep.subr.bf16.mxu0 %v6423
    %7464 = vmatpush1.bf16.msra.mxu0 %v6422
    %7465 = vmatprep.subr.bf16.mxu0 %v6415
    %7466 = vmatpush1.bf16.msra.mxu0 %v6414
    %7467 = vmatprep.subr.bf16.mxu0 %v6407
    %7468 = vmatpush1.bf16.msra.mxu0 %v6406
    %7469 = vmatprep.subr.bf16.mxu0 %v6399
    %7470 = vmatpush1.bf16.msra.mxu0 %v6398
    %7471 = vmatprep.subr.bf16.mxu0 %v6391
    %7472 = vmatpush1.bf16.msra.mxu0 %v6390
    %7473 = vmatprep.subr.bf16.mxu0 %v6383
    %7474 = vmatpush1.bf16.msra.mxu0 %v6382
    %7475 = vmatprep.subr.bf16.mxu0 %v6375
    %7476 = vmatpush1.bf16.msra.mxu0 %v6374
    %7477 = vmatprep.subr.bf16.mxu0 %v6495
    %7478 = vmatpush2.bf16.msra.mxu0 %v6494
    %7479 = vmatprep.subr.bf16.mxu0 %v6487
    %7480 = vmatpush2.bf16.msra.mxu0 %v6486
    %7481 = vmatprep.subr.bf16.mxu0 %v6479
    %7482 = vmatpush2.bf16.msra.mxu0 %v6478
    %7483 = vmatprep.subr.bf16.mxu0 %v6471
    %7484 = vmatpush2.bf16.msra.mxu0 %v6470
    %7485 = vmatprep.subr.bf16.mxu0 %v6463
    %7486 = vmatpush2.bf16.msra.mxu0 %v6462
    %7487 = vmatprep.subr.bf16.mxu0 %v6455
    %7488 = vmatpush2.bf16.msra.mxu0 %v6454
    %7489 = vmatprep.subr.bf16.mxu0 %v6447
    %7490 = vmatpush2.bf16.msra.mxu0 %v6446
    %7491 = vmatprep.subr.bf16.mxu0 %v6439
    %7492 = vmatpush2.bf16.msra.mxu0 %v6438
    %7493 = vmatprep.mubr.bf16.mxu0 %v4441
    %7494 = vmatmul.mubr.bf16.gmra.mxu0 %v4440
    %v7495 = vpop.f32.mrf.mxu0
    %v7496 = vadd.f32 %v7455, %v7495
    %v7497 = vpop.f32.mrf.mxu0
    %v7498 = vadd.f32 %v7457, %v7497
    %v7499 = vpop.f32.mrf.mxu0
    %v7500 = vpop.f32.mrf.mxu0
    %7501 = vdwg.mxu0
    %7502 = vmatprep.subr.bf16.mxu0 %v6049
    %7503 = vmatpush1.bf16.msra.mxu0 %v6048
    %7504 = vmatprep.subr.bf16.mxu0 %v6041
    %7505 = vmatpush1.bf16.msra.mxu0 %v6040
    %7506 = vmatprep.subr.bf16.mxu0 %v6033
    %7507 = vmatpush1.bf16.msra.mxu0 %v6032
    %7508 = vmatprep.subr.bf16.mxu0 %v6025
    %7509 = vmatpush1.bf16.msra.mxu0 %v6024
    %7510 = vmatprep.subr.bf16.mxu0 %v6017
    %7511 = vmatpush1.bf16.msra.mxu0 %v6016
    %7512 = vmatprep.subr.bf16.mxu0 %v6009
    %7513 = vmatpush1.bf16.msra.mxu0 %v6008
    %7514 = vmatprep.subr.bf16.mxu0 %v6001
    %7515 = vmatpush1.bf16.msra.mxu0 %v6000
    %7516 = vmatprep.subr.bf16.mxu0 %v5993
    %7517 = vmatpush1.bf16.msra.mxu0 %v5992
    %7518 = vmatprep.subr.bf16.mxu0 %v6113
    %7519 = vmatpush2.bf16.msra.mxu0 %v6112
    %7520 = vmatprep.subr.bf16.mxu0 %v6105
    %7521 = vmatpush2.bf16.msra.mxu0 %v6104
    %7522 = vmatprep.subr.bf16.mxu0 %v6097
    %7523 = vmatpush2.bf16.msra.mxu0 %v6096
    %7524 = vmatprep.subr.bf16.mxu0 %v6089
    %7525 = vmatpush2.bf16.msra.mxu0 %v6088
    %7526 = vmatprep.subr.bf16.mxu0 %v6081
    %7527 = vmatpush2.bf16.msra.mxu0 %v6080
    %7528 = vmatprep.subr.bf16.mxu0 %v6073
    %7529 = vmatpush2.bf16.msra.mxu0 %v6072
    %7530 = vmatprep.subr.bf16.mxu0 %v6065
    %7531 = vmatpush2.bf16.msra.mxu0 %v6064
    %7532 = vmatprep.subr.bf16.mxu0 %v6057
    %7533 = vmatpush2.bf16.msra.mxu0 %v6056
    %7534 = vmatprep.mubr.bf16.mxu0 %v4435
    %7535 = vmatmul.mubr.bf16.gmra.mxu0 %v4434
    %v7536 = vpop.f32.mrf.mxu0
    %v7537 = vadd.f32 %v4416, %v7536
    %v7538 = vpop.f32.mrf.mxu0
    %v7539 = vadd.f32 %v4418, %v7538
    %v7540 = vpop.f32.mrf.mxu0
    %v7541 = vpop.f32.mrf.mxu0
    %7542 = vdwg.mxu0
    %7543 = vmatprep.subr.bf16.mxu0 %v6177
    %7544 = vmatpush1.bf16.msra.mxu0 %v6176
    %7545 = vmatprep.subr.bf16.mxu0 %v6169
    %7546 = vmatpush1.bf16.msra.mxu0 %v6168
    %7547 = vmatprep.subr.bf16.mxu0 %v6161
    %7548 = vmatpush1.bf16.msra.mxu0 %v6160
    %7549 = vmatprep.subr.bf16.mxu0 %v6153
    %7550 = vmatpush1.bf16.msra.mxu0 %v6152
    %7551 = vmatprep.subr.bf16.mxu0 %v6145
    %7552 = vmatpush1.bf16.msra.mxu0 %v6144
    %7553 = vmatprep.subr.bf16.mxu0 %v6137
    %7554 = vmatpush1.bf16.msra.mxu0 %v6136
    %7555 = vmatprep.subr.bf16.mxu0 %v6129
    %7556 = vmatpush1.bf16.msra.mxu0 %v6128
    %7557 = vmatprep.subr.bf16.mxu0 %v6121
    %7558 = vmatpush1.bf16.msra.mxu0 %v6120
    %7559 = vmatprep.subr.bf16.mxu0 %v6241
    %7560 = vmatpush2.bf16.msra.mxu0 %v6240
    %7561 = vmatprep.subr.bf16.mxu0 %v6233
    %7562 = vmatpush2.bf16.msra.mxu0 %v6232
    %7563 = vmatprep.subr.bf16.mxu0 %v6225
    %7564 = vmatpush2.bf16.msra.mxu0 %v6224
    %7565 = vmatprep.subr.bf16.mxu0 %v6217
    %7566 = vmatpush2.bf16.msra.mxu0 %v6216
    %7567 = vmatprep.subr.bf16.mxu0 %v6209
    %7568 = vmatpush2.bf16.msra.mxu0 %v6208
    %7569 = vmatprep.subr.bf16.mxu0 %v6201
    %7570 = vmatpush2.bf16.msra.mxu0 %v6200
    %7571 = vmatprep.subr.bf16.mxu0 %v6193
    %7572 = vmatpush2.bf16.msra.mxu0 %v6192
    %7573 = vmatprep.subr.bf16.mxu0 %v6185
    %7574 = vmatpush2.bf16.msra.mxu0 %v6184
    %7575 = vmatprep.mubr.bf16.mxu0 %v4437
    %7576 = vmatmul.mubr.bf16.gmra.mxu0 %v4436
    %v7577 = vpop.f32.mrf.mxu0
    %v7578 = vadd.f32 %v7537, %v7577
    %v7579 = vpop.f32.mrf.mxu0
    %v7580 = vadd.f32 %v7539, %v7579
    %v7581 = vpop.f32.mrf.mxu0
    %v7582 = vpop.f32.mrf.mxu0
    %7583 = vdwg.mxu0
    %7584 = vmatprep.subr.bf16.mxu0 %v6305
    %7585 = vmatpush1.bf16.msra.mxu0 %v6304
    %7586 = vmatprep.subr.bf16.mxu0 %v6297
    %7587 = vmatpush1.bf16.msra.mxu0 %v6296
    %7588 = vmatprep.subr.bf16.mxu0 %v6289
    %7589 = vmatpush1.bf16.msra.mxu0 %v6288
    %7590 = vmatprep.subr.bf16.mxu0 %v6281
    %7591 = vmatpush1.bf16.msra.mxu0 %v6280
    %7592 = vmatprep.subr.bf16.mxu0 %v6273
    %7593 = vmatpush1.bf16.msra.mxu0 %v6272
    %7594 = vmatprep.subr.bf16.mxu0 %v6265
    %7595 = vmatpush1.bf16.msra.mxu0 %v6264
    %7596 = vmatprep.subr.bf16.mxu0 %v6257
    %7597 = vmatpush1.bf16.msra.mxu0 %v6256
    %7598 = vmatprep.subr.bf16.mxu0 %v6249
    %7599 = vmatpush1.bf16.msra.mxu0 %v6248
    %7600 = vmatprep.subr.bf16.mxu0 %v6369
    %7601 = vmatpush2.bf16.msra.mxu0 %v6368
    %7602 = vmatprep.subr.bf16.mxu0 %v6361
    %7603 = vmatpush2.bf16.msra.mxu0 %v6360
    %7604 = vmatprep.subr.bf16.mxu0 %v6353
    %7605 = vmatpush2.bf16.msra.mxu0 %v6352
    %7606 = vmatprep.subr.bf16.mxu0 %v6345
    %7607 = vmatpush2.bf16.msra.mxu0 %v6344
    %7608 = vmatprep.subr.bf16.mxu0 %v6337
    %7609 = vmatpush2.bf16.msra.mxu0 %v6336
    %7610 = vmatprep.subr.bf16.mxu0 %v6329
    %7611 = vmatpush2.bf16.msra.mxu0 %v6328
    %7612 = vmatprep.subr.bf16.mxu0 %v6321
    %7613 = vmatpush2.bf16.msra.mxu0 %v6320
    %7614 = vmatprep.subr.bf16.mxu0 %v6313
    %7615 = vmatpush2.bf16.msra.mxu0 %v6312
    %7616 = vmatprep.mubr.bf16.mxu0 %v4439
    %7617 = vmatmul.mubr.bf16.gmra.mxu0 %v4438
    %v7618 = vpop.f32.mrf.mxu0
    %v7619 = vadd.f32 %v7578, %v7618
    %v7620 = vpop.f32.mrf.mxu0
    %v7621 = vadd.f32 %v7580, %v7620
    %v7622 = vpop.f32.mrf.mxu0
    %v7623 = vpop.f32.mrf.mxu0
    %7624 = vdwg.mxu0
    %7625 = vmatprep.subr.bf16.mxu0 %v6433
    %7626 = vmatpush1.bf16.msra.mxu0 %v6432
    %7627 = vmatprep.subr.bf16.mxu0 %v6425
    %7628 = vmatpush1.bf16.msra.mxu0 %v6424
    %7629 = vmatprep.subr.bf16.mxu0 %v6417
    %7630 = vmatpush1.bf16.msra.mxu0 %v6416
    %7631 = vmatprep.subr.bf16.mxu0 %v6409
    %7632 = vmatpush1.bf16.msra.mxu0 %v6408
    %7633 = vmatprep.subr.bf16.mxu0 %v6401
    %7634 = vmatpush1.bf16.msra.mxu0 %v6400
    %7635 = vmatprep.subr.bf16.mxu0 %v6393
    %7636 = vmatpush1.bf16.msra.mxu0 %v6392
    %7637 = vmatprep.subr.bf16.mxu0 %v6385
    %7638 = vmatpush1.bf16.msra.mxu0 %v6384
    %7639 = vmatprep.subr.bf16.mxu0 %v6377
    %7640 = vmatpush1.bf16.msra.mxu0 %v6376
    %7641 = vmatprep.subr.bf16.mxu0 %v6497
    %7642 = vmatpush2.bf16.msra.mxu0 %v6496
    %7643 = vmatprep.subr.bf16.mxu0 %v6489
    %7644 = vmatpush2.bf16.msra.mxu0 %v6488
    %7645 = vmatprep.subr.bf16.mxu0 %v6481
    %7646 = vmatpush2.bf16.msra.mxu0 %v6480
    %7647 = vmatprep.subr.bf16.mxu0 %v6473
    %7648 = vmatpush2.bf16.msra.mxu0 %v6472
    %7649 = vmatprep.subr.bf16.mxu0 %v6465
    %7650 = vmatpush2.bf16.msra.mxu0 %v6464
    %7651 = vmatprep.subr.bf16.mxu0 %v6457
    %7652 = vmatpush2.bf16.msra.mxu0 %v6456
    %7653 = vmatprep.subr.bf16.mxu0 %v6449
    %7654 = vmatpush2.bf16.msra.mxu0 %v6448
    %7655 = vmatprep.subr.bf16.mxu0 %v6441
    %7656 = vmatpush2.bf16.msra.mxu0 %v6440
    %7657 = vmatprep.mubr.bf16.mxu0 %v4441
    %7658 = vmatmul.mubr.bf16.gmra.mxu0 %v4440
    %v7659 = vpop.f32.mrf.mxu0
    %v7660 = vadd.f32 %v7619, %v7659
    %v7661 = vpop.f32.mrf.mxu0
    %v7662 = vadd.f32 %v7621, %v7661
    %v7663 = vpop.f32.mrf.mxu0
    %v7664 = vpop.f32.mrf.mxu0
    %7665 = vdwg.mxu0
    %v7666 = vld [vmem:[#allocation10] sm:$0xff]
    %v7668 = vlaneseq
    %v7669 = vshrl.u32 %v7668, 7
    %v7670 = vsub.s32 0, %v7669
    %v7671 = vrot.slane %v7666, %v7670
    %v7672 = vlaneseq
    %v7673 = vshrl.u32 %v7672, 7
    %v7674 = vsub.s32 1, %v7673
    %v7675 = vrot.slane %v7666, %v7674
    %v7676 = vlaneseq
    %v7677 = vshrl.u32 %v7676, 7
    %v7678 = vsub.s32 2, %v7677
    %v7679 = vrot.slane %v7666, %v7678
    %v7680 = vlaneseq
    %v7681 = vshrl.u32 %v7680, 7
    %v7682 = vsub.s32 3, %v7681
    %v7683 = vrot.slane %v7666, %v7682
    %v7684 = vlaneseq
    %v7685 = vshrl.u32 %v7684, 7
    %v7686 = vsub.s32 4, %v7685
    %v7687 = vrot.slane %v7666, %v7686
    %v7688 = vlaneseq
    %v7689 = vshrl.u32 %v7688, 7
    %v7690 = vsub.s32 5, %v7689
    %v7691 = vrot.slane %v7666, %v7690
    %v7692 = vlaneseq
    %v7693 = vshrl.u32 %v7692, 7
    %v7694 = vsub.s32 6, %v7693
    %v7695 = vrot.slane %v7666, %v7694
    %v7696 = vlaneseq
    %v7697 = vshrl.u32 %v7696, 7
    %v7698 = vsub.s32 7, %v7697
    %v7699 = vrot.slane %v7666, %v7698
    %v7708 = vadd.f32 %v7168, %v7671
    %v7709 = vadd.f32 %v7170, %v7675
    %v7710 = vadd.f32 %v7332, %v7679
    %v7711 = vadd.f32 %v7334, %v7683
    %v7712 = vadd.f32 %v7496, %v7687
    %v7713 = vadd.f32 %v7498, %v7691
    %v7714 = vadd.f32 %v7660, %v7695
    %v7715 = vadd.f32 %v7662, %v7699
    %v7716 = vmax.f32 %v7708, 0.0
    %v7717 = vmax.f32 %v7709, 0.0
    %v7718 = vmax.f32 %v7710, 0.0
    %v7719 = vmax.f32 %v7711, 0.0
    %v7720 = vmax.f32 %v7712, 0.0
    %v7721 = vmax.f32 %v7713, 0.0
    %v7722 = vmax.f32 %v7714, 0.0
    %v7723 = vmax.f32 %v7715, 0.0
    %v7724 = vpack.c.bf16 %v7716, %v7716
    %v7725 = vpack.c.bf16 %v7717, %v7717
    %v7726 = vpack.c.bf16 %v7718, %v7718
    %v7727 = vpack.c.bf16 %v7719, %v7719
    %v7728 = vpack.c.bf16 %v7720, %v7720
    %v7729 = vpack.c.bf16 %v7721, %v7721
    %v7730 = vpack.c.bf16 %v7722, %v7722
    %v7731 = vpack.c.bf16 %v7723, %v7723
    %v7732 = vld [vmem:[#allocation11] sm:$0xff]
    %v7733 = vld [vmem:[#allocation11 + $0x8] sm:$0xff]
    %v7734 = vld [vmem:[#allocation11 + $0x10] sm:$0xff]
    %v7735 = vld [vmem:[#allocation11 + $0x18] sm:$0xff]
    %v7736 = vld [vmem:[#allocation11 + $0x20] sm:$0xff]
    %v7737 = vld [vmem:[#allocation11 + $0x28] sm:$0xff]
    %v7738 = vld [vmem:[#allocation11 + $0x30] sm:$0xff]
    %v7739 = vld [vmem:[#allocation11 + $0x38] sm:$0xff]
    %v7740 = vld [vmem:[#allocation11 + $0x40] sm:$0xff]
    %v7741 = vld [vmem:[#allocation11 + $0x48] sm:$0xff]
    %v7742 = vld [vmem:[#allocation11 + $0x50] sm:$0xff]
    %v7743 = vld [vmem:[#allocation11 + $0x58] sm:$0xff]
    %v7744 = vld [vmem:[#allocation11 + $0x60] sm:$0xff]
    %v7745 = vld [vmem:[#allocation11 + $0x68] sm:$0xff]
    %v7746 = vld [vmem:[#allocation11 + $0x70] sm:$0xff]
    %v7747 = vld [vmem:[#allocation11 + $0x78] sm:$0xff]
    %v7748 = vld [vmem:[#allocation11 + $0x80] sm:$0xff]
    %v7749 = vld [vmem:[#allocation11 + $0x88] sm:$0xff]
    %v7750 = vld [vmem:[#allocation11 + $0x90] sm:$0xff]
    %v7751 = vld [vmem:[#allocation11 + $0x98] sm:$0xff]
    %v7752 = vld [vmem:[#allocation11 + $0xa0] sm:$0xff]
    %v7753 = vld [vmem:[#allocation11 + $0xa8] sm:$0xff]
    %v7754 = vld [vmem:[#allocation11 + $0xb0] sm:$0xff]
    %v7755 = vld [vmem:[#allocation11 + $0xb8] sm:$0xff]
    %v7756 = vld [vmem:[#allocation11 + $0xc0] sm:$0xff]
    %v7757 = vld [vmem:[#allocation11 + $0xc8] sm:$0xff]
    %v7758 = vld [vmem:[#allocation11 + $0xd0] sm:$0xff]
    %v7759 = vld [vmem:[#allocation11 + $0xd8] sm:$0xff]
    %v7760 = vld [vmem:[#allocation11 + $0xe0] sm:$0xff]
    %v7761 = vld [vmem:[#allocation11 + $0xe8] sm:$0xff]
    %v7762 = vld [vmem:[#allocation11 + $0xf0] sm:$0xff]
    %v7763 = vld [vmem:[#allocation11 + $0xf8] sm:$0xff]
    %v7764 = vld [vmem:[#allocation11 + $0x100] sm:$0xff]
    %v7765 = vld [vmem:[#allocation11 + $0x108] sm:$0xff]
    %v7766 = vld [vmem:[#allocation11 + $0x110] sm:$0xff]
    %v7767 = vld [vmem:[#allocation11 + $0x118] sm:$0xff]
    %v7768 = vld [vmem:[#allocation11 + $0x120] sm:$0xff]
    %v7769 = vld [vmem:[#allocation11 + $0x128] sm:$0xff]
    %v7770 = vld [vmem:[#allocation11 + $0x130] sm:$0xff]
    %v7771 = vld [vmem:[#allocation11 + $0x138] sm:$0xff]
    %v7772 = vld [vmem:[#allocation11 + $0x140] sm:$0xff]
    %v7773 = vld [vmem:[#allocation11 + $0x148] sm:$0xff]
    %v7774 = vld [vmem:[#allocation11 + $0x150] sm:$0xff]
    %v7775 = vld [vmem:[#allocation11 + $0x158] sm:$0xff]
    %v7776 = vld [vmem:[#allocation11 + $0x160] sm:$0xff]
    %v7777 = vld [vmem:[#allocation11 + $0x168] sm:$0xff]
    %v7778 = vld [vmem:[#allocation11 + $0x170] sm:$0xff]
    %v7779 = vld [vmem:[#allocation11 + $0x178] sm:$0xff]
    %v7780 = vld [vmem:[#allocation11 + $0x180] sm:$0xff]
    %v7781 = vld [vmem:[#allocation11 + $0x188] sm:$0xff]
    %v7782 = vld [vmem:[#allocation11 + $0x190] sm:$0xff]
    %v7783 = vld [vmem:[#allocation11 + $0x198] sm:$0xff]
    %v7784 = vld [vmem:[#allocation11 + $0x1a0] sm:$0xff]
    %v7785 = vld [vmem:[#allocation11 + $0x1a8] sm:$0xff]
    %v7786 = vld [vmem:[#allocation11 + $0x1b0] sm:$0xff]
    %v7787 = vld [vmem:[#allocation11 + $0x1b8] sm:$0xff]
    %v7788 = vld [vmem:[#allocation11 + $0x1c0] sm:$0xff]
    %v7789 = vld [vmem:[#allocation11 + $0x1c8] sm:$0xff]
    %v7790 = vld [vmem:[#allocation11 + $0x1d0] sm:$0xff]
    %v7791 = vld [vmem:[#allocation11 + $0x1d8] sm:$0xff]
    %v7792 = vld [vmem:[#allocation11 + $0x1e0] sm:$0xff]
    %v7793 = vld [vmem:[#allocation11 + $0x1e8] sm:$0xff]
    %v7794 = vld [vmem:[#allocation11 + $0x1f0] sm:$0xff]
    %v7795 = vld [vmem:[#allocation11 + $0x1f8] sm:$0xff]
    %v7796 = vld [vmem:[#allocation11 + $0x200] sm:$0xff]
    %v7797 = vld [vmem:[#allocation11 + $0x208] sm:$0xff]
    %v7798 = vld [vmem:[#allocation11 + $0x210] sm:$0xff]
    %v7799 = vld [vmem:[#allocation11 + $0x218] sm:$0xff]
    %v7800 = vld [vmem:[#allocation11 + $0x220] sm:$0xff]
    %v7801 = vld [vmem:[#allocation11 + $0x228] sm:$0xff]
    %v7802 = vld [vmem:[#allocation11 + $0x230] sm:$0xff]
    %v7803 = vld [vmem:[#allocation11 + $0x238] sm:$0xff]
    %v7804 = vld [vmem:[#allocation11 + $0x240] sm:$0xff]
    %v7805 = vld [vmem:[#allocation11 + $0x248] sm:$0xff]
    %v7806 = vld [vmem:[#allocation11 + $0x250] sm:$0xff]
    %v7807 = vld [vmem:[#allocation11 + $0x258] sm:$0xff]
    %v7808 = vld [vmem:[#allocation11 + $0x260] sm:$0xff]
    %v7809 = vld [vmem:[#allocation11 + $0x268] sm:$0xff]
    %v7810 = vld [vmem:[#allocation11 + $0x270] sm:$0xff]
    %v7811 = vld [vmem:[#allocation11 + $0x278] sm:$0xff]
    %v7812 = vld [vmem:[#allocation11 + $0x280] sm:$0xff]
    %v7813 = vld [vmem:[#allocation11 + $0x288] sm:$0xff]
    %v7814 = vld [vmem:[#allocation11 + $0x290] sm:$0xff]
    %v7815 = vld [vmem:[#allocation11 + $0x298] sm:$0xff]
    %v7816 = vld [vmem:[#allocation11 + $0x2a0] sm:$0xff]
    %v7817 = vld [vmem:[#allocation11 + $0x2a8] sm:$0xff]
    %v7818 = vld [vmem:[#allocation11 + $0x2b0] sm:$0xff]
    %v7819 = vld [vmem:[#allocation11 + $0x2b8] sm:$0xff]
    %v7820 = vld [vmem:[#allocation11 + $0x2c0] sm:$0xff]
    %v7821 = vld [vmem:[#allocation11 + $0x2c8] sm:$0xff]
    %v7822 = vld [vmem:[#allocation11 + $0x2d0] sm:$0xff]
    %v7823 = vld [vmem:[#allocation11 + $0x2d8] sm:$0xff]
    %v7824 = vld [vmem:[#allocation11 + $0x2e0] sm:$0xff]
    %v7825 = vld [vmem:[#allocation11 + $0x2e8] sm:$0xff]
    %v7826 = vld [vmem:[#allocation11 + $0x2f0] sm:$0xff]
    %v7827 = vld [vmem:[#allocation11 + $0x2f8] sm:$0xff]
    %v7828 = vld [vmem:[#allocation11 + $0x300] sm:$0xff]
    %v7829 = vld [vmem:[#allocation11 + $0x308] sm:$0xff]
    %v7830 = vld [vmem:[#allocation11 + $0x310] sm:$0xff]
    %v7831 = vld [vmem:[#allocation11 + $0x318] sm:$0xff]
    %v7832 = vld [vmem:[#allocation11 + $0x320] sm:$0xff]
    %v7833 = vld [vmem:[#allocation11 + $0x328] sm:$0xff]
    %v7834 = vld [vmem:[#allocation11 + $0x330] sm:$0xff]
    %v7835 = vld [vmem:[#allocation11 + $0x338] sm:$0xff]
    %v7836 = vld [vmem:[#allocation11 + $0x340] sm:$0xff]
    %v7837 = vld [vmem:[#allocation11 + $0x348] sm:$0xff]
    %v7838 = vld [vmem:[#allocation11 + $0x350] sm:$0xff]
    %v7839 = vld [vmem:[#allocation11 + $0x358] sm:$0xff]
    %v7840 = vld [vmem:[#allocation11 + $0x360] sm:$0xff]
    %v7841 = vld [vmem:[#allocation11 + $0x368] sm:$0xff]
    %v7842 = vld [vmem:[#allocation11 + $0x370] sm:$0xff]
    %v7843 = vld [vmem:[#allocation11 + $0x378] sm:$0xff]
    %v7844 = vld [vmem:[#allocation11 + $0x380] sm:$0xff]
    %v7845 = vld [vmem:[#allocation11 + $0x388] sm:$0xff]
    %v7846 = vld [vmem:[#allocation11 + $0x390] sm:$0xff]
    %v7847 = vld [vmem:[#allocation11 + $0x398] sm:$0xff]
    %v7848 = vld [vmem:[#allocation11 + $0x3a0] sm:$0xff]
    %v7849 = vld [vmem:[#allocation11 + $0x3a8] sm:$0xff]
    %v7850 = vld [vmem:[#allocation11 + $0x3b0] sm:$0xff]
    %v7851 = vld [vmem:[#allocation11 + $0x3b8] sm:$0xff]
    %v7852 = vld [vmem:[#allocation11 + $0x3c0] sm:$0xff]
    %v7853 = vld [vmem:[#allocation11 + $0x3c8] sm:$0xff]
    %v7854 = vld [vmem:[#allocation11 + $0x3d0] sm:$0xff]
    %v7855 = vld [vmem:[#allocation11 + $0x3d8] sm:$0xff]
    %v7856 = vld [vmem:[#allocation11 + $0x3e0] sm:$0xff]
    %v7857 = vld [vmem:[#allocation11 + $0x3e8] sm:$0xff]
    %v7858 = vld [vmem:[#allocation11 + $0x3f0] sm:$0xff]
    %v7859 = vld [vmem:[#allocation11 + $0x3f8] sm:$0xff]
    %v7860 = vld [vmem:[#allocation11 + $0x400] sm:$0xff]
    %v7861 = vld [vmem:[#allocation11 + $0x408] sm:$0xff]
    %v7862 = vld [vmem:[#allocation11 + $0x410] sm:$0xff]
    %v7863 = vld [vmem:[#allocation11 + $0x418] sm:$0xff]
    %v7864 = vld [vmem:[#allocation11 + $0x420] sm:$0xff]
    %v7865 = vld [vmem:[#allocation11 + $0x428] sm:$0xff]
    %v7866 = vld [vmem:[#allocation11 + $0x430] sm:$0xff]
    %v7867 = vld [vmem:[#allocation11 + $0x438] sm:$0xff]
    %v7868 = vld [vmem:[#allocation11 + $0x440] sm:$0xff]
    %v7869 = vld [vmem:[#allocation11 + $0x448] sm:$0xff]
    %v7870 = vld [vmem:[#allocation11 + $0x450] sm:$0xff]
    %v7871 = vld [vmem:[#allocation11 + $0x458] sm:$0xff]
    %v7872 = vld [vmem:[#allocation11 + $0x460] sm:$0xff]
    %v7873 = vld [vmem:[#allocation11 + $0x468] sm:$0xff]
    %v7874 = vld [vmem:[#allocation11 + $0x470] sm:$0xff]
    %v7875 = vld [vmem:[#allocation11 + $0x478] sm:$0xff]
    %v7876 = vld [vmem:[#allocation11 + $0x480] sm:$0xff]
    %v7877 = vld [vmem:[#allocation11 + $0x488] sm:$0xff]
    %v7878 = vld [vmem:[#allocation11 + $0x490] sm:$0xff]
    %v7879 = vld [vmem:[#allocation11 + $0x498] sm:$0xff]
    %v7880 = vld [vmem:[#allocation11 + $0x4a0] sm:$0xff]
    %v7881 = vld [vmem:[#allocation11 + $0x4a8] sm:$0xff]
    %v7882 = vld [vmem:[#allocation11 + $0x4b0] sm:$0xff]
    %v7883 = vld [vmem:[#allocation11 + $0x4b8] sm:$0xff]
    %v7884 = vld [vmem:[#allocation11 + $0x4c0] sm:$0xff]
    %v7885 = vld [vmem:[#allocation11 + $0x4c8] sm:$0xff]
    %v7886 = vld [vmem:[#allocation11 + $0x4d0] sm:$0xff]
    %v7887 = vld [vmem:[#allocation11 + $0x4d8] sm:$0xff]
    %v7888 = vld [vmem:[#allocation11 + $0x4e0] sm:$0xff]
    %v7889 = vld [vmem:[#allocation11 + $0x4e8] sm:$0xff]
    %v7890 = vld [vmem:[#allocation11 + $0x4f0] sm:$0xff]
    %v7891 = vld [vmem:[#allocation11 + $0x4f8] sm:$0xff]
    %v7892 = vld [vmem:[#allocation11 + $0x500] sm:$0xff]
    %v7893 = vld [vmem:[#allocation11 + $0x508] sm:$0xff]
    %v7894 = vld [vmem:[#allocation11 + $0x510] sm:$0xff]
    %v7895 = vld [vmem:[#allocation11 + $0x518] sm:$0xff]
    %v7896 = vld [vmem:[#allocation11 + $0x520] sm:$0xff]
    %v7897 = vld [vmem:[#allocation11 + $0x528] sm:$0xff]
    %v7898 = vld [vmem:[#allocation11 + $0x530] sm:$0xff]
    %v7899 = vld [vmem:[#allocation11 + $0x538] sm:$0xff]
    %v7900 = vld [vmem:[#allocation11 + $0x540] sm:$0xff]
    %v7901 = vld [vmem:[#allocation11 + $0x548] sm:$0xff]
    %v7902 = vld [vmem:[#allocation11 + $0x550] sm:$0xff]
    %v7903 = vld [vmem:[#allocation11 + $0x558] sm:$0xff]
    %v7904 = vld [vmem:[#allocation11 + $0x560] sm:$0xff]
    %v7905 = vld [vmem:[#allocation11 + $0x568] sm:$0xff]
    %v7906 = vld [vmem:[#allocation11 + $0x570] sm:$0xff]
    %v7907 = vld [vmem:[#allocation11 + $0x578] sm:$0xff]
    %v7908 = vld [vmem:[#allocation11 + $0x580] sm:$0xff]
    %v7909 = vld [vmem:[#allocation11 + $0x588] sm:$0xff]
    %v7910 = vld [vmem:[#allocation11 + $0x590] sm:$0xff]
    %v7911 = vld [vmem:[#allocation11 + $0x598] sm:$0xff]
    %v7912 = vld [vmem:[#allocation11 + $0x5a0] sm:$0xff]
    %v7913 = vld [vmem:[#allocation11 + $0x5a8] sm:$0xff]
    %v7914 = vld [vmem:[#allocation11 + $0x5b0] sm:$0xff]
    %v7915 = vld [vmem:[#allocation11 + $0x5b8] sm:$0xff]
    %v7916 = vld [vmem:[#allocation11 + $0x5c0] sm:$0xff]
    %v7917 = vld [vmem:[#allocation11 + $0x5c8] sm:$0xff]
    %v7918 = vld [vmem:[#allocation11 + $0x5d0] sm:$0xff]
    %v7919 = vld [vmem:[#allocation11 + $0x5d8] sm:$0xff]
    %v7920 = vld [vmem:[#allocation11 + $0x5e0] sm:$0xff]
    %v7921 = vld [vmem:[#allocation11 + $0x5e8] sm:$0xff]
    %v7922 = vld [vmem:[#allocation11 + $0x5f0] sm:$0xff]
    %v7923 = vld [vmem:[#allocation11 + $0x5f8] sm:$0xff]
    %v7924 = vld [vmem:[#allocation11 + $0x600] sm:$0xff]
    %v7925 = vld [vmem:[#allocation11 + $0x608] sm:$0xff]
    %v7926 = vld [vmem:[#allocation11 + $0x610] sm:$0xff]
    %v7927 = vld [vmem:[#allocation11 + $0x618] sm:$0xff]
    %v7928 = vld [vmem:[#allocation11 + $0x620] sm:$0xff]
    %v7929 = vld [vmem:[#allocation11 + $0x628] sm:$0xff]
    %v7930 = vld [vmem:[#allocation11 + $0x630] sm:$0xff]
    %v7931 = vld [vmem:[#allocation11 + $0x638] sm:$0xff]
    %v7932 = vld [vmem:[#allocation11 + $0x640] sm:$0xff]
    %v7933 = vld [vmem:[#allocation11 + $0x648] sm:$0xff]
    %v7934 = vld [vmem:[#allocation11 + $0x650] sm:$0xff]
    %v7935 = vld [vmem:[#allocation11 + $0x658] sm:$0xff]
    %v7936 = vld [vmem:[#allocation11 + $0x660] sm:$0xff]
    %v7937 = vld [vmem:[#allocation11 + $0x668] sm:$0xff]
    %v7938 = vld [vmem:[#allocation11 + $0x670] sm:$0xff]
    %v7939 = vld [vmem:[#allocation11 + $0x678] sm:$0xff]
    %v7940 = vld [vmem:[#allocation11 + $0x680] sm:$0xff]
    %v7941 = vld [vmem:[#allocation11 + $0x688] sm:$0xff]
    %v7942 = vld [vmem:[#allocation11 + $0x690] sm:$0xff]
    %v7943 = vld [vmem:[#allocation11 + $0x698] sm:$0xff]
    %v7944 = vld [vmem:[#allocation11 + $0x6a0] sm:$0xff]
    %v7945 = vld [vmem:[#allocation11 + $0x6a8] sm:$0xff]
    %v7946 = vld [vmem:[#allocation11 + $0x6b0] sm:$0xff]
    %v7947 = vld [vmem:[#allocation11 + $0x6b8] sm:$0xff]
    %v7948 = vld [vmem:[#allocation11 + $0x6c0] sm:$0xff]
    %v7949 = vld [vmem:[#allocation11 + $0x6c8] sm:$0xff]
    %v7950 = vld [vmem:[#allocation11 + $0x6d0] sm:$0xff]
    %v7951 = vld [vmem:[#allocation11 + $0x6d8] sm:$0xff]
    %v7952 = vld [vmem:[#allocation11 + $0x6e0] sm:$0xff]
    %v7953 = vld [vmem:[#allocation11 + $0x6e8] sm:$0xff]
    %v7954 = vld [vmem:[#allocation11 + $0x6f0] sm:$0xff]
    %v7955 = vld [vmem:[#allocation11 + $0x6f8] sm:$0xff]
    %v7956 = vld [vmem:[#allocation11 + $0x700] sm:$0xff]
    %v7957 = vld [vmem:[#allocation11 + $0x708] sm:$0xff]
    %v7958 = vld [vmem:[#allocation11 + $0x710] sm:$0xff]
    %v7959 = vld [vmem:[#allocation11 + $0x718] sm:$0xff]
    %v7960 = vld [vmem:[#allocation11 + $0x720] sm:$0xff]
    %v7961 = vld [vmem:[#allocation11 + $0x728] sm:$0xff]
    %v7962 = vld [vmem:[#allocation11 + $0x730] sm:$0xff]
    %v7963 = vld [vmem:[#allocation11 + $0x738] sm:$0xff]
    %v7964 = vld [vmem:[#allocation11 + $0x740] sm:$0xff]
    %v7965 = vld [vmem:[#allocation11 + $0x748] sm:$0xff]
    %v7966 = vld [vmem:[#allocation11 + $0x750] sm:$0xff]
    %v7967 = vld [vmem:[#allocation11 + $0x758] sm:$0xff]
    %v7968 = vld [vmem:[#allocation11 + $0x760] sm:$0xff]
    %v7969 = vld [vmem:[#allocation11 + $0x768] sm:$0xff]
    %v7970 = vld [vmem:[#allocation11 + $0x770] sm:$0xff]
    %v7971 = vld [vmem:[#allocation11 + $0x778] sm:$0xff]
    %v7972 = vld [vmem:[#allocation11 + $0x780] sm:$0xff]
    %v7973 = vld [vmem:[#allocation11 + $0x788] sm:$0xff]
    %v7974 = vld [vmem:[#allocation11 + $0x790] sm:$0xff]
    %v7975 = vld [vmem:[#allocation11 + $0x798] sm:$0xff]
    %v7976 = vld [vmem:[#allocation11 + $0x7a0] sm:$0xff]
    %v7977 = vld [vmem:[#allocation11 + $0x7a8] sm:$0xff]
    %v7978 = vld [vmem:[#allocation11 + $0x7b0] sm:$0xff]
    %v7979 = vld [vmem:[#allocation11 + $0x7b8] sm:$0xff]
    %v7980 = vld [vmem:[#allocation11 + $0x7c0] sm:$0xff]
    %v7981 = vld [vmem:[#allocation11 + $0x7c8] sm:$0xff]
    %v7982 = vld [vmem:[#allocation11 + $0x7d0] sm:$0xff]
    %v7983 = vld [vmem:[#allocation11 + $0x7d8] sm:$0xff]
    %v7984 = vld [vmem:[#allocation11 + $0x7e0] sm:$0xff]
    %v7985 = vld [vmem:[#allocation11 + $0x7e8] sm:$0xff]
    %v7986 = vld [vmem:[#allocation11 + $0x7f0] sm:$0xff]
    %v7987 = vld [vmem:[#allocation11 + $0x7f8] sm:$0xff]
    %v7988 = vld [vmem:[#allocation11 + $0x800] sm:$0xff]
    %v7989 = vld [vmem:[#allocation11 + $0x808] sm:$0xff]
    %v7990 = vld [vmem:[#allocation11 + $0x810] sm:$0xff]
    %v7991 = vld [vmem:[#allocation11 + $0x818] sm:$0xff]
    %v7992 = vld [vmem:[#allocation11 + $0x820] sm:$0xff]
    %v7993 = vld [vmem:[#allocation11 + $0x828] sm:$0xff]
    %v7994 = vld [vmem:[#allocation11 + $0x830] sm:$0xff]
    %v7995 = vld [vmem:[#allocation11 + $0x838] sm:$0xff]
    %v7996 = vld [vmem:[#allocation11 + $0x840] sm:$0xff]
    %v7997 = vld [vmem:[#allocation11 + $0x848] sm:$0xff]
    %v7998 = vld [vmem:[#allocation11 + $0x850] sm:$0xff]
    %v7999 = vld [vmem:[#allocation11 + $0x858] sm:$0xff]
    %v8000 = vld [vmem:[#allocation11 + $0x860] sm:$0xff]
    %v8001 = vld [vmem:[#allocation11 + $0x868] sm:$0xff]
    %v8002 = vld [vmem:[#allocation11 + $0x870] sm:$0xff]
    %v8003 = vld [vmem:[#allocation11 + $0x878] sm:$0xff]
    %v8004 = vld [vmem:[#allocation11 + $0x880] sm:$0xff]
    %v8005 = vld [vmem:[#allocation11 + $0x888] sm:$0xff]
    %v8006 = vld [vmem:[#allocation11 + $0x890] sm:$0xff]
    %v8007 = vld [vmem:[#allocation11 + $0x898] sm:$0xff]
    %v8008 = vld [vmem:[#allocation11 + $0x8a0] sm:$0xff]
    %v8009 = vld [vmem:[#allocation11 + $0x8a8] sm:$0xff]
    %v8010 = vld [vmem:[#allocation11 + $0x8b0] sm:$0xff]
    %v8011 = vld [vmem:[#allocation11 + $0x8b8] sm:$0xff]
    %v8012 = vld [vmem:[#allocation11 + $0x8c0] sm:$0xff]
    %v8013 = vld [vmem:[#allocation11 + $0x8c8] sm:$0xff]
    %v8014 = vld [vmem:[#allocation11 + $0x8d0] sm:$0xff]
    %v8015 = vld [vmem:[#allocation11 + $0x8d8] sm:$0xff]
    %v8016 = vld [vmem:[#allocation11 + $0x8e0] sm:$0xff]
    %v8017 = vld [vmem:[#allocation11 + $0x8e8] sm:$0xff]
    %v8018 = vld [vmem:[#allocation11 + $0x8f0] sm:$0xff]
    %v8019 = vld [vmem:[#allocation11 + $0x8f8] sm:$0xff]
    %v8020 = vld [vmem:[#allocation11 + $0x900] sm:$0xff]
    %v8021 = vld [vmem:[#allocation11 + $0x908] sm:$0xff]
    %v8022 = vld [vmem:[#allocation11 + $0x910] sm:$0xff]
    %v8023 = vld [vmem:[#allocation11 + $0x918] sm:$0xff]
    %v8024 = vld [vmem:[#allocation11 + $0x920] sm:$0xff]
    %v8025 = vld [vmem:[#allocation11 + $0x928] sm:$0xff]
    %v8026 = vld [vmem:[#allocation11 + $0x930] sm:$0xff]
    %v8027 = vld [vmem:[#allocation11 + $0x938] sm:$0xff]
    %v8028 = vld [vmem:[#allocation11 + $0x940] sm:$0xff]
    %v8029 = vld [vmem:[#allocation11 + $0x948] sm:$0xff]
    %v8030 = vld [vmem:[#allocation11 + $0x950] sm:$0xff]
    %v8031 = vld [vmem:[#allocation11 + $0x958] sm:$0xff]
    %v8032 = vld [vmem:[#allocation11 + $0x960] sm:$0xff]
    %v8033 = vld [vmem:[#allocation11 + $0x968] sm:$0xff]
    %v8034 = vld [vmem:[#allocation11 + $0x970] sm:$0xff]
    %v8035 = vld [vmem:[#allocation11 + $0x978] sm:$0xff]
    %v8036 = vld [vmem:[#allocation11 + $0x980] sm:$0xff]
    %v8037 = vld [vmem:[#allocation11 + $0x988] sm:$0xff]
    %v8038 = vld [vmem:[#allocation11 + $0x990] sm:$0xff]
    %v8039 = vld [vmem:[#allocation11 + $0x998] sm:$0xff]
    %v8040 = vld [vmem:[#allocation11 + $0x9a0] sm:$0xff]
    %v8041 = vld [vmem:[#allocation11 + $0x9a8] sm:$0xff]
    %v8042 = vld [vmem:[#allocation11 + $0x9b0] sm:$0xff]
    %v8043 = vld [vmem:[#allocation11 + $0x9b8] sm:$0xff]
    %v8044 = vld [vmem:[#allocation11 + $0x9c0] sm:$0xff]
    %v8045 = vld [vmem:[#allocation11 + $0x9c8] sm:$0xff]
    %v8046 = vld [vmem:[#allocation11 + $0x9d0] sm:$0xff]
    %v8047 = vld [vmem:[#allocation11 + $0x9d8] sm:$0xff]
    %v8048 = vld [vmem:[#allocation11 + $0x9e0] sm:$0xff]
    %v8049 = vld [vmem:[#allocation11 + $0x9e8] sm:$0xff]
    %v8050 = vld [vmem:[#allocation11 + $0x9f0] sm:$0xff]
    %v8051 = vld [vmem:[#allocation11 + $0x9f8] sm:$0xff]
    %v8052 = vld [vmem:[#allocation11 + $0xa00] sm:$0xff]
    %v8053 = vld [vmem:[#allocation11 + $0xa08] sm:$0xff]
    %v8054 = vld [vmem:[#allocation11 + $0xa10] sm:$0xff]
    %v8055 = vld [vmem:[#allocation11 + $0xa18] sm:$0xff]
    %v8056 = vld [vmem:[#allocation11 + $0xa20] sm:$0xff]
    %v8057 = vld [vmem:[#allocation11 + $0xa28] sm:$0xff]
    %v8058 = vld [vmem:[#allocation11 + $0xa30] sm:$0xff]
    %v8059 = vld [vmem:[#allocation11 + $0xa38] sm:$0xff]
    %v8060 = vld [vmem:[#allocation11 + $0xa40] sm:$0xff]
    %v8061 = vld [vmem:[#allocation11 + $0xa48] sm:$0xff]
    %v8062 = vld [vmem:[#allocation11 + $0xa50] sm:$0xff]
    %v8063 = vld [vmem:[#allocation11 + $0xa58] sm:$0xff]
    %v8064 = vld [vmem:[#allocation11 + $0xa60] sm:$0xff]
    %v8065 = vld [vmem:[#allocation11 + $0xa68] sm:$0xff]
    %v8066 = vld [vmem:[#allocation11 + $0xa70] sm:$0xff]
    %v8067 = vld [vmem:[#allocation11 + $0xa78] sm:$0xff]
    %v8068 = vld [vmem:[#allocation11 + $0xa80] sm:$0xff]
    %v8069 = vld [vmem:[#allocation11 + $0xa88] sm:$0xff]
    %v8070 = vld [vmem:[#allocation11 + $0xa90] sm:$0xff]
    %v8071 = vld [vmem:[#allocation11 + $0xa98] sm:$0xff]
    %v8072 = vld [vmem:[#allocation11 + $0xaa0] sm:$0xff]
    %v8073 = vld [vmem:[#allocation11 + $0xaa8] sm:$0xff]
    %v8074 = vld [vmem:[#allocation11 + $0xab0] sm:$0xff]
    %v8075 = vld [vmem:[#allocation11 + $0xab8] sm:$0xff]
    %v8076 = vld [vmem:[#allocation11 + $0xac0] sm:$0xff]
    %v8077 = vld [vmem:[#allocation11 + $0xac8] sm:$0xff]
    %v8078 = vld [vmem:[#allocation11 + $0xad0] sm:$0xff]
    %v8079 = vld [vmem:[#allocation11 + $0xad8] sm:$0xff]
    %v8080 = vld [vmem:[#allocation11 + $0xae0] sm:$0xff]
    %v8081 = vld [vmem:[#allocation11 + $0xae8] sm:$0xff]
    %v8082 = vld [vmem:[#allocation11 + $0xaf0] sm:$0xff]
    %v8083 = vld [vmem:[#allocation11 + $0xaf8] sm:$0xff]
    %v8084 = vld [vmem:[#allocation11 + $0xb00] sm:$0xff]
    %v8085 = vld [vmem:[#allocation11 + $0xb08] sm:$0xff]
    %v8086 = vld [vmem:[#allocation11 + $0xb10] sm:$0xff]
    %v8087 = vld [vmem:[#allocation11 + $0xb18] sm:$0xff]
    %v8088 = vld [vmem:[#allocation11 + $0xb20] sm:$0xff]
    %v8089 = vld [vmem:[#allocation11 + $0xb28] sm:$0xff]
    %v8090 = vld [vmem:[#allocation11 + $0xb30] sm:$0xff]
    %v8091 = vld [vmem:[#allocation11 + $0xb38] sm:$0xff]
    %v8092 = vld [vmem:[#allocation11 + $0xb40] sm:$0xff]
    %v8093 = vld [vmem:[#allocation11 + $0xb48] sm:$0xff]
    %v8094 = vld [vmem:[#allocation11 + $0xb50] sm:$0xff]
    %v8095 = vld [vmem:[#allocation11 + $0xb58] sm:$0xff]
    %v8096 = vld [vmem:[#allocation11 + $0xb60] sm:$0xff]
    %v8097 = vld [vmem:[#allocation11 + $0xb68] sm:$0xff]
    %v8098 = vld [vmem:[#allocation11 + $0xb70] sm:$0xff]
    %v8099 = vld [vmem:[#allocation11 + $0xb78] sm:$0xff]
    %v8100 = vld [vmem:[#allocation11 + $0xb80] sm:$0xff]
    %v8101 = vld [vmem:[#allocation11 + $0xb88] sm:$0xff]
    %v8102 = vld [vmem:[#allocation11 + $0xb90] sm:$0xff]
    %v8103 = vld [vmem:[#allocation11 + $0xb98] sm:$0xff]
    %v8104 = vld [vmem:[#allocation11 + $0xba0] sm:$0xff]
    %v8105 = vld [vmem:[#allocation11 + $0xba8] sm:$0xff]
    %v8106 = vld [vmem:[#allocation11 + $0xbb0] sm:$0xff]
    %v8107 = vld [vmem:[#allocation11 + $0xbb8] sm:$0xff]
    %v8108 = vld [vmem:[#allocation11 + $0xbc0] sm:$0xff]
    %v8109 = vld [vmem:[#allocation11 + $0xbc8] sm:$0xff]
    %v8110 = vld [vmem:[#allocation11 + $0xbd0] sm:$0xff]
    %v8111 = vld [vmem:[#allocation11 + $0xbd8] sm:$0xff]
    %v8112 = vld [vmem:[#allocation11 + $0xbe0] sm:$0xff]
    %v8113 = vld [vmem:[#allocation11 + $0xbe8] sm:$0xff]
    %v8114 = vld [vmem:[#allocation11 + $0xbf0] sm:$0xff]
    %v8115 = vld [vmem:[#allocation11 + $0xbf8] sm:$0xff]
    %v8116 = vld [vmem:[#allocation11 + $0xc00] sm:$0xff]
    %v8117 = vld [vmem:[#allocation11 + $0xc08] sm:$0xff]
    %v8118 = vld [vmem:[#allocation11 + $0xc10] sm:$0xff]
    %v8119 = vld [vmem:[#allocation11 + $0xc18] sm:$0xff]
    %v8120 = vld [vmem:[#allocation11 + $0xc20] sm:$0xff]
    %v8121 = vld [vmem:[#allocation11 + $0xc28] sm:$0xff]
    %v8122 = vld [vmem:[#allocation11 + $0xc30] sm:$0xff]
    %v8123 = vld [vmem:[#allocation11 + $0xc38] sm:$0xff]
    %v8124 = vld [vmem:[#allocation11 + $0xc40] sm:$0xff]
    %v8125 = vld [vmem:[#allocation11 + $0xc48] sm:$0xff]
    %v8126 = vld [vmem:[#allocation11 + $0xc50] sm:$0xff]
    %v8127 = vld [vmem:[#allocation11 + $0xc58] sm:$0xff]
    %v8128 = vld [vmem:[#allocation11 + $0xc60] sm:$0xff]
    %v8129 = vld [vmem:[#allocation11 + $0xc68] sm:$0xff]
    %v8130 = vld [vmem:[#allocation11 + $0xc70] sm:$0xff]
    %v8131 = vld [vmem:[#allocation11 + $0xc78] sm:$0xff]
    %v8132 = vld [vmem:[#allocation11 + $0xc80] sm:$0xff]
    %v8133 = vld [vmem:[#allocation11 + $0xc88] sm:$0xff]
    %v8134 = vld [vmem:[#allocation11 + $0xc90] sm:$0xff]
    %v8135 = vld [vmem:[#allocation11 + $0xc98] sm:$0xff]
    %v8136 = vld [vmem:[#allocation11 + $0xca0] sm:$0xff]
    %v8137 = vld [vmem:[#allocation11 + $0xca8] sm:$0xff]
    %v8138 = vld [vmem:[#allocation11 + $0xcb0] sm:$0xff]
    %v8139 = vld [vmem:[#allocation11 + $0xcb8] sm:$0xff]
    %v8140 = vld [vmem:[#allocation11 + $0xcc0] sm:$0xff]
    %v8141 = vld [vmem:[#allocation11 + $0xcc8] sm:$0xff]
    %v8142 = vld [vmem:[#allocation11 + $0xcd0] sm:$0xff]
    %v8143 = vld [vmem:[#allocation11 + $0xcd8] sm:$0xff]
    %v8144 = vld [vmem:[#allocation11 + $0xce0] sm:$0xff]
    %v8145 = vld [vmem:[#allocation11 + $0xce8] sm:$0xff]
    %v8146 = vld [vmem:[#allocation11 + $0xcf0] sm:$0xff]
    %v8147 = vld [vmem:[#allocation11 + $0xcf8] sm:$0xff]
    %v8148 = vld [vmem:[#allocation11 + $0xd00] sm:$0xff]
    %v8149 = vld [vmem:[#allocation11 + $0xd08] sm:$0xff]
    %v8150 = vld [vmem:[#allocation11 + $0xd10] sm:$0xff]
    %v8151 = vld [vmem:[#allocation11 + $0xd18] sm:$0xff]
    %v8152 = vld [vmem:[#allocation11 + $0xd20] sm:$0xff]
    %v8153 = vld [vmem:[#allocation11 + $0xd28] sm:$0xff]
    %v8154 = vld [vmem:[#allocation11 + $0xd30] sm:$0xff]
    %v8155 = vld [vmem:[#allocation11 + $0xd38] sm:$0xff]
    %v8156 = vld [vmem:[#allocation11 + $0xd40] sm:$0xff]
    %v8157 = vld [vmem:[#allocation11 + $0xd48] sm:$0xff]
    %v8158 = vld [vmem:[#allocation11 + $0xd50] sm:$0xff]
    %v8159 = vld [vmem:[#allocation11 + $0xd58] sm:$0xff]
    %v8160 = vld [vmem:[#allocation11 + $0xd60] sm:$0xff]
    %v8161 = vld [vmem:[#allocation11 + $0xd68] sm:$0xff]
    %v8162 = vld [vmem:[#allocation11 + $0xd70] sm:$0xff]
    %v8163 = vld [vmem:[#allocation11 + $0xd78] sm:$0xff]
    %v8164 = vld [vmem:[#allocation11 + $0xd80] sm:$0xff]
    %v8165 = vld [vmem:[#allocation11 + $0xd88] sm:$0xff]
    %v8166 = vld [vmem:[#allocation11 + $0xd90] sm:$0xff]
    %v8167 = vld [vmem:[#allocation11 + $0xd98] sm:$0xff]
    %v8168 = vld [vmem:[#allocation11 + $0xda0] sm:$0xff]
    %v8169 = vld [vmem:[#allocation11 + $0xda8] sm:$0xff]
    %v8170 = vld [vmem:[#allocation11 + $0xdb0] sm:$0xff]
    %v8171 = vld [vmem:[#allocation11 + $0xdb8] sm:$0xff]
    %v8172 = vld [vmem:[#allocation11 + $0xdc0] sm:$0xff]
    %v8173 = vld [vmem:[#allocation11 + $0xdc8] sm:$0xff]
    %v8174 = vld [vmem:[#allocation11 + $0xdd0] sm:$0xff]
    %v8175 = vld [vmem:[#allocation11 + $0xdd8] sm:$0xff]
    %v8176 = vld [vmem:[#allocation11 + $0xde0] sm:$0xff]
    %v8177 = vld [vmem:[#allocation11 + $0xde8] sm:$0xff]
    %v8178 = vld [vmem:[#allocation11 + $0xdf0] sm:$0xff]
    %v8179 = vld [vmem:[#allocation11 + $0xdf8] sm:$0xff]
    %v8180 = vld [vmem:[#allocation11 + $0xe00] sm:$0xff]
    %v8181 = vld [vmem:[#allocation11 + $0xe08] sm:$0xff]
    %v8182 = vld [vmem:[#allocation11 + $0xe10] sm:$0xff]
    %v8183 = vld [vmem:[#allocation11 + $0xe18] sm:$0xff]
    %v8184 = vld [vmem:[#allocation11 + $0xe20] sm:$0xff]
    %v8185 = vld [vmem:[#allocation11 + $0xe28] sm:$0xff]
    %v8186 = vld [vmem:[#allocation11 + $0xe30] sm:$0xff]
    %v8187 = vld [vmem:[#allocation11 + $0xe38] sm:$0xff]
    %v8188 = vld [vmem:[#allocation11 + $0xe40] sm:$0xff]
    %v8189 = vld [vmem:[#allocation11 + $0xe48] sm:$0xff]
    %v8190 = vld [vmem:[#allocation11 + $0xe50] sm:$0xff]
    %v8191 = vld [vmem:[#allocation11 + $0xe58] sm:$0xff]
    %v8192 = vld [vmem:[#allocation11 + $0xe60] sm:$0xff]
    %v8193 = vld [vmem:[#allocation11 + $0xe68] sm:$0xff]
    %v8194 = vld [vmem:[#allocation11 + $0xe70] sm:$0xff]
    %v8195 = vld [vmem:[#allocation11 + $0xe78] sm:$0xff]
    %v8196 = vld [vmem:[#allocation11 + $0xe80] sm:$0xff]
    %v8197 = vld [vmem:[#allocation11 + $0xe88] sm:$0xff]
    %v8198 = vld [vmem:[#allocation11 + $0xe90] sm:$0xff]
    %v8199 = vld [vmem:[#allocation11 + $0xe98] sm:$0xff]
    %v8200 = vld [vmem:[#allocation11 + $0xea0] sm:$0xff]
    %v8201 = vld [vmem:[#allocation11 + $0xea8] sm:$0xff]
    %v8202 = vld [vmem:[#allocation11 + $0xeb0] sm:$0xff]
    %v8203 = vld [vmem:[#allocation11 + $0xeb8] sm:$0xff]
    %v8204 = vld [vmem:[#allocation11 + $0xec0] sm:$0xff]
    %v8205 = vld [vmem:[#allocation11 + $0xec8] sm:$0xff]
    %v8206 = vld [vmem:[#allocation11 + $0xed0] sm:$0xff]
    %v8207 = vld [vmem:[#allocation11 + $0xed8] sm:$0xff]
    %v8208 = vld [vmem:[#allocation11 + $0xee0] sm:$0xff]
    %v8209 = vld [vmem:[#allocation11 + $0xee8] sm:$0xff]
    %v8210 = vld [vmem:[#allocation11 + $0xef0] sm:$0xff]
    %v8211 = vld [vmem:[#allocation11 + $0xef8] sm:$0xff]
    %v8212 = vld [vmem:[#allocation11 + $0xf00] sm:$0xff]
    %v8213 = vld [vmem:[#allocation11 + $0xf08] sm:$0xff]
    %v8214 = vld [vmem:[#allocation11 + $0xf10] sm:$0xff]
    %v8215 = vld [vmem:[#allocation11 + $0xf18] sm:$0xff]
    %v8216 = vld [vmem:[#allocation11 + $0xf20] sm:$0xff]
    %v8217 = vld [vmem:[#allocation11 + $0xf28] sm:$0xff]
    %v8218 = vld [vmem:[#allocation11 + $0xf30] sm:$0xff]
    %v8219 = vld [vmem:[#allocation11 + $0xf38] sm:$0xff]
    %v8220 = vld [vmem:[#allocation11 + $0xf40] sm:$0xff]
    %v8221 = vld [vmem:[#allocation11 + $0xf48] sm:$0xff]
    %v8222 = vld [vmem:[#allocation11 + $0xf50] sm:$0xff]
    %v8223 = vld [vmem:[#allocation11 + $0xf58] sm:$0xff]
    %v8224 = vld [vmem:[#allocation11 + $0xf60] sm:$0xff]
    %v8225 = vld [vmem:[#allocation11 + $0xf68] sm:$0xff]
    %v8226 = vld [vmem:[#allocation11 + $0xf70] sm:$0xff]
    %v8227 = vld [vmem:[#allocation11 + $0xf78] sm:$0xff]
    %v8228 = vld [vmem:[#allocation11 + $0xf80] sm:$0xff]
    %v8229 = vld [vmem:[#allocation11 + $0xf88] sm:$0xff]
    %v8230 = vld [vmem:[#allocation11 + $0xf90] sm:$0xff]
    %v8231 = vld [vmem:[#allocation11 + $0xf98] sm:$0xff]
    %v8232 = vld [vmem:[#allocation11 + $0xfa0] sm:$0xff]
    %v8233 = vld [vmem:[#allocation11 + $0xfa8] sm:$0xff]
    %v8234 = vld [vmem:[#allocation11 + $0xfb0] sm:$0xff]
    %v8235 = vld [vmem:[#allocation11 + $0xfb8] sm:$0xff]
    %v8236 = vld [vmem:[#allocation11 + $0xfc0] sm:$0xff]
    %v8237 = vld [vmem:[#allocation11 + $0xfc8] sm:$0xff]
    %v8238 = vld [vmem:[#allocation11 + $0xfd0] sm:$0xff]
    %v8239 = vld [vmem:[#allocation11 + $0xfd8] sm:$0xff]
    %v8240 = vld [vmem:[#allocation11 + $0xfe0] sm:$0xff]
    %v8241 = vld [vmem:[#allocation11 + $0xfe8] sm:$0xff]
    %v8242 = vld [vmem:[#allocation11 + $0xff0] sm:$0xff]
    %v8243 = vld [vmem:[#allocation11 + $0xff8] sm:$0xff]
    %v8244 = vld [vmem:[#allocation13] sm:$0xff]
    %v8246 = vlaneseq
    %v8247 = vshrl.u32 %v8246, 7
    %v8248 = vsub.s32 0, %v8247
    %v8249 = vrot.slane %v8244, %v8248
    %v8250 = vlaneseq
    %v8251 = vshrl.u32 %v8250, 7
    %v8252 = vsub.s32 1, %v8251
    %v8253 = vrot.slane %v8244, %v8252
    %v8254 = vlaneseq
    %v8255 = vshrl.u32 %v8254, 7
    %v8256 = vsub.s32 2, %v8255
    %v8257 = vrot.slane %v8244, %v8256
    %v8258 = vlaneseq
    %v8259 = vshrl.u32 %v8258, 7
    %v8260 = vsub.s32 3, %v8259
    %v8261 = vrot.slane %v8244, %v8260
    %v8262 = vlaneseq
    %v8263 = vshrl.u32 %v8262, 7
    %v8264 = vsub.s32 4, %v8263
    %v8265 = vrot.slane %v8244, %v8264
    %v8266 = vlaneseq
    %v8267 = vshrl.u32 %v8266, 7
    %v8268 = vsub.s32 5, %v8267
    %v8269 = vrot.slane %v8244, %v8268
    %v8270 = vlaneseq
    %v8271 = vshrl.u32 %v8270, 7
    %v8272 = vsub.s32 6, %v8271
    %v8273 = vrot.slane %v8244, %v8272
    %v8274 = vlaneseq
    %v8275 = vshrl.u32 %v8274, 7
    %v8276 = vsub.s32 7, %v8275
    %v8277 = vrot.slane %v8244, %v8276
    %v8798 = vunpack.c.l.b16 %v7732
    %v8799 = vunpack.c.h.b16 %v7732
    %v8800 = vunpack.c.l.b16 %v7733
    %v8801 = vunpack.c.h.b16 %v7733
    %v8802 = vunpack.c.l.b16 %v7734
    %v8803 = vunpack.c.h.b16 %v7734
    %v8804 = vunpack.c.l.b16 %v7735
    %v8805 = vunpack.c.h.b16 %v7735
    %v8806 = vunpack.c.l.b16 %v7736
    %v8807 = vunpack.c.h.b16 %v7736
    %v8808 = vunpack.c.l.b16 %v7737
    %v8809 = vunpack.c.h.b16 %v7737
    %v8810 = vunpack.c.l.b16 %v7738
    %v8811 = vunpack.c.h.b16 %v7738
    %v8812 = vunpack.c.l.b16 %v7739
    %v8813 = vunpack.c.h.b16 %v7739
    %v8814 = vunpack.c.l.b16 %v7740
    %v8815 = vunpack.c.h.b16 %v7740
    %v8816 = vunpack.c.l.b16 %v7741
    %v8817 = vunpack.c.h.b16 %v7741
    %v8818 = vunpack.c.l.b16 %v7742
    %v8819 = vunpack.c.h.b16 %v7742
    %v8820 = vunpack.c.l.b16 %v7743
    %v8821 = vunpack.c.h.b16 %v7743
    %v8822 = vunpack.c.l.b16 %v7744
    %v8823 = vunpack.c.h.b16 %v7744
    %v8824 = vunpack.c.l.b16 %v7745
    %v8825 = vunpack.c.h.b16 %v7745
    %v8826 = vunpack.c.l.b16 %v7746
    %v8827 = vunpack.c.h.b16 %v7746
    %v8828 = vunpack.c.l.b16 %v7747
    %v8829 = vunpack.c.h.b16 %v7747
    %v8830 = vunpack.c.l.b16 %v7748
    %v8831 = vunpack.c.h.b16 %v7748
    %v8832 = vunpack.c.l.b16 %v7749
    %v8833 = vunpack.c.h.b16 %v7749
    %v8834 = vunpack.c.l.b16 %v7750
    %v8835 = vunpack.c.h.b16 %v7750
    %v8836 = vunpack.c.l.b16 %v7751
    %v8837 = vunpack.c.h.b16 %v7751
    %v8838 = vunpack.c.l.b16 %v7752
    %v8839 = vunpack.c.h.b16 %v7752
    %v8840 = vunpack.c.l.b16 %v7753
    %v8841 = vunpack.c.h.b16 %v7753
    %v8842 = vunpack.c.l.b16 %v7754
    %v8843 = vunpack.c.h.b16 %v7754
    %v8844 = vunpack.c.l.b16 %v7755
    %v8845 = vunpack.c.h.b16 %v7755
    %v8846 = vunpack.c.l.b16 %v7756
    %v8847 = vunpack.c.h.b16 %v7756
    %v8848 = vunpack.c.l.b16 %v7757
    %v8849 = vunpack.c.h.b16 %v7757
    %v8850 = vunpack.c.l.b16 %v7758
    %v8851 = vunpack.c.h.b16 %v7758
    %v8852 = vunpack.c.l.b16 %v7759
    %v8853 = vunpack.c.h.b16 %v7759
    %v8854 = vunpack.c.l.b16 %v7760
    %v8855 = vunpack.c.h.b16 %v7760
    %v8856 = vunpack.c.l.b16 %v7761
    %v8857 = vunpack.c.h.b16 %v7761
    %v8858 = vunpack.c.l.b16 %v7762
    %v8859 = vunpack.c.h.b16 %v7762
    %v8860 = vunpack.c.l.b16 %v7763
    %v8861 = vunpack.c.h.b16 %v7763
    %v8862 = vunpack.c.l.b16 %v7764
    %v8863 = vunpack.c.h.b16 %v7764
    %v8864 = vunpack.c.l.b16 %v7765
    %v8865 = vunpack.c.h.b16 %v7765
    %v8866 = vunpack.c.l.b16 %v7766
    %v8867 = vunpack.c.h.b16 %v7766
    %v8868 = vunpack.c.l.b16 %v7767
    %v8869 = vunpack.c.h.b16 %v7767
    %v8870 = vunpack.c.l.b16 %v7768
    %v8871 = vunpack.c.h.b16 %v7768
    %v8872 = vunpack.c.l.b16 %v7769
    %v8873 = vunpack.c.h.b16 %v7769
    %v8874 = vunpack.c.l.b16 %v7770
    %v8875 = vunpack.c.h.b16 %v7770
    %v8876 = vunpack.c.l.b16 %v7771
    %v8877 = vunpack.c.h.b16 %v7771
    %v8878 = vunpack.c.l.b16 %v7772
    %v8879 = vunpack.c.h.b16 %v7772
    %v8880 = vunpack.c.l.b16 %v7773
    %v8881 = vunpack.c.h.b16 %v7773
    %v8882 = vunpack.c.l.b16 %v7774
    %v8883 = vunpack.c.h.b16 %v7774
    %v8884 = vunpack.c.l.b16 %v7775
    %v8885 = vunpack.c.h.b16 %v7775
    %v8886 = vunpack.c.l.b16 %v7776
    %v8887 = vunpack.c.h.b16 %v7776
    %v8888 = vunpack.c.l.b16 %v7777
    %v8889 = vunpack.c.h.b16 %v7777
    %v8890 = vunpack.c.l.b16 %v7778
    %v8891 = vunpack.c.h.b16 %v7778
    %v8892 = vunpack.c.l.b16 %v7779
    %v8893 = vunpack.c.h.b16 %v7779
    %v8894 = vunpack.c.l.b16 %v7780
    %v8895 = vunpack.c.h.b16 %v7780
    %v8896 = vunpack.c.l.b16 %v7781
    %v8897 = vunpack.c.h.b16 %v7781
    %v8898 = vunpack.c.l.b16 %v7782
    %v8899 = vunpack.c.h.b16 %v7782
    %v8900 = vunpack.c.l.b16 %v7783
    %v8901 = vunpack.c.h.b16 %v7783
    %v8902 = vunpack.c.l.b16 %v7784
    %v8903 = vunpack.c.h.b16 %v7784
    %v8904 = vunpack.c.l.b16 %v7785
    %v8905 = vunpack.c.h.b16 %v7785
    %v8906 = vunpack.c.l.b16 %v7786
    %v8907 = vunpack.c.h.b16 %v7786
    %v8908 = vunpack.c.l.b16 %v7787
    %v8909 = vunpack.c.h.b16 %v7787
    %v8910 = vunpack.c.l.b16 %v7788
    %v8911 = vunpack.c.h.b16 %v7788
    %v8912 = vunpack.c.l.b16 %v7789
    %v8913 = vunpack.c.h.b16 %v7789
    %v8914 = vunpack.c.l.b16 %v7790
    %v8915 = vunpack.c.h.b16 %v7790
    %v8916 = vunpack.c.l.b16 %v7791
    %v8917 = vunpack.c.h.b16 %v7791
    %v8918 = vunpack.c.l.b16 %v7792
    %v8919 = vunpack.c.h.b16 %v7792
    %v8920 = vunpack.c.l.b16 %v7793
    %v8921 = vunpack.c.h.b16 %v7793
    %v8922 = vunpack.c.l.b16 %v7794
    %v8923 = vunpack.c.h.b16 %v7794
    %v8924 = vunpack.c.l.b16 %v7795
    %v8925 = vunpack.c.h.b16 %v7795
    %v8926 = vunpack.c.l.b16 %v7796
    %v8927 = vunpack.c.h.b16 %v7796
    %v8928 = vunpack.c.l.b16 %v7797
    %v8929 = vunpack.c.h.b16 %v7797
    %v8930 = vunpack.c.l.b16 %v7798
    %v8931 = vunpack.c.h.b16 %v7798
    %v8932 = vunpack.c.l.b16 %v7799
    %v8933 = vunpack.c.h.b16 %v7799
    %v8934 = vunpack.c.l.b16 %v7800
    %v8935 = vunpack.c.h.b16 %v7800
    %v8936 = vunpack.c.l.b16 %v7801
    %v8937 = vunpack.c.h.b16 %v7801
    %v8938 = vunpack.c.l.b16 %v7802
    %v8939 = vunpack.c.h.b16 %v7802
    %v8940 = vunpack.c.l.b16 %v7803
    %v8941 = vunpack.c.h.b16 %v7803
    %v8942 = vunpack.c.l.b16 %v7804
    %v8943 = vunpack.c.h.b16 %v7804
    %v8944 = vunpack.c.l.b16 %v7805
    %v8945 = vunpack.c.h.b16 %v7805
    %v8946 = vunpack.c.l.b16 %v7806
    %v8947 = vunpack.c.h.b16 %v7806
    %v8948 = vunpack.c.l.b16 %v7807
    %v8949 = vunpack.c.h.b16 %v7807
    %v8950 = vunpack.c.l.b16 %v7808
    %v8951 = vunpack.c.h.b16 %v7808
    %v8952 = vunpack.c.l.b16 %v7809
    %v8953 = vunpack.c.h.b16 %v7809
    %v8954 = vunpack.c.l.b16 %v7810
    %v8955 = vunpack.c.h.b16 %v7810
    %v8956 = vunpack.c.l.b16 %v7811
    %v8957 = vunpack.c.h.b16 %v7811
    %v8958 = vunpack.c.l.b16 %v7812
    %v8959 = vunpack.c.h.b16 %v7812
    %v8960 = vunpack.c.l.b16 %v7813
    %v8961 = vunpack.c.h.b16 %v7813
    %v8962 = vunpack.c.l.b16 %v7814
    %v8963 = vunpack.c.h.b16 %v7814
    %v8964 = vunpack.c.l.b16 %v7815
    %v8965 = vunpack.c.h.b16 %v7815
    %v8966 = vunpack.c.l.b16 %v7816
    %v8967 = vunpack.c.h.b16 %v7816
    %v8968 = vunpack.c.l.b16 %v7817
    %v8969 = vunpack.c.h.b16 %v7817
    %v8970 = vunpack.c.l.b16 %v7818
    %v8971 = vunpack.c.h.b16 %v7818
    %v8972 = vunpack.c.l.b16 %v7819
    %v8973 = vunpack.c.h.b16 %v7819
    %v8974 = vunpack.c.l.b16 %v7820
    %v8975 = vunpack.c.h.b16 %v7820
    %v8976 = vunpack.c.l.b16 %v7821
    %v8977 = vunpack.c.h.b16 %v7821
    %v8978 = vunpack.c.l.b16 %v7822
    %v8979 = vunpack.c.h.b16 %v7822
    %v8980 = vunpack.c.l.b16 %v7823
    %v8981 = vunpack.c.h.b16 %v7823
    %v8982 = vunpack.c.l.b16 %v7824
    %v8983 = vunpack.c.h.b16 %v7824
    %v8984 = vunpack.c.l.b16 %v7825
    %v8985 = vunpack.c.h.b16 %v7825
    %v8986 = vunpack.c.l.b16 %v7826
    %v8987 = vunpack.c.h.b16 %v7826
    %v8988 = vunpack.c.l.b16 %v7827
    %v8989 = vunpack.c.h.b16 %v7827
    %v8990 = vunpack.c.l.b16 %v7828
    %v8991 = vunpack.c.h.b16 %v7828
    %v8992 = vunpack.c.l.b16 %v7829
    %v8993 = vunpack.c.h.b16 %v7829
    %v8994 = vunpack.c.l.b16 %v7830
    %v8995 = vunpack.c.h.b16 %v7830
    %v8996 = vunpack.c.l.b16 %v7831
    %v8997 = vunpack.c.h.b16 %v7831
    %v8998 = vunpack.c.l.b16 %v7832
    %v8999 = vunpack.c.h.b16 %v7832
    %v9000 = vunpack.c.l.b16 %v7833
    %v9001 = vunpack.c.h.b16 %v7833
    %v9002 = vunpack.c.l.b16 %v7834
    %v9003 = vunpack.c.h.b16 %v7834
    %v9004 = vunpack.c.l.b16 %v7835
    %v9005 = vunpack.c.h.b16 %v7835
    %v9006 = vunpack.c.l.b16 %v7836
    %v9007 = vunpack.c.h.b16 %v7836
    %v9008 = vunpack.c.l.b16 %v7837
    %v9009 = vunpack.c.h.b16 %v7837
    %v9010 = vunpack.c.l.b16 %v7838
    %v9011 = vunpack.c.h.b16 %v7838
    %v9012 = vunpack.c.l.b16 %v7839
    %v9013 = vunpack.c.h.b16 %v7839
    %v9014 = vunpack.c.l.b16 %v7840
    %v9015 = vunpack.c.h.b16 %v7840
    %v9016 = vunpack.c.l.b16 %v7841
    %v9017 = vunpack.c.h.b16 %v7841
    %v9018 = vunpack.c.l.b16 %v7842
    %v9019 = vunpack.c.h.b16 %v7842
    %v9020 = vunpack.c.l.b16 %v7843
    %v9021 = vunpack.c.h.b16 %v7843
    %v9022 = vunpack.c.l.b16 %v7844
    %v9023 = vunpack.c.h.b16 %v7844
    %v9024 = vunpack.c.l.b16 %v7845
    %v9025 = vunpack.c.h.b16 %v7845
    %v9026 = vunpack.c.l.b16 %v7846
    %v9027 = vunpack.c.h.b16 %v7846
    %v9028 = vunpack.c.l.b16 %v7847
    %v9029 = vunpack.c.h.b16 %v7847
    %v9030 = vunpack.c.l.b16 %v7848
    %v9031 = vunpack.c.h.b16 %v7848
    %v9032 = vunpack.c.l.b16 %v7849
    %v9033 = vunpack.c.h.b16 %v7849
    %v9034 = vunpack.c.l.b16 %v7850
    %v9035 = vunpack.c.h.b16 %v7850
    %v9036 = vunpack.c.l.b16 %v7851
    %v9037 = vunpack.c.h.b16 %v7851
    %v9038 = vunpack.c.l.b16 %v7852
    %v9039 = vunpack.c.h.b16 %v7852
    %v9040 = vunpack.c.l.b16 %v7853
    %v9041 = vunpack.c.h.b16 %v7853
    %v9042 = vunpack.c.l.b16 %v7854
    %v9043 = vunpack.c.h.b16 %v7854
    %v9044 = vunpack.c.l.b16 %v7855
    %v9045 = vunpack.c.h.b16 %v7855
    %v9046 = vunpack.c.l.b16 %v7856
    %v9047 = vunpack.c.h.b16 %v7856
    %v9048 = vunpack.c.l.b16 %v7857
    %v9049 = vunpack.c.h.b16 %v7857
    %v9050 = vunpack.c.l.b16 %v7858
    %v9051 = vunpack.c.h.b16 %v7858
    %v9052 = vunpack.c.l.b16 %v7859
    %v9053 = vunpack.c.h.b16 %v7859
    %v9054 = vunpack.c.l.b16 %v7860
    %v9055 = vunpack.c.h.b16 %v7860
    %v9056 = vunpack.c.l.b16 %v7861
    %v9057 = vunpack.c.h.b16 %v7861
    %v9058 = vunpack.c.l.b16 %v7862
    %v9059 = vunpack.c.h.b16 %v7862
    %v9060 = vunpack.c.l.b16 %v7863
    %v9061 = vunpack.c.h.b16 %v7863
    %v9062 = vunpack.c.l.b16 %v7864
    %v9063 = vunpack.c.h.b16 %v7864
    %v9064 = vunpack.c.l.b16 %v7865
    %v9065 = vunpack.c.h.b16 %v7865
    %v9066 = vunpack.c.l.b16 %v7866
    %v9067 = vunpack.c.h.b16 %v7866
    %v9068 = vunpack.c.l.b16 %v7867
    %v9069 = vunpack.c.h.b16 %v7867
    %v9070 = vunpack.c.l.b16 %v7868
    %v9071 = vunpack.c.h.b16 %v7868
    %v9072 = vunpack.c.l.b16 %v7869
    %v9073 = vunpack.c.h.b16 %v7869
    %v9074 = vunpack.c.l.b16 %v7870
    %v9075 = vunpack.c.h.b16 %v7870
    %v9076 = vunpack.c.l.b16 %v7871
    %v9077 = vunpack.c.h.b16 %v7871
    %v9078 = vunpack.c.l.b16 %v7872
    %v9079 = vunpack.c.h.b16 %v7872
    %v9080 = vunpack.c.l.b16 %v7873
    %v9081 = vunpack.c.h.b16 %v7873
    %v9082 = vunpack.c.l.b16 %v7874
    %v9083 = vunpack.c.h.b16 %v7874
    %v9084 = vunpack.c.l.b16 %v7875
    %v9085 = vunpack.c.h.b16 %v7875
    %v9086 = vunpack.c.l.b16 %v7876
    %v9087 = vunpack.c.h.b16 %v7876
    %v9088 = vunpack.c.l.b16 %v7877
    %v9089 = vunpack.c.h.b16 %v7877
    %v9090 = vunpack.c.l.b16 %v7878
    %v9091 = vunpack.c.h.b16 %v7878
    %v9092 = vunpack.c.l.b16 %v7879
    %v9093 = vunpack.c.h.b16 %v7879
    %v9094 = vunpack.c.l.b16 %v7880
    %v9095 = vunpack.c.h.b16 %v7880
    %v9096 = vunpack.c.l.b16 %v7881
    %v9097 = vunpack.c.h.b16 %v7881
    %v9098 = vunpack.c.l.b16 %v7882
    %v9099 = vunpack.c.h.b16 %v7882
    %v9100 = vunpack.c.l.b16 %v7883
    %v9101 = vunpack.c.h.b16 %v7883
    %v9102 = vunpack.c.l.b16 %v7884
    %v9103 = vunpack.c.h.b16 %v7884
    %v9104 = vunpack.c.l.b16 %v7885
    %v9105 = vunpack.c.h.b16 %v7885
    %v9106 = vunpack.c.l.b16 %v7886
    %v9107 = vunpack.c.h.b16 %v7886
    %v9108 = vunpack.c.l.b16 %v7887
    %v9109 = vunpack.c.h.b16 %v7887
    %v9110 = vunpack.c.l.b16 %v7888
    %v9111 = vunpack.c.h.b16 %v7888
    %v9112 = vunpack.c.l.b16 %v7889
    %v9113 = vunpack.c.h.b16 %v7889
    %v9114 = vunpack.c.l.b16 %v7890
    %v9115 = vunpack.c.h.b16 %v7890
    %v9116 = vunpack.c.l.b16 %v7891
    %v9117 = vunpack.c.h.b16 %v7891
    %v9118 = vunpack.c.l.b16 %v7892
    %v9119 = vunpack.c.h.b16 %v7892
    %v9120 = vunpack.c.l.b16 %v7893
    %v9121 = vunpack.c.h.b16 %v7893
    %v9122 = vunpack.c.l.b16 %v7894
    %v9123 = vunpack.c.h.b16 %v7894
    %v9124 = vunpack.c.l.b16 %v7895
    %v9125 = vunpack.c.h.b16 %v7895
    %v9126 = vunpack.c.l.b16 %v7896
    %v9127 = vunpack.c.h.b16 %v7896
    %v9128 = vunpack.c.l.b16 %v7897
    %v9129 = vunpack.c.h.b16 %v7897
    %v9130 = vunpack.c.l.b16 %v7898
    %v9131 = vunpack.c.h.b16 %v7898
    %v9132 = vunpack.c.l.b16 %v7899
    %v9133 = vunpack.c.h.b16 %v7899
    %v9134 = vunpack.c.l.b16 %v7900
    %v9135 = vunpack.c.h.b16 %v7900
    %v9136 = vunpack.c.l.b16 %v7901
    %v9137 = vunpack.c.h.b16 %v7901
    %v9138 = vunpack.c.l.b16 %v7902
    %v9139 = vunpack.c.h.b16 %v7902
    %v9140 = vunpack.c.l.b16 %v7903
    %v9141 = vunpack.c.h.b16 %v7903
    %v9142 = vunpack.c.l.b16 %v7904
    %v9143 = vunpack.c.h.b16 %v7904
    %v9144 = vunpack.c.l.b16 %v7905
    %v9145 = vunpack.c.h.b16 %v7905
    %v9146 = vunpack.c.l.b16 %v7906
    %v9147 = vunpack.c.h.b16 %v7906
    %v9148 = vunpack.c.l.b16 %v7907
    %v9149 = vunpack.c.h.b16 %v7907
    %v9150 = vunpack.c.l.b16 %v7908
    %v9151 = vunpack.c.h.b16 %v7908
    %v9152 = vunpack.c.l.b16 %v7909
    %v9153 = vunpack.c.h.b16 %v7909
    %v9154 = vunpack.c.l.b16 %v7910
    %v9155 = vunpack.c.h.b16 %v7910
    %v9156 = vunpack.c.l.b16 %v7911
    %v9157 = vunpack.c.h.b16 %v7911
    %v9158 = vunpack.c.l.b16 %v7912
    %v9159 = vunpack.c.h.b16 %v7912
    %v9160 = vunpack.c.l.b16 %v7913
    %v9161 = vunpack.c.h.b16 %v7913
    %v9162 = vunpack.c.l.b16 %v7914
    %v9163 = vunpack.c.h.b16 %v7914
    %v9164 = vunpack.c.l.b16 %v7915
    %v9165 = vunpack.c.h.b16 %v7915
    %v9166 = vunpack.c.l.b16 %v7916
    %v9167 = vunpack.c.h.b16 %v7916
    %v9168 = vunpack.c.l.b16 %v7917
    %v9169 = vunpack.c.h.b16 %v7917
    %v9170 = vunpack.c.l.b16 %v7918
    %v9171 = vunpack.c.h.b16 %v7918
    %v9172 = vunpack.c.l.b16 %v7919
    %v9173 = vunpack.c.h.b16 %v7919
    %v9174 = vunpack.c.l.b16 %v7920
    %v9175 = vunpack.c.h.b16 %v7920
    %v9176 = vunpack.c.l.b16 %v7921
    %v9177 = vunpack.c.h.b16 %v7921
    %v9178 = vunpack.c.l.b16 %v7922
    %v9179 = vunpack.c.h.b16 %v7922
    %v9180 = vunpack.c.l.b16 %v7923
    %v9181 = vunpack.c.h.b16 %v7923
    %v9182 = vunpack.c.l.b16 %v7924
    %v9183 = vunpack.c.h.b16 %v7924
    %v9184 = vunpack.c.l.b16 %v7925
    %v9185 = vunpack.c.h.b16 %v7925
    %v9186 = vunpack.c.l.b16 %v7926
    %v9187 = vunpack.c.h.b16 %v7926
    %v9188 = vunpack.c.l.b16 %v7927
    %v9189 = vunpack.c.h.b16 %v7927
    %v9190 = vunpack.c.l.b16 %v7928
    %v9191 = vunpack.c.h.b16 %v7928
    %v9192 = vunpack.c.l.b16 %v7929
    %v9193 = vunpack.c.h.b16 %v7929
    %v9194 = vunpack.c.l.b16 %v7930
    %v9195 = vunpack.c.h.b16 %v7930
    %v9196 = vunpack.c.l.b16 %v7931
    %v9197 = vunpack.c.h.b16 %v7931
    %v9198 = vunpack.c.l.b16 %v7932
    %v9199 = vunpack.c.h.b16 %v7932
    %v9200 = vunpack.c.l.b16 %v7933
    %v9201 = vunpack.c.h.b16 %v7933
    %v9202 = vunpack.c.l.b16 %v7934
    %v9203 = vunpack.c.h.b16 %v7934
    %v9204 = vunpack.c.l.b16 %v7935
    %v9205 = vunpack.c.h.b16 %v7935
    %v9206 = vunpack.c.l.b16 %v7936
    %v9207 = vunpack.c.h.b16 %v7936
    %v9208 = vunpack.c.l.b16 %v7937
    %v9209 = vunpack.c.h.b16 %v7937
    %v9210 = vunpack.c.l.b16 %v7938
    %v9211 = vunpack.c.h.b16 %v7938
    %v9212 = vunpack.c.l.b16 %v7939
    %v9213 = vunpack.c.h.b16 %v7939
    %v9214 = vunpack.c.l.b16 %v7940
    %v9215 = vunpack.c.h.b16 %v7940
    %v9216 = vunpack.c.l.b16 %v7941
    %v9217 = vunpack.c.h.b16 %v7941
    %v9218 = vunpack.c.l.b16 %v7942
    %v9219 = vunpack.c.h.b16 %v7942
    %v9220 = vunpack.c.l.b16 %v7943
    %v9221 = vunpack.c.h.b16 %v7943
    %v9222 = vunpack.c.l.b16 %v7944
    %v9223 = vunpack.c.h.b16 %v7944
    %v9224 = vunpack.c.l.b16 %v7945
    %v9225 = vunpack.c.h.b16 %v7945
    %v9226 = vunpack.c.l.b16 %v7946
    %v9227 = vunpack.c.h.b16 %v7946
    %v9228 = vunpack.c.l.b16 %v7947
    %v9229 = vunpack.c.h.b16 %v7947
    %v9230 = vunpack.c.l.b16 %v7948
    %v9231 = vunpack.c.h.b16 %v7948
    %v9232 = vunpack.c.l.b16 %v7949
    %v9233 = vunpack.c.h.b16 %v7949
    %v9234 = vunpack.c.l.b16 %v7950
    %v9235 = vunpack.c.h.b16 %v7950
    %v9236 = vunpack.c.l.b16 %v7951
    %v9237 = vunpack.c.h.b16 %v7951
    %v9238 = vunpack.c.l.b16 %v7952
    %v9239 = vunpack.c.h.b16 %v7952
    %v9240 = vunpack.c.l.b16 %v7953
    %v9241 = vunpack.c.h.b16 %v7953
    %v9242 = vunpack.c.l.b16 %v7954
    %v9243 = vunpack.c.h.b16 %v7954
    %v9244 = vunpack.c.l.b16 %v7955
    %v9245 = vunpack.c.h.b16 %v7955
    %v9246 = vunpack.c.l.b16 %v7956
    %v9247 = vunpack.c.h.b16 %v7956
    %v9248 = vunpack.c.l.b16 %v7957
    %v9249 = vunpack.c.h.b16 %v7957
    %v9250 = vunpack.c.l.b16 %v7958
    %v9251 = vunpack.c.h.b16 %v7958
    %v9252 = vunpack.c.l.b16 %v7959
    %v9253 = vunpack.c.h.b16 %v7959
    %v9254 = vunpack.c.l.b16 %v7960
    %v9255 = vunpack.c.h.b16 %v7960
    %v9256 = vunpack.c.l.b16 %v7961
    %v9257 = vunpack.c.h.b16 %v7961
    %v9258 = vunpack.c.l.b16 %v7962
    %v9259 = vunpack.c.h.b16 %v7962
    %v9260 = vunpack.c.l.b16 %v7963
    %v9261 = vunpack.c.h.b16 %v7963
    %v9262 = vunpack.c.l.b16 %v7964
    %v9263 = vunpack.c.h.b16 %v7964
    %v9264 = vunpack.c.l.b16 %v7965
    %v9265 = vunpack.c.h.b16 %v7965
    %v9266 = vunpack.c.l.b16 %v7966
    %v9267 = vunpack.c.h.b16 %v7966
    %v9268 = vunpack.c.l.b16 %v7967
    %v9269 = vunpack.c.h.b16 %v7967
    %v9270 = vunpack.c.l.b16 %v7968
    %v9271 = vunpack.c.h.b16 %v7968
    %v9272 = vunpack.c.l.b16 %v7969
    %v9273 = vunpack.c.h.b16 %v7969
    %v9274 = vunpack.c.l.b16 %v7970
    %v9275 = vunpack.c.h.b16 %v7970
    %v9276 = vunpack.c.l.b16 %v7971
    %v9277 = vunpack.c.h.b16 %v7971
    %v9278 = vunpack.c.l.b16 %v7972
    %v9279 = vunpack.c.h.b16 %v7972
    %v9280 = vunpack.c.l.b16 %v7973
    %v9281 = vunpack.c.h.b16 %v7973
    %v9282 = vunpack.c.l.b16 %v7974
    %v9283 = vunpack.c.h.b16 %v7974
    %v9284 = vunpack.c.l.b16 %v7975
    %v9285 = vunpack.c.h.b16 %v7975
    %v9286 = vunpack.c.l.b16 %v7976
    %v9287 = vunpack.c.h.b16 %v7976
    %v9288 = vunpack.c.l.b16 %v7977
    %v9289 = vunpack.c.h.b16 %v7977
    %v9290 = vunpack.c.l.b16 %v7978
    %v9291 = vunpack.c.h.b16 %v7978
    %v9292 = vunpack.c.l.b16 %v7979
    %v9293 = vunpack.c.h.b16 %v7979
    %v9294 = vunpack.c.l.b16 %v7980
    %v9295 = vunpack.c.h.b16 %v7980
    %v9296 = vunpack.c.l.b16 %v7981
    %v9297 = vunpack.c.h.b16 %v7981
    %v9298 = vunpack.c.l.b16 %v7982
    %v9299 = vunpack.c.h.b16 %v7982
    %v9300 = vunpack.c.l.b16 %v7983
    %v9301 = vunpack.c.h.b16 %v7983
    %v9302 = vunpack.c.l.b16 %v7984
    %v9303 = vunpack.c.h.b16 %v7984
    %v9304 = vunpack.c.l.b16 %v7985
    %v9305 = vunpack.c.h.b16 %v7985
    %v9306 = vunpack.c.l.b16 %v7986
    %v9307 = vunpack.c.h.b16 %v7986
    %v9308 = vunpack.c.l.b16 %v7987
    %v9309 = vunpack.c.h.b16 %v7987
    %v9310 = vunpack.c.l.b16 %v7988
    %v9311 = vunpack.c.h.b16 %v7988
    %v9312 = vunpack.c.l.b16 %v7989
    %v9313 = vunpack.c.h.b16 %v7989
    %v9314 = vunpack.c.l.b16 %v7990
    %v9315 = vunpack.c.h.b16 %v7990
    %v9316 = vunpack.c.l.b16 %v7991
    %v9317 = vunpack.c.h.b16 %v7991
    %v9318 = vunpack.c.l.b16 %v7992
    %v9319 = vunpack.c.h.b16 %v7992
    %v9320 = vunpack.c.l.b16 %v7993
    %v9321 = vunpack.c.h.b16 %v7993
    %v9322 = vunpack.c.l.b16 %v7994
    %v9323 = vunpack.c.h.b16 %v7994
    %v9324 = vunpack.c.l.b16 %v7995
    %v9325 = vunpack.c.h.b16 %v7995
    %v9326 = vunpack.c.l.b16 %v7996
    %v9327 = vunpack.c.h.b16 %v7996
    %v9328 = vunpack.c.l.b16 %v7997
    %v9329 = vunpack.c.h.b16 %v7997
    %v9330 = vunpack.c.l.b16 %v7998
    %v9331 = vunpack.c.h.b16 %v7998
    %v9332 = vunpack.c.l.b16 %v7999
    %v9333 = vunpack.c.h.b16 %v7999
    %v9334 = vunpack.c.l.b16 %v8000
    %v9335 = vunpack.c.h.b16 %v8000
    %v9336 = vunpack.c.l.b16 %v8001
    %v9337 = vunpack.c.h.b16 %v8001
    %v9338 = vunpack.c.l.b16 %v8002
    %v9339 = vunpack.c.h.b16 %v8002
    %v9340 = vunpack.c.l.b16 %v8003
    %v9341 = vunpack.c.h.b16 %v8003
    %v9342 = vunpack.c.l.b16 %v8004
    %v9343 = vunpack.c.h.b16 %v8004
    %v9344 = vunpack.c.l.b16 %v8005
    %v9345 = vunpack.c.h.b16 %v8005
    %v9346 = vunpack.c.l.b16 %v8006
    %v9347 = vunpack.c.h.b16 %v8006
    %v9348 = vunpack.c.l.b16 %v8007
    %v9349 = vunpack.c.h.b16 %v8007
    %v9350 = vunpack.c.l.b16 %v8008
    %v9351 = vunpack.c.h.b16 %v8008
    %v9352 = vunpack.c.l.b16 %v8009
    %v9353 = vunpack.c.h.b16 %v8009
    %v9354 = vunpack.c.l.b16 %v8010
    %v9355 = vunpack.c.h.b16 %v8010
    %v9356 = vunpack.c.l.b16 %v8011
    %v9357 = vunpack.c.h.b16 %v8011
    %v9358 = vunpack.c.l.b16 %v8012
    %v9359 = vunpack.c.h.b16 %v8012
    %v9360 = vunpack.c.l.b16 %v8013
    %v9361 = vunpack.c.h.b16 %v8013
    %v9362 = vunpack.c.l.b16 %v8014
    %v9363 = vunpack.c.h.b16 %v8014
    %v9364 = vunpack.c.l.b16 %v8015
    %v9365 = vunpack.c.h.b16 %v8015
    %v9366 = vunpack.c.l.b16 %v8016
    %v9367 = vunpack.c.h.b16 %v8016
    %v9368 = vunpack.c.l.b16 %v8017
    %v9369 = vunpack.c.h.b16 %v8017
    %v9370 = vunpack.c.l.b16 %v8018
    %v9371 = vunpack.c.h.b16 %v8018
    %v9372 = vunpack.c.l.b16 %v8019
    %v9373 = vunpack.c.h.b16 %v8019
    %v9374 = vunpack.c.l.b16 %v8020
    %v9375 = vunpack.c.h.b16 %v8020
    %v9376 = vunpack.c.l.b16 %v8021
    %v9377 = vunpack.c.h.b16 %v8021
    %v9378 = vunpack.c.l.b16 %v8022
    %v9379 = vunpack.c.h.b16 %v8022
    %v9380 = vunpack.c.l.b16 %v8023
    %v9381 = vunpack.c.h.b16 %v8023
    %v9382 = vunpack.c.l.b16 %v8024
    %v9383 = vunpack.c.h.b16 %v8024
    %v9384 = vunpack.c.l.b16 %v8025
    %v9385 = vunpack.c.h.b16 %v8025
    %v9386 = vunpack.c.l.b16 %v8026
    %v9387 = vunpack.c.h.b16 %v8026
    %v9388 = vunpack.c.l.b16 %v8027
    %v9389 = vunpack.c.h.b16 %v8027
    %v9390 = vunpack.c.l.b16 %v8028
    %v9391 = vunpack.c.h.b16 %v8028
    %v9392 = vunpack.c.l.b16 %v8029
    %v9393 = vunpack.c.h.b16 %v8029
    %v9394 = vunpack.c.l.b16 %v8030
    %v9395 = vunpack.c.h.b16 %v8030
    %v9396 = vunpack.c.l.b16 %v8031
    %v9397 = vunpack.c.h.b16 %v8031
    %v9398 = vunpack.c.l.b16 %v8032
    %v9399 = vunpack.c.h.b16 %v8032
    %v9400 = vunpack.c.l.b16 %v8033
    %v9401 = vunpack.c.h.b16 %v8033
    %v9402 = vunpack.c.l.b16 %v8034
    %v9403 = vunpack.c.h.b16 %v8034
    %v9404 = vunpack.c.l.b16 %v8035
    %v9405 = vunpack.c.h.b16 %v8035
    %v9406 = vunpack.c.l.b16 %v8036
    %v9407 = vunpack.c.h.b16 %v8036
    %v9408 = vunpack.c.l.b16 %v8037
    %v9409 = vunpack.c.h.b16 %v8037
    %v9410 = vunpack.c.l.b16 %v8038
    %v9411 = vunpack.c.h.b16 %v8038
    %v9412 = vunpack.c.l.b16 %v8039
    %v9413 = vunpack.c.h.b16 %v8039
    %v9414 = vunpack.c.l.b16 %v8040
    %v9415 = vunpack.c.h.b16 %v8040
    %v9416 = vunpack.c.l.b16 %v8041
    %v9417 = vunpack.c.h.b16 %v8041
    %v9418 = vunpack.c.l.b16 %v8042
    %v9419 = vunpack.c.h.b16 %v8042
    %v9420 = vunpack.c.l.b16 %v8043
    %v9421 = vunpack.c.h.b16 %v8043
    %v9422 = vunpack.c.l.b16 %v8044
    %v9423 = vunpack.c.h.b16 %v8044
    %v9424 = vunpack.c.l.b16 %v8045
    %v9425 = vunpack.c.h.b16 %v8045
    %v9426 = vunpack.c.l.b16 %v8046
    %v9427 = vunpack.c.h.b16 %v8046
    %v9428 = vunpack.c.l.b16 %v8047
    %v9429 = vunpack.c.h.b16 %v8047
    %v9430 = vunpack.c.l.b16 %v8048
    %v9431 = vunpack.c.h.b16 %v8048
    %v9432 = vunpack.c.l.b16 %v8049
    %v9433 = vunpack.c.h.b16 %v8049
    %v9434 = vunpack.c.l.b16 %v8050
    %v9435 = vunpack.c.h.b16 %v8050
    %v9436 = vunpack.c.l.b16 %v8051
    %v9437 = vunpack.c.h.b16 %v8051
    %v9438 = vunpack.c.l.b16 %v8052
    %v9439 = vunpack.c.h.b16 %v8052
    %v9440 = vunpack.c.l.b16 %v8053
    %v9441 = vunpack.c.h.b16 %v8053
    %v9442 = vunpack.c.l.b16 %v8054
    %v9443 = vunpack.c.h.b16 %v8054
    %v9444 = vunpack.c.l.b16 %v8055
    %v9445 = vunpack.c.h.b16 %v8055
    %v9446 = vunpack.c.l.b16 %v8056
    %v9447 = vunpack.c.h.b16 %v8056
    %v9448 = vunpack.c.l.b16 %v8057
    %v9449 = vunpack.c.h.b16 %v8057
    %v9450 = vunpack.c.l.b16 %v8058
    %v9451 = vunpack.c.h.b16 %v8058
    %v9452 = vunpack.c.l.b16 %v8059
    %v9453 = vunpack.c.h.b16 %v8059
    %v9454 = vunpack.c.l.b16 %v8060
    %v9455 = vunpack.c.h.b16 %v8060
    %v9456 = vunpack.c.l.b16 %v8061
    %v9457 = vunpack.c.h.b16 %v8061
    %v9458 = vunpack.c.l.b16 %v8062
    %v9459 = vunpack.c.h.b16 %v8062
    %v9460 = vunpack.c.l.b16 %v8063
    %v9461 = vunpack.c.h.b16 %v8063
    %v9462 = vunpack.c.l.b16 %v8064
    %v9463 = vunpack.c.h.b16 %v8064
    %v9464 = vunpack.c.l.b16 %v8065
    %v9465 = vunpack.c.h.b16 %v8065
    %v9466 = vunpack.c.l.b16 %v8066
    %v9467 = vunpack.c.h.b16 %v8066
    %v9468 = vunpack.c.l.b16 %v8067
    %v9469 = vunpack.c.h.b16 %v8067
    %v9470 = vunpack.c.l.b16 %v8068
    %v9471 = vunpack.c.h.b16 %v8068
    %v9472 = vunpack.c.l.b16 %v8069
    %v9473 = vunpack.c.h.b16 %v8069
    %v9474 = vunpack.c.l.b16 %v8070
    %v9475 = vunpack.c.h.b16 %v8070
    %v9476 = vunpack.c.l.b16 %v8071
    %v9477 = vunpack.c.h.b16 %v8071
    %v9478 = vunpack.c.l.b16 %v8072
    %v9479 = vunpack.c.h.b16 %v8072
    %v9480 = vunpack.c.l.b16 %v8073
    %v9481 = vunpack.c.h.b16 %v8073
    %v9482 = vunpack.c.l.b16 %v8074
    %v9483 = vunpack.c.h.b16 %v8074
    %v9484 = vunpack.c.l.b16 %v8075
    %v9485 = vunpack.c.h.b16 %v8075
    %v9486 = vunpack.c.l.b16 %v8076
    %v9487 = vunpack.c.h.b16 %v8076
    %v9488 = vunpack.c.l.b16 %v8077
    %v9489 = vunpack.c.h.b16 %v8077
    %v9490 = vunpack.c.l.b16 %v8078
    %v9491 = vunpack.c.h.b16 %v8078
    %v9492 = vunpack.c.l.b16 %v8079
    %v9493 = vunpack.c.h.b16 %v8079
    %v9494 = vunpack.c.l.b16 %v8080
    %v9495 = vunpack.c.h.b16 %v8080
    %v9496 = vunpack.c.l.b16 %v8081
    %v9497 = vunpack.c.h.b16 %v8081
    %v9498 = vunpack.c.l.b16 %v8082
    %v9499 = vunpack.c.h.b16 %v8082
    %v9500 = vunpack.c.l.b16 %v8083
    %v9501 = vunpack.c.h.b16 %v8083
    %v9502 = vunpack.c.l.b16 %v8084
    %v9503 = vunpack.c.h.b16 %v8084
    %v9504 = vunpack.c.l.b16 %v8085
    %v9505 = vunpack.c.h.b16 %v8085
    %v9506 = vunpack.c.l.b16 %v8086
    %v9507 = vunpack.c.h.b16 %v8086
    %v9508 = vunpack.c.l.b16 %v8087
    %v9509 = vunpack.c.h.b16 %v8087
    %v9510 = vunpack.c.l.b16 %v8088
    %v9511 = vunpack.c.h.b16 %v8088
    %v9512 = vunpack.c.l.b16 %v8089
    %v9513 = vunpack.c.h.b16 %v8089
    %v9514 = vunpack.c.l.b16 %v8090
    %v9515 = vunpack.c.h.b16 %v8090
    %v9516 = vunpack.c.l.b16 %v8091
    %v9517 = vunpack.c.h.b16 %v8091
    %v9518 = vunpack.c.l.b16 %v8092
    %v9519 = vunpack.c.h.b16 %v8092
    %v9520 = vunpack.c.l.b16 %v8093
    %v9521 = vunpack.c.h.b16 %v8093
    %v9522 = vunpack.c.l.b16 %v8094
    %v9523 = vunpack.c.h.b16 %v8094
    %v9524 = vunpack.c.l.b16 %v8095
    %v9525 = vunpack.c.h.b16 %v8095
    %v9526 = vunpack.c.l.b16 %v8096
    %v9527 = vunpack.c.h.b16 %v8096
    %v9528 = vunpack.c.l.b16 %v8097
    %v9529 = vunpack.c.h.b16 %v8097
    %v9530 = vunpack.c.l.b16 %v8098
    %v9531 = vunpack.c.h.b16 %v8098
    %v9532 = vunpack.c.l.b16 %v8099
    %v9533 = vunpack.c.h.b16 %v8099
    %v9534 = vunpack.c.l.b16 %v8100
    %v9535 = vunpack.c.h.b16 %v8100
    %v9536 = vunpack.c.l.b16 %v8101
    %v9537 = vunpack.c.h.b16 %v8101
    %v9538 = vunpack.c.l.b16 %v8102
    %v9539 = vunpack.c.h.b16 %v8102
    %v9540 = vunpack.c.l.b16 %v8103
    %v9541 = vunpack.c.h.b16 %v8103
    %v9542 = vunpack.c.l.b16 %v8104
    %v9543 = vunpack.c.h.b16 %v8104
    %v9544 = vunpack.c.l.b16 %v8105
    %v9545 = vunpack.c.h.b16 %v8105
    %v9546 = vunpack.c.l.b16 %v8106
    %v9547 = vunpack.c.h.b16 %v8106
    %v9548 = vunpack.c.l.b16 %v8107
    %v9549 = vunpack.c.h.b16 %v8107
    %v9550 = vunpack.c.l.b16 %v8108
    %v9551 = vunpack.c.h.b16 %v8108
    %v9552 = vunpack.c.l.b16 %v8109
    %v9553 = vunpack.c.h.b16 %v8109
    %v9554 = vunpack.c.l.b16 %v8110
    %v9555 = vunpack.c.h.b16 %v8110
    %v9556 = vunpack.c.l.b16 %v8111
    %v9557 = vunpack.c.h.b16 %v8111
    %v9558 = vunpack.c.l.b16 %v8112
    %v9559 = vunpack.c.h.b16 %v8112
    %v9560 = vunpack.c.l.b16 %v8113
    %v9561 = vunpack.c.h.b16 %v8113
    %v9562 = vunpack.c.l.b16 %v8114
    %v9563 = vunpack.c.h.b16 %v8114
    %v9564 = vunpack.c.l.b16 %v8115
    %v9565 = vunpack.c.h.b16 %v8115
    %v9566 = vunpack.c.l.b16 %v8116
    %v9567 = vunpack.c.h.b16 %v8116
    %v9568 = vunpack.c.l.b16 %v8117
    %v9569 = vunpack.c.h.b16 %v8117
    %v9570 = vunpack.c.l.b16 %v8118
    %v9571 = vunpack.c.h.b16 %v8118
    %v9572 = vunpack.c.l.b16 %v8119
    %v9573 = vunpack.c.h.b16 %v8119
    %v9574 = vunpack.c.l.b16 %v8120
    %v9575 = vunpack.c.h.b16 %v8120
    %v9576 = vunpack.c.l.b16 %v8121
    %v9577 = vunpack.c.h.b16 %v8121
    %v9578 = vunpack.c.l.b16 %v8122
    %v9579 = vunpack.c.h.b16 %v8122
    %v9580 = vunpack.c.l.b16 %v8123
    %v9581 = vunpack.c.h.b16 %v8123
    %v9582 = vunpack.c.l.b16 %v8124
    %v9583 = vunpack.c.h.b16 %v8124
    %v9584 = vunpack.c.l.b16 %v8125
    %v9585 = vunpack.c.h.b16 %v8125
    %v9586 = vunpack.c.l.b16 %v8126
    %v9587 = vunpack.c.h.b16 %v8126
    %v9588 = vunpack.c.l.b16 %v8127
    %v9589 = vunpack.c.h.b16 %v8127
    %v9590 = vunpack.c.l.b16 %v8128
    %v9591 = vunpack.c.h.b16 %v8128
    %v9592 = vunpack.c.l.b16 %v8129
    %v9593 = vunpack.c.h.b16 %v8129
    %v9594 = vunpack.c.l.b16 %v8130
    %v9595 = vunpack.c.h.b16 %v8130
    %v9596 = vunpack.c.l.b16 %v8131
    %v9597 = vunpack.c.h.b16 %v8131
    %v9598 = vunpack.c.l.b16 %v8132
    %v9599 = vunpack.c.h.b16 %v8132
    %v9600 = vunpack.c.l.b16 %v8133
    %v9601 = vunpack.c.h.b16 %v8133
    %v9602 = vunpack.c.l.b16 %v8134
    %v9603 = vunpack.c.h.b16 %v8134
    %v9604 = vunpack.c.l.b16 %v8135
    %v9605 = vunpack.c.h.b16 %v8135
    %v9606 = vunpack.c.l.b16 %v8136
    %v9607 = vunpack.c.h.b16 %v8136
    %v9608 = vunpack.c.l.b16 %v8137
    %v9609 = vunpack.c.h.b16 %v8137
    %v9610 = vunpack.c.l.b16 %v8138
    %v9611 = vunpack.c.h.b16 %v8138
    %v9612 = vunpack.c.l.b16 %v8139
    %v9613 = vunpack.c.h.b16 %v8139
    %v9614 = vunpack.c.l.b16 %v8140
    %v9615 = vunpack.c.h.b16 %v8140
    %v9616 = vunpack.c.l.b16 %v8141
    %v9617 = vunpack.c.h.b16 %v8141
    %v9618 = vunpack.c.l.b16 %v8142
    %v9619 = vunpack.c.h.b16 %v8142
    %v9620 = vunpack.c.l.b16 %v8143
    %v9621 = vunpack.c.h.b16 %v8143
    %v9622 = vunpack.c.l.b16 %v8144
    %v9623 = vunpack.c.h.b16 %v8144
    %v9624 = vunpack.c.l.b16 %v8145
    %v9625 = vunpack.c.h.b16 %v8145
    %v9626 = vunpack.c.l.b16 %v8146
    %v9627 = vunpack.c.h.b16 %v8146
    %v9628 = vunpack.c.l.b16 %v8147
    %v9629 = vunpack.c.h.b16 %v8147
    %v9630 = vunpack.c.l.b16 %v8148
    %v9631 = vunpack.c.h.b16 %v8148
    %v9632 = vunpack.c.l.b16 %v8149
    %v9633 = vunpack.c.h.b16 %v8149
    %v9634 = vunpack.c.l.b16 %v8150
    %v9635 = vunpack.c.h.b16 %v8150
    %v9636 = vunpack.c.l.b16 %v8151
    %v9637 = vunpack.c.h.b16 %v8151
    %v9638 = vunpack.c.l.b16 %v8152
    %v9639 = vunpack.c.h.b16 %v8152
    %v9640 = vunpack.c.l.b16 %v8153
    %v9641 = vunpack.c.h.b16 %v8153
    %v9642 = vunpack.c.l.b16 %v8154
    %v9643 = vunpack.c.h.b16 %v8154
    %v9644 = vunpack.c.l.b16 %v8155
    %v9645 = vunpack.c.h.b16 %v8155
    %v9646 = vunpack.c.l.b16 %v8156
    %v9647 = vunpack.c.h.b16 %v8156
    %v9648 = vunpack.c.l.b16 %v8157
    %v9649 = vunpack.c.h.b16 %v8157
    %v9650 = vunpack.c.l.b16 %v8158
    %v9651 = vunpack.c.h.b16 %v8158
    %v9652 = vunpack.c.l.b16 %v8159
    %v9653 = vunpack.c.h.b16 %v8159
    %v9654 = vunpack.c.l.b16 %v8160
    %v9655 = vunpack.c.h.b16 %v8160
    %v9656 = vunpack.c.l.b16 %v8161
    %v9657 = vunpack.c.h.b16 %v8161
    %v9658 = vunpack.c.l.b16 %v8162
    %v9659 = vunpack.c.h.b16 %v8162
    %v9660 = vunpack.c.l.b16 %v8163
    %v9661 = vunpack.c.h.b16 %v8163
    %v9662 = vunpack.c.l.b16 %v8164
    %v9663 = vunpack.c.h.b16 %v8164
    %v9664 = vunpack.c.l.b16 %v8165
    %v9665 = vunpack.c.h.b16 %v8165
    %v9666 = vunpack.c.l.b16 %v8166
    %v9667 = vunpack.c.h.b16 %v8166
    %v9668 = vunpack.c.l.b16 %v8167
    %v9669 = vunpack.c.h.b16 %v8167
    %v9670 = vunpack.c.l.b16 %v8168
    %v9671 = vunpack.c.h.b16 %v8168
    %v9672 = vunpack.c.l.b16 %v8169
    %v9673 = vunpack.c.h.b16 %v8169
    %v9674 = vunpack.c.l.b16 %v8170
    %v9675 = vunpack.c.h.b16 %v8170
    %v9676 = vunpack.c.l.b16 %v8171
    %v9677 = vunpack.c.h.b16 %v8171
    %v9678 = vunpack.c.l.b16 %v8172
    %v9679 = vunpack.c.h.b16 %v8172
    %v9680 = vunpack.c.l.b16 %v8173
    %v9681 = vunpack.c.h.b16 %v8173
    %v9682 = vunpack.c.l.b16 %v8174
    %v9683 = vunpack.c.h.b16 %v8174
    %v9684 = vunpack.c.l.b16 %v8175
    %v9685 = vunpack.c.h.b16 %v8175
    %v9686 = vunpack.c.l.b16 %v8176
    %v9687 = vunpack.c.h.b16 %v8176
    %v9688 = vunpack.c.l.b16 %v8177
    %v9689 = vunpack.c.h.b16 %v8177
    %v9690 = vunpack.c.l.b16 %v8178
    %v9691 = vunpack.c.h.b16 %v8178
    %v9692 = vunpack.c.l.b16 %v8179
    %v9693 = vunpack.c.h.b16 %v8179
    %v9694 = vunpack.c.l.b16 %v8180
    %v9695 = vunpack.c.h.b16 %v8180
    %v9696 = vunpack.c.l.b16 %v8181
    %v9697 = vunpack.c.h.b16 %v8181
    %v9698 = vunpack.c.l.b16 %v8182
    %v9699 = vunpack.c.h.b16 %v8182
    %v9700 = vunpack.c.l.b16 %v8183
    %v9701 = vunpack.c.h.b16 %v8183
    %v9702 = vunpack.c.l.b16 %v8184
    %v9703 = vunpack.c.h.b16 %v8184
    %v9704 = vunpack.c.l.b16 %v8185
    %v9705 = vunpack.c.h.b16 %v8185
    %v9706 = vunpack.c.l.b16 %v8186
    %v9707 = vunpack.c.h.b16 %v8186
    %v9708 = vunpack.c.l.b16 %v8187
    %v9709 = vunpack.c.h.b16 %v8187
    %v9710 = vunpack.c.l.b16 %v8188
    %v9711 = vunpack.c.h.b16 %v8188
    %v9712 = vunpack.c.l.b16 %v8189
    %v9713 = vunpack.c.h.b16 %v8189
    %v9714 = vunpack.c.l.b16 %v8190
    %v9715 = vunpack.c.h.b16 %v8190
    %v9716 = vunpack.c.l.b16 %v8191
    %v9717 = vunpack.c.h.b16 %v8191
    %v9718 = vunpack.c.l.b16 %v8192
    %v9719 = vunpack.c.h.b16 %v8192
    %v9720 = vunpack.c.l.b16 %v8193
    %v9721 = vunpack.c.h.b16 %v8193
    %v9722 = vunpack.c.l.b16 %v8194
    %v9723 = vunpack.c.h.b16 %v8194
    %v9724 = vunpack.c.l.b16 %v8195
    %v9725 = vunpack.c.h.b16 %v8195
    %v9726 = vunpack.c.l.b16 %v8196
    %v9727 = vunpack.c.h.b16 %v8196
    %v9728 = vunpack.c.l.b16 %v8197
    %v9729 = vunpack.c.h.b16 %v8197
    %v9730 = vunpack.c.l.b16 %v8198
    %v9731 = vunpack.c.h.b16 %v8198
    %v9732 = vunpack.c.l.b16 %v8199
    %v9733 = vunpack.c.h.b16 %v8199
    %v9734 = vunpack.c.l.b16 %v8200
    %v9735 = vunpack.c.h.b16 %v8200
    %v9736 = vunpack.c.l.b16 %v8201
    %v9737 = vunpack.c.h.b16 %v8201
    %v9738 = vunpack.c.l.b16 %v8202
    %v9739 = vunpack.c.h.b16 %v8202
    %v9740 = vunpack.c.l.b16 %v8203
    %v9741 = vunpack.c.h.b16 %v8203
    %v9742 = vunpack.c.l.b16 %v8204
    %v9743 = vunpack.c.h.b16 %v8204
    %v9744 = vunpack.c.l.b16 %v8205
    %v9745 = vunpack.c.h.b16 %v8205
    %v9746 = vunpack.c.l.b16 %v8206
    %v9747 = vunpack.c.h.b16 %v8206
    %v9748 = vunpack.c.l.b16 %v8207
    %v9749 = vunpack.c.h.b16 %v8207
    %v9750 = vunpack.c.l.b16 %v8208
    %v9751 = vunpack.c.h.b16 %v8208
    %v9752 = vunpack.c.l.b16 %v8209
    %v9753 = vunpack.c.h.b16 %v8209
    %v9754 = vunpack.c.l.b16 %v8210
    %v9755 = vunpack.c.h.b16 %v8210
    %v9756 = vunpack.c.l.b16 %v8211
    %v9757 = vunpack.c.h.b16 %v8211
    %v9758 = vunpack.c.l.b16 %v8212
    %v9759 = vunpack.c.h.b16 %v8212
    %v9760 = vunpack.c.l.b16 %v8213
    %v9761 = vunpack.c.h.b16 %v8213
    %v9762 = vunpack.c.l.b16 %v8214
    %v9763 = vunpack.c.h.b16 %v8214
    %v9764 = vunpack.c.l.b16 %v8215
    %v9765 = vunpack.c.h.b16 %v8215
    %v9766 = vunpack.c.l.b16 %v8216
    %v9767 = vunpack.c.h.b16 %v8216
    %v9768 = vunpack.c.l.b16 %v8217
    %v9769 = vunpack.c.h.b16 %v8217
    %v9770 = vunpack.c.l.b16 %v8218
    %v9771 = vunpack.c.h.b16 %v8218
    %v9772 = vunpack.c.l.b16 %v8219
    %v9773 = vunpack.c.h.b16 %v8219
    %v9774 = vunpack.c.l.b16 %v8220
    %v9775 = vunpack.c.h.b16 %v8220
    %v9776 = vunpack.c.l.b16 %v8221
    %v9777 = vunpack.c.h.b16 %v8221
    %v9778 = vunpack.c.l.b16 %v8222
    %v9779 = vunpack.c.h.b16 %v8222
    %v9780 = vunpack.c.l.b16 %v8223
    %v9781 = vunpack.c.h.b16 %v8223
    %v9782 = vunpack.c.l.b16 %v8224
    %v9783 = vunpack.c.h.b16 %v8224
    %v9784 = vunpack.c.l.b16 %v8225
    %v9785 = vunpack.c.h.b16 %v8225
    %v9786 = vunpack.c.l.b16 %v8226
    %v9787 = vunpack.c.h.b16 %v8226
    %v9788 = vunpack.c.l.b16 %v8227
    %v9789 = vunpack.c.h.b16 %v8227
    %v9790 = vunpack.c.l.b16 %v8228
    %v9791 = vunpack.c.h.b16 %v8228
    %v9792 = vunpack.c.l.b16 %v8229
    %v9793 = vunpack.c.h.b16 %v8229
    %v9794 = vunpack.c.l.b16 %v8230
    %v9795 = vunpack.c.h.b16 %v8230
    %v9796 = vunpack.c.l.b16 %v8231
    %v9797 = vunpack.c.h.b16 %v8231
    %v9798 = vunpack.c.l.b16 %v8232
    %v9799 = vunpack.c.h.b16 %v8232
    %v9800 = vunpack.c.l.b16 %v8233
    %v9801 = vunpack.c.h.b16 %v8233
    %v9802 = vunpack.c.l.b16 %v8234
    %v9803 = vunpack.c.h.b16 %v8234
    %v9804 = vunpack.c.l.b16 %v8235
    %v9805 = vunpack.c.h.b16 %v8235
    %v9806 = vunpack.c.l.b16 %v8236
    %v9807 = vunpack.c.h.b16 %v8236
    %v9808 = vunpack.c.l.b16 %v8237
    %v9809 = vunpack.c.h.b16 %v8237
    %v9810 = vunpack.c.l.b16 %v8238
    %v9811 = vunpack.c.h.b16 %v8238
    %v9812 = vunpack.c.l.b16 %v8239
    %v9813 = vunpack.c.h.b16 %v8239
    %v9814 = vunpack.c.l.b16 %v8240
    %v9815 = vunpack.c.h.b16 %v8240
    %v9816 = vunpack.c.l.b16 %v8241
    %v9817 = vunpack.c.h.b16 %v8241
    %v9818 = vunpack.c.l.b16 %v8242
    %v9819 = vunpack.c.h.b16 %v8242
    %v9820 = vunpack.c.l.b16 %v8243
    %v9821 = vunpack.c.h.b16 %v8243
    %v9822 = vpack.c.b16 %v8806, %v8798
    %v9823 = vpack.c.b16 %v8807, %v8799
    %v9824 = vpack.c.b16 %v8808, %v8800
    %v9825 = vpack.c.b16 %v8809, %v8801
    %v9826 = vpack.c.b16 %v8810, %v8802
    %v9827 = vpack.c.b16 %v8811, %v8803
    %v9828 = vpack.c.b16 %v8812, %v8804
    %v9829 = vpack.c.b16 %v8813, %v8805
    %v9830 = vpack.c.b16 %v8822, %v8814
    %v9831 = vpack.c.b16 %v8823, %v8815
    %v9832 = vpack.c.b16 %v8824, %v8816
    %v9833 = vpack.c.b16 %v8825, %v8817
    %v9834 = vpack.c.b16 %v8826, %v8818
    %v9835 = vpack.c.b16 %v8827, %v8819
    %v9836 = vpack.c.b16 %v8828, %v8820
    %v9837 = vpack.c.b16 %v8829, %v8821
    %v9838 = vpack.c.b16 %v8838, %v8830
    %v9839 = vpack.c.b16 %v8839, %v8831
    %v9840 = vpack.c.b16 %v8840, %v8832
    %v9841 = vpack.c.b16 %v8841, %v8833
    %v9842 = vpack.c.b16 %v8842, %v8834
    %v9843 = vpack.c.b16 %v8843, %v8835
    %v9844 = vpack.c.b16 %v8844, %v8836
    %v9845 = vpack.c.b16 %v8845, %v8837
    %v9846 = vpack.c.b16 %v8854, %v8846
    %v9847 = vpack.c.b16 %v8855, %v8847
    %v9848 = vpack.c.b16 %v8856, %v8848
    %v9849 = vpack.c.b16 %v8857, %v8849
    %v9850 = vpack.c.b16 %v8858, %v8850
    %v9851 = vpack.c.b16 %v8859, %v8851
    %v9852 = vpack.c.b16 %v8860, %v8852
    %v9853 = vpack.c.b16 %v8861, %v8853
    %v9854 = vpack.c.b16 %v8870, %v8862
    %v9855 = vpack.c.b16 %v8871, %v8863
    %v9856 = vpack.c.b16 %v8872, %v8864
    %v9857 = vpack.c.b16 %v8873, %v8865
    %v9858 = vpack.c.b16 %v8874, %v8866
    %v9859 = vpack.c.b16 %v8875, %v8867
    %v9860 = vpack.c.b16 %v8876, %v8868
    %v9861 = vpack.c.b16 %v8877, %v8869
    %v9862 = vpack.c.b16 %v8886, %v8878
    %v9863 = vpack.c.b16 %v8887, %v8879
    %v9864 = vpack.c.b16 %v8888, %v8880
    %v9865 = vpack.c.b16 %v8889, %v8881
    %v9866 = vpack.c.b16 %v8890, %v8882
    %v9867 = vpack.c.b16 %v8891, %v8883
    %v9868 = vpack.c.b16 %v8892, %v8884
    %v9869 = vpack.c.b16 %v8893, %v8885
    %v9870 = vpack.c.b16 %v8902, %v8894
    %v9871 = vpack.c.b16 %v8903, %v8895
    %v9872 = vpack.c.b16 %v8904, %v8896
    %v9873 = vpack.c.b16 %v8905, %v8897
    %v9874 = vpack.c.b16 %v8906, %v8898
    %v9875 = vpack.c.b16 %v8907, %v8899
    %v9876 = vpack.c.b16 %v8908, %v8900
    %v9877 = vpack.c.b16 %v8909, %v8901
    %v9878 = vpack.c.b16 %v8918, %v8910
    %v9879 = vpack.c.b16 %v8919, %v8911
    %v9880 = vpack.c.b16 %v8920, %v8912
    %v9881 = vpack.c.b16 %v8921, %v8913
    %v9882 = vpack.c.b16 %v8922, %v8914
    %v9883 = vpack.c.b16 %v8923, %v8915
    %v9884 = vpack.c.b16 %v8924, %v8916
    %v9885 = vpack.c.b16 %v8925, %v8917
    %v9886 = vpack.c.b16 %v8934, %v8926
    %v9887 = vpack.c.b16 %v8935, %v8927
    %v9888 = vpack.c.b16 %v8936, %v8928
    %v9889 = vpack.c.b16 %v8937, %v8929
    %v9890 = vpack.c.b16 %v8938, %v8930
    %v9891 = vpack.c.b16 %v8939, %v8931
    %v9892 = vpack.c.b16 %v8940, %v8932
    %v9893 = vpack.c.b16 %v8941, %v8933
    %v9894 = vpack.c.b16 %v8950, %v8942
    %v9895 = vpack.c.b16 %v8951, %v8943
    %v9896 = vpack.c.b16 %v8952, %v8944
    %v9897 = vpack.c.b16 %v8953, %v8945
    %v9898 = vpack.c.b16 %v8954, %v8946
    %v9899 = vpack.c.b16 %v8955, %v8947
    %v9900 = vpack.c.b16 %v8956, %v8948
    %v9901 = vpack.c.b16 %v8957, %v8949
    %v9902 = vpack.c.b16 %v8966, %v8958
    %v9903 = vpack.c.b16 %v8967, %v8959
    %v9904 = vpack.c.b16 %v8968, %v8960
    %v9905 = vpack.c.b16 %v8969, %v8961
    %v9906 = vpack.c.b16 %v8970, %v8962
    %v9907 = vpack.c.b16 %v8971, %v8963
    %v9908 = vpack.c.b16 %v8972, %v8964
    %v9909 = vpack.c.b16 %v8973, %v8965
    %v9910 = vpack.c.b16 %v8982, %v8974
    %v9911 = vpack.c.b16 %v8983, %v8975
    %v9912 = vpack.c.b16 %v8984, %v8976
    %v9913 = vpack.c.b16 %v8985, %v8977
    %v9914 = vpack.c.b16 %v8986, %v8978
    %v9915 = vpack.c.b16 %v8987, %v8979
    %v9916 = vpack.c.b16 %v8988, %v8980
    %v9917 = vpack.c.b16 %v8989, %v8981
    %v9918 = vpack.c.b16 %v8998, %v8990
    %v9919 = vpack.c.b16 %v8999, %v8991
    %v9920 = vpack.c.b16 %v9000, %v8992
    %v9921 = vpack.c.b16 %v9001, %v8993
    %v9922 = vpack.c.b16 %v9002, %v8994
    %v9923 = vpack.c.b16 %v9003, %v8995
    %v9924 = vpack.c.b16 %v9004, %v8996
    %v9925 = vpack.c.b16 %v9005, %v8997
    %v9926 = vpack.c.b16 %v9014, %v9006
    %v9927 = vpack.c.b16 %v9015, %v9007
    %v9928 = vpack.c.b16 %v9016, %v9008
    %v9929 = vpack.c.b16 %v9017, %v9009
    %v9930 = vpack.c.b16 %v9018, %v9010
    %v9931 = vpack.c.b16 %v9019, %v9011
    %v9932 = vpack.c.b16 %v9020, %v9012
    %v9933 = vpack.c.b16 %v9021, %v9013
    %v9934 = vpack.c.b16 %v9030, %v9022
    %v9935 = vpack.c.b16 %v9031, %v9023
    %v9936 = vpack.c.b16 %v9032, %v9024
    %v9937 = vpack.c.b16 %v9033, %v9025
    %v9938 = vpack.c.b16 %v9034, %v9026
    %v9939 = vpack.c.b16 %v9035, %v9027
    %v9940 = vpack.c.b16 %v9036, %v9028
    %v9941 = vpack.c.b16 %v9037, %v9029
    %v9942 = vpack.c.b16 %v9046, %v9038
    %v9943 = vpack.c.b16 %v9047, %v9039
    %v9944 = vpack.c.b16 %v9048, %v9040
    %v9945 = vpack.c.b16 %v9049, %v9041
    %v9946 = vpack.c.b16 %v9050, %v9042
    %v9947 = vpack.c.b16 %v9051, %v9043
    %v9948 = vpack.c.b16 %v9052, %v9044
    %v9949 = vpack.c.b16 %v9053, %v9045
    %v9950 = vpack.c.b16 %v9062, %v9054
    %v9951 = vpack.c.b16 %v9063, %v9055
    %v9952 = vpack.c.b16 %v9064, %v9056
    %v9953 = vpack.c.b16 %v9065, %v9057
    %v9954 = vpack.c.b16 %v9066, %v9058
    %v9955 = vpack.c.b16 %v9067, %v9059
    %v9956 = vpack.c.b16 %v9068, %v9060
    %v9957 = vpack.c.b16 %v9069, %v9061
    %v9958 = vpack.c.b16 %v9078, %v9070
    %v9959 = vpack.c.b16 %v9079, %v9071
    %v9960 = vpack.c.b16 %v9080, %v9072
    %v9961 = vpack.c.b16 %v9081, %v9073
    %v9962 = vpack.c.b16 %v9082, %v9074
    %v9963 = vpack.c.b16 %v9083, %v9075
    %v9964 = vpack.c.b16 %v9084, %v9076
    %v9965 = vpack.c.b16 %v9085, %v9077
    %v9966 = vpack.c.b16 %v9094, %v9086
    %v9967 = vpack.c.b16 %v9095, %v9087
    %v9968 = vpack.c.b16 %v9096, %v9088
    %v9969 = vpack.c.b16 %v9097, %v9089
    %v9970 = vpack.c.b16 %v9098, %v9090
    %v9971 = vpack.c.b16 %v9099, %v9091
    %v9972 = vpack.c.b16 %v9100, %v9092
    %v9973 = vpack.c.b16 %v9101, %v9093
    %v9974 = vpack.c.b16 %v9110, %v9102
    %v9975 = vpack.c.b16 %v9111, %v9103
    %v9976 = vpack.c.b16 %v9112, %v9104
    %v9977 = vpack.c.b16 %v9113, %v9105
    %v9978 = vpack.c.b16 %v9114, %v9106
    %v9979 = vpack.c.b16 %v9115, %v9107
    %v9980 = vpack.c.b16 %v9116, %v9108
    %v9981 = vpack.c.b16 %v9117, %v9109
    %v9982 = vpack.c.b16 %v9126, %v9118
    %v9983 = vpack.c.b16 %v9127, %v9119
    %v9984 = vpack.c.b16 %v9128, %v9120
    %v9985 = vpack.c.b16 %v9129, %v9121
    %v9986 = vpack.c.b16 %v9130, %v9122
    %v9987 = vpack.c.b16 %v9131, %v9123
    %v9988 = vpack.c.b16 %v9132, %v9124
    %v9989 = vpack.c.b16 %v9133, %v9125
    %v9990 = vpack.c.b16 %v9142, %v9134
    %v9991 = vpack.c.b16 %v9143, %v9135
    %v9992 = vpack.c.b16 %v9144, %v9136
    %v9993 = vpack.c.b16 %v9145, %v9137
    %v9994 = vpack.c.b16 %v9146, %v9138
    %v9995 = vpack.c.b16 %v9147, %v9139
    %v9996 = vpack.c.b16 %v9148, %v9140
    %v9997 = vpack.c.b16 %v9149, %v9141
    %v9998 = vpack.c.b16 %v9158, %v9150
    %v9999 = vpack.c.b16 %v9159, %v9151
    %v10000 = vpack.c.b16 %v9160, %v9152
    %v10001 = vpack.c.b16 %v9161, %v9153
    %v10002 = vpack.c.b16 %v9162, %v9154
    %v10003 = vpack.c.b16 %v9163, %v9155
    %v10004 = vpack.c.b16 %v9164, %v9156
    %v10005 = vpack.c.b16 %v9165, %v9157
    %v10006 = vpack.c.b16 %v9174, %v9166
    %v10007 = vpack.c.b16 %v9175, %v9167
    %v10008 = vpack.c.b16 %v9176, %v9168
    %v10009 = vpack.c.b16 %v9177, %v9169
    %v10010 = vpack.c.b16 %v9178, %v9170
    %v10011 = vpack.c.b16 %v9179, %v9171
    %v10012 = vpack.c.b16 %v9180, %v9172
    %v10013 = vpack.c.b16 %v9181, %v9173
    %v10014 = vpack.c.b16 %v9190, %v9182
    %v10015 = vpack.c.b16 %v9191, %v9183
    %v10016 = vpack.c.b16 %v9192, %v9184
    %v10017 = vpack.c.b16 %v9193, %v9185
    %v10018 = vpack.c.b16 %v9194, %v9186
    %v10019 = vpack.c.b16 %v9195, %v9187
    %v10020 = vpack.c.b16 %v9196, %v9188
    %v10021 = vpack.c.b16 %v9197, %v9189
    %v10022 = vpack.c.b16 %v9206, %v9198
    %v10023 = vpack.c.b16 %v9207, %v9199
    %v10024 = vpack.c.b16 %v9208, %v9200
    %v10025 = vpack.c.b16 %v9209, %v9201
    %v10026 = vpack.c.b16 %v9210, %v9202
    %v10027 = vpack.c.b16 %v9211, %v9203
    %v10028 = vpack.c.b16 %v9212, %v9204
    %v10029 = vpack.c.b16 %v9213, %v9205
    %v10030 = vpack.c.b16 %v9222, %v9214
    %v10031 = vpack.c.b16 %v9223, %v9215
    %v10032 = vpack.c.b16 %v9224, %v9216
    %v10033 = vpack.c.b16 %v9225, %v9217
    %v10034 = vpack.c.b16 %v9226, %v9218
    %v10035 = vpack.c.b16 %v9227, %v9219
    %v10036 = vpack.c.b16 %v9228, %v9220
    %v10037 = vpack.c.b16 %v9229, %v9221
    %v10038 = vpack.c.b16 %v9238, %v9230
    %v10039 = vpack.c.b16 %v9239, %v9231
    %v10040 = vpack.c.b16 %v9240, %v9232
    %v10041 = vpack.c.b16 %v9241, %v9233
    %v10042 = vpack.c.b16 %v9242, %v9234
    %v10043 = vpack.c.b16 %v9243, %v9235
    %v10044 = vpack.c.b16 %v9244, %v9236
    %v10045 = vpack.c.b16 %v9245, %v9237
    %v10046 = vpack.c.b16 %v9254, %v9246
    %v10047 = vpack.c.b16 %v9255, %v9247
    %v10048 = vpack.c.b16 %v9256, %v9248
    %v10049 = vpack.c.b16 %v9257, %v9249
    %v10050 = vpack.c.b16 %v9258, %v9250
    %v10051 = vpack.c.b16 %v9259, %v9251
    %v10052 = vpack.c.b16 %v9260, %v9252
    %v10053 = vpack.c.b16 %v9261, %v9253
    %v10054 = vpack.c.b16 %v9270, %v9262
    %v10055 = vpack.c.b16 %v9271, %v9263
    %v10056 = vpack.c.b16 %v9272, %v9264
    %v10057 = vpack.c.b16 %v9273, %v9265
    %v10058 = vpack.c.b16 %v9274, %v9266
    %v10059 = vpack.c.b16 %v9275, %v9267
    %v10060 = vpack.c.b16 %v9276, %v9268
    %v10061 = vpack.c.b16 %v9277, %v9269
    %v10062 = vpack.c.b16 %v9286, %v9278
    %v10063 = vpack.c.b16 %v9287, %v9279
    %v10064 = vpack.c.b16 %v9288, %v9280
    %v10065 = vpack.c.b16 %v9289, %v9281
    %v10066 = vpack.c.b16 %v9290, %v9282
    %v10067 = vpack.c.b16 %v9291, %v9283
    %v10068 = vpack.c.b16 %v9292, %v9284
    %v10069 = vpack.c.b16 %v9293, %v9285
    %v10070 = vpack.c.b16 %v9302, %v9294
    %v10071 = vpack.c.b16 %v9303, %v9295
    %v10072 = vpack.c.b16 %v9304, %v9296
    %v10073 = vpack.c.b16 %v9305, %v9297
    %v10074 = vpack.c.b16 %v9306, %v9298
    %v10075 = vpack.c.b16 %v9307, %v9299
    %v10076 = vpack.c.b16 %v9308, %v9300
    %v10077 = vpack.c.b16 %v9309, %v9301
    %v10078 = vpack.c.b16 %v9318, %v9310
    %v10079 = vpack.c.b16 %v9319, %v9311
    %v10080 = vpack.c.b16 %v9320, %v9312
    %v10081 = vpack.c.b16 %v9321, %v9313
    %v10082 = vpack.c.b16 %v9322, %v9314
    %v10083 = vpack.c.b16 %v9323, %v9315
    %v10084 = vpack.c.b16 %v9324, %v9316
    %v10085 = vpack.c.b16 %v9325, %v9317
    %v10086 = vpack.c.b16 %v9334, %v9326
    %v10087 = vpack.c.b16 %v9335, %v9327
    %v10088 = vpack.c.b16 %v9336, %v9328
    %v10089 = vpack.c.b16 %v9337, %v9329
    %v10090 = vpack.c.b16 %v9338, %v9330
    %v10091 = vpack.c.b16 %v9339, %v9331
    %v10092 = vpack.c.b16 %v9340, %v9332
    %v10093 = vpack.c.b16 %v9341, %v9333
    %v10094 = vpack.c.b16 %v9350, %v9342
    %v10095 = vpack.c.b16 %v9351, %v9343
    %v10096 = vpack.c.b16 %v9352, %v9344
    %v10097 = vpack.c.b16 %v9353, %v9345
    %v10098 = vpack.c.b16 %v9354, %v9346
    %v10099 = vpack.c.b16 %v9355, %v9347
    %v10100 = vpack.c.b16 %v9356, %v9348
    %v10101 = vpack.c.b16 %v9357, %v9349
    %v10102 = vpack.c.b16 %v9366, %v9358
    %v10103 = vpack.c.b16 %v9367, %v9359
    %v10104 = vpack.c.b16 %v9368, %v9360
    %v10105 = vpack.c.b16 %v9369, %v9361
    %v10106 = vpack.c.b16 %v9370, %v9362
    %v10107 = vpack.c.b16 %v9371, %v9363
    %v10108 = vpack.c.b16 %v9372, %v9364
    %v10109 = vpack.c.b16 %v9373, %v9365
    %v10110 = vpack.c.b16 %v9382, %v9374
    %v10111 = vpack.c.b16 %v9383, %v9375
    %v10112 = vpack.c.b16 %v9384, %v9376
    %v10113 = vpack.c.b16 %v9385, %v9377
    %v10114 = vpack.c.b16 %v9386, %v9378
    %v10115 = vpack.c.b16 %v9387, %v9379
    %v10116 = vpack.c.b16 %v9388, %v9380
    %v10117 = vpack.c.b16 %v9389, %v9381
    %v10118 = vpack.c.b16 %v9398, %v9390
    %v10119 = vpack.c.b16 %v9399, %v9391
    %v10120 = vpack.c.b16 %v9400, %v9392
    %v10121 = vpack.c.b16 %v9401, %v9393
    %v10122 = vpack.c.b16 %v9402, %v9394
    %v10123 = vpack.c.b16 %v9403, %v9395
    %v10124 = vpack.c.b16 %v9404, %v9396
    %v10125 = vpack.c.b16 %v9405, %v9397
    %v10126 = vpack.c.b16 %v9414, %v9406
    %v10127 = vpack.c.b16 %v9415, %v9407
    %v10128 = vpack.c.b16 %v9416, %v9408
    %v10129 = vpack.c.b16 %v9417, %v9409
    %v10130 = vpack.c.b16 %v9418, %v9410
    %v10131 = vpack.c.b16 %v9419, %v9411
    %v10132 = vpack.c.b16 %v9420, %v9412
    %v10133 = vpack.c.b16 %v9421, %v9413
    %v10134 = vpack.c.b16 %v9430, %v9422
    %v10135 = vpack.c.b16 %v9431, %v9423
    %v10136 = vpack.c.b16 %v9432, %v9424
    %v10137 = vpack.c.b16 %v9433, %v9425
    %v10138 = vpack.c.b16 %v9434, %v9426
    %v10139 = vpack.c.b16 %v9435, %v9427
    %v10140 = vpack.c.b16 %v9436, %v9428
    %v10141 = vpack.c.b16 %v9437, %v9429
    %v10142 = vpack.c.b16 %v9446, %v9438
    %v10143 = vpack.c.b16 %v9447, %v9439
    %v10144 = vpack.c.b16 %v9448, %v9440
    %v10145 = vpack.c.b16 %v9449, %v9441
    %v10146 = vpack.c.b16 %v9450, %v9442
    %v10147 = vpack.c.b16 %v9451, %v9443
    %v10148 = vpack.c.b16 %v9452, %v9444
    %v10149 = vpack.c.b16 %v9453, %v9445
    %v10150 = vpack.c.b16 %v9462, %v9454
    %v10151 = vpack.c.b16 %v9463, %v9455
    %v10152 = vpack.c.b16 %v9464, %v9456
    %v10153 = vpack.c.b16 %v9465, %v9457
    %v10154 = vpack.c.b16 %v9466, %v9458
    %v10155 = vpack.c.b16 %v9467, %v9459
    %v10156 = vpack.c.b16 %v9468, %v9460
    %v10157 = vpack.c.b16 %v9469, %v9461
    %v10158 = vpack.c.b16 %v9478, %v9470
    %v10159 = vpack.c.b16 %v9479, %v9471
    %v10160 = vpack.c.b16 %v9480, %v9472
    %v10161 = vpack.c.b16 %v9481, %v9473
    %v10162 = vpack.c.b16 %v9482, %v9474
    %v10163 = vpack.c.b16 %v9483, %v9475
    %v10164 = vpack.c.b16 %v9484, %v9476
    %v10165 = vpack.c.b16 %v9485, %v9477
    %v10166 = vpack.c.b16 %v9494, %v9486
    %v10167 = vpack.c.b16 %v9495, %v9487
    %v10168 = vpack.c.b16 %v9496, %v9488
    %v10169 = vpack.c.b16 %v9497, %v9489
    %v10170 = vpack.c.b16 %v9498, %v9490
    %v10171 = vpack.c.b16 %v9499, %v9491
    %v10172 = vpack.c.b16 %v9500, %v9492
    %v10173 = vpack.c.b16 %v9501, %v9493
    %v10174 = vpack.c.b16 %v9510, %v9502
    %v10175 = vpack.c.b16 %v9511, %v9503
    %v10176 = vpack.c.b16 %v9512, %v9504
    %v10177 = vpack.c.b16 %v9513, %v9505
    %v10178 = vpack.c.b16 %v9514, %v9506
    %v10179 = vpack.c.b16 %v9515, %v9507
    %v10180 = vpack.c.b16 %v9516, %v9508
    %v10181 = vpack.c.b16 %v9517, %v9509
    %v10182 = vpack.c.b16 %v9526, %v9518
    %v10183 = vpack.c.b16 %v9527, %v9519
    %v10184 = vpack.c.b16 %v9528, %v9520
    %v10185 = vpack.c.b16 %v9529, %v9521
    %v10186 = vpack.c.b16 %v9530, %v9522
    %v10187 = vpack.c.b16 %v9531, %v9523
    %v10188 = vpack.c.b16 %v9532, %v9524
    %v10189 = vpack.c.b16 %v9533, %v9525
    %v10190 = vpack.c.b16 %v9542, %v9534
    %v10191 = vpack.c.b16 %v9543, %v9535
    %v10192 = vpack.c.b16 %v9544, %v9536
    %v10193 = vpack.c.b16 %v9545, %v9537
    %v10194 = vpack.c.b16 %v9546, %v9538
    %v10195 = vpack.c.b16 %v9547, %v9539
    %v10196 = vpack.c.b16 %v9548, %v9540
    %v10197 = vpack.c.b16 %v9549, %v9541
    %v10198 = vpack.c.b16 %v9558, %v9550
    %v10199 = vpack.c.b16 %v9559, %v9551
    %v10200 = vpack.c.b16 %v9560, %v9552
    %v10201 = vpack.c.b16 %v9561, %v9553
    %v10202 = vpack.c.b16 %v9562, %v9554
    %v10203 = vpack.c.b16 %v9563, %v9555
    %v10204 = vpack.c.b16 %v9564, %v9556
    %v10205 = vpack.c.b16 %v9565, %v9557
    %v10206 = vpack.c.b16 %v9574, %v9566
    %v10207 = vpack.c.b16 %v9575, %v9567
    %v10208 = vpack.c.b16 %v9576, %v9568
    %v10209 = vpack.c.b16 %v9577, %v9569
    %v10210 = vpack.c.b16 %v9578, %v9570
    %v10211 = vpack.c.b16 %v9579, %v9571
    %v10212 = vpack.c.b16 %v9580, %v9572
    %v10213 = vpack.c.b16 %v9581, %v9573
    %v10214 = vpack.c.b16 %v9590, %v9582
    %v10215 = vpack.c.b16 %v9591, %v9583
    %v10216 = vpack.c.b16 %v9592, %v9584
    %v10217 = vpack.c.b16 %v9593, %v9585
    %v10218 = vpack.c.b16 %v9594, %v9586
    %v10219 = vpack.c.b16 %v9595, %v9587
    %v10220 = vpack.c.b16 %v9596, %v9588
    %v10221 = vpack.c.b16 %v9597, %v9589
    %v10222 = vpack.c.b16 %v9606, %v9598
    %v10223 = vpack.c.b16 %v9607, %v9599
    %v10224 = vpack.c.b16 %v9608, %v9600
    %v10225 = vpack.c.b16 %v9609, %v9601
    %v10226 = vpack.c.b16 %v9610, %v9602
    %v10227 = vpack.c.b16 %v9611, %v9603
    %v10228 = vpack.c.b16 %v9612, %v9604
    %v10229 = vpack.c.b16 %v9613, %v9605
    %v10230 = vpack.c.b16 %v9622, %v9614
    %v10231 = vpack.c.b16 %v9623, %v9615
    %v10232 = vpack.c.b16 %v9624, %v9616
    %v10233 = vpack.c.b16 %v9625, %v9617
    %v10234 = vpack.c.b16 %v9626, %v9618
    %v10235 = vpack.c.b16 %v9627, %v9619
    %v10236 = vpack.c.b16 %v9628, %v9620
    %v10237 = vpack.c.b16 %v9629, %v9621
    %v10238 = vpack.c.b16 %v9638, %v9630
    %v10239 = vpack.c.b16 %v9639, %v9631
    %v10240 = vpack.c.b16 %v9640, %v9632
    %v10241 = vpack.c.b16 %v9641, %v9633
    %v10242 = vpack.c.b16 %v9642, %v9634
    %v10243 = vpack.c.b16 %v9643, %v9635
    %v10244 = vpack.c.b16 %v9644, %v9636
    %v10245 = vpack.c.b16 %v9645, %v9637
    %v10246 = vpack.c.b16 %v9654, %v9646
    %v10247 = vpack.c.b16 %v9655, %v9647
    %v10248 = vpack.c.b16 %v9656, %v9648
    %v10249 = vpack.c.b16 %v9657, %v9649
    %v10250 = vpack.c.b16 %v9658, %v9650
    %v10251 = vpack.c.b16 %v9659, %v9651
    %v10252 = vpack.c.b16 %v9660, %v9652
    %v10253 = vpack.c.b16 %v9661, %v9653
    %v10254 = vpack.c.b16 %v9670, %v9662
    %v10255 = vpack.c.b16 %v9671, %v9663
    %v10256 = vpack.c.b16 %v9672, %v9664
    %v10257 = vpack.c.b16 %v9673, %v9665
    %v10258 = vpack.c.b16 %v9674, %v9666
    %v10259 = vpack.c.b16 %v9675, %v9667
    %v10260 = vpack.c.b16 %v9676, %v9668
    %v10261 = vpack.c.b16 %v9677, %v9669
    %v10262 = vpack.c.b16 %v9686, %v9678
    %v10263 = vpack.c.b16 %v9687, %v9679
    %v10264 = vpack.c.b16 %v9688, %v9680
    %v10265 = vpack.c.b16 %v9689, %v9681
    %v10266 = vpack.c.b16 %v9690, %v9682
    %v10267 = vpack.c.b16 %v9691, %v9683
    %v10268 = vpack.c.b16 %v9692, %v9684
    %v10269 = vpack.c.b16 %v9693, %v9685
    %v10270 = vpack.c.b16 %v9702, %v9694
    %v10271 = vpack.c.b16 %v9703, %v9695
    %v10272 = vpack.c.b16 %v9704, %v9696
    %v10273 = vpack.c.b16 %v9705, %v9697
    %v10274 = vpack.c.b16 %v9706, %v9698
    %v10275 = vpack.c.b16 %v9707, %v9699
    %v10276 = vpack.c.b16 %v9708, %v9700
    %v10277 = vpack.c.b16 %v9709, %v9701
    %v10278 = vpack.c.b16 %v9718, %v9710
    %v10279 = vpack.c.b16 %v9719, %v9711
    %v10280 = vpack.c.b16 %v9720, %v9712
    %v10281 = vpack.c.b16 %v9721, %v9713
    %v10282 = vpack.c.b16 %v9722, %v9714
    %v10283 = vpack.c.b16 %v9723, %v9715
    %v10284 = vpack.c.b16 %v9724, %v9716
    %v10285 = vpack.c.b16 %v9725, %v9717
    %v10286 = vpack.c.b16 %v9734, %v9726
    %v10287 = vpack.c.b16 %v9735, %v9727
    %v10288 = vpack.c.b16 %v9736, %v9728
    %v10289 = vpack.c.b16 %v9737, %v9729
    %v10290 = vpack.c.b16 %v9738, %v9730
    %v10291 = vpack.c.b16 %v9739, %v9731
    %v10292 = vpack.c.b16 %v9740, %v9732
    %v10293 = vpack.c.b16 %v9741, %v9733
    %v10294 = vpack.c.b16 %v9750, %v9742
    %v10295 = vpack.c.b16 %v9751, %v9743
    %v10296 = vpack.c.b16 %v9752, %v9744
    %v10297 = vpack.c.b16 %v9753, %v9745
    %v10298 = vpack.c.b16 %v9754, %v9746
    %v10299 = vpack.c.b16 %v9755, %v9747
    %v10300 = vpack.c.b16 %v9756, %v9748
    %v10301 = vpack.c.b16 %v9757, %v9749
    %v10302 = vpack.c.b16 %v9766, %v9758
    %v10303 = vpack.c.b16 %v9767, %v9759
    %v10304 = vpack.c.b16 %v9768, %v9760
    %v10305 = vpack.c.b16 %v9769, %v9761
    %v10306 = vpack.c.b16 %v9770, %v9762
    %v10307 = vpack.c.b16 %v9771, %v9763
    %v10308 = vpack.c.b16 %v9772, %v9764
    %v10309 = vpack.c.b16 %v9773, %v9765
    %v10310 = vpack.c.b16 %v9782, %v9774
    %v10311 = vpack.c.b16 %v9783, %v9775
    %v10312 = vpack.c.b16 %v9784, %v9776
    %v10313 = vpack.c.b16 %v9785, %v9777
    %v10314 = vpack.c.b16 %v9786, %v9778
    %v10315 = vpack.c.b16 %v9787, %v9779
    %v10316 = vpack.c.b16 %v9788, %v9780
    %v10317 = vpack.c.b16 %v9789, %v9781
    %v10318 = vpack.c.b16 %v9798, %v9790
    %v10319 = vpack.c.b16 %v9799, %v9791
    %v10320 = vpack.c.b16 %v9800, %v9792
    %v10321 = vpack.c.b16 %v9801, %v9793
    %v10322 = vpack.c.b16 %v9802, %v9794
    %v10323 = vpack.c.b16 %v9803, %v9795
    %v10324 = vpack.c.b16 %v9804, %v9796
    %v10325 = vpack.c.b16 %v9805, %v9797
    %v10326 = vpack.c.b16 %v9814, %v9806
    %v10327 = vpack.c.b16 %v9815, %v9807
    %v10328 = vpack.c.b16 %v9816, %v9808
    %v10329 = vpack.c.b16 %v9817, %v9809
    %v10330 = vpack.c.b16 %v9818, %v9810
    %v10331 = vpack.c.b16 %v9819, %v9811
    %v10332 = vpack.c.b16 %v9820, %v9812
    %v10333 = vpack.c.b16 %v9821, %v9813
    %10846 = vmatprep.subr.bf16.mxu0 %v9879
    %10847 = vmatpush1.bf16.msra.mxu0 %v9878
    %10848 = vmatprep.subr.bf16.mxu0 %v9871
    %10849 = vmatpush1.bf16.msra.mxu0 %v9870
    %10850 = vmatprep.subr.bf16.mxu0 %v9863
    %10851 = vmatpush1.bf16.msra.mxu0 %v9862
    %10852 = vmatprep.subr.bf16.mxu0 %v9855
    %10853 = vmatpush1.bf16.msra.mxu0 %v9854
    %10854 = vmatprep.subr.bf16.mxu0 %v9847
    %10855 = vmatpush1.bf16.msra.mxu0 %v9846
    %10856 = vmatprep.subr.bf16.mxu0 %v9839
    %10857 = vmatpush1.bf16.msra.mxu0 %v9838
    %10858 = vmatprep.subr.bf16.mxu0 %v9831
    %10859 = vmatpush1.bf16.msra.mxu0 %v9830
    %10860 = vmatprep.subr.bf16.mxu0 %v9823
    %10861 = vmatpush1.bf16.msra.mxu0 %v9822
    %10862 = vmatprep.subr.bf16.mxu0 %v9943
    %10863 = vmatpush2.bf16.msra.mxu0 %v9942
    %10864 = vmatprep.subr.bf16.mxu0 %v9935
    %10865 = vmatpush2.bf16.msra.mxu0 %v9934
    %10866 = vmatprep.subr.bf16.mxu0 %v9927
    %10867 = vmatpush2.bf16.msra.mxu0 %v9926
    %10868 = vmatprep.subr.bf16.mxu0 %v9919
    %10869 = vmatpush2.bf16.msra.mxu0 %v9918
    %10870 = vmatprep.subr.bf16.mxu0 %v9911
    %10871 = vmatpush2.bf16.msra.mxu0 %v9910
    %10872 = vmatprep.subr.bf16.mxu0 %v9903
    %10873 = vmatpush2.bf16.msra.mxu0 %v9902
    %10874 = vmatprep.subr.bf16.mxu0 %v9895
    %10875 = vmatpush2.bf16.msra.mxu0 %v9894
    %10876 = vmatprep.subr.bf16.mxu0 %v9887
    %10877 = vmatpush2.bf16.msra.mxu0 %v9886
    %10878 = vmatprep.mubr.bf16.mxu0 %v7725
    %10879 = vmatmul.mubr.bf16.gmra.mxu0 %v7724
    %v10880 = vpop.f32.mrf.mxu0
    %v10881 = vadd.f32 %v8249, %v10880
    %v10882 = vpop.f32.mrf.mxu0
    %v10883 = vadd.f32 %v8253, %v10882
    %v10884 = vpop.f32.mrf.mxu0
    %v10885 = vpop.f32.mrf.mxu0
    %10886 = vdwg.mxu0
    %10887 = vmatprep.subr.bf16.mxu0 %v10007
    %10888 = vmatpush1.bf16.msra.mxu0 %v10006
    %10889 = vmatprep.subr.bf16.mxu0 %v9999
    %10890 = vmatpush1.bf16.msra.mxu0 %v9998
    %10891 = vmatprep.subr.bf16.mxu0 %v9991
    %10892 = vmatpush1.bf16.msra.mxu0 %v9990
    %10893 = vmatprep.subr.bf16.mxu0 %v9983
    %10894 = vmatpush1.bf16.msra.mxu0 %v9982
    %10895 = vmatprep.subr.bf16.mxu0 %v9975
    %10896 = vmatpush1.bf16.msra.mxu0 %v9974
    %10897 = vmatprep.subr.bf16.mxu0 %v9967
    %10898 = vmatpush1.bf16.msra.mxu0 %v9966
    %10899 = vmatprep.subr.bf16.mxu0 %v9959
    %10900 = vmatpush1.bf16.msra.mxu0 %v9958
    %10901 = vmatprep.subr.bf16.mxu0 %v9951
    %10902 = vmatpush1.bf16.msra.mxu0 %v9950
    %10903 = vmatprep.subr.bf16.mxu0 %v10071
    %10904 = vmatpush2.bf16.msra.mxu0 %v10070
    %10905 = vmatprep.subr.bf16.mxu0 %v10063
    %10906 = vmatpush2.bf16.msra.mxu0 %v10062
    %10907 = vmatprep.subr.bf16.mxu0 %v10055
    %10908 = vmatpush2.bf16.msra.mxu0 %v10054
    %10909 = vmatprep.subr.bf16.mxu0 %v10047
    %10910 = vmatpush2.bf16.msra.mxu0 %v10046
    %10911 = vmatprep.subr.bf16.mxu0 %v10039
    %10912 = vmatpush2.bf16.msra.mxu0 %v10038
    %10913 = vmatprep.subr.bf16.mxu0 %v10031
    %10914 = vmatpush2.bf16.msra.mxu0 %v10030
    %10915 = vmatprep.subr.bf16.mxu0 %v10023
    %10916 = vmatpush2.bf16.msra.mxu0 %v10022
    %10917 = vmatprep.subr.bf16.mxu0 %v10015
    %10918 = vmatpush2.bf16.msra.mxu0 %v10014
    %10919 = vmatprep.mubr.bf16.mxu0 %v7727
    %10920 = vmatmul.mubr.bf16.gmra.mxu0 %v7726
    %v10921 = vpop.f32.mrf.mxu0
    %v10922 = vadd.f32 %v10881, %v10921
    %v10923 = vpop.f32.mrf.mxu0
    %v10924 = vadd.f32 %v10883, %v10923
    %v10925 = vpop.f32.mrf.mxu0
    %v10926 = vpop.f32.mrf.mxu0
    %10927 = vdwg.mxu0
    %10928 = vmatprep.subr.bf16.mxu0 %v10135
    %10929 = vmatpush1.bf16.msra.mxu0 %v10134
    %10930 = vmatprep.subr.bf16.mxu0 %v10127
    %10931 = vmatpush1.bf16.msra.mxu0 %v10126
    %10932 = vmatprep.subr.bf16.mxu0 %v10119
    %10933 = vmatpush1.bf16.msra.mxu0 %v10118
    %10934 = vmatprep.subr.bf16.mxu0 %v10111
    %10935 = vmatpush1.bf16.msra.mxu0 %v10110
    %10936 = vmatprep.subr.bf16.mxu0 %v10103
    %10937 = vmatpush1.bf16.msra.mxu0 %v10102
    %10938 = vmatprep.subr.bf16.mxu0 %v10095
    %10939 = vmatpush1.bf16.msra.mxu0 %v10094
    %10940 = vmatprep.subr.bf16.mxu0 %v10087
    %10941 = vmatpush1.bf16.msra.mxu0 %v10086
    %10942 = vmatprep.subr.bf16.mxu0 %v10079
    %10943 = vmatpush1.bf16.msra.mxu0 %v10078
    %10944 = vmatprep.subr.bf16.mxu0 %v10199
    %10945 = vmatpush2.bf16.msra.mxu0 %v10198
    %10946 = vmatprep.subr.bf16.mxu0 %v10191
    %10947 = vmatpush2.bf16.msra.mxu0 %v10190
    %10948 = vmatprep.subr.bf16.mxu0 %v10183
    %10949 = vmatpush2.bf16.msra.mxu0 %v10182
    %10950 = vmatprep.subr.bf16.mxu0 %v10175
    %10951 = vmatpush2.bf16.msra.mxu0 %v10174
    %10952 = vmatprep.subr.bf16.mxu0 %v10167
    %10953 = vmatpush2.bf16.msra.mxu0 %v10166
    %10954 = vmatprep.subr.bf16.mxu0 %v10159
    %10955 = vmatpush2.bf16.msra.mxu0 %v10158
    %10956 = vmatprep.subr.bf16.mxu0 %v10151
    %10957 = vmatpush2.bf16.msra.mxu0 %v10150
    %10958 = vmatprep.subr.bf16.mxu0 %v10143
    %10959 = vmatpush2.bf16.msra.mxu0 %v10142
    %10960 = vmatprep.mubr.bf16.mxu0 %v7729
    %10961 = vmatmul.mubr.bf16.gmra.mxu0 %v7728
    %v10962 = vpop.f32.mrf.mxu0
    %v10963 = vadd.f32 %v10922, %v10962
    %v10964 = vpop.f32.mrf.mxu0
    %v10965 = vadd.f32 %v10924, %v10964
    %v10966 = vpop.f32.mrf.mxu0
    %v10967 = vpop.f32.mrf.mxu0
    %10968 = vdwg.mxu0
    %10969 = vmatprep.subr.bf16.mxu0 %v10263
    %10970 = vmatpush1.bf16.msra.mxu0 %v10262
    %10971 = vmatprep.subr.bf16.mxu0 %v10255
    %10972 = vmatpush1.bf16.msra.mxu0 %v10254
    %10973 = vmatprep.subr.bf16.mxu0 %v10247
    %10974 = vmatpush1.bf16.msra.mxu0 %v10246
    %10975 = vmatprep.subr.bf16.mxu0 %v10239
    %10976 = vmatpush1.bf16.msra.mxu0 %v10238
    %10977 = vmatprep.subr.bf16.mxu0 %v10231
    %10978 = vmatpush1.bf16.msra.mxu0 %v10230
    %10979 = vmatprep.subr.bf16.mxu0 %v10223
    %10980 = vmatpush1.bf16.msra.mxu0 %v10222
    %10981 = vmatprep.subr.bf16.mxu0 %v10215
    %10982 = vmatpush1.bf16.msra.mxu0 %v10214
    %10983 = vmatprep.subr.bf16.mxu0 %v10207
    %10984 = vmatpush1.bf16.msra.mxu0 %v10206
    %10985 = vmatprep.subr.bf16.mxu0 %v10327
    %10986 = vmatpush2.bf16.msra.mxu0 %v10326
    %10987 = vmatprep.subr.bf16.mxu0 %v10319
    %10988 = vmatpush2.bf16.msra.mxu0 %v10318
    %10989 = vmatprep.subr.bf16.mxu0 %v10311
    %10990 = vmatpush2.bf16.msra.mxu0 %v10310
    %10991 = vmatprep.subr.bf16.mxu0 %v10303
    %10992 = vmatpush2.bf16.msra.mxu0 %v10302
    %10993 = vmatprep.subr.bf16.mxu0 %v10295
    %10994 = vmatpush2.bf16.msra.mxu0 %v10294
    %10995 = vmatprep.subr.bf16.mxu0 %v10287
    %10996 = vmatpush2.bf16.msra.mxu0 %v10286
    %10997 = vmatprep.subr.bf16.mxu0 %v10279
    %10998 = vmatpush2.bf16.msra.mxu0 %v10278
    %10999 = vmatprep.subr.bf16.mxu0 %v10271
    %11000 = vmatpush2.bf16.msra.mxu0 %v10270
    %11001 = vmatprep.mubr.bf16.mxu0 %v7731
    %11002 = vmatmul.mubr.bf16.gmra.mxu0 %v7730
    %v11003 = vpop.f32.mrf.mxu0
    %v11004 = vadd.f32 %v10963, %v11003
    %v11005 = vpop.f32.mrf.mxu0
    %v11006 = vadd.f32 %v10965, %v11005
    %v11007 = vpop.f32.mrf.mxu0
    %v11008 = vpop.f32.mrf.mxu0
    %11009 = vdwg.mxu0
    %11010 = vmatprep.subr.bf16.mxu0 %v9881
    %11011 = vmatpush1.bf16.msra.mxu0 %v9880
    %11012 = vmatprep.subr.bf16.mxu0 %v9873
    %11013 = vmatpush1.bf16.msra.mxu0 %v9872
    %11014 = vmatprep.subr.bf16.mxu0 %v9865
    %11015 = vmatpush1.bf16.msra.mxu0 %v9864
    %11016 = vmatprep.subr.bf16.mxu0 %v9857
    %11017 = vmatpush1.bf16.msra.mxu0 %v9856
    %11018 = vmatprep.subr.bf16.mxu0 %v9849
    %11019 = vmatpush1.bf16.msra.mxu0 %v9848
    %11020 = vmatprep.subr.bf16.mxu0 %v9841
    %11021 = vmatpush1.bf16.msra.mxu0 %v9840
    %11022 = vmatprep.subr.bf16.mxu0 %v9833
    %11023 = vmatpush1.bf16.msra.mxu0 %v9832
    %11024 = vmatprep.subr.bf16.mxu0 %v9825
    %11025 = vmatpush1.bf16.msra.mxu0 %v9824
    %11026 = vmatprep.subr.bf16.mxu0 %v9945
    %11027 = vmatpush2.bf16.msra.mxu0 %v9944
    %11028 = vmatprep.subr.bf16.mxu0 %v9937
    %11029 = vmatpush2.bf16.msra.mxu0 %v9936
    %11030 = vmatprep.subr.bf16.mxu0 %v9929
    %11031 = vmatpush2.bf16.msra.mxu0 %v9928
    %11032 = vmatprep.subr.bf16.mxu0 %v9921
    %11033 = vmatpush2.bf16.msra.mxu0 %v9920
    %11034 = vmatprep.subr.bf16.mxu0 %v9913
    %11035 = vmatpush2.bf16.msra.mxu0 %v9912
    %11036 = vmatprep.subr.bf16.mxu0 %v9905
    %11037 = vmatpush2.bf16.msra.mxu0 %v9904
    %11038 = vmatprep.subr.bf16.mxu0 %v9897
    %11039 = vmatpush2.bf16.msra.mxu0 %v9896
    %11040 = vmatprep.subr.bf16.mxu0 %v9889
    %11041 = vmatpush2.bf16.msra.mxu0 %v9888
    %11042 = vmatprep.mubr.bf16.mxu0 %v7725
    %11043 = vmatmul.mubr.bf16.gmra.mxu0 %v7724
    %v11044 = vpop.f32.mrf.mxu0
    %v11045 = vadd.f32 %v8257, %v11044
    %v11046 = vpop.f32.mrf.mxu0
    %v11047 = vadd.f32 %v8261, %v11046
    %v11048 = vpop.f32.mrf.mxu0
    %v11049 = vpop.f32.mrf.mxu0
    %11050 = vdwg.mxu0
    %11051 = vmatprep.subr.bf16.mxu0 %v10009
    %11052 = vmatpush1.bf16.msra.mxu0 %v10008
    %11053 = vmatprep.subr.bf16.mxu0 %v10001
    %11054 = vmatpush1.bf16.msra.mxu0 %v10000
    %11055 = vmatprep.subr.bf16.mxu0 %v9993
    %11056 = vmatpush1.bf16.msra.mxu0 %v9992
    %11057 = vmatprep.subr.bf16.mxu0 %v9985
    %11058 = vmatpush1.bf16.msra.mxu0 %v9984
    %11059 = vmatprep.subr.bf16.mxu0 %v9977
    %11060 = vmatpush1.bf16.msra.mxu0 %v9976
    %11061 = vmatprep.subr.bf16.mxu0 %v9969
    %11062 = vmatpush1.bf16.msra.mxu0 %v9968
    %11063 = vmatprep.subr.bf16.mxu0 %v9961
    %11064 = vmatpush1.bf16.msra.mxu0 %v9960
    %11065 = vmatprep.subr.bf16.mxu0 %v9953
    %11066 = vmatpush1.bf16.msra.mxu0 %v9952
    %11067 = vmatprep.subr.bf16.mxu0 %v10073
    %11068 = vmatpush2.bf16.msra.mxu0 %v10072
    %11069 = vmatprep.subr.bf16.mxu0 %v10065
    %11070 = vmatpush2.bf16.msra.mxu0 %v10064
    %11071 = vmatprep.subr.bf16.mxu0 %v10057
    %11072 = vmatpush2.bf16.msra.mxu0 %v10056
    %11073 = vmatprep.subr.bf16.mxu0 %v10049
    %11074 = vmatpush2.bf16.msra.mxu0 %v10048
    %11075 = vmatprep.subr.bf16.mxu0 %v10041
    %11076 = vmatpush2.bf16.msra.mxu0 %v10040
    %11077 = vmatprep.subr.bf16.mxu0 %v10033
    %11078 = vmatpush2.bf16.msra.mxu0 %v10032
    %11079 = vmatprep.subr.bf16.mxu0 %v10025
    %11080 = vmatpush2.bf16.msra.mxu0 %v10024
    %11081 = vmatprep.subr.bf16.mxu0 %v10017
    %11082 = vmatpush2.bf16.msra.mxu0 %v10016
    %11083 = vmatprep.mubr.bf16.mxu0 %v7727
    %11084 = vmatmul.mubr.bf16.gmra.mxu0 %v7726
    %v11085 = vpop.f32.mrf.mxu0
    %v11086 = vadd.f32 %v11045, %v11085
    %v11087 = vpop.f32.mrf.mxu0
    %v11088 = vadd.f32 %v11047, %v11087
    %v11089 = vpop.f32.mrf.mxu0
    %v11090 = vpop.f32.mrf.mxu0
    %11091 = vdwg.mxu0
    %11092 = vmatprep.subr.bf16.mxu0 %v10137
    %11093 = vmatpush1.bf16.msra.mxu0 %v10136
    %11094 = vmatprep.subr.bf16.mxu0 %v10129
    %11095 = vmatpush1.bf16.msra.mxu0 %v10128
    %11096 = vmatprep.subr.bf16.mxu0 %v10121
    %11097 = vmatpush1.bf16.msra.mxu0 %v10120
    %11098 = vmatprep.subr.bf16.mxu0 %v10113
    %11099 = vmatpush1.bf16.msra.mxu0 %v10112
    %11100 = vmatprep.subr.bf16.mxu0 %v10105
    %11101 = vmatpush1.bf16.msra.mxu0 %v10104
    %11102 = vmatprep.subr.bf16.mxu0 %v10097
    %11103 = vmatpush1.bf16.msra.mxu0 %v10096
    %11104 = vmatprep.subr.bf16.mxu0 %v10089
    %11105 = vmatpush1.bf16.msra.mxu0 %v10088
    %11106 = vmatprep.subr.bf16.mxu0 %v10081
    %11107 = vmatpush1.bf16.msra.mxu0 %v10080
    %11108 = vmatprep.subr.bf16.mxu0 %v10201
    %11109 = vmatpush2.bf16.msra.mxu0 %v10200
    %11110 = vmatprep.subr.bf16.mxu0 %v10193
    %11111 = vmatpush2.bf16.msra.mxu0 %v10192
    %11112 = vmatprep.subr.bf16.mxu0 %v10185
    %11113 = vmatpush2.bf16.msra.mxu0 %v10184
    %11114 = vmatprep.subr.bf16.mxu0 %v10177
    %11115 = vmatpush2.bf16.msra.mxu0 %v10176
    %11116 = vmatprep.subr.bf16.mxu0 %v10169
    %11117 = vmatpush2.bf16.msra.mxu0 %v10168
    %11118 = vmatprep.subr.bf16.mxu0 %v10161
    %11119 = vmatpush2.bf16.msra.mxu0 %v10160
    %11120 = vmatprep.subr.bf16.mxu0 %v10153
    %11121 = vmatpush2.bf16.msra.mxu0 %v10152
    %11122 = vmatprep.subr.bf16.mxu0 %v10145
    %11123 = vmatpush2.bf16.msra.mxu0 %v10144
    %11124 = vmatprep.mubr.bf16.mxu0 %v7729
    %11125 = vmatmul.mubr.bf16.gmra.mxu0 %v7728
    %v11126 = vpop.f32.mrf.mxu0
    %v11127 = vadd.f32 %v11086, %v11126
    %v11128 = vpop.f32.mrf.mxu0
    %v11129 = vadd.f32 %v11088, %v11128
    %v11130 = vpop.f32.mrf.mxu0
    %v11131 = vpop.f32.mrf.mxu0
    %11132 = vdwg.mxu0
    %11133 = vmatprep.subr.bf16.mxu0 %v10265
    %11134 = vmatpush1.bf16.msra.mxu0 %v10264
    %11135 = vmatprep.subr.bf16.mxu0 %v10257
    %11136 = vmatpush1.bf16.msra.mxu0 %v10256
    %11137 = vmatprep.subr.bf16.mxu0 %v10249
    %11138 = vmatpush1.bf16.msra.mxu0 %v10248
    %11139 = vmatprep.subr.bf16.mxu0 %v10241
    %11140 = vmatpush1.bf16.msra.mxu0 %v10240
    %11141 = vmatprep.subr.bf16.mxu0 %v10233
    %11142 = vmatpush1.bf16.msra.mxu0 %v10232
    %11143 = vmatprep.subr.bf16.mxu0 %v10225
    %11144 = vmatpush1.bf16.msra.mxu0 %v10224
    %11145 = vmatprep.subr.bf16.mxu0 %v10217
    %11146 = vmatpush1.bf16.msra.mxu0 %v10216
    %11147 = vmatprep.subr.bf16.mxu0 %v10209
    %11148 = vmatpush1.bf16.msra.mxu0 %v10208
    %11149 = vmatprep.subr.bf16.mxu0 %v10329
    %11150 = vmatpush2.bf16.msra.mxu0 %v10328
    %11151 = vmatprep.subr.bf16.mxu0 %v10321
    %11152 = vmatpush2.bf16.msra.mxu0 %v10320
    %11153 = vmatprep.subr.bf16.mxu0 %v10313
    %11154 = vmatpush2.bf16.msra.mxu0 %v10312
    %11155 = vmatprep.subr.bf16.mxu0 %v10305
    %11156 = vmatpush2.bf16.msra.mxu0 %v10304
    %11157 = vmatprep.subr.bf16.mxu0 %v10297
    %11158 = vmatpush2.bf16.msra.mxu0 %v10296
    %11159 = vmatprep.subr.bf16.mxu0 %v10289
    %11160 = vmatpush2.bf16.msra.mxu0 %v10288
    %11161 = vmatprep.subr.bf16.mxu0 %v10281
    %11162 = vmatpush2.bf16.msra.mxu0 %v10280
    %11163 = vmatprep.subr.bf16.mxu0 %v10273
    %11164 = vmatpush2.bf16.msra.mxu0 %v10272
    %11165 = vmatprep.mubr.bf16.mxu0 %v7731
    %11166 = vmatmul.mubr.bf16.gmra.mxu0 %v7730
    %v11167 = vpop.f32.mrf.mxu0
    %v11168 = vadd.f32 %v11127, %v11167
    %v11169 = vpop.f32.mrf.mxu0
    %v11170 = vadd.f32 %v11129, %v11169
    %v11171 = vpop.f32.mrf.mxu0
    %v11172 = vpop.f32.mrf.mxu0
    %11173 = vdwg.mxu0
    %11174 = vmatprep.subr.bf16.mxu0 %v9883
    %11175 = vmatpush1.bf16.msra.mxu0 %v9882
    %11176 = vmatprep.subr.bf16.mxu0 %v9875
    %11177 = vmatpush1.bf16.msra.mxu0 %v9874
    %11178 = vmatprep.subr.bf16.mxu0 %v9867
    %11179 = vmatpush1.bf16.msra.mxu0 %v9866
    %11180 = vmatprep.subr.bf16.mxu0 %v9859
    %11181 = vmatpush1.bf16.msra.mxu0 %v9858
    %11182 = vmatprep.subr.bf16.mxu0 %v9851
    %11183 = vmatpush1.bf16.msra.mxu0 %v9850
    %11184 = vmatprep.subr.bf16.mxu0 %v9843
    %11185 = vmatpush1.bf16.msra.mxu0 %v9842
    %11186 = vmatprep.subr.bf16.mxu0 %v9835
    %11187 = vmatpush1.bf16.msra.mxu0 %v9834
    %11188 = vmatprep.subr.bf16.mxu0 %v9827
    %11189 = vmatpush1.bf16.msra.mxu0 %v9826
    %11190 = vmatprep.subr.bf16.mxu0 %v9947
    %11191 = vmatpush2.bf16.msra.mxu0 %v9946
    %11192 = vmatprep.subr.bf16.mxu0 %v9939
    %11193 = vmatpush2.bf16.msra.mxu0 %v9938
    %11194 = vmatprep.subr.bf16.mxu0 %v9931
    %11195 = vmatpush2.bf16.msra.mxu0 %v9930
    %11196 = vmatprep.subr.bf16.mxu0 %v9923
    %11197 = vmatpush2.bf16.msra.mxu0 %v9922
    %11198 = vmatprep.subr.bf16.mxu0 %v9915
    %11199 = vmatpush2.bf16.msra.mxu0 %v9914
    %11200 = vmatprep.subr.bf16.mxu0 %v9907
    %11201 = vmatpush2.bf16.msra.mxu0 %v9906
    %11202 = vmatprep.subr.bf16.mxu0 %v9899
    %11203 = vmatpush2.bf16.msra.mxu0 %v9898
    %11204 = vmatprep.subr.bf16.mxu0 %v9891
    %11205 = vmatpush2.bf16.msra.mxu0 %v9890
    %11206 = vmatprep.mubr.bf16.mxu0 %v7725
    %11207 = vmatmul.mubr.bf16.gmra.mxu0 %v7724
    %v11208 = vpop.f32.mrf.mxu0
    %v11209 = vadd.f32 %v8265, %v11208
    %v11210 = vpop.f32.mrf.mxu0
    %v11211 = vadd.f32 %v8269, %v11210
    %v11212 = vpop.f32.mrf.mxu0
    %v11213 = vpop.f32.mrf.mxu0
    %11214 = vdwg.mxu0
    %11215 = vmatprep.subr.bf16.mxu0 %v10011
    %11216 = vmatpush1.bf16.msra.mxu0 %v10010
    %11217 = vmatprep.subr.bf16.mxu0 %v10003
    %11218 = vmatpush1.bf16.msra.mxu0 %v10002
    %11219 = vmatprep.subr.bf16.mxu0 %v9995
    %11220 = vmatpush1.bf16.msra.mxu0 %v9994
    %11221 = vmatprep.subr.bf16.mxu0 %v9987
    %11222 = vmatpush1.bf16.msra.mxu0 %v9986
    %11223 = vmatprep.subr.bf16.mxu0 %v9979
    %11224 = vmatpush1.bf16.msra.mxu0 %v9978
    %11225 = vmatprep.subr.bf16.mxu0 %v9971
    %11226 = vmatpush1.bf16.msra.mxu0 %v9970
    %11227 = vmatprep.subr.bf16.mxu0 %v9963
    %11228 = vmatpush1.bf16.msra.mxu0 %v9962
    %11229 = vmatprep.subr.bf16.mxu0 %v9955
    %11230 = vmatpush1.bf16.msra.mxu0 %v9954
    %11231 = vmatprep.subr.bf16.mxu0 %v10075
    %11232 = vmatpush2.bf16.msra.mxu0 %v10074
    %11233 = vmatprep.subr.bf16.mxu0 %v10067
    %11234 = vmatpush2.bf16.msra.mxu0 %v10066
    %11235 = vmatprep.subr.bf16.mxu0 %v10059
    %11236 = vmatpush2.bf16.msra.mxu0 %v10058
    %11237 = vmatprep.subr.bf16.mxu0 %v10051
    %11238 = vmatpush2.bf16.msra.mxu0 %v10050
    %11239 = vmatprep.subr.bf16.mxu0 %v10043
    %11240 = vmatpush2.bf16.msra.mxu0 %v10042
    %11241 = vmatprep.subr.bf16.mxu0 %v10035
    %11242 = vmatpush2.bf16.msra.mxu0 %v10034
    %11243 = vmatprep.subr.bf16.mxu0 %v10027
    %11244 = vmatpush2.bf16.msra.mxu0 %v10026
    %11245 = vmatprep.subr.bf16.mxu0 %v10019
    %11246 = vmatpush2.bf16.msra.mxu0 %v10018
    %11247 = vmatprep.mubr.bf16.mxu0 %v7727
    %11248 = vmatmul.mubr.bf16.gmra.mxu0 %v7726
    %v11249 = vpop.f32.mrf.mxu0
    %v11250 = vadd.f32 %v11209, %v11249
    %v11251 = vpop.f32.mrf.mxu0
    %v11252 = vadd.f32 %v11211, %v11251
    %v11253 = vpop.f32.mrf.mxu0
    %v11254 = vpop.f32.mrf.mxu0
    %11255 = vdwg.mxu0
    %11256 = vmatprep.subr.bf16.mxu0 %v10139
    %11257 = vmatpush1.bf16.msra.mxu0 %v10138
    %11258 = vmatprep.subr.bf16.mxu0 %v10131
    %11259 = vmatpush1.bf16.msra.mxu0 %v10130
    %11260 = vmatprep.subr.bf16.mxu0 %v10123
    %11261 = vmatpush1.bf16.msra.mxu0 %v10122
    %11262 = vmatprep.subr.bf16.mxu0 %v10115
    %11263 = vmatpush1.bf16.msra.mxu0 %v10114
    %11264 = vmatprep.subr.bf16.mxu0 %v10107
    %11265 = vmatpush1.bf16.msra.mxu0 %v10106
    %11266 = vmatprep.subr.bf16.mxu0 %v10099
    %11267 = vmatpush1.bf16.msra.mxu0 %v10098
    %11268 = vmatprep.subr.bf16.mxu0 %v10091
    %11269 = vmatpush1.bf16.msra.mxu0 %v10090
    %11270 = vmatprep.subr.bf16.mxu0 %v10083
    %11271 = vmatpush1.bf16.msra.mxu0 %v10082
    %11272 = vmatprep.subr.bf16.mxu0 %v10203
    %11273 = vmatpush2.bf16.msra.mxu0 %v10202
    %11274 = vmatprep.subr.bf16.mxu0 %v10195
    %11275 = vmatpush2.bf16.msra.mxu0 %v10194
    %11276 = vmatprep.subr.bf16.mxu0 %v10187
    %11277 = vmatpush2.bf16.msra.mxu0 %v10186
    %11278 = vmatprep.subr.bf16.mxu0 %v10179
    %11279 = vmatpush2.bf16.msra.mxu0 %v10178
    %11280 = vmatprep.subr.bf16.mxu0 %v10171
    %11281 = vmatpush2.bf16.msra.mxu0 %v10170
    %11282 = vmatprep.subr.bf16.mxu0 %v10163
    %11283 = vmatpush2.bf16.msra.mxu0 %v10162
    %11284 = vmatprep.subr.bf16.mxu0 %v10155
    %11285 = vmatpush2.bf16.msra.mxu0 %v10154
    %11286 = vmatprep.subr.bf16.mxu0 %v10147
    %11287 = vmatpush2.bf16.msra.mxu0 %v10146
    %11288 = vmatprep.mubr.bf16.mxu0 %v7729
    %11289 = vmatmul.mubr.bf16.gmra.mxu0 %v7728
    %v11290 = vpop.f32.mrf.mxu0
    %v11291 = vadd.f32 %v11250, %v11290
    %v11292 = vpop.f32.mrf.mxu0
    %v11293 = vadd.f32 %v11252, %v11292
    %v11294 = vpop.f32.mrf.mxu0
    %v11295 = vpop.f32.mrf.mxu0
    %11296 = vdwg.mxu0
    %11297 = vmatprep.subr.bf16.mxu0 %v10267
    %11298 = vmatpush1.bf16.msra.mxu0 %v10266
    %11299 = vmatprep.subr.bf16.mxu0 %v10259
    %11300 = vmatpush1.bf16.msra.mxu0 %v10258
    %11301 = vmatprep.subr.bf16.mxu0 %v10251
    %11302 = vmatpush1.bf16.msra.mxu0 %v10250
    %11303 = vmatprep.subr.bf16.mxu0 %v10243
    %11304 = vmatpush1.bf16.msra.mxu0 %v10242
    %11305 = vmatprep.subr.bf16.mxu0 %v10235
    %11306 = vmatpush1.bf16.msra.mxu0 %v10234
    %11307 = vmatprep.subr.bf16.mxu0 %v10227
    %11308 = vmatpush1.bf16.msra.mxu0 %v10226
    %11309 = vmatprep.subr.bf16.mxu0 %v10219
    %11310 = vmatpush1.bf16.msra.mxu0 %v10218
    %11311 = vmatprep.subr.bf16.mxu0 %v10211
    %11312 = vmatpush1.bf16.msra.mxu0 %v10210
    %11313 = vmatprep.subr.bf16.mxu0 %v10331
    %11314 = vmatpush2.bf16.msra.mxu0 %v10330
    %11315 = vmatprep.subr.bf16.mxu0 %v10323
    %11316 = vmatpush2.bf16.msra.mxu0 %v10322
    %11317 = vmatprep.subr.bf16.mxu0 %v10315
    %11318 = vmatpush2.bf16.msra.mxu0 %v10314
    %11319 = vmatprep.subr.bf16.mxu0 %v10307
    %11320 = vmatpush2.bf16.msra.mxu0 %v10306
    %11321 = vmatprep.subr.bf16.mxu0 %v10299
    %11322 = vmatpush2.bf16.msra.mxu0 %v10298
    %11323 = vmatprep.subr.bf16.mxu0 %v10291
    %11324 = vmatpush2.bf16.msra.mxu0 %v10290
    %11325 = vmatprep.subr.bf16.mxu0 %v10283
    %11326 = vmatpush2.bf16.msra.mxu0 %v10282
    %11327 = vmatprep.subr.bf16.mxu0 %v10275
    %11328 = vmatpush2.bf16.msra.mxu0 %v10274
    %11329 = vmatprep.mubr.bf16.mxu0 %v7731
    %11330 = vmatmul.mubr.bf16.gmra.mxu0 %v7730
    %v11331 = vpop.f32.mrf.mxu0
    %v11332 = vadd.f32 %v11291, %v11331
    %v11333 = vpop.f32.mrf.mxu0
    %v11334 = vadd.f32 %v11293, %v11333
    %v11335 = vpop.f32.mrf.mxu0
    %v11336 = vpop.f32.mrf.mxu0
    %11337 = vdwg.mxu0
    %11338 = vmatprep.subr.bf16.mxu0 %v9885
    %11339 = vmatpush1.bf16.msra.mxu0 %v9884
    %11340 = vmatprep.subr.bf16.mxu0 %v9877
    %11341 = vmatpush1.bf16.msra.mxu0 %v9876
    %11342 = vmatprep.subr.bf16.mxu0 %v9869
    %11343 = vmatpush1.bf16.msra.mxu0 %v9868
    %11344 = vmatprep.subr.bf16.mxu0 %v9861
    %11345 = vmatpush1.bf16.msra.mxu0 %v9860
    %11346 = vmatprep.subr.bf16.mxu0 %v9853
    %11347 = vmatpush1.bf16.msra.mxu0 %v9852
    %11348 = vmatprep.subr.bf16.mxu0 %v9845
    %11349 = vmatpush1.bf16.msra.mxu0 %v9844
    %11350 = vmatprep.subr.bf16.mxu0 %v9837
    %11351 = vmatpush1.bf16.msra.mxu0 %v9836
    %11352 = vmatprep.subr.bf16.mxu0 %v9829
    %11353 = vmatpush1.bf16.msra.mxu0 %v9828
    %11354 = vmatprep.subr.bf16.mxu0 %v9949
    %11355 = vmatpush2.bf16.msra.mxu0 %v9948
    %11356 = vmatprep.subr.bf16.mxu0 %v9941
    %11357 = vmatpush2.bf16.msra.mxu0 %v9940
    %11358 = vmatprep.subr.bf16.mxu0 %v9933
    %11359 = vmatpush2.bf16.msra.mxu0 %v9932
    %11360 = vmatprep.subr.bf16.mxu0 %v9925
    %11361 = vmatpush2.bf16.msra.mxu0 %v9924
    %11362 = vmatprep.subr.bf16.mxu0 %v9917
    %11363 = vmatpush2.bf16.msra.mxu0 %v9916
    %11364 = vmatprep.subr.bf16.mxu0 %v9909
    %11365 = vmatpush2.bf16.msra.mxu0 %v9908
    %11366 = vmatprep.subr.bf16.mxu0 %v9901
    %11367 = vmatpush2.bf16.msra.mxu0 %v9900
    %11368 = vmatprep.subr.bf16.mxu0 %v9893
    %11369 = vmatpush2.bf16.msra.mxu0 %v9892
    %11370 = vmatprep.mubr.bf16.mxu0 %v7725
    %11371 = vmatmul.mubr.bf16.gmra.mxu0 %v7724
    %v11372 = vpop.f32.mrf.mxu0
    %v11373 = vadd.f32 %v8273, %v11372
    %v11374 = vpop.f32.mrf.mxu0
    %v11375 = vadd.f32 %v8277, %v11374
    %v11376 = vpop.f32.mrf.mxu0
    %v11377 = vpop.f32.mrf.mxu0
    %11378 = vdwg.mxu0
    %11379 = vmatprep.subr.bf16.mxu0 %v10013
    %11380 = vmatpush1.bf16.msra.mxu0 %v10012
    %11381 = vmatprep.subr.bf16.mxu0 %v10005
    %11382 = vmatpush1.bf16.msra.mxu0 %v10004
    %11383 = vmatprep.subr.bf16.mxu0 %v9997
    %11384 = vmatpush1.bf16.msra.mxu0 %v9996
    %11385 = vmatprep.subr.bf16.mxu0 %v9989
    %11386 = vmatpush1.bf16.msra.mxu0 %v9988
    %11387 = vmatprep.subr.bf16.mxu0 %v9981
    %11388 = vmatpush1.bf16.msra.mxu0 %v9980
    %11389 = vmatprep.subr.bf16.mxu0 %v9973
    %11390 = vmatpush1.bf16.msra.mxu0 %v9972
    %11391 = vmatprep.subr.bf16.mxu0 %v9965
    %11392 = vmatpush1.bf16.msra.mxu0 %v9964
    %11393 = vmatprep.subr.bf16.mxu0 %v9957
    %11394 = vmatpush1.bf16.msra.mxu0 %v9956
    %11395 = vmatprep.subr.bf16.mxu0 %v10077
    %11396 = vmatpush2.bf16.msra.mxu0 %v10076
    %11397 = vmatprep.subr.bf16.mxu0 %v10069
    %11398 = vmatpush2.bf16.msra.mxu0 %v10068
    %11399 = vmatprep.subr.bf16.mxu0 %v10061
    %11400 = vmatpush2.bf16.msra.mxu0 %v10060
    %11401 = vmatprep.subr.bf16.mxu0 %v10053
    %11402 = vmatpush2.bf16.msra.mxu0 %v10052
    %11403 = vmatprep.subr.bf16.mxu0 %v10045
    %11404 = vmatpush2.bf16.msra.mxu0 %v10044
    %11405 = vmatprep.subr.bf16.mxu0 %v10037
    %11406 = vmatpush2.bf16.msra.mxu0 %v10036
    %11407 = vmatprep.subr.bf16.mxu0 %v10029
    %11408 = vmatpush2.bf16.msra.mxu0 %v10028
    %11409 = vmatprep.subr.bf16.mxu0 %v10021
    %11410 = vmatpush2.bf16.msra.mxu0 %v10020
    %11411 = vmatprep.mubr.bf16.mxu0 %v7727
    %11412 = vmatmul.mubr.bf16.gmra.mxu0 %v7726
    %v11413 = vpop.f32.mrf.mxu0
    %v11414 = vadd.f32 %v11373, %v11413
    %v11415 = vpop.f32.mrf.mxu0
    %v11416 = vadd.f32 %v11375, %v11415
    %v11417 = vpop.f32.mrf.mxu0
    %v11418 = vpop.f32.mrf.mxu0
    %11419 = vdwg.mxu0
    %11420 = vmatprep.subr.bf16.mxu0 %v10141
    %11421 = vmatpush1.bf16.msra.mxu0 %v10140
    %11422 = vmatprep.subr.bf16.mxu0 %v10133
    %11423 = vmatpush1.bf16.msra.mxu0 %v10132
    %11424 = vmatprep.subr.bf16.mxu0 %v10125
    %11425 = vmatpush1.bf16.msra.mxu0 %v10124
    %11426 = vmatprep.subr.bf16.mxu0 %v10117
    %11427 = vmatpush1.bf16.msra.mxu0 %v10116
    %11428 = vmatprep.subr.bf16.mxu0 %v10109
    %11429 = vmatpush1.bf16.msra.mxu0 %v10108
    %11430 = vmatprep.subr.bf16.mxu0 %v10101
    %11431 = vmatpush1.bf16.msra.mxu0 %v10100
    %11432 = vmatprep.subr.bf16.mxu0 %v10093
    %11433 = vmatpush1.bf16.msra.mxu0 %v10092
    %11434 = vmatprep.subr.bf16.mxu0 %v10085
    %11435 = vmatpush1.bf16.msra.mxu0 %v10084
    %11436 = vmatprep.subr.bf16.mxu0 %v10205
    %11437 = vmatpush2.bf16.msra.mxu0 %v10204
    %11438 = vmatprep.subr.bf16.mxu0 %v10197
    %11439 = vmatpush2.bf16.msra.mxu0 %v10196
    %11440 = vmatprep.subr.bf16.mxu0 %v10189
    %11441 = vmatpush2.bf16.msra.mxu0 %v10188
    %11442 = vmatprep.subr.bf16.mxu0 %v10181
    %11443 = vmatpush2.bf16.msra.mxu0 %v10180
    %11444 = vmatprep.subr.bf16.mxu0 %v10173
    %11445 = vmatpush2.bf16.msra.mxu0 %v10172
    %11446 = vmatprep.subr.bf16.mxu0 %v10165
    %11447 = vmatpush2.bf16.msra.mxu0 %v10164
    %11448 = vmatprep.subr.bf16.mxu0 %v10157
    %11449 = vmatpush2.bf16.msra.mxu0 %v10156
    %11450 = vmatprep.subr.bf16.mxu0 %v10149
    %11451 = vmatpush2.bf16.msra.mxu0 %v10148
    %11452 = vmatprep.mubr.bf16.mxu0 %v7729
    %11453 = vmatmul.mubr.bf16.gmra.mxu0 %v7728
    %v11454 = vpop.f32.mrf.mxu0
    %v11455 = vadd.f32 %v11414, %v11454
    %v11456 = vpop.f32.mrf.mxu0
    %v11457 = vadd.f32 %v11416, %v11456
    %v11458 = vpop.f32.mrf.mxu0
    %v11459 = vpop.f32.mrf.mxu0
    %11460 = vdwg.mxu0
    %11461 = vmatprep.subr.bf16.mxu0 %v10269
    %11462 = vmatpush1.bf16.msra.mxu0 %v10268
    %11463 = vmatprep.subr.bf16.mxu0 %v10261
    %11464 = vmatpush1.bf16.msra.mxu0 %v10260
    %11465 = vmatprep.subr.bf16.mxu0 %v10253
    %11466 = vmatpush1.bf16.msra.mxu0 %v10252
    %11467 = vmatprep.subr.bf16.mxu0 %v10245
    %11468 = vmatpush1.bf16.msra.mxu0 %v10244
    %11469 = vmatprep.subr.bf16.mxu0 %v10237
    %11470 = vmatpush1.bf16.msra.mxu0 %v10236
    %11471 = vmatprep.subr.bf16.mxu0 %v10229
    %11472 = vmatpush1.bf16.msra.mxu0 %v10228
    %11473 = vmatprep.subr.bf16.mxu0 %v10221
    %11474 = vmatpush1.bf16.msra.mxu0 %v10220
    %11475 = vmatprep.subr.bf16.mxu0 %v10213
    %11476 = vmatpush1.bf16.msra.mxu0 %v10212
    %11477 = vmatprep.subr.bf16.mxu0 %v10333
    %11478 = vmatpush2.bf16.msra.mxu0 %v10332
    %11479 = vmatprep.subr.bf16.mxu0 %v10325
    %11480 = vmatpush2.bf16.msra.mxu0 %v10324
    %11481 = vmatprep.subr.bf16.mxu0 %v10317
    %11482 = vmatpush2.bf16.msra.mxu0 %v10316
    %11483 = vmatprep.subr.bf16.mxu0 %v10309
    %11484 = vmatpush2.bf16.msra.mxu0 %v10308
    %11485 = vmatprep.subr.bf16.mxu0 %v10301
    %11486 = vmatpush2.bf16.msra.mxu0 %v10300
    %11487 = vmatprep.subr.bf16.mxu0 %v10293
    %11488 = vmatpush2.bf16.msra.mxu0 %v10292
    %11489 = vmatprep.subr.bf16.mxu0 %v10285
    %11490 = vmatpush2.bf16.msra.mxu0 %v10284
    %11491 = vmatprep.subr.bf16.mxu0 %v10277
    %11492 = vmatpush2.bf16.msra.mxu0 %v10276
    %11493 = vmatprep.mubr.bf16.mxu0 %v7731
    %11494 = vmatmul.mubr.bf16.gmra.mxu0 %v7730
    %v11495 = vpop.f32.mrf.mxu0
    %v11496 = vadd.f32 %v11455, %v11495
    %v11497 = vpop.f32.mrf.mxu0
    %v11498 = vadd.f32 %v11457, %v11497
    %v11499 = vpop.f32.mrf.mxu0
    %v11500 = vpop.f32.mrf.mxu0
    %11501 = vdwg.mxu0
    %v11502 = vmax.f32 %v11004, 0.0
    %v11503 = vmax.f32 %v11006, 0.0
    %v11504 = vmax.f32 %v11168, 0.0
    %v11505 = vmax.f32 %v11170, 0.0
    %v11506 = vmax.f32 %v11332, 0.0
    %v11507 = vmax.f32 %v11334, 0.0
    %v11508 = vmax.f32 %v11496, 0.0
    %v11509 = vmax.f32 %v11498, 0.0
    %v11510 = vpack.c.bf16 %v11502, %v11502
    %v11511 = vpack.c.bf16 %v11503, %v11503
    %v11512 = vpack.c.bf16 %v11504, %v11504
    %v11513 = vpack.c.bf16 %v11505, %v11505
    %v11514 = vpack.c.bf16 %v11506, %v11506
    %v11515 = vpack.c.bf16 %v11507, %v11507
    %v11516 = vpack.c.bf16 %v11508, %v11508
    %v11517 = vpack.c.bf16 %v11509, %v11509
    %v11518 = vld [vmem:[#allocation14] sm:$0xf]
    %v11519 = vld [vmem:[#allocation14 + $0x4] sm:$0xf]
    %v11520 = vld [vmem:[#allocation14 + $0x8] sm:$0xf]
    %v11521 = vld [vmem:[#allocation14 + $0xc] sm:$0xf]
    %v11522 = vld [vmem:[#allocation14 + $0x10] sm:$0xf]
    %v11523 = vld [vmem:[#allocation14 + $0x14] sm:$0xf]
    %v11524 = vld [vmem:[#allocation14 + $0x18] sm:$0xf]
    %v11525 = vld [vmem:[#allocation14 + $0x1c] sm:$0xf]
    %v11526 = vld [vmem:[#allocation14 + $0x20] sm:$0xf]
    %v11527 = vld [vmem:[#allocation14 + $0x24] sm:$0xf]
    %v11528 = vld [vmem:[#allocation14 + $0x28] sm:$0xf]
    %v11529 = vld [vmem:[#allocation14 + $0x2c] sm:$0xf]
    %v11530 = vld [vmem:[#allocation14 + $0x30] sm:$0xf]
    %v11531 = vld [vmem:[#allocation14 + $0x34] sm:$0xf]
    %v11532 = vld [vmem:[#allocation14 + $0x38] sm:$0xf]
    %v11533 = vld [vmem:[#allocation14 + $0x3c] sm:$0xf]
    %v11534 = vld [vmem:[#allocation14 + $0x40] sm:$0xf]
    %v11535 = vld [vmem:[#allocation14 + $0x44] sm:$0xf]
    %v11536 = vld [vmem:[#allocation14 + $0x48] sm:$0xf]
    %v11537 = vld [vmem:[#allocation14 + $0x4c] sm:$0xf]
    %v11538 = vld [vmem:[#allocation14 + $0x50] sm:$0xf]
    %v11539 = vld [vmem:[#allocation14 + $0x54] sm:$0xf]
    %v11540 = vld [vmem:[#allocation14 + $0x58] sm:$0xf]
    %v11541 = vld [vmem:[#allocation14 + $0x5c] sm:$0xf]
    %v11542 = vld [vmem:[#allocation14 + $0x60] sm:$0xf]
    %v11543 = vld [vmem:[#allocation14 + $0x64] sm:$0xf]
    %v11544 = vld [vmem:[#allocation14 + $0x68] sm:$0xf]
    %v11545 = vld [vmem:[#allocation14 + $0x6c] sm:$0xf]
    %v11546 = vld [vmem:[#allocation14 + $0x70] sm:$0xf]
    %v11547 = vld [vmem:[#allocation14 + $0x74] sm:$0xf]
    %v11548 = vld [vmem:[#allocation14 + $0x78] sm:$0xf]
    %v11549 = vld [vmem:[#allocation14 + $0x7c] sm:$0xf]
    %v11550 = vld [vmem:[#allocation14 + $0x80] sm:$0xf]
    %v11551 = vld [vmem:[#allocation14 + $0x84] sm:$0xf]
    %v11552 = vld [vmem:[#allocation14 + $0x88] sm:$0xf]
    %v11553 = vld [vmem:[#allocation14 + $0x8c] sm:$0xf]
    %v11554 = vld [vmem:[#allocation14 + $0x90] sm:$0xf]
    %v11555 = vld [vmem:[#allocation14 + $0x94] sm:$0xf]
    %v11556 = vld [vmem:[#allocation14 + $0x98] sm:$0xf]
    %v11557 = vld [vmem:[#allocation14 + $0x9c] sm:$0xf]
    %v11558 = vld [vmem:[#allocation14 + $0xa0] sm:$0xf]
    %v11559 = vld [vmem:[#allocation14 + $0xa4] sm:$0xf]
    %v11560 = vld [vmem:[#allocation14 + $0xa8] sm:$0xf]
    %v11561 = vld [vmem:[#allocation14 + $0xac] sm:$0xf]
    %v11562 = vld [vmem:[#allocation14 + $0xb0] sm:$0xf]
    %v11563 = vld [vmem:[#allocation14 + $0xb4] sm:$0xf]
    %v11564 = vld [vmem:[#allocation14 + $0xb8] sm:$0xf]
    %v11565 = vld [vmem:[#allocation14 + $0xbc] sm:$0xf]
    %v11566 = vld [vmem:[#allocation14 + $0xc0] sm:$0xf]
    %v11567 = vld [vmem:[#allocation14 + $0xc4] sm:$0xf]
    %v11568 = vld [vmem:[#allocation14 + $0xc8] sm:$0xf]
    %v11569 = vld [vmem:[#allocation14 + $0xcc] sm:$0xf]
    %v11570 = vld [vmem:[#allocation14 + $0xd0] sm:$0xf]
    %v11571 = vld [vmem:[#allocation14 + $0xd4] sm:$0xf]
    %v11572 = vld [vmem:[#allocation14 + $0xd8] sm:$0xf]
    %v11573 = vld [vmem:[#allocation14 + $0xdc] sm:$0xf]
    %v11574 = vld [vmem:[#allocation14 + $0xe0] sm:$0xf]
    %v11575 = vld [vmem:[#allocation14 + $0xe4] sm:$0xf]
    %v11576 = vld [vmem:[#allocation14 + $0xe8] sm:$0xf]
    %v11577 = vld [vmem:[#allocation14 + $0xec] sm:$0xf]
    %v11578 = vld [vmem:[#allocation14 + $0xf0] sm:$0xf]
    %v11579 = vld [vmem:[#allocation14 + $0xf4] sm:$0xf]
    %v11580 = vld [vmem:[#allocation14 + $0xf8] sm:$0xf]
    %v11581 = vld [vmem:[#allocation14 + $0xfc] sm:$0xf]
    %v11582 = vld [vmem:[#allocation14 + $0x100] sm:$0xf]
    %v11583 = vld [vmem:[#allocation14 + $0x104] sm:$0xf]
    %v11584 = vld [vmem:[#allocation14 + $0x108] sm:$0xf]
    %v11585 = vld [vmem:[#allocation14 + $0x10c] sm:$0xf]
    %v11586 = vld [vmem:[#allocation14 + $0x110] sm:$0xf]
    %v11587 = vld [vmem:[#allocation14 + $0x114] sm:$0xf]
    %v11588 = vld [vmem:[#allocation14 + $0x118] sm:$0xf]
    %v11589 = vld [vmem:[#allocation14 + $0x11c] sm:$0xf]
    %v11590 = vld [vmem:[#allocation14 + $0x120] sm:$0xf]
    %v11591 = vld [vmem:[#allocation14 + $0x124] sm:$0xf]
    %v11592 = vld [vmem:[#allocation14 + $0x128] sm:$0xf]
    %v11593 = vld [vmem:[#allocation14 + $0x12c] sm:$0xf]
    %v11594 = vld [vmem:[#allocation14 + $0x130] sm:$0xf]
    %v11595 = vld [vmem:[#allocation14 + $0x134] sm:$0xf]
    %v11596 = vld [vmem:[#allocation14 + $0x138] sm:$0xf]
    %v11597 = vld [vmem:[#allocation14 + $0x13c] sm:$0xf]
    %v11598 = vld [vmem:[#allocation14 + $0x140] sm:$0xf]
    %v11599 = vld [vmem:[#allocation14 + $0x144] sm:$0xf]
    %v11600 = vld [vmem:[#allocation14 + $0x148] sm:$0xf]
    %v11601 = vld [vmem:[#allocation14 + $0x14c] sm:$0xf]
    %v11602 = vld [vmem:[#allocation14 + $0x150] sm:$0xf]
    %v11603 = vld [vmem:[#allocation14 + $0x154] sm:$0xf]
    %v11604 = vld [vmem:[#allocation14 + $0x158] sm:$0xf]
    %v11605 = vld [vmem:[#allocation14 + $0x15c] sm:$0xf]
    %v11606 = vld [vmem:[#allocation14 + $0x160] sm:$0xf]
    %v11607 = vld [vmem:[#allocation14 + $0x164] sm:$0xf]
    %v11608 = vld [vmem:[#allocation14 + $0x168] sm:$0xf]
    %v11609 = vld [vmem:[#allocation14 + $0x16c] sm:$0xf]
    %v11610 = vld [vmem:[#allocation14 + $0x170] sm:$0xf]
    %v11611 = vld [vmem:[#allocation14 + $0x174] sm:$0xf]
    %v11612 = vld [vmem:[#allocation14 + $0x178] sm:$0xf]
    %v11613 = vld [vmem:[#allocation14 + $0x17c] sm:$0xf]
    %v11614 = vld [vmem:[#allocation14 + $0x180] sm:$0xf]
    %v11615 = vld [vmem:[#allocation14 + $0x184] sm:$0xf]
    %v11616 = vld [vmem:[#allocation14 + $0x188] sm:$0xf]
    %v11617 = vld [vmem:[#allocation14 + $0x18c] sm:$0xf]
    %v11618 = vld [vmem:[#allocation14 + $0x190] sm:$0xf]
    %v11619 = vld [vmem:[#allocation14 + $0x194] sm:$0xf]
    %v11620 = vld [vmem:[#allocation14 + $0x198] sm:$0xf]
    %v11621 = vld [vmem:[#allocation14 + $0x19c] sm:$0xf]
    %v11622 = vld [vmem:[#allocation14 + $0x1a0] sm:$0xf]
    %v11623 = vld [vmem:[#allocation14 + $0x1a4] sm:$0xf]
    %v11624 = vld [vmem:[#allocation14 + $0x1a8] sm:$0xf]
    %v11625 = vld [vmem:[#allocation14 + $0x1ac] sm:$0xf]
    %v11626 = vld [vmem:[#allocation14 + $0x1b0] sm:$0xf]
    %v11627 = vld [vmem:[#allocation14 + $0x1b4] sm:$0xf]
    %v11628 = vld [vmem:[#allocation14 + $0x1b8] sm:$0xf]
    %v11629 = vld [vmem:[#allocation14 + $0x1bc] sm:$0xf]
    %v11630 = vld [vmem:[#allocation14 + $0x1c0] sm:$0xf]
    %v11631 = vld [vmem:[#allocation14 + $0x1c4] sm:$0xf]
    %v11632 = vld [vmem:[#allocation14 + $0x1c8] sm:$0xf]
    %v11633 = vld [vmem:[#allocation14 + $0x1cc] sm:$0xf]
    %v11634 = vld [vmem:[#allocation14 + $0x1d0] sm:$0xf]
    %v11635 = vld [vmem:[#allocation14 + $0x1d4] sm:$0xf]
    %v11636 = vld [vmem:[#allocation14 + $0x1d8] sm:$0xf]
    %v11637 = vld [vmem:[#allocation14 + $0x1dc] sm:$0xf]
    %v11638 = vld [vmem:[#allocation14 + $0x1e0] sm:$0xf]
    %v11639 = vld [vmem:[#allocation14 + $0x1e4] sm:$0xf]
    %v11640 = vld [vmem:[#allocation14 + $0x1e8] sm:$0xf]
    %v11641 = vld [vmem:[#allocation14 + $0x1ec] sm:$0xf]
    %v11642 = vld [vmem:[#allocation14 + $0x1f0] sm:$0xf]
    %v11643 = vld [vmem:[#allocation14 + $0x1f4] sm:$0xf]
    %v11644 = vld [vmem:[#allocation14 + $0x1f8] sm:$0xf]
    %v11645 = vld [vmem:[#allocation14 + $0x1fc] sm:$0xf]
    %v11646 = vld [vmem:[#allocation16] sm:$0x1]
    %v11648 = vlaneseq
    %v11649 = vshrl.u32 %v11648, 7
    %v11650 = vsub.s32 0, %v11649
    %v11651 = vrot.slane %v11646, %v11650
    %v11781 = vunpack.c.l.b16 %v11518
    %v11782 = vunpack.c.l.b16 %v11519
    %v11783 = vunpack.c.l.b16 %v11520
    %v11784 = vunpack.c.l.b16 %v11521
    %v11785 = vunpack.c.l.b16 %v11522
    %v11786 = vunpack.c.l.b16 %v11523
    %v11787 = vunpack.c.l.b16 %v11524
    %v11788 = vunpack.c.l.b16 %v11525
    %v11789 = vunpack.c.l.b16 %v11526
    %v11790 = vunpack.c.l.b16 %v11527
    %v11791 = vunpack.c.l.b16 %v11528
    %v11792 = vunpack.c.l.b16 %v11529
    %v11793 = vunpack.c.l.b16 %v11530
    %v11794 = vunpack.c.l.b16 %v11531
    %v11795 = vunpack.c.l.b16 %v11532
    %v11796 = vunpack.c.l.b16 %v11533
    %v11797 = vunpack.c.l.b16 %v11534
    %v11798 = vunpack.c.l.b16 %v11535
    %v11799 = vunpack.c.l.b16 %v11536
    %v11800 = vunpack.c.l.b16 %v11537
    %v11801 = vunpack.c.l.b16 %v11538
    %v11802 = vunpack.c.l.b16 %v11539
    %v11803 = vunpack.c.l.b16 %v11540
    %v11804 = vunpack.c.l.b16 %v11541
    %v11805 = vunpack.c.l.b16 %v11542
    %v11806 = vunpack.c.l.b16 %v11543
    %v11807 = vunpack.c.l.b16 %v11544
    %v11808 = vunpack.c.l.b16 %v11545
    %v11809 = vunpack.c.l.b16 %v11546
    %v11810 = vunpack.c.l.b16 %v11547
    %v11811 = vunpack.c.l.b16 %v11548
    %v11812 = vunpack.c.l.b16 %v11549
    %v11813 = vunpack.c.l.b16 %v11550
    %v11814 = vunpack.c.l.b16 %v11551
    %v11815 = vunpack.c.l.b16 %v11552
    %v11816 = vunpack.c.l.b16 %v11553
    %v11817 = vunpack.c.l.b16 %v11554
    %v11818 = vunpack.c.l.b16 %v11555
    %v11819 = vunpack.c.l.b16 %v11556
    %v11820 = vunpack.c.l.b16 %v11557
    %v11821 = vunpack.c.l.b16 %v11558
    %v11822 = vunpack.c.l.b16 %v11559
    %v11823 = vunpack.c.l.b16 %v11560
    %v11824 = vunpack.c.l.b16 %v11561
    %v11825 = vunpack.c.l.b16 %v11562
    %v11826 = vunpack.c.l.b16 %v11563
    %v11827 = vunpack.c.l.b16 %v11564
    %v11828 = vunpack.c.l.b16 %v11565
    %v11829 = vunpack.c.l.b16 %v11566
    %v11830 = vunpack.c.l.b16 %v11567
    %v11831 = vunpack.c.l.b16 %v11568
    %v11832 = vunpack.c.l.b16 %v11569
    %v11833 = vunpack.c.l.b16 %v11570
    %v11834 = vunpack.c.l.b16 %v11571
    %v11835 = vunpack.c.l.b16 %v11572
    %v11836 = vunpack.c.l.b16 %v11573
    %v11837 = vunpack.c.l.b16 %v11574
    %v11838 = vunpack.c.l.b16 %v11575
    %v11839 = vunpack.c.l.b16 %v11576
    %v11840 = vunpack.c.l.b16 %v11577
    %v11841 = vunpack.c.l.b16 %v11578
    %v11842 = vunpack.c.l.b16 %v11579
    %v11843 = vunpack.c.l.b16 %v11580
    %v11844 = vunpack.c.l.b16 %v11581
    %v11845 = vunpack.c.l.b16 %v11582
    %v11846 = vunpack.c.l.b16 %v11583
    %v11847 = vunpack.c.l.b16 %v11584
    %v11848 = vunpack.c.l.b16 %v11585
    %v11849 = vunpack.c.l.b16 %v11586
    %v11850 = vunpack.c.l.b16 %v11587
    %v11851 = vunpack.c.l.b16 %v11588
    %v11852 = vunpack.c.l.b16 %v11589
    %v11853 = vunpack.c.l.b16 %v11590
    %v11854 = vunpack.c.l.b16 %v11591
    %v11855 = vunpack.c.l.b16 %v11592
    %v11856 = vunpack.c.l.b16 %v11593
    %v11857 = vunpack.c.l.b16 %v11594
    %v11858 = vunpack.c.l.b16 %v11595
    %v11859 = vunpack.c.l.b16 %v11596
    %v11860 = vunpack.c.l.b16 %v11597
    %v11861 = vunpack.c.l.b16 %v11598
    %v11862 = vunpack.c.l.b16 %v11599
    %v11863 = vunpack.c.l.b16 %v11600
    %v11864 = vunpack.c.l.b16 %v11601
    %v11865 = vunpack.c.l.b16 %v11602
    %v11866 = vunpack.c.l.b16 %v11603
    %v11867 = vunpack.c.l.b16 %v11604
    %v11868 = vunpack.c.l.b16 %v11605
    %v11869 = vunpack.c.l.b16 %v11606
    %v11870 = vunpack.c.l.b16 %v11607
    %v11871 = vunpack.c.l.b16 %v11608
    %v11872 = vunpack.c.l.b16 %v11609
    %v11873 = vunpack.c.l.b16 %v11610
    %v11874 = vunpack.c.l.b16 %v11611
    %v11875 = vunpack.c.l.b16 %v11612
    %v11876 = vunpack.c.l.b16 %v11613
    %v11877 = vunpack.c.l.b16 %v11614
    %v11878 = vunpack.c.l.b16 %v11615
    %v11879 = vunpack.c.l.b16 %v11616
    %v11880 = vunpack.c.l.b16 %v11617
    %v11881 = vunpack.c.l.b16 %v11618
    %v11882 = vunpack.c.l.b16 %v11619
    %v11883 = vunpack.c.l.b16 %v11620
    %v11884 = vunpack.c.l.b16 %v11621
    %v11885 = vunpack.c.l.b16 %v11622
    %v11886 = vunpack.c.l.b16 %v11623
    %v11887 = vunpack.c.l.b16 %v11624
    %v11888 = vunpack.c.l.b16 %v11625
    %v11889 = vunpack.c.l.b16 %v11626
    %v11890 = vunpack.c.l.b16 %v11627
    %v11891 = vunpack.c.l.b16 %v11628
    %v11892 = vunpack.c.l.b16 %v11629
    %v11893 = vunpack.c.l.b16 %v11630
    %v11894 = vunpack.c.l.b16 %v11631
    %v11895 = vunpack.c.l.b16 %v11632
    %v11896 = vunpack.c.l.b16 %v11633
    %v11897 = vunpack.c.l.b16 %v11634
    %v11898 = vunpack.c.l.b16 %v11635
    %v11899 = vunpack.c.l.b16 %v11636
    %v11900 = vunpack.c.l.b16 %v11637
    %v11901 = vunpack.c.l.b16 %v11638
    %v11902 = vunpack.c.l.b16 %v11639
    %v11903 = vunpack.c.l.b16 %v11640
    %v11904 = vunpack.c.l.b16 %v11641
    %v11905 = vunpack.c.l.b16 %v11642
    %v11906 = vunpack.c.l.b16 %v11643
    %v11907 = vunpack.c.l.b16 %v11644
    %v11908 = vunpack.c.l.b16 %v11645
    %v11909 = vpack.c.b16 %v11782, %v11781
    %v11910 = vpack.c.b16 %v11784, %v11783
    %v11911 = vpack.c.b16 %v11786, %v11785
    %v11912 = vpack.c.b16 %v11788, %v11787
    %v11913 = vpack.c.b16 %v11790, %v11789
    %v11914 = vpack.c.b16 %v11792, %v11791
    %v11915 = vpack.c.b16 %v11794, %v11793
    %v11916 = vpack.c.b16 %v11796, %v11795
    %v11917 = vpack.c.b16 %v11798, %v11797
    %v11918 = vpack.c.b16 %v11800, %v11799
    %v11919 = vpack.c.b16 %v11802, %v11801
    %v11920 = vpack.c.b16 %v11804, %v11803
    %v11921 = vpack.c.b16 %v11806, %v11805
    %v11922 = vpack.c.b16 %v11808, %v11807
    %v11923 = vpack.c.b16 %v11810, %v11809
    %v11924 = vpack.c.b16 %v11812, %v11811
    %v11925 = vpack.c.b16 %v11814, %v11813
    %v11926 = vpack.c.b16 %v11816, %v11815
    %v11927 = vpack.c.b16 %v11818, %v11817
    %v11928 = vpack.c.b16 %v11820, %v11819
    %v11929 = vpack.c.b16 %v11822, %v11821
    %v11930 = vpack.c.b16 %v11824, %v11823
    %v11931 = vpack.c.b16 %v11826, %v11825
    %v11932 = vpack.c.b16 %v11828, %v11827
    %v11933 = vpack.c.b16 %v11830, %v11829
    %v11934 = vpack.c.b16 %v11832, %v11831
    %v11935 = vpack.c.b16 %v11834, %v11833
    %v11936 = vpack.c.b16 %v11836, %v11835
    %v11937 = vpack.c.b16 %v11838, %v11837
    %v11938 = vpack.c.b16 %v11840, %v11839
    %v11939 = vpack.c.b16 %v11842, %v11841
    %v11940 = vpack.c.b16 %v11844, %v11843
    %v11941 = vpack.c.b16 %v11846, %v11845
    %v11942 = vpack.c.b16 %v11848, %v11847
    %v11943 = vpack.c.b16 %v11850, %v11849
    %v11944 = vpack.c.b16 %v11852, %v11851
    %v11945 = vpack.c.b16 %v11854, %v11853
    %v11946 = vpack.c.b16 %v11856, %v11855
    %v11947 = vpack.c.b16 %v11858, %v11857
    %v11948 = vpack.c.b16 %v11860, %v11859
    %v11949 = vpack.c.b16 %v11862, %v11861
    %v11950 = vpack.c.b16 %v11864, %v11863
    %v11951 = vpack.c.b16 %v11866, %v11865
    %v11952 = vpack.c.b16 %v11868, %v11867
    %v11953 = vpack.c.b16 %v11870, %v11869
    %v11954 = vpack.c.b16 %v11872, %v11871
    %v11955 = vpack.c.b16 %v11874, %v11873
    %v11956 = vpack.c.b16 %v11876, %v11875
    %v11957 = vpack.c.b16 %v11878, %v11877
    %v11958 = vpack.c.b16 %v11880, %v11879
    %v11959 = vpack.c.b16 %v11882, %v11881
    %v11960 = vpack.c.b16 %v11884, %v11883
    %v11961 = vpack.c.b16 %v11886, %v11885
    %v11962 = vpack.c.b16 %v11888, %v11887
    %v11963 = vpack.c.b16 %v11890, %v11889
    %v11964 = vpack.c.b16 %v11892, %v11891
    %v11965 = vpack.c.b16 %v11894, %v11893
    %v11966 = vpack.c.b16 %v11896, %v11895
    %v11967 = vpack.c.b16 %v11898, %v11897
    %v11968 = vpack.c.b16 %v11900, %v11899
    %v11969 = vpack.c.b16 %v11902, %v11901
    %v11970 = vpack.c.b16 %v11904, %v11903
    %v11971 = vpack.c.b16 %v11906, %v11905
    %v11972 = vpack.c.b16 %v11908, %v11907
    %12037 = vmatprep.subr.bf16.mxu0 0
    %12038 = vmatpush1.bf16.msra.mxu0 %v11916
    %12039 = vmatprep.subr.bf16.mxu0 0
    %12040 = vmatpush1.bf16.msra.mxu0 %v11915
    %12041 = vmatprep.subr.bf16.mxu0 0
    %12042 = vmatpush1.bf16.msra.mxu0 %v11914
    %12043 = vmatprep.subr.bf16.mxu0 0
    %12044 = vmatpush1.bf16.msra.mxu0 %v11913
    %12045 = vmatprep.subr.bf16.mxu0 0
    %12046 = vmatpush1.bf16.msra.mxu0 %v11912
    %12047 = vmatprep.subr.bf16.mxu0 0
    %12048 = vmatpush1.bf16.msra.mxu0 %v11911
    %12049 = vmatprep.subr.bf16.mxu0 0
    %12050 = vmatpush1.bf16.msra.mxu0 %v11910
    %12051 = vmatprep.subr.bf16.mxu0 0
    %12052 = vmatpush1.bf16.msra.mxu0 %v11909
    %12053 = vmatprep.subr.bf16.mxu0 0
    %12054 = vmatpush2.bf16.msra.mxu0 %v11924
    %12055 = vmatprep.subr.bf16.mxu0 0
    %12056 = vmatpush2.bf16.msra.mxu0 %v11923
    %12057 = vmatprep.subr.bf16.mxu0 0
    %12058 = vmatpush2.bf16.msra.mxu0 %v11922
    %12059 = vmatprep.subr.bf16.mxu0 0
    %12060 = vmatpush2.bf16.msra.mxu0 %v11921
    %12061 = vmatprep.subr.bf16.mxu0 0
    %12062 = vmatpush2.bf16.msra.mxu0 %v11920
    %12063 = vmatprep.subr.bf16.mxu0 0
    %12064 = vmatpush2.bf16.msra.mxu0 %v11919
    %12065 = vmatprep.subr.bf16.mxu0 0
    %12066 = vmatpush2.bf16.msra.mxu0 %v11918
    %12067 = vmatprep.subr.bf16.mxu0 0
    %12068 = vmatpush2.bf16.msra.mxu0 %v11917
    %12069 = vmatprep.mubr.bf16.mxu0 %v11511
    %12070 = vmatmul.mubr.bf16.gmra.mxu0 %v11510
    %v12071 = vpop.f32.mrf.mxu0
    %v12072 = vadd.f32 %v11651, %v12071
    %v12073 = vpop.f32.mrf.mxu0
    %v12074 = vpop.f32.mrf.mxu0
    %v12075 = vpop.f32.mrf.mxu0
    %12076 = vdwg.mxu0
    %12077 = vmatprep.subr.bf16.mxu0 0
    %12078 = vmatpush1.bf16.msra.mxu0 %v11932
    %12079 = vmatprep.subr.bf16.mxu0 0
    %12080 = vmatpush1.bf16.msra.mxu0 %v11931
    %12081 = vmatprep.subr.bf16.mxu0 0
    %12082 = vmatpush1.bf16.msra.mxu0 %v11930
    %12083 = vmatprep.subr.bf16.mxu0 0
    %12084 = vmatpush1.bf16.msra.mxu0 %v11929
    %12085 = vmatprep.subr.bf16.mxu0 0
    %12086 = vmatpush1.bf16.msra.mxu0 %v11928
    %12087 = vmatprep.subr.bf16.mxu0 0
    %12088 = vmatpush1.bf16.msra.mxu0 %v11927
    %12089 = vmatprep.subr.bf16.mxu0 0
    %12090 = vmatpush1.bf16.msra.mxu0 %v11926
    %12091 = vmatprep.subr.bf16.mxu0 0
    %12092 = vmatpush1.bf16.msra.mxu0 %v11925
    %12093 = vmatprep.subr.bf16.mxu0 0
    %12094 = vmatpush2.bf16.msra.mxu0 %v11940
    %12095 = vmatprep.subr.bf16.mxu0 0
    %12096 = vmatpush2.bf16.msra.mxu0 %v11939
    %12097 = vmatprep.subr.bf16.mxu0 0
    %12098 = vmatpush2.bf16.msra.mxu0 %v11938
    %12099 = vmatprep.subr.bf16.mxu0 0
    %12100 = vmatpush2.bf16.msra.mxu0 %v11937
    %12101 = vmatprep.subr.bf16.mxu0 0
    %12102 = vmatpush2.bf16.msra.mxu0 %v11936
    %12103 = vmatprep.subr.bf16.mxu0 0
    %12104 = vmatpush2.bf16.msra.mxu0 %v11935
    %12105 = vmatprep.subr.bf16.mxu0 0
    %12106 = vmatpush2.bf16.msra.mxu0 %v11934
    %12107 = vmatprep.subr.bf16.mxu0 0
    %12108 = vmatpush2.bf16.msra.mxu0 %v11933
    %12109 = vmatprep.mubr.bf16.mxu0 %v11513
    %12110 = vmatmul.mubr.bf16.gmra.mxu0 %v11512
    %v12111 = vpop.f32.mrf.mxu0
    %v12112 = vadd.f32 %v12072, %v12111
    %v12113 = vpop.f32.mrf.mxu0
    %v12114 = vpop.f32.mrf.mxu0
    %v12115 = vpop.f32.mrf.mxu0
    %12116 = vdwg.mxu0
    %12117 = vmatprep.subr.bf16.mxu0 0
    %12118 = vmatpush1.bf16.msra.mxu0 %v11948
    %12119 = vmatprep.subr.bf16.mxu0 0
    %12120 = vmatpush1.bf16.msra.mxu0 %v11947
    %12121 = vmatprep.subr.bf16.mxu0 0
    %12122 = vmatpush1.bf16.msra.mxu0 %v11946
    %12123 = vmatprep.subr.bf16.mxu0 0
    %12124 = vmatpush1.bf16.msra.mxu0 %v11945
    %12125 = vmatprep.subr.bf16.mxu0 0
    %12126 = vmatpush1.bf16.msra.mxu0 %v11944
    %12127 = vmatprep.subr.bf16.mxu0 0
    %12128 = vmatpush1.bf16.msra.mxu0 %v11943
    %12129 = vmatprep.subr.bf16.mxu0 0
    %12130 = vmatpush1.bf16.msra.mxu0 %v11942
    %12131 = vmatprep.subr.bf16.mxu0 0
    %12132 = vmatpush1.bf16.msra.mxu0 %v11941
    %12133 = vmatprep.subr.bf16.mxu0 0
    %12134 = vmatpush2.bf16.msra.mxu0 %v11956
    %12135 = vmatprep.subr.bf16.mxu0 0
    %12136 = vmatpush2.bf16.msra.mxu0 %v11955
    %12137 = vmatprep.subr.bf16.mxu0 0
    %12138 = vmatpush2.bf16.msra.mxu0 %v11954
    %12139 = vmatprep.subr.bf16.mxu0 0
    %12140 = vmatpush2.bf16.msra.mxu0 %v11953
    %12141 = vmatprep.subr.bf16.mxu0 0
    %12142 = vmatpush2.bf16.msra.mxu0 %v11952
    %12143 = vmatprep.subr.bf16.mxu0 0
    %12144 = vmatpush2.bf16.msra.mxu0 %v11951
    %12145 = vmatprep.subr.bf16.mxu0 0
    %12146 = vmatpush2.bf16.msra.mxu0 %v11950
    %12147 = vmatprep.subr.bf16.mxu0 0
    %12148 = vmatpush2.bf16.msra.mxu0 %v11949
    %12149 = vmatprep.mubr.bf16.mxu0 %v11515
    %12150 = vmatmul.mubr.bf16.gmra.mxu0 %v11514
    %v12151 = vpop.f32.mrf.mxu0
    %v12152 = vadd.f32 %v12112, %v12151
    %v12153 = vpop.f32.mrf.mxu0
    %v12154 = vpop.f32.mrf.mxu0
    %v12155 = vpop.f32.mrf.mxu0
    %12156 = vdwg.mxu0
    %12157 = vmatprep.subr.bf16.mxu0 0
    %12158 = vmatpush1.bf16.msra.mxu0 %v11964
    %12159 = vmatprep.subr.bf16.mxu0 0
    %12160 = vmatpush1.bf16.msra.mxu0 %v11963
    %12161 = vmatprep.subr.bf16.mxu0 0
    %12162 = vmatpush1.bf16.msra.mxu0 %v11962
    %12163 = vmatprep.subr.bf16.mxu0 0
    %12164 = vmatpush1.bf16.msra.mxu0 %v11961
    %12165 = vmatprep.subr.bf16.mxu0 0
    %12166 = vmatpush1.bf16.msra.mxu0 %v11960
    %12167 = vmatprep.subr.bf16.mxu0 0
    %12168 = vmatpush1.bf16.msra.mxu0 %v11959
    %12169 = vmatprep.subr.bf16.mxu0 0
    %12170 = vmatpush1.bf16.msra.mxu0 %v11958
    %12171 = vmatprep.subr.bf16.mxu0 0
    %12172 = vmatpush1.bf16.msra.mxu0 %v11957
    %12173 = vmatprep.subr.bf16.mxu0 0
    %12174 = vmatpush2.bf16.msra.mxu0 %v11972
    %12175 = vmatprep.subr.bf16.mxu0 0
    %12176 = vmatpush2.bf16.msra.mxu0 %v11971
    %12177 = vmatprep.subr.bf16.mxu0 0
    %12178 = vmatpush2.bf16.msra.mxu0 %v11970
    %12179 = vmatprep.subr.bf16.mxu0 0
    %12180 = vmatpush2.bf16.msra.mxu0 %v11969
    %12181 = vmatprep.subr.bf16.mxu0 0
    %12182 = vmatpush2.bf16.msra.mxu0 %v11968
    %12183 = vmatprep.subr.bf16.mxu0 0
    %12184 = vmatpush2.bf16.msra.mxu0 %v11967
    %12185 = vmatprep.subr.bf16.mxu0 0
    %12186 = vmatpush2.bf16.msra.mxu0 %v11966
    %12187 = vmatprep.subr.bf16.mxu0 0
    %12188 = vmatpush2.bf16.msra.mxu0 %v11965
    %12189 = vmatprep.mubr.bf16.mxu0 %v11517
    %12190 = vmatmul.mubr.bf16.gmra.mxu0 %v11516
    %v12191 = vpop.f32.mrf.mxu0
    %v12192 = vadd.f32 %v12152, %v12191
    %v12193 = vpop.f32.mrf.mxu0
    %v12194 = vpop.f32.mrf.mxu0
    %v12195 = vpop.f32.mrf.mxu0
    %12196 = vdwg.mxu0
    %v12197 = vlaneseq
    %v12198 = vand.u32 %v12197, 127
    %vm12199 = vcmp.lt.s32.totalorder %v12198, 2
    %v12200 = vsel %vm12199, %v12192, -1e+30
    %12201 = vmax.xlane.f32.xlu0 %v12200
    %v12202 = vpop.xlane.xlu0 %12201
    %v12203 = vsub.f32 %v12200, %v12202
    %v12204 = vmul.f32 %v12203, 1.442695
    %v12205 = vpow.pop %v12204
    %v12206 = vsel %vm12199, %v12205, 0.0
    %12207 = vadd.xlane.f32.xlu0 %v12206
    %v12208 = vpop.xlane.xlu0 %12207
    %v12209 = vrcp.pop %v12208
    %v12210 = vmul.f32 %v12206, %v12209
    %12211 = vst [vmem:[#allocation17] sm:$0xff] %v12210
    // Predicated region
    $region74: #{tpu_custom_call.1} parent=1 // pred_check
      _
    $region75: #{tpu_custom_call.1} parent=1 // pred_check_branch
      %12213 = sbr.rel (0) target = $region77
    $region76: #{tpu_custom_call.1} parent=1 // pred_region
      %s12215 = ssub.s32 128, 128
      %12216 = vsyncadd [#allocation4], %s12215
      %s12218 = sshll.u32 [#allocation17], 4
      %s12219 = int_to_ptr.vmem [resolvable:$true] %s12218
      %12221 = dma.vmem_to_hbm [thread:$0]  %s12219, 128, %s9, [#allocation4]
    $region77: #{tpu_custom_call.1} parent=1 // pred_fallthru
      _
    // Predicated region
    $region78: #{tpu_custom_call.1} parent=1 // pred_check
      _
    $region79: #{tpu_custom_call.1} parent=1 // pred_check_branch
      %12223 = sbr.rel (0) target = $region81
    $region80: #{tpu_custom_call.1} parent=1 // pred_region
      %12224 = dma.done [#allocation4], 128
    $region81: #{tpu_custom_call.1} parent=1 // pred_fallthru
      _
    %12225 = vsyncpa [#allocation3], 1
    %12226 = vsyncpa [#allocation6], 1
    %12227 = vsyncpa [#allocation9], 1
    %12228 = vsyncpa [#allocation12], 1
    %12229 = vsyncpa [#allocation15], 1
    %12230 = vsyncpa [#allocation4], 1

</llo_original>
